<compile_context>
chip_gen: v7x
topology: tpu7x:2x2x1
jax: 0.10.0
libtpu: 0.0.40
codegen_flags: <defaults>
</compile_context>

<pallas_src>
import functools
import math

import jax
import jax.numpy as jnp
from jax.experimental import pallas as pl
from jax.experimental.pallas import tpu as pltpu

VMEM_LIMIT = 48 * 1024 * 1024  # below physical VMEM on v5e/v6e/v7x
LN_EPS = 1e-5


# ----------------------------------------------------------------------------
# helpers
# ----------------------------------------------------------------------------

def _pick_tile(dim, pref, align):
    """Largest multiple of `align` dividing `dim`, <= pref; else full dim."""
    if dim % align != 0:
        return dim
    t = min(pref, dim)
    t -= t % align
    while t >= align and dim % t != 0:
        t -= align
    return t if t >= align else dim


def _ln_f32(x, gamma, beta):
    mean = jnp.mean(x, axis=-1, keepdims=True)
    var = jnp.mean((x - mean) ** 2, axis=-1, keepdims=True)
    return (x - mean) * jax.lax.rsqrt(var + LN_EPS) * gamma + beta


# ----------------------------------------------------------------------------
# fused projections (pos-add / LayerNorm folded into the matmul kernels)
# ----------------------------------------------------------------------------

def _qkv_proj_kernel(x_ref, pos_ref, g_ref, b_ref,
                     wq_ref, bq_ref, wk_ref, bk_ref, wv_ref, bv_ref,
                     q_ref, k_ref, v_ref, *, use_ln):
    x = x_ref[...].astype(jnp.float32)
    if use_ln:
        x = _ln_f32(x, g_ref[...].astype(jnp.float32),
                    b_ref[...].astype(jnp.float32))
    xp = x + pos_ref[...].astype(jnp.float32)
    q_ref[...] = (jnp.dot(xp, wq_ref[...], preferred_element_type=jnp.float32)
                  + bq_ref[...]).astype(q_ref.dtype)
    k_ref[...] = (jnp.dot(xp, wk_ref[...], preferred_element_type=jnp.float32)
                  + bk_ref[...]).astype(k_ref.dtype)
    v_ref[...] = (jnp.dot(x, wv_ref[...], preferred_element_type=jnp.float32)
                  + bv_ref[...]).astype(v_ref.dtype)


def qkv_proj(x, pos, wq, bq, wk, bk, wv, bv, gamma=None, beta=None):
    """q = (maybe_LN(x)+pos) @ wq ; k = (maybe_LN(x)+pos) @ wk ; v = maybe_LN(x) @ wv."""
    M, D = x.shape
    use_ln = gamma is not None
    if not use_ln:
        gamma = jnp.ones((D,), x.dtype)
        beta = jnp.zeros((D,), x.dtype)
    tm = _pick_tile(M, 256, 8)
    vec = lambda a: a.reshape(1, -1)
    row = pl.BlockSpec((tm, D), lambda i: (i, 0))
    par = pl.BlockSpec((1, D), lambda i: (0, 0))
    wsp = pl.BlockSpec((D, D), lambda i: (0, 0))
    kernel = functools.partial(_qkv_proj_kernel, use_ln=use_ln)
    return pl.pallas_call(
        kernel,
        out_shape=tuple(jax.ShapeDtypeStruct((M, D), x.dtype) for _ in range(3)),
        grid=(M // tm,),
        in_specs=[row, row, par, par, wsp, par, wsp, par, wsp, par],
        out_specs=(row, row, row),
        compiler_params=pltpu.CompilerParams(
            dimension_semantics=("parallel",),
            vmem_limit_bytes=VMEM_LIMIT),
    )(x, pos, vec(gamma), vec(beta), wq, vec(bq), wk, vec(bk), wv, vec(bv))


def _kv_proj_kernel(x_ref, pos_ref, wk_ref, bk_ref, wv_ref, bv_ref,
                    k_ref, v_ref):
    x = x_ref[...].astype(jnp.float32)
    xp = x + pos_ref[...].astype(jnp.float32)
    k_ref[...] = (jnp.dot(xp, wk_ref[...], preferred_element_type=jnp.float32)
                  + bk_ref[...]).astype(k_ref.dtype)
    v_ref[...] = (jnp.dot(x, wv_ref[...], preferred_element_type=jnp.float32)
                  + bv_ref[...]).astype(v_ref.dtype)


def kv_proj(x, pos, wk, bk, wv, bv):
    """k = (x+pos) @ wk ; v = x @ wv (cross-attention memory projections)."""
    M, D = x.shape
    tm = _pick_tile(M, 256, 8)
    row = pl.BlockSpec((tm, D), lambda i: (i, 0))
    par = pl.BlockSpec((1, D), lambda i: (0, 0))
    wsp = pl.BlockSpec((D, D), lambda i: (0, 0))
    return pl.pallas_call(
        _kv_proj_kernel,
        out_shape=tuple(jax.ShapeDtypeStruct((M, D), x.dtype) for _ in range(2)),
        grid=(M // tm,),
        in_specs=[row, row, wsp, par, wsp, par],
        out_specs=(row, row),
        compiler_params=pltpu.CompilerParams(
            dimension_semantics=("parallel",),
            vmem_limit_bytes=VMEM_LIMIT),
    )(x, pos, wk, bk.reshape(1, D), wv, bv.reshape(1, D))


def _posadd_linear_kernel(x_ref, pos_ref, w_ref, b_ref, o_ref):
    xp = x_ref[...].astype(jnp.float32) + pos_ref[...].astype(jnp.float32)
    o_ref[...] = (jnp.dot(xp, w_ref[...], preferred_element_type=jnp.float32)
                  + b_ref[...]).astype(o_ref.dtype)


def posadd_linear(x, pos, w, b):
    """(x + pos) @ w + b  (cross-attention query projection)."""
    M, D = x.shape
    N = w.shape[1]
    tm = _pick_tile(M, 256, 8)
    return pl.pallas_call(
        _posadd_linear_kernel,
        out_shape=jax.ShapeDtypeStruct((M, N), x.dtype),
        grid=(M // tm,),
        in_specs=[pl.BlockSpec((tm, D), lambda i: (i, 0)),
                  pl.BlockSpec((tm, D), lambda i: (i, 0)),
                  pl.BlockSpec((D, N), lambda i: (0, 0)),
                  pl.BlockSpec((1, N), lambda i: (0, 0))],
        out_specs=pl.BlockSpec((tm, N), lambda i: (i, 0)),
        compiler_params=pltpu.CompilerParams(
            dimension_semantics=("parallel",),
            vmem_limit_bytes=VMEM_LIMIT),
    )(x, pos, w, b.reshape(1, N))


# ----------------------------------------------------------------------------
# fused multi-head attention + output projection + residual + LayerNorm
# one grid step == one batch element, all heads processed per step
# ----------------------------------------------------------------------------

def _mha_core(q_ref, k_ref, v_ref, bias_ref, wo_ref, bo_ref, res_ref, nhead):
    L = q_ref.shape[1]
    D = q_ref.shape[2]
    hd = D // nhead
    scale = 1.0 / math.sqrt(hd)

    q = q_ref[0].astype(jnp.float32) * scale        # (L, D)
    k = k_ref[0].astype(jnp.float32)                # (S, D)
    v = v_ref[0].astype(jnp.float32)                # (S, D)
    bias = bias_ref[0].astype(jnp.float32)          # (1, S) additive mask bias
    wo = wo_ref[...].astype(jnp.float32)            # (D, D)

    acc = jnp.zeros((L, D), jnp.float32)
    for h in range(nhead):                          # static unroll over heads
        lo, hi = h * hd, (h + 1) * hd
        # scores: contract last dims (no explicit k.T / XLU transpose)
        s = jax.lax.dot_general(q[:, lo:hi], k[:, lo:hi],
                                (((1,), (1,)), ((), ())),
                                preferred_element_type=jnp.float32) + bias
        m = jnp.max(s, axis=-1, keepdims=True)
        p = jnp.exp(s - m)
        denom = jnp.sum(p, axis=-1, keepdims=True)
        p = p * pl.reciprocal(denom, approx=True)   # EUP slot
        oh = jnp.dot(p, v[:, lo:hi], preferred_element_type=jnp.float32)
        # fold the head-concat into the output projection (lane-dense acc)
        acc = acc + jnp.dot(oh, wo[lo:hi, :], preferred_element_type=jnp.float32)

    return res_ref[0].astype(jnp.float32) + acc + bo_ref[...].astype(jnp.float32)


def _mha_ln_kernel(q_ref, k_ref, v_ref, bias_ref, wo_ref, bo_ref, res_ref,
                   g_ref, beta_ref, ln_ref, *, nhead):
    s_out = _mha_core(q_ref, k_ref, v_ref, bias_ref, wo_ref, bo_ref, res_ref, nhead)
    ln_ref[0] = _ln_f32(s_out, g_ref[...].astype(jnp.float32),
                        beta_ref[...].astype(jnp.float32)).astype(ln_ref.dtype)


def _mha_sum_ln_kernel(q_ref, k_ref, v_ref, bias_ref, wo_ref, bo_ref, res_ref,
                       g_ref, beta_ref, sum_ref, ln_ref, *, nhead):
    s_out = _mha_core(q_ref, k_ref, v_ref, bias_ref, wo_ref, bo_ref, res_ref, nhead)
    sum_ref[0] = s_out.astype(sum_ref.dtype)
    ln_ref[0] = _ln_f32(s_out, g_ref[...].astype(jnp.float32),
                        beta_ref[...].astype(jnp.float32)).astype(ln_ref.dtype)


def mha_attend(q, k, v, wo, bo, bias, res, gamma, beta, nhead, need_sum=False):
    """q: (B,L,D) projected queries; k/v: (B,S,D); bias: (B,1,S); res: (B,L,D).
    Returns (residual_sum or None, LayerNorm(residual_sum + attn_out))."""
    B, L, D = q.shape
    S = k.shape[1]
    kernel = functools.partial(
        _mha_sum_ln_kernel if need_sum else _mha_ln_kernel, nhead=nhead)

    slab = jax.ShapeDtypeStruct((B, L, D), q.dtype)
    out_shape = (slab, slab) if need_sum else slab
    blk = lambda T: pl.BlockSpec((1, T, D), lambda b: (b, 0, 0))
    par = pl.BlockSpec((1, D), lambda b: (0, 0))
    out_spec = (blk(L), blk(L)) if need_sum else blk(L)

    outs = pl.pallas_call(
        kernel,
        out_shape=out_shape,
        grid=(B,),
        in_specs=[
            blk(L), blk(S), blk(S),
            pl.BlockSpec((1, 1, S), lambda b: (b, 0, 0)),   # no head-repeat of bias
            pl.BlockSpec((D, D), lambda b: (0, 0)),
            par,
            blk(L),
            par, par,
        ],
        out_specs=out_spec,
        compiler_params=pltpu.CompilerParams(
            dimension_semantics=("parallel",),
            vmem_limit_bytes=VMEM_LIMIT),
    )(q, k, v, bias, wo, bo.reshape(1, D), res,
      gamma.reshape(1, D), beta.reshape(1, D))

    if need_sum:
        return outs
    return None, outs


# ----------------------------------------------------------------------------
# fused FFN (linear1 -> relu -> linear2) + residual + LayerNorm
# grid = (M tiles, F tiles); F is the reduction axis of the 2nd matmul
# ----------------------------------------------------------------------------

def _ffn_fused_kernel(x_ref, w1_ref, b1_ref, w2_ref, b2_ref, res_ref,
                      g_ref, beta_ref, o_ref, acc_ref):
    j = pl.program_id(1)

    @pl.when(j == 0)
    def _():
        acc_ref[...] = jnp.zeros_like(acc_ref)

    h = jnp.dot(x_ref[...], w1_ref[...], preferred_element_type=jnp.float32)
    h = jnp.maximum(h + b1_ref[...], 0.0)
    acc_ref[...] += jnp.dot(h, w2_ref[...], preferred_element_type=jnp.float32)

    @pl.when(j == pl.num_programs(1) - 1)
    def _():
        s = res_ref[...].astype(jnp.float32) + acc_ref[...] + b2_ref[...]
        o_ref[...] = _ln_f32(s, g_ref[...].astype(jnp.float32),
                             beta_ref[...].astype(jnp.float32)).astype(o_ref.dtype)


def ffn_add_ln(x, w1, b1, w2, b2, res, gamma, beta):
    M, D = x.shape
    F = w1.shape[1]
    tm = _pick_tile(M, 256, 8)
    tf = _pick_tile(F, 512, 128)
    grid = (M // tm, F // tf)
    return pl.pallas_call(
        _ffn_fused_kernel,
        out_shape=jax.ShapeDtypeStruct((M, D), x.dtype),
        grid=grid,
        in_specs=[
            pl.BlockSpec((tm, D), lambda i, j: (i, 0)),
            pl.BlockSpec((D, tf), lambda i, j: (0, j)),
            pl.BlockSpec((1, tf), lambda i, j: (0, j)),
            pl.BlockSpec((tf, D), lambda i, j: (j, 0)),
            pl.BlockSpec((1, D), lambda i, j: (0, 0)),
            pl.BlockSpec((tm, D), lambda i, j: (i, 0)),
            pl.BlockSpec((1, D), lambda i, j: (0, 0)),
            pl.BlockSpec((1, D), lambda i, j: (0, 0)),
        ],
        out_specs=pl.BlockSpec((tm, D), lambda i, j: (i, 0)),
        scratch_shapes=[pltpu.VMEM((tm, D), jnp.float32)],
        compiler_params=pltpu.CompilerParams(
            dimension_semantics=("parallel", "arbitrary"),
            vmem_limit_bytes=VMEM_LIMIT),
    )(x, w1, b1.reshape(1, F), w2, b2.reshape(1, D), res,
      gamma.reshape(1, D), beta.reshape(1, D))


# ----------------------------------------------------------------------------
# encoder / decoder layers (layout: (B, T, D))
# ----------------------------------------------------------------------------

def encoder_layer(x, pos, key_bias, p, nhead):
    B, S, D = x.shape
    sa = p["sa"]
    # norm1 + (+pos) + q/k/v projections in one fused kernel
    q, k, v = qkv_proj(x.reshape(B * S, D), pos.reshape(B * S, D),
                       sa["wq"], sa["bq"], sa["wk"], sa["bk"], sa["wv"], sa["bv"],
                       gamma=p["ln1_g"], beta=p["ln1_b"])
    # attention + out-proj + residual(x) + norm2; both x+attn and norm2(x+attn)
    x_new, x2b = mha_attend(q.reshape(B, S, D), k.reshape(B, S, D),
                            v.reshape(B, S, D), sa["wo"], sa["bo"], key_bias,
                            res=x, gamma=p["ln2_g"], beta=p["ln2_b"],
                            nhead=nhead, need_sum=True)
    x_out = ffn_add_ln(x2b.reshape(B * S, D), p["w1"], p["b1"], p["w2"], p["b2"],
                       res=x_new.reshape(B * S, D),
                       gamma=p["ln3_g"], beta=p["ln3_b"]).reshape(B, S, D)
    return x_out


def decoder_layer(t, memory, pos, query_pos, mem_bias, self_bias, p, nhead):
    B, L, D = t.shape
    S = memory.shape[1]
    sa, ca = p["sa"], p["ca"]

    # self-attention: (+query_pos) + q/k/v projections fused (no pre-norm)
    q, k, v = qkv_proj(t.reshape(B * L, D), query_pos.reshape(B * L, D),
                       sa["wq"], sa["bq"], sa["wk"], sa["bk"], sa["wv"], sa["bv"])
    _, t1 = mha_attend(q.reshape(B, L, D), k.reshape(B, L, D), v.reshape(B, L, D),
                       sa["wo"], sa["bo"], self_bias,
                       res=t, gamma=p["ln1_g"], beta=p["ln1_b"], nhead=nhead)

    # cross-attention
    qc = posadd_linear(t1.reshape(B * L, D), query_pos.reshape(B * L, D),
                       ca["wq"], ca["bq"]).reshape(B, L, D)
    kc, vc = kv_proj(memory.reshape(B * S, D), pos.reshape(B * S, D),
                     ca["wk"], ca["bk"], ca["wv"], ca["bv"])
    _, t2 = mha_attend(qc, kc.reshape(B, S, D), vc.reshape(B, S, D),
                       ca["wo"], ca["bo"], mem_bias,
                       res=t1, gamma=p["ln2_g"], beta=p["ln2_b"], nhead=nhead)

    t3 = ffn_add_ln(t2.reshape(B * L, D), p["w1"], p["b1"], p["w2"], p["b2"],
                    res=t2.reshape(B * L, D),
                    gamma=p["ln3_g"], beta=p["ln3_b"]).reshape(B, L, D)
    return t3


def transformer_forward(params, x, mask, query_embed, pos_embed, nhead):
    """x: (bs,c,h,w) NCHW; mask: (bs,h,w) bool (True = padded);
    query_embed: (nq, d); pos_embed: (bs,c,h,w).
    Returns (hs, memory_img) exactly like PyTorch Transformer.forward."""
    bs, c, h, w = x.shape
    nq = query_embed.shape[0]

    src = jnp.transpose(x.reshape(bs, c, h * w), (0, 2, 1))        # (B, HW, C)
    pos = jnp.transpose(pos_embed.reshape(bs, c, h * w), (0, 2, 1))
    query = jnp.broadcast_to(query_embed[None, :, :], (bs, nq, c)).astype(x.dtype)
    mask_flat = mask.reshape(bs, h * w)
    mem_bias = jnp.where(mask_flat[:, None, :], -1e30, 0.0).astype(jnp.float32)
    self_bias = jnp.zeros((bs, 1, nq), jnp.float32)
    target = jnp.zeros_like(query)

    memory = src
    for lp in params["enc"]:
        memory = encoder_layer(memory, pos, mem_bias, lp, nhead)

    out = target
    for lp in params["dec"]:
        out = decoder_layer(out, memory, pos, query, mem_bias, self_bias, lp, nhead)

    hs = out[None]                                                 # (1, bs, nq, d)
    mem_img = jnp.transpose(memory, (0, 2, 1)).reshape(bs, c, h, w)
    return hs, mem_img


# ----------------------------------------------------------------------------
# deterministic parameter init
# ----------------------------------------------------------------------------

def init_params(key, d_model, dim_ff, n_enc, n_dec):
    keys = iter(jax.random.split(key, 4096))

    def w(shape):
        return jax.random.normal(next(keys), shape, jnp.float32) * 0.02

    def mha():
        return dict(
            wq=w((d_model, d_model)), bq=jnp.zeros((d_model,), jnp.float32),
            wk=w((d_model, d_model)), bk=jnp.zeros((d_model,), jnp.float32),
            wv=w((d_model, d_model)), bv=jnp.zeros((d_model,), jnp.float32),
            wo=w((d_model, d_model)), bo=jnp.zeros((d_model,), jnp.float32),
        )

    def common():
        return dict(
            w1=w((d_model, dim_ff)), b1=jnp.zeros((dim_ff,), jnp.float32),
            w2=w((dim_ff, d_model)), b2=jnp.zeros((d_model,), jnp.float32),
            ln1_g=jnp.ones((d_model,), jnp.float32), ln1_b=jnp.zeros((d_model,), jnp.float32),
            ln2_g=jnp.ones((d_model,), jnp.float32), ln2_b=jnp.zeros((d_model,), jnp.float32),
            ln3_g=jnp.ones((d_model,), jnp.float32), ln3_b=jnp.zeros((d_model,), jnp.float32),
        )

    enc = [dict(sa=mha(), **common()) for _ in range(n_enc)]
    dec = [dict(sa=mha(), ca=mha(), **common()) for _ in range(n_dec)]
    return dict(enc=enc, dec=dec)


# ----------------------------------------------------------------------------
# main
# ----------------------------------------------------------------------------

if __name__ == "__main__":
    # module-default widths (lane-dense: d_model / dim_ff multiples of 128),
    # small spatial / query / layer counts for a quick check
    bs, d_model, h, w = 2, 128, 4, 4
    nhead = 2
    dim_ff = 128
    num_queries = 8
    n_enc, n_dec = 2, 2

    root = jax.random.PRNGKey(0)
    k_p, k_x, k_pos, k_q = jax.random.split(root, 4)

    params = init_params(k_p, d_model, dim_ff, n_enc, n_dec)

    x = jax.random.normal(k_x, (bs, d_model, h, w), jnp.float32)
    pos_embed = jax.random.normal(k_pos, (bs, d_model, h, w), jnp.float32)
    query_embed = jax.random.normal(k_q, (num_queries, d_model), jnp.float32)
    # key-padding mask: True = padded; pad the last column of batch 1 only
    mask = jnp.zeros((bs, h, w), jnp.bool_).at[1, :, w - 1].set(True)

    fwd = jax.jit(functools.partial(transformer_forward, nhead=nhead))
    hs, mem_img = fwd(params, x, mask, query_embed, pos_embed)
    jax.block_until_ready((hs, mem_img))

    assert hs.shape == (1, bs, num_queries, d_model)
    assert mem_img.shape == (bs, d_model, h, w)
    assert bool(jnp.all(jnp.isfinite(hs))) and bool(jnp.all(jnp.isfinite(mem_img)))

    # TODO(synk): dropout (p=0.2) is identity here (eval mode); bf16 MXU
    # operands (f32 accumulate) would be a drop-in cast at the matmul inputs.
    print("KERNEL_OK")
</pallas_src>

<mosaic_0001>
module attributes {stable_mosaic.version = 11 : i64} {
  func.func @_mha_sum_ln_kernel(%arg0: i32, %arg1: memref<1x16x128xf32, #tpu.memory_space<vmem>>, %arg2: memref<1x16x128xf32, #tpu.memory_space<vmem>>, %arg3: memref<1x16x128xf32, #tpu.memory_space<vmem>>, %arg4: memref<1x1x16xf32, #tpu.memory_space<vmem>>, %arg5: memref<128x128xf32, #tpu.memory_space<vmem>>, %arg6: memref<1x128xf32, #tpu.memory_space<vmem>>, %arg7: memref<1x16x128xf32, #tpu.memory_space<vmem>>, %arg8: memref<1x128xf32, #tpu.memory_space<vmem>>, %arg9: memref<1x128xf32, #tpu.memory_space<vmem>>, %arg10: memref<1x16x128xf32, #tpu.memory_space<vmem>>, %arg11: memref<1x16x128xf32, #tpu.memory_space<vmem>>) attributes {dimension_semantics = [#tpu.dimension_semantics<parallel>], iteration_bounds = array<i64: 2>, scalar_prefetch = 0 : i64, scratch_operands = 0 : i64, tpu.core_type = #tpu.core_type<tc>, window_params = [{transform_indices = @transform_0, window_bounds = array<i64: 1, 16, 128>}, {transform_indices = @transform_1, window_bounds = array<i64: 1, 16, 128>}, {transform_indices = @transform_2, window_bounds = array<i64: 1, 16, 128>}, {transform_indices = @transform_3, window_bounds = array<i64: 1, 1, 16>}, {pipeline_mode = #tpu.pipeline_mode<synchronous>, transform_indices = @transform_4, window_bounds = array<i64: 128, 128>}, {pipeline_mode = #tpu.pipeline_mode<synchronous>, transform_indices = @transform_5, window_bounds = array<i64: 1, 128>}, {transform_indices = @transform_6, window_bounds = array<i64: 1, 16, 128>}, {pipeline_mode = #tpu.pipeline_mode<synchronous>, transform_indices = @transform_7, window_bounds = array<i64: 1, 128>}, {pipeline_mode = #tpu.pipeline_mode<synchronous>, transform_indices = @transform_8, window_bounds = array<i64: 1, 128>}, {transform_indices = @transform_9, window_bounds = array<i64: 1, 16, 128>}, {transform_indices = @transform_10, window_bounds = array<i64: 1, 16, 128>}]} {
    %c0 = arith.constant 0 : index
    %c0_0 = arith.constant 0 : index
    %c0_1 = arith.constant 0 : index
    %0 = vector.load %arg1[%c0, %c0_0, %c0_1] : memref<1x16x128xf32, #tpu.memory_space<vmem>>, vector<1x16x128xf32>
    %1 = vector.shape_cast %0 : vector<1x16x128xf32> to vector<16x128xf32>
    %cst = arith.constant 1.250000e-01 : f32
    %2 = vector.broadcast %cst : f32 to vector<16x128xf32>
    %3 = arith.mulf %1, %2 : vector<16x128xf32>
    %c0_2 = arith.constant 0 : index
    %c0_3 = arith.constant 0 : index
    %c0_4 = arith.constant 0 : index
    %4 = vector.load %arg2[%c0_2, %c0_3, %c0_4] : memref<1x16x128xf32, #tpu.memory_space<vmem>>, vector<1x16x128xf32>
    %5 = vector.shape_cast %4 : vector<1x16x128xf32> to vector<16x128xf32>
    %c0_5 = arith.constant 0 : index
    %c0_6 = arith.constant 0 : index
    %c0_7 = arith.constant 0 : index
    %6 = vector.load %arg3[%c0_5, %c0_6, %c0_7] : memref<1x16x128xf32, #tpu.memory_space<vmem>>, vector<1x16x128xf32>
    %7 = vector.shape_cast %6 : vector<1x16x128xf32> to vector<16x128xf32>
    %c0_8 = arith.constant 0 : index
    %c0_9 = arith.constant 0 : index
    %c0_10 = arith.constant 0 : index
    %8 = vector.load %arg4[%c0_8, %c0_9, %c0_10] : memref<1x1x16xf32, #tpu.memory_space<vmem>>, vector<1x1x16xf32>
    %9 = vector.shape_cast %8 : vector<1x1x16xf32> to vector<1x16xf32>
    %c0_11 = arith.constant 0 : index
    %c0_12 = arith.constant 0 : index
    %10 = vector.load %arg5[%c0_11, %c0_12] : memref<128x128xf32, #tpu.memory_space<vmem>>, vector<128x128xf32>
    %cst_13 = arith.constant 0.000000e+00 : f32
    %11 = vector.broadcast %cst_13 : f32 to vector<16x128xf32>
    %12 = vector.extract_strided_slice %3 {offsets = [0, 0], sizes = [16, 64], strides = [1, 1]} : vector<16x128xf32> to vector<16x64xf32>
    %13 = vector.extract_strided_slice %5 {offsets = [0, 0], sizes = [16, 64], strides = [1, 1]} : vector<16x128xf32> to vector<16x64xf32>
    %cst_14 = arith.constant dense<0.000000e+00> : vector<16x16xf32>
    %14 = tpu.matmul %12, %13, %cst_14 {dimension_numbers = #tpu.dot_dimension_numbers<[1], [1], [0], [0], [0, 0, 1, 0], [], []>} : vector<16x64xf32>, vector<16x64xf32>, vector<16x16xf32> -> vector<16x16xf32>
    %15 = vector.broadcast %9 : vector<1x16xf32> to vector<16x16xf32>
    %16 = arith.addf %14, %15 : vector<16x16xf32>
    %cst_15 = arith.constant dense<0xFF800000> : vector<16xf32>
    %17 = vector.multi_reduction <maximumf>, %16, %cst_15 [1] : vector<16x16xf32> to vector<16xf32>
    %18 = vector.shape_cast %17 : vector<16xf32> to vector<16x1xf32>
    %19 = vector.broadcast %18 : vector<16x1xf32> to vector<16x16xf32>
    %20 = arith.subf %16, %19 : vector<16x16xf32>
    %21 = math.exp %20 : vector<16x16xf32>
    %cst_16 = arith.constant dense<0.000000e+00> : vector<16xf32>
    %22 = vector.multi_reduction <add>, %21, %cst_16 [1] : vector<16x16xf32> to vector<16xf32>
    %23 = vector.shape_cast %22 : vector<16xf32> to vector<16x1xf32>
    %24 = tpu.reciprocal %23 {approx = true} : vector<16x1xf32> -> vector<16x1xf32>
    %25 = vector.broadcast %24 : vector<16x1xf32> to vector<16x16xf32>
    %26 = arith.mulf %21, %25 : vector<16x16xf32>
    %27 = vector.extract_strided_slice %7 {offsets = [0, 0], sizes = [16, 64], strides = [1, 1]} : vector<16x128xf32> to vector<16x64xf32>
    %cst_17 = arith.constant dense<0.000000e+00> : vector<16x64xf32>
    %28 = tpu.matmul %26, %27, %cst_17 {dimension_numbers = #tpu.dot_dimension_numbers<[1], [0], [0], [1], [0, 0, 1, 1], [], []>} : vector<16x16xf32>, vector<16x64xf32>, vector<16x64xf32> -> vector<16x64xf32>
    %29 = vector.extract_strided_slice %10 {offsets = [0, 0], sizes = [64, 128], strides = [1, 1]} : vector<128x128xf32> to vector<64x128xf32>
    %cst_18 = arith.constant dense<0.000000e+00> : vector<16x128xf32>
    %30 = tpu.matmul %28, %29, %cst_18 {dimension_numbers = #tpu.dot_dimension_numbers<[1], [0], [0], [1], [0, 0, 1, 1], [], []>} : vector<16x64xf32>, vector<64x128xf32>, vector<16x128xf32> -> vector<16x128xf32>
    %31 = arith.addf %11, %30 : vector<16x128xf32>
    %32 = vector.extract_strided_slice %3 {offsets = [0, 64], sizes = [16, 64], strides = [1, 1]} : vector<16x128xf32> to vector<16x64xf32>
    %33 = vector.extract_strided_slice %5 {offsets = [0, 64], sizes = [16, 64], strides = [1, 1]} : vector<16x128xf32> to vector<16x64xf32>
    %cst_19 = arith.constant dense<0.000000e+00> : vector<16x16xf32>
    %34 = tpu.matmul %32, %33, %cst_19 {dimension_numbers = #tpu.dot_dimension_numbers<[1], [1], [0], [0], [0, 0, 1, 0], [], []>} : vector<16x64xf32>, vector<16x64xf32>, vector<16x16xf32> -> vector<16x16xf32>
    %35 = vector.broadcast %9 : vector<1x16xf32> to vector<16x16xf32>
    %36 = arith.addf %34, %35 : vector<16x16xf32>
    %cst_20 = arith.constant dense<0xFF800000> : vector<16xf32>
    %37 = vector.multi_reduction <maximumf>, %36, %cst_20 [1] : vector<16x16xf32> to vector<16xf32>
    %38 = vector.shape_cast %37 : vector<16xf32> to vector<16x1xf32>
    %39 = vector.broadcast %38 : vector<16x1xf32> to vector<16x16xf32>
    %40 = arith.subf %36, %39 : vector<16x16xf32>
    %41 = math.exp %40 : vector<16x16xf32>
    %cst_21 = arith.constant dense<0.000000e+00> : vector<16xf32>
    %42 = vector.multi_reduction <add>, %41, %cst_21 [1] : vector<16x16xf32> to vector<16xf32>
    %43 = vector.shape_cast %42 : vector<16xf32> to vector<16x1xf32>
    %44 = tpu.reciprocal %43 {approx = true} : vector<16x1xf32> -> vector<16x1xf32>
    %45 = vector.broadcast %44 : vector<16x1xf32> to vector<16x16xf32>
    %46 = arith.mulf %41, %45 : vector<16x16xf32>
    %47 = vector.extract_strided_slice %7 {offsets = [0, 64], sizes = [16, 64], strides = [1, 1]} : vector<16x128xf32> to vector<16x64xf32>
    %cst_22 = arith.constant dense<0.000000e+00> : vector<16x64xf32>
    %48 = tpu.matmul %46, %47, %cst_22 {dimension_numbers = #tpu.dot_dimension_numbers<[1], [0], [0], [1], [0, 0, 1, 1], [], []>} : vector<16x16xf32>, vector<16x64xf32>, vector<16x64xf32> -> vector<16x64xf32>
    %49 = vector.extract_strided_slice %10 {offsets = [64, 0], sizes = [64, 128], strides = [1, 1]} : vector<128x128xf32> to vector<64x128xf32>
    %cst_23 = arith.constant dense<0.000000e+00> : vector<16x128xf32>
    %50 = tpu.matmul %48, %49, %cst_23 {dimension_numbers = #tpu.dot_dimension_numbers<[1], [0], [0], [1], [0, 0, 1, 1], [], []>} : vector<16x64xf32>, vector<64x128xf32>, vector<16x128xf32> -> vector<16x128xf32>
    %51 = arith.addf %31, %50 : vector<16x128xf32>
    %c0_24 = arith.constant 0 : index
    %c0_25 = arith.constant 0 : index
    %c0_26 = arith.constant 0 : index
    %52 = vector.load %arg7[%c0_24, %c0_25, %c0_26] : memref<1x16x128xf32, #tpu.memory_space<vmem>>, vector<1x16x128xf32>
    %53 = vector.shape_cast %52 : vector<1x16x128xf32> to vector<16x128xf32>
    %54 = arith.addf %53, %51 : vector<16x128xf32>
    %c0_27 = arith.constant 0 : index
    %c0_28 = arith.constant 0 : index
    %55 = vector.load %arg6[%c0_27, %c0_28] : memref<1x128xf32, #tpu.memory_space<vmem>>, vector<1x128xf32>
    %56 = vector.broadcast %55 : vector<1x128xf32> to vector<16x128xf32>
    %57 = arith.addf %54, %56 : vector<16x128xf32>
    %c0_29 = arith.constant 0 : index
    %c0_30 = arith.constant 0 : index
    %c0_31 = arith.constant 0 : index
    %58 = vector.load %arg10[%c0_29, %c0_30, %c0_31] : memref<1x16x128xf32, #tpu.memory_space<vmem>>, vector<1x16x128xf32>
    %59 = vector.shape_cast %58 : vector<1x16x128xf32> to vector<16x128xf32>
    %60 = vector.shape_cast %57 : vector<16x128xf32> to vector<1x16x128xf32>
    tpu.vector_store %arg10[%c0_29, %c0_30, %c0_31], %60 {strides = array<i32>} : memref<1x16x128xf32, #tpu.memory_space<vmem>>, vector<1x16x128xf32>,
    %c0_32 = arith.constant 0 : index
    %c0_33 = arith.constant 0 : index
    %61 = vector.load %arg8[%c0_32, %c0_33] : memref<1x128xf32, #tpu.memory_space<vmem>>, vector<1x128xf32>
    %c0_34 = arith.constant 0 : index
    %c0_35 = arith.constant 0 : index
    %62 = vector.load %arg9[%c0_34, %c0_35] : memref<1x128xf32, #tpu.memory_space<vmem>>, vector<1x128xf32>
    %cst_36 = arith.constant dense<0.000000e+00> : vector<16xf32>
    %63 = vector.multi_reduction <add>, %57, %cst_36 [1] : vector<16x128xf32> to vector<16xf32>
    %64 = vector.shape_cast %63 : vector<16xf32> to vector<16x1xf32>
    %cst_37 = arith.constant 1.280000e+02 : f32
    %65 = vector.broadcast %cst_37 : f32 to vector<16x1xf32>
    %66 = arith.divf %64, %65 : vector<16x1xf32>
    %67 = vector.broadcast %66 : vector<16x1xf32> to vector<16x128xf32>
    %68 = arith.subf %57, %67 : vector<16x128xf32>
    %69 = arith.mulf %68, %68 : vector<16x128xf32>
    %cst_38 = arith.constant dense<0.000000e+00> : vector<16xf32>
    %70 = vector.multi_reduction <add>, %69, %cst_38 [1] : vector<16x128xf32> to vector<16xf32>
    %71 = vector.shape_cast %70 : vector<16xf32> to vector<16x1xf32>
    %cst_39 = arith.constant 1.280000e+02 : f32
    %72 = vector.broadcast %cst_39 : f32 to vector<16x1xf32>
    %73 = arith.divf %71, %72 : vector<16x1xf32>
    %74 = vector.broadcast %66 : vector<16x1xf32> to vector<16x128xf32>
    %75 = arith.subf %57, %74 : vector<16x128xf32>
    %cst_40 = arith.constant 9.99999974E-6 : f32
    %76 = vector.broadcast %cst_40 : f32 to vector<16x1xf32>
    %77 = arith.addf %73, %76 : vector<16x1xf32>
    %78 = math.rsqrt %77 : vector<16x1xf32>
    %79 = vector.broadcast %78 : vector<16x1xf32> to vector<16x128xf32>
    %80 = arith.mulf %75, %79 : vector<16x128xf32>
    %81 = vector.broadcast %61 : vector<1x128xf32> to vector<16x128xf32>
    %82 = arith.mulf %80, %81 : vector<16x128xf32>
    %83 = vector.broadcast %62 : vector<1x128xf32> to vector<16x128xf32>
    %84 = arith.addf %82, %83 : vector<16x128xf32>
    %c0_41 = arith.constant 0 : index
    %c0_42 = arith.constant 0 : index
    %c0_43 = arith.constant 0 : index
    %85 = vector.load %arg11[%c0_41, %c0_42, %c0_43] : memref<1x16x128xf32, #tpu.memory_space<vmem>>, vector<1x16x128xf32>
    %86 = vector.shape_cast %85 : vector<1x16x128xf32> to vector<16x128xf32>
    %87 = vector.shape_cast %84 : vector<16x128xf32> to vector<1x16x128xf32>
    tpu.vector_store %arg11[%c0_41, %c0_42, %c0_43], %87 {strides = array<i32>} : memref<1x16x128xf32, #tpu.memory_space<vmem>>, vector<1x16x128xf32>,
    return
  }
  func.func @transform_0(%arg0: i32) -> (i32, i32, i32) {
    %c0_i32 = arith.constant 0 : i32
    %c0_i32_0 = arith.constant 0 : i32
    %c0_i32_1 = arith.constant 0 : i32
    return %arg0, %c0_i32, %c0_i32_0 : i32, i32, i32
  }
  func.func @transform_1(%arg0: i32) -> (i32, i32, i32) {
    %c0_i32 = arith.constant 0 : i32
    %c0_i32_0 = arith.constant 0 : i32
    %c0_i32_1 = arith.constant 0 : i32
    return %arg0, %c0_i32, %c0_i32_0 : i32, i32, i32
  }
  func.func @transform_2(%arg0: i32) -> (i32, i32, i32) {
    %c0_i32 = arith.constant 0 : i32
    %c0_i32_0 = arith.constant 0 : i32
    %c0_i32_1 = arith.constant 0 : i32
    return %arg0, %c0_i32, %c0_i32_0 : i32, i32, i32
  }
  func.func @transform_3(%arg0: i32) -> (i32, i32, i32) {
    %c0_i32 = arith.constant 0 : i32
    %c0_i32_0 = arith.constant 0 : i32
    %c0_i32_1 = arith.constant 0 : i32
    return %arg0, %c0_i32, %c0_i32_0 : i32, i32, i32
  }
  func.func @transform_4(%arg0: i32) -> (i32, i32) {
    %c0_i32 = arith.constant 0 : i32
    %c0_i32_0 = arith.constant 0 : i32
    %c0_i32_1 = arith.constant 0 : i32
    return %c0_i32, %c0_i32_0 : i32, i32
  }
  func.func @transform_5(%arg0: i32) -> (i32, i32) {
    %c0_i32 = arith.constant 0 : i32
    %c0_i32_0 = arith.constant 0 : i32
    %c0_i32_1 = arith.constant 0 : i32
    return %c0_i32, %c0_i32_0 : i32, i32
  }
  func.func @transform_6(%arg0: i32) -> (i32, i32, i32) {
    %c0_i32 = arith.constant 0 : i32
    %c0_i32_0 = arith.constant 0 : i32
    %c0_i32_1 = arith.constant 0 : i32
    return %arg0, %c0_i32, %c0_i32_0 : i32, i32, i32
  }
  func.func @transform_7(%arg0: i32) -> (i32, i32) {
    %c0_i32 = arith.constant 0 : i32
    %c0_i32_0 = arith.constant 0 : i32
    %c0_i32_1 = arith.constant 0 : i32
    return %c0_i32, %c0_i32_0 : i32, i32
  }
  func.func @transform_8(%arg0: i32) -> (i32, i32) {
    %c0_i32 = arith.constant 0 : i32
    %c0_i32_0 = arith.constant 0 : i32
    %c0_i32_1 = arith.constant 0 : i32
    return %c0_i32, %c0_i32_0 : i32, i32
  }
  func.func @transform_9(%arg0: i32) -> (i32, i32, i32) {
    %c0_i32 = arith.constant 0 : i32
    %c0_i32_0 = arith.constant 0 : i32
    %c0_i32_1 = arith.constant 0 : i32
    return %arg0, %c0_i32, %c0_i32_0 : i32, i32, i32
  }
  func.func @transform_10(%arg0: i32) -> (i32, i32, i32) {
    %c0_i32 = arith.constant 0 : i32
    %c0_i32_0 = arith.constant 0 : i32
    %c0_i32_1 = arith.constant 0 : i32
    return %arg0, %c0_i32, %c0_i32_0 : i32, i32, i32
  }
}

module attributes {stable_mosaic.version = 11 : i64} {
  func.func @_qkv_proj_kernel(%arg0: i32, %arg1: memref<32x128xf32, #tpu.memory_space<vmem>>, %arg2: memref<32x128xf32, #tpu.memory_space<vmem>>, %arg3: memref<1x128xf32, #tpu.memory_space<vmem>>, %arg4: memref<1x128xf32, #tpu.memory_space<vmem>>, %arg5: memref<128x128xf32, #tpu.memory_space<vmem>>, %arg6: memref<1x128xf32, #tpu.memory_space<vmem>>, %arg7: memref<128x128xf32, #tpu.memory_space<vmem>>, %arg8: memref<1x128xf32, #tpu.memory_space<vmem>>, %arg9: memref<128x128xf32, #tpu.memory_space<vmem>>, %arg10: memref<1x128xf32, #tpu.memory_space<vmem>>, %arg11: memref<32x128xf32, #tpu.memory_space<vmem>>, %arg12: memref<32x128xf32, #tpu.memory_space<vmem>>, %arg13: memref<32x128xf32, #tpu.memory_space<vmem>>) attributes {dimension_semantics = [#tpu.dimension_semantics<parallel>], iteration_bounds = array<i64: 1>, scalar_prefetch = 0 : i64, scratch_operands = 0 : i64, tpu.core_type = #tpu.core_type<tc>, window_params = [{transform_indices = @transform_0, window_bounds = array<i64: 32, 128>}, {transform_indices = @transform_1, window_bounds = array<i64: 32, 128>}, {pipeline_mode = #tpu.pipeline_mode<synchronous>, transform_indices = @transform_2, window_bounds = array<i64: 1, 128>}, {pipeline_mode = #tpu.pipeline_mode<synchronous>, transform_indices = @transform_3, window_bounds = array<i64: 1, 128>}, {pipeline_mode = #tpu.pipeline_mode<synchronous>, transform_indices = @transform_4, window_bounds = array<i64: 128, 128>}, {pipeline_mode = #tpu.pipeline_mode<synchronous>, transform_indices = @transform_5, window_bounds = array<i64: 1, 128>}, {pipeline_mode = #tpu.pipeline_mode<synchronous>, transform_indices = @transform_6, window_bounds = array<i64: 128, 128>}, {pipeline_mode = #tpu.pipeline_mode<synchronous>, transform_indices = @transform_7, window_bounds = array<i64: 1, 128>}, {pipeline_mode = #tpu.pipeline_mode<synchronous>, transform_indices = @transform_8, window_bounds = array<i64: 128, 128>}, {pipeline_mode = #tpu.pipeline_mode<synchronous>, transform_indices = @transform_9, window_bounds = array<i64: 1, 128>}, {transform_indices = @transform_10, window_bounds = array<i64: 32, 128>}, {transform_indices = @transform_11, window_bounds = array<i64: 32, 128>}, {transform_indices = @transform_12, window_bounds = array<i64: 32, 128>}]} {
    %c0 = arith.constant 0 : index
    %c0_0 = arith.constant 0 : index
    %0 = vector.load %arg1[%c0, %c0_0] : memref<32x128xf32, #tpu.memory_space<vmem>>, vector<32x128xf32>
    %c0_1 = arith.constant 0 : index
    %c0_2 = arith.constant 0 : index
    %1 = vector.load %arg3[%c0_1, %c0_2] : memref<1x128xf32, #tpu.memory_space<vmem>>, vector<1x128xf32>
    %c0_3 = arith.constant 0 : index
    %c0_4 = arith.constant 0 : index
    %2 = vector.load %arg4[%c0_3, %c0_4] : memref<1x128xf32, #tpu.memory_space<vmem>>, vector<1x128xf32>
    %cst = arith.constant dense<0.000000e+00> : vector<32xf32>
    %3 = vector.multi_reduction <add>, %0, %cst [1] : vector<32x128xf32> to vector<32xf32>
    %4 = vector.shape_cast %3 : vector<32xf32> to vector<32x1xf32>
    %cst_5 = arith.constant 1.280000e+02 : f32
    %5 = vector.broadcast %cst_5 : f32 to vector<32x1xf32>
    %6 = arith.divf %4, %5 : vector<32x1xf32>
    %7 = vector.broadcast %6 : vector<32x1xf32> to vector<32x128xf32>
    %8 = arith.subf %0, %7 : vector<32x128xf32>
    %9 = arith.mulf %8, %8 : vector<32x128xf32>
    %cst_6 = arith.constant dense<0.000000e+00> : vector<32xf32>
    %10 = vector.multi_reduction <add>, %9, %cst_6 [1] : vector<32x128xf32> to vector<32xf32>
    %11 = vector.shape_cast %10 : vector<32xf32> to vector<32x1xf32>
    %cst_7 = arith.constant 1.280000e+02 : f32
    %12 = vector.broadcast %cst_7 : f32 to vector<32x1xf32>
    %13 = arith.divf %11, %12 : vector<32x1xf32>
    %14 = vector.broadcast %6 : vector<32x1xf32> to vector<32x128xf32>
    %15 = arith.subf %0, %14 : vector<32x128xf32>
    %cst_8 = arith.constant 9.99999974E-6 : f32
    %16 = vector.broadcast %cst_8 : f32 to vector<32x1xf32>
    %17 = arith.addf %13, %16 : vector<32x1xf32>
    %18 = math.rsqrt %17 : vector<32x1xf32>
    %19 = vector.broadcast %18 : vector<32x1xf32> to vector<32x128xf32>
    %20 = arith.mulf %15, %19 : vector<32x128xf32>
    %21 = vector.broadcast %1 : vector<1x128xf32> to vector<32x128xf32>
    %22 = arith.mulf %20, %21 : vector<32x128xf32>
    %23 = vector.broadcast %2 : vector<1x128xf32> to vector<32x128xf32>
    %24 = arith.addf %22, %23 : vector<32x128xf32>
    %c0_9 = arith.constant 0 : index
    %c0_10 = arith.constant 0 : index
    %25 = vector.load %arg2[%c0_9, %c0_10] : memref<32x128xf32, #tpu.memory_space<vmem>>, vector<32x128xf32>
    %26 = arith.addf %24, %25 : vector<32x128xf32>
    %c0_11 = arith.constant 0 : index
    %c0_12 = arith.constant 0 : index
    %27 = vector.load %arg5[%c0_11, %c0_12] : memref<128x128xf32, #tpu.memory_space<vmem>>, vector<128x128xf32>
    %cst_13 = arith.constant dense<0.000000e+00> : vector<32x128xf32>
    %28 = tpu.matmul %26, %27, %cst_13 {dimension_numbers = #tpu.dot_dimension_numbers<[1], [0], [0], [1], [0, 0, 1, 1], [], []>} : vector<32x128xf32>, vector<128x128xf32>, vector<32x128xf32> -> vector<32x128xf32>
    %c0_14 = arith.constant 0 : index
    %c0_15 = arith.constant 0 : index
    %29 = vector.load %arg6[%c0_14, %c0_15] : memref<1x128xf32, #tpu.memory_space<vmem>>, vector<1x128xf32>
    %30 = vector.broadcast %29 : vector<1x128xf32> to vector<32x128xf32>
    %31 = arith.addf %28, %30 : vector<32x128xf32>
    %c0_16 = arith.constant 0 : index
    %c0_17 = arith.constant 0 : index
    %32 = vector.load %arg11[%c0_16, %c0_17] : memref<32x128xf32, #tpu.memory_space<vmem>>, vector<32x128xf32>
    tpu.vector_store %arg11[%c0_16, %c0_17], %31 {strides = array<i32>} : memref<32x128xf32, #tpu.memory_space<vmem>>, vector<32x128xf32>,
    %c0_18 = arith.constant 0 : index
    %c0_19 = arith.constant 0 : index
    %33 = vector.load %arg7[%c0_18, %c0_19] : memref<128x128xf32, #tpu.memory_space<vmem>>, vector<128x128xf32>
    %cst_20 = arith.constant dense<0.000000e+00> : vector<32x128xf32>
    %34 = tpu.matmul %26, %33, %cst_20 {dimension_numbers = #tpu.dot_dimension_numbers<[1], [0], [0], [1], [0, 0, 1, 1], [], []>} : vector<32x128xf32>, vector<128x128xf32>, vector<32x128xf32> -> vector<32x128xf32>
    %c0_21 = arith.constant 0 : index
    %c0_22 = arith.constant 0 : index
    %35 = vector.load %arg8[%c0_21, %c0_22] : memref<1x128xf32, #tpu.memory_space<vmem>>, vector<1x128xf32>
    %36 = vector.broadcast %35 : vector<1x128xf32> to vector<32x128xf32>
    %37 = arith.addf %34, %36 : vector<32x128xf32>
    %c0_23 = arith.constant 0 : index
    %c0_24 = arith.constant 0 : index
    %38 = vector.load %arg12[%c0_23, %c0_24] : memref<32x128xf32, #tpu.memory_space<vmem>>, vector<32x128xf32>
    tpu.vector_store %arg12[%c0_23, %c0_24], %37 {strides = array<i32>} : memref<32x128xf32, #tpu.memory_space<vmem>>, vector<32x128xf32>,
    %c0_25 = arith.constant 0 : index
    %c0_26 = arith.constant 0 : index
    %39 = vector.load %arg9[%c0_25, %c0_26] : memref<128x128xf32, #tpu.memory_space<vmem>>, vector<128x128xf32>
    %cst_27 = arith.constant dense<0.000000e+00> : vector<32x128xf32>
    %40 = tpu.matmul %24, %39, %cst_27 {dimension_numbers = #tpu.dot_dimension_numbers<[1], [0], [0], [1], [0, 0, 1, 1], [], []>} : vector<32x128xf32>, vector<128x128xf32>, vector<32x128xf32> -> vector<32x128xf32>
    %c0_28 = arith.constant 0 : index
    %c0_29 = arith.constant 0 : index
    %41 = vector.load %arg10[%c0_28, %c0_29] : memref<1x128xf32, #tpu.memory_space<vmem>>, vector<1x128xf32>
    %42 = vector.broadcast %41 : vector<1x128xf32> to vector<32x128xf32>
    %43 = arith.addf %40, %42 : vector<32x128xf32>
    %c0_30 = arith.constant 0 : index
    %c0_31 = arith.constant 0 : index
    %44 = vector.load %arg13[%c0_30, %c0_31] : memref<32x128xf32, #tpu.memory_space<vmem>>, vector<32x128xf32>
    tpu.vector_store %arg13[%c0_30, %c0_31], %43 {strides = array<i32>} : memref<32x128xf32, #tpu.memory_space<vmem>>, vector<32x128xf32>,
    return
  }
  func.func @transform_0(%arg0: i32) -> (i32, i32) {
    %c0_i32 = arith.constant 0 : i32
    %c0_i32_0 = arith.constant 0 : i32
    return %arg0, %c0_i32 : i32, i32
  }
  func.func @transform_1(%arg0: i32) -> (i32, i32) {
    %c0_i32 = arith.constant 0 : i32
    %c0_i32_0 = arith.constant 0 : i32
    return %arg0, %c0_i32 : i32, i32
  }
  func.func @transform_2(%arg0: i32) -> (i32, i32) {
    %c0_i32 = arith.constant 0 : i32
    %c0_i32_0 = arith.constant 0 : i32
    %c0_i32_1 = arith.constant 0 : i32
    return %c0_i32, %c0_i32_0 : i32, i32
  }
  func.func @transform_3(%arg0: i32) -> (i32, i32) {
    %c0_i32 = arith.constant 0 : i32
    %c0_i32_0 = arith.constant 0 : i32
    %c0_i32_1 = arith.constant 0 : i32
    return %c0_i32, %c0_i32_0 : i32, i32
  }
  func.func @transform_4(%arg0: i32) -> (i32, i32) {
    %c0_i32 = arith.constant 0 : i32
    %c0_i32_0 = arith.constant 0 : i32
    %c0_i32_1 = arith.constant 0 : i32
    return %c0_i32, %c0_i32_0 : i32, i32
  }
  func.func @transform_5(%arg0: i32) -> (i32, i32) {
    %c0_i32 = arith.constant 0 : i32
    %c0_i32_0 = arith.constant 0 : i32
    %c0_i32_1 = arith.constant 0 : i32
    return %c0_i32, %c0_i32_0 : i32, i32
  }
  func.func @transform_6(%arg0: i32) -> (i32, i32) {
    %c0_i32 = arith.constant 0 : i32
    %c0_i32_0 = arith.constant 0 : i32
    %c0_i32_1 = arith.constant 0 : i32
    return %c0_i32, %c0_i32_0 : i32, i32
  }
  func.func @transform_7(%arg0: i32) -> (i32, i32) {
    %c0_i32 = arith.constant 0 : i32
    %c0_i32_0 = arith.constant 0 : i32
    %c0_i32_1 = arith.constant 0 : i32
    return %c0_i32, %c0_i32_0 : i32, i32
  }
  func.func @transform_8(%arg0: i32) -> (i32, i32) {
    %c0_i32 = arith.constant 0 : i32
    %c0_i32_0 = arith.constant 0 : i32
    %c0_i32_1 = arith.constant 0 : i32
    return %c0_i32, %c0_i32_0 : i32, i32
  }
  func.func @transform_9(%arg0: i32) -> (i32, i32) {
    %c0_i32 = arith.constant 0 : i32
    %c0_i32_0 = arith.constant 0 : i32
    %c0_i32_1 = arith.constant 0 : i32
    return %c0_i32, %c0_i32_0 : i32, i32
  }
  func.func @transform_10(%arg0: i32) -> (i32, i32) {
    %c0_i32 = arith.constant 0 : i32
    %c0_i32_0 = arith.constant 0 : i32
    return %arg0, %c0_i32 : i32, i32
  }
  func.func @transform_11(%arg0: i32) -> (i32, i32) {
    %c0_i32 = arith.constant 0 : i32
    %c0_i32_0 = arith.constant 0 : i32
    return %arg0, %c0_i32 : i32, i32
  }
  func.func @transform_12(%arg0: i32) -> (i32, i32) {
    %c0_i32 = arith.constant 0 : i32
    %c0_i32_0 = arith.constant 0 : i32
    return %arg0, %c0_i32 : i32, i32
  }
}

module attributes {stable_mosaic.version = 11 : i64} {
  func.func @_ffn_fused_kernel(%arg0: i32, %arg1: i32, %arg2: memref<32x128xf32, #tpu.memory_space<vmem>>, %arg3: memref<128x128xf32, #tpu.memory_space<vmem>>, %arg4: memref<1x128xf32, #tpu.memory_space<vmem>>, %arg5: memref<128x128xf32, #tpu.memory_space<vmem>>, %arg6: memref<1x128xf32, #tpu.memory_space<vmem>>, %arg7: memref<32x128xf32, #tpu.memory_space<vmem>>, %arg8: memref<1x128xf32, #tpu.memory_space<vmem>>, %arg9: memref<1x128xf32, #tpu.memory_space<vmem>>, %arg10: memref<32x128xf32, #tpu.memory_space<vmem>>, %arg11: memref<32x128xf32, #tpu.memory_space<vmem>>) attributes {dimension_semantics = [#tpu.dimension_semantics<parallel>, #tpu.dimension_semantics<arbitrary>], iteration_bounds = array<i64: 1, 1>, scalar_prefetch = 0 : i64, scratch_operands = 1 : i64, tpu.core_type = #tpu.core_type<tc>, window_params = [{transform_indices = @transform_0, window_bounds = array<i64: 32, 128>}, {transform_indices = @transform_1, window_bounds = array<i64: 128, 128>}, {transform_indices = @transform_2, window_bounds = array<i64: 1, 128>}, {transform_indices = @transform_3, window_bounds = array<i64: 128, 128>}, {pipeline_mode = #tpu.pipeline_mode<synchronous>, transform_indices = @transform_4, window_bounds = array<i64: 1, 128>}, {transform_indices = @transform_5, window_bounds = array<i64: 32, 128>}, {pipeline_mode = #tpu.pipeline_mode<synchronous>, transform_indices = @transform_6, window_bounds = array<i64: 1, 128>}, {pipeline_mode = #tpu.pipeline_mode<synchronous>, transform_indices = @transform_7, window_bounds = array<i64: 1, 128>}, {transform_indices = @transform_8, window_bounds = array<i64: 32, 128>}]} {
    %c0_i32 = arith.constant 0 : i32
    %0 = arith.cmpi eq, %arg1, %c0_i32 : i32
    %1 = arith.extui %0 : i1 to i32
    %c0_i32_0 = arith.constant 0 : i32
    %2 = arith.cmpi ne, %1, %c0_i32_0 : i32
    scf.if %2 {
      %cst_16 = arith.constant 0.000000e+00 : f32
      %19 = vector.broadcast %cst_16 : f32 to vector<32x128xf32>
      %c0_17 = arith.constant 0 : index
      %c0_18 = arith.constant 0 : index
      %20 = vector.load %arg11[%c0_17, %c0_18] : memref<32x128xf32, #tpu.memory_space<vmem>>, vector<32x128xf32>
      tpu.vector_store %arg11[%c0_17, %c0_18], %19 {strides = array<i32>} : memref<32x128xf32, #tpu.memory_space<vmem>>, vector<32x128xf32>,
    } else {
    }
    %c0 = arith.constant 0 : index
    %c0_1 = arith.constant 0 : index
    %3 = vector.load %arg2[%c0, %c0_1] : memref<32x128xf32, #tpu.memory_space<vmem>>, vector<32x128xf32>
    %c0_2 = arith.constant 0 : index
    %c0_3 = arith.constant 0 : index
    %4 = vector.load %arg3[%c0_2, %c0_3] : memref<128x128xf32, #tpu.memory_space<vmem>>, vector<128x128xf32>
    %cst = arith.constant dense<0.000000e+00> : vector<32x128xf32>
    %5 = tpu.matmul %3, %4, %cst {dimension_numbers = #tpu.dot_dimension_numbers<[1], [0], [0], [1], [0, 0, 1, 1], [], []>} : vector<32x128xf32>, vector<128x128xf32>, vector<32x128xf32> -> vector<32x128xf32>
    %c0_4 = arith.constant 0 : index
    %c0_5 = arith.constant 0 : index
    %6 = vector.load %arg4[%c0_4, %c0_5] : memref<1x128xf32, #tpu.memory_space<vmem>>, vector<1x128xf32>
    %7 = vector.broadcast %6 : vector<1x128xf32> to vector<32x128xf32>
    %8 = arith.addf %5, %7 : vector<32x128xf32>
    %cst_6 = arith.constant 0.000000e+00 : f32
    %9 = vector.broadcast %cst_6 : f32 to vector<32x128xf32>
    %10 = arith.maximumf %8, %9 : vector<32x128xf32>
    %c0_7 = arith.constant 0 : index
    %c0_8 = arith.constant 0 : index
    %11 = vector.load %arg11[%c0_7, %c0_8] : memref<32x128xf32, #tpu.memory_space<vmem>>, vector<32x128xf32>
    %c0_9 = arith.constant 0 : index
    %c0_10 = arith.constant 0 : index
    %12 = vector.load %arg5[%c0_9, %c0_10] : memref<128x128xf32, #tpu.memory_space<vmem>>, vector<128x128xf32>
    %cst_11 = arith.constant dense<0.000000e+00> : vector<32x128xf32>
    %13 = tpu.matmul %10, %12, %cst_11 {dimension_numbers = #tpu.dot_dimension_numbers<[1], [0], [0], [1], [0, 0, 1, 1], [], []>} : vector<32x128xf32>, vector<128x128xf32>, vector<32x128xf32> -> vector<32x128xf32>
    %14 = arith.addf %11, %13 : vector<32x128xf32>
    %c0_12 = arith.constant 0 : index
    %c0_13 = arith.constant 0 : index
    %15 = vector.load %arg11[%c0_12, %c0_13] : memref<32x128xf32, #tpu.memory_space<vmem>>, vector<32x128xf32>
    tpu.vector_store %arg11[%c0_12, %c0_13], %14 {strides = array<i32>} : memref<32x128xf32, #tpu.memory_space<vmem>>, vector<32x128xf32>,
    %c0_i32_14 = arith.constant 0 : i32
    %16 = arith.cmpi eq, %arg1, %c0_i32_14 : i32
    %17 = arith.extui %16 : i1 to i32
    %c0_i32_15 = arith.constant 0 : i32
    %18 = arith.cmpi ne, %17, %c0_i32_15 : i32
    scf.if %18 {
      %c0_16 = arith.constant 0 : index
      %c0_17 = arith.constant 0 : index
      %19 = vector.load %arg7[%c0_16, %c0_17] : memref<32x128xf32, #tpu.memory_space<vmem>>, vector<32x128xf32>
      %c0_18 = arith.constant 0 : index
      %c0_19 = arith.constant 0 : index
      %20 = vector.load %arg11[%c0_18, %c0_19] : memref<32x128xf32, #tpu.memory_space<vmem>>, vector<32x128xf32>
      %21 = arith.addf %19, %20 : vector<32x128xf32>
      %c0_20 = arith.constant 0 : index
      %c0_21 = arith.constant 0 : index
      %22 = vector.load %arg6[%c0_20, %c0_21] : memref<1x128xf32, #tpu.memory_space<vmem>>, vector<1x128xf32>
      %23 = vector.broadcast %22 : vector<1x128xf32> to vector<32x128xf32>
      %24 = arith.addf %21, %23 : vector<32x128xf32>
      %c0_22 = arith.constant 0 : index
      %c0_23 = arith.constant 0 : index
      %25 = vector.load %arg8[%c0_22, %c0_23] : memref<1x128xf32, #tpu.memory_space<vmem>>, vector<1x128xf32>
      %c0_24 = arith.constant 0 : index
      %c0_25 = arith.constant 0 : index
      %26 = vector.load %arg9[%c0_24, %c0_25] : memref<1x128xf32, #tpu.memory_space<vmem>>, vector<1x128xf32>
      %cst_26 = arith.constant dense<0.000000e+00> : vector<32xf32>
      %27 = vector.multi_reduction <add>, %24, %cst_26 [1] : vector<32x128xf32> to vector<32xf32>
      %28 = vector.shape_cast %27 : vector<32xf32> to vector<32x1xf32>
      %cst_27 = arith.constant 1.280000e+02 : f32
      %29 = vector.broadcast %cst_27 : f32 to vector<32x1xf32>
      %30 = arith.divf %28, %29 : vector<32x1xf32>
      %31 = vector.broadcast %30 : vector<32x1xf32> to vector<32x128xf32>
      %32 = arith.subf %24, %31 : vector<32x128xf32>
      %33 = arith.mulf %32, %32 : vector<32x128xf32>
      %cst_28 = arith.constant dense<0.000000e+00> : vector<32xf32>
      %34 = vector.multi_reduction <add>, %33, %cst_28 [1] : vector<32x128xf32> to vector<32xf32>
      %35 = vector.shape_cast %34 : vector<32xf32> to vector<32x1xf32>
      %cst_29 = arith.constant 1.280000e+02 : f32
      %36 = vector.broadcast %cst_29 : f32 to vector<32x1xf32>
      %37 = arith.divf %35, %36 : vector<32x1xf32>
      %38 = vector.broadcast %30 : vector<32x1xf32> to vector<32x128xf32>
      %39 = arith.subf %24, %38 : vector<32x128xf32>
      %cst_30 = arith.constant 9.99999974E-6 : f32
      %40 = vector.broadcast %cst_30 : f32 to vector<32x1xf32>
      %41 = arith.addf %37, %40 : vector<32x1xf32>
      %42 = math.rsqrt %41 : vector<32x1xf32>
      %43 = vector.broadcast %42 : vector<32x1xf32> to vector<32x128xf32>
      %44 = arith.mulf %39, %43 : vector<32x128xf32>
      %45 = vector.broadcast %25 : vector<1x128xf32> to vector<32x128xf32>
      %46 = arith.mulf %44, %45 : vector<32x128xf32>
      %47 = vector.broadcast %26 : vector<1x128xf32> to vector<32x128xf32>
      %48 = arith.addf %46, %47 : vector<32x128xf32>
      %c0_31 = arith.constant 0 : index
      %c0_32 = arith.constant 0 : index
      %49 = vector.load %arg10[%c0_31, %c0_32] : memref<32x128xf32, #tpu.memory_space<vmem>>, vector<32x128xf32>
      tpu.vector_store %arg10[%c0_31, %c0_32], %48 {strides = array<i32>} : memref<32x128xf32, #tpu.memory_space<vmem>>, vector<32x128xf32>,
    } else {
    }
    return
  }
  func.func @transform_0(%arg0: i32, %arg1: i32) -> (i32, i32) {
    %c0_i32 = arith.constant 0 : i32
    %c0_i32_0 = arith.constant 0 : i32
    return %arg0, %c0_i32 : i32, i32
  }
  func.func @transform_1(%arg0: i32, %arg1: i32) -> (i32, i32) {
    %c0_i32 = arith.constant 0 : i32
    %c0_i32_0 = arith.constant 0 : i32
    return %c0_i32, %arg1 : i32, i32
  }
  func.func @transform_2(%arg0: i32, %arg1: i32) -> (i32, i32) {
    %c0_i32 = arith.constant 0 : i32
    %c0_i32_0 = arith.constant 0 : i32
    return %c0_i32, %arg1 : i32, i32
  }
  func.func @transform_3(%arg0: i32, %arg1: i32) -> (i32, i32) {
    %c0_i32 = arith.constant 0 : i32
    %c0_i32_0 = arith.constant 0 : i32
    return %arg1, %c0_i32 : i32, i32
  }
  func.func @transform_4(%arg0: i32, %arg1: i32) -> (i32, i32) {
    %c0_i32 = arith.constant 0 : i32
    %c0_i32_0 = arith.constant 0 : i32
    %c0_i32_1 = arith.constant 0 : i32
    return %c0_i32, %c0_i32_0 : i32, i32
  }
  func.func @transform_5(%arg0: i32, %arg1: i32) -> (i32, i32) {
    %c0_i32 = arith.constant 0 : i32
    %c0_i32_0 = arith.constant 0 : i32
    return %arg0, %c0_i32 : i32, i32
  }
  func.func @transform_6(%arg0: i32, %arg1: i32) -> (i32, i32) {
    %c0_i32 = arith.constant 0 : i32
    %c0_i32_0 = arith.constant 0 : i32
    %c0_i32_1 = arith.constant 0 : i32
    return %c0_i32, %c0_i32_0 : i32, i32
  }
  func.func @transform_7(%arg0: i32, %arg1: i32) -> (i32, i32) {
    %c0_i32 = arith.constant 0 : i32
    %c0_i32_0 = arith.constant 0 : i32
    %c0_i32_1 = arith.constant 0 : i32
    return %c0_i32, %c0_i32_0 : i32, i32
  }
  func.func @transform_8(%arg0: i32, %arg1: i32) -> (i32, i32) {
    %c0_i32 = arith.constant 0 : i32
    %c0_i32_0 = arith.constant 0 : i32
    return %arg0, %c0_i32 : i32, i32
  }
}

module attributes {stable_mosaic.version = 11 : i64} {
  func.func @_qkv_proj_kernel(%arg0: i32, %arg1: memref<32x128xf32, #tpu.memory_space<vmem>>, %arg2: memref<32x128xf32, #tpu.memory_space<vmem>>, %arg3: memref<1x128xf32, #tpu.memory_space<vmem>>, %arg4: memref<1x128xf32, #tpu.memory_space<vmem>>, %arg5: memref<128x128xf32, #tpu.memory_space<vmem>>, %arg6: memref<1x128xf32, #tpu.memory_space<vmem>>, %arg7: memref<128x128xf32, #tpu.memory_space<vmem>>, %arg8: memref<1x128xf32, #tpu.memory_space<vmem>>, %arg9: memref<128x128xf32, #tpu.memory_space<vmem>>, %arg10: memref<1x128xf32, #tpu.memory_space<vmem>>, %arg11: memref<32x128xf32, #tpu.memory_space<vmem>>, %arg12: memref<32x128xf32, #tpu.memory_space<vmem>>, %arg13: memref<32x128xf32, #tpu.memory_space<vmem>>) attributes {dimension_semantics = [#tpu.dimension_semantics<parallel>], iteration_bounds = array<i64: 1>, scalar_prefetch = 0 : i64, scratch_operands = 0 : i64, tpu.core_type = #tpu.core_type<tc>, window_params = [{transform_indices = @transform_0, window_bounds = array<i64: 32, 128>}, {transform_indices = @transform_1, window_bounds = array<i64: 32, 128>}, {pipeline_mode = #tpu.pipeline_mode<synchronous>, transform_indices = @transform_2, window_bounds = array<i64: 1, 128>}, {pipeline_mode = #tpu.pipeline_mode<synchronous>, transform_indices = @transform_3, window_bounds = array<i64: 1, 128>}, {pipeline_mode = #tpu.pipeline_mode<synchronous>, transform_indices = @transform_4, window_bounds = array<i64: 128, 128>}, {pipeline_mode = #tpu.pipeline_mode<synchronous>, transform_indices = @transform_5, window_bounds = array<i64: 1, 128>}, {pipeline_mode = #tpu.pipeline_mode<synchronous>, transform_indices = @transform_6, window_bounds = array<i64: 128, 128>}, {pipeline_mode = #tpu.pipeline_mode<synchronous>, transform_indices = @transform_7, window_bounds = array<i64: 1, 128>}, {pipeline_mode = #tpu.pipeline_mode<synchronous>, transform_indices = @transform_8, window_bounds = array<i64: 128, 128>}, {pipeline_mode = #tpu.pipeline_mode<synchronous>, transform_indices = @transform_9, window_bounds = array<i64: 1, 128>}, {transform_indices = @transform_10, window_bounds = array<i64: 32, 128>}, {transform_indices = @transform_11, window_bounds = array<i64: 32, 128>}, {transform_indices = @transform_12, window_bounds = array<i64: 32, 128>}]} {
    %c0 = arith.constant 0 : index
    %c0_0 = arith.constant 0 : index
    %0 = vector.load %arg1[%c0, %c0_0] : memref<32x128xf32, #tpu.memory_space<vmem>>, vector<32x128xf32>
    %c0_1 = arith.constant 0 : index
    %c0_2 = arith.constant 0 : index
    %1 = vector.load %arg3[%c0_1, %c0_2] : memref<1x128xf32, #tpu.memory_space<vmem>>, vector<1x128xf32>
    %c0_3 = arith.constant 0 : index
    %c0_4 = arith.constant 0 : index
    %2 = vector.load %arg4[%c0_3, %c0_4] : memref<1x128xf32, #tpu.memory_space<vmem>>, vector<1x128xf32>
    %cst = arith.constant dense<0.000000e+00> : vector<32xf32>
    %3 = vector.multi_reduction <add>, %0, %cst [1] : vector<32x128xf32> to vector<32xf32>
    %4 = vector.shape_cast %3 : vector<32xf32> to vector<32x1xf32>
    %cst_5 = arith.constant 1.280000e+02 : f32
    %5 = vector.broadcast %cst_5 : f32 to vector<32x1xf32>
    %6 = arith.divf %4, %5 : vector<32x1xf32>
    %7 = vector.broadcast %6 : vector<32x1xf32> to vector<32x128xf32>
    %8 = arith.subf %0, %7 : vector<32x128xf32>
    %9 = arith.mulf %8, %8 : vector<32x128xf32>
    %cst_6 = arith.constant dense<0.000000e+00> : vector<32xf32>
    %10 = vector.multi_reduction <add>, %9, %cst_6 [1] : vector<32x128xf32> to vector<32xf32>
    %11 = vector.shape_cast %10 : vector<32xf32> to vector<32x1xf32>
    %cst_7 = arith.constant 1.280000e+02 : f32
    %12 = vector.broadcast %cst_7 : f32 to vector<32x1xf32>
    %13 = arith.divf %11, %12 : vector<32x1xf32>
    %14 = vector.broadcast %6 : vector<32x1xf32> to vector<32x128xf32>
    %15 = arith.subf %0, %14 : vector<32x128xf32>
    %cst_8 = arith.constant 9.99999974E-6 : f32
    %16 = vector.broadcast %cst_8 : f32 to vector<32x1xf32>
    %17 = arith.addf %13, %16 : vector<32x1xf32>
    %18 = math.rsqrt %17 : vector<32x1xf32>
    %19 = vector.broadcast %18 : vector<32x1xf32> to vector<32x128xf32>
    %20 = arith.mulf %15, %19 : vector<32x128xf32>
    %21 = vector.broadcast %1 : vector<1x128xf32> to vector<32x128xf32>
    %22 = arith.mulf %20, %21 : vector<32x128xf32>
    %23 = vector.broadcast %2 : vector<1x128xf32> to vector<32x128xf32>
    %24 = arith.addf %22, %23 : vector<32x128xf32>
    %c0_9 = arith.constant 0 : index
    %c0_10 = arith.constant 0 : index
    %25 = vector.load %arg2[%c0_9, %c0_10] : memref<32x128xf32, #tpu.memory_space<vmem>>, vector<32x128xf32>
    %26 = arith.addf %24, %25 : vector<32x128xf32>
    %c0_11 = arith.constant 0 : index
    %c0_12 = arith.constant 0 : index
    %27 = vector.load %arg5[%c0_11, %c0_12] : memref<128x128xf32, #tpu.memory_space<vmem>>, vector<128x128xf32>
    %cst_13 = arith.constant dense<0.000000e+00> : vector<32x128xf32>
    %28 = tpu.matmul %26, %27, %cst_13 {dimension_numbers = #tpu.dot_dimension_numbers<[1], [0], [0], [1], [0, 0, 1, 1], [], []>} : vector<32x128xf32>, vector<128x128xf32>, vector<32x128xf32> -> vector<32x128xf32>
    %c0_14 = arith.constant 0 : index
    %c0_15 = arith.constant 0 : index
    %29 = vector.load %arg6[%c0_14, %c0_15] : memref<1x128xf32, #tpu.memory_space<vmem>>, vector<1x128xf32>
    %30 = vector.broadcast %29 : vector<1x128xf32> to vector<32x128xf32>
    %31 = arith.addf %28, %30 : vector<32x128xf32>
    %c0_16 = arith.constant 0 : index
    %c0_17 = arith.constant 0 : index
    %32 = vector.load %arg11[%c0_16, %c0_17] : memref<32x128xf32, #tpu.memory_space<vmem>>, vector<32x128xf32>
    tpu.vector_store %arg11[%c0_16, %c0_17], %31 {strides = array<i32>} : memref<32x128xf32, #tpu.memory_space<vmem>>, vector<32x128xf32>,
    %c0_18 = arith.constant 0 : index
    %c0_19 = arith.constant 0 : index
    %33 = vector.load %arg7[%c0_18, %c0_19] : memref<128x128xf32, #tpu.memory_space<vmem>>, vector<128x128xf32>
    %cst_20 = arith.constant dense<0.000000e+00> : vector<32x128xf32>
    %34 = tpu.matmul %26, %33, %cst_20 {dimension_numbers = #tpu.dot_dimension_numbers<[1], [0], [0], [1], [0, 0, 1, 1], [], []>} : vector<32x128xf32>, vector<128x128xf32>, vector<32x128xf32> -> vector<32x128xf32>
    %c0_21 = arith.constant 0 : index
    %c0_22 = arith.constant 0 : index
    %35 = vector.load %arg8[%c0_21, %c0_22] : memref<1x128xf32, #tpu.memory_space<vmem>>, vector<1x128xf32>
    %36 = vector.broadcast %35 : vector<1x128xf32> to vector<32x128xf32>
    %37 = arith.addf %34, %36 : vector<32x128xf32>
    %c0_23 = arith.constant 0 : index
    %c0_24 = arith.constant 0 : index
    %38 = vector.load %arg12[%c0_23, %c0_24] : memref<32x128xf32, #tpu.memory_space<vmem>>, vector<32x128xf32>
    tpu.vector_store %arg12[%c0_23, %c0_24], %37 {strides = array<i32>} : memref<32x128xf32, #tpu.memory_space<vmem>>, vector<32x128xf32>,
    %c0_25 = arith.constant 0 : index
    %c0_26 = arith.constant 0 : index
    %39 = vector.load %arg9[%c0_25, %c0_26] : memref<128x128xf32, #tpu.memory_space<vmem>>, vector<128x128xf32>
    %cst_27 = arith.constant dense<0.000000e+00> : vector<32x128xf32>
    %40 = tpu.matmul %24, %39, %cst_27 {dimension_numbers = #tpu.dot_dimension_numbers<[1], [0], [0], [1], [0, 0, 1, 1], [], []>} : vector<32x128xf32>, vector<128x128xf32>, vector<32x128xf32> -> vector<32x128xf32>
    %c0_28 = arith.constant 0 : index
    %c0_29 = arith.constant 0 : index
    %41 = vector.load %arg10[%c0_28, %c0_29] : memref<1x128xf32, #tpu.memory_space<vmem>>, vector<1x128xf32>
    %42 = vector.broadcast %41 : vector<1x128xf32> to vector<32x128xf32>
    %43 = arith.addf %40, %42 : vector<32x128xf32>
    %c0_30 = arith.constant 0 : index
    %c0_31 = arith.constant 0 : index
    %44 = vector.load %arg13[%c0_30, %c0_31] : memref<32x128xf32, #tpu.memory_space<vmem>>, vector<32x128xf32>
    tpu.vector_store %arg13[%c0_30, %c0_31], %43 {strides = array<i32>} : memref<32x128xf32, #tpu.memory_space<vmem>>, vector<32x128xf32>,
    return
  }
  func.func @transform_0(%arg0: i32) -> (i32, i32) {
    %c0_i32 = arith.constant 0 : i32
    %c0_i32_0 = arith.constant 0 : i32
    return %arg0, %c0_i32 : i32, i32
  }
  func.func @transform_1(%arg0: i32) -> (i32, i32) {
    %c0_i32 = arith.constant 0 : i32
    %c0_i32_0 = arith.constant 0 : i32
    return %arg0, %c0_i32 : i32, i32
  }
  func.func @transform_2(%arg0: i32) -> (i32, i32) {
    %c0_i32 = arith.constant 0 : i32
    %c0_i32_0 = arith.constant 0 : i32
    %c0_i32_1 = arith.constant 0 : i32
    return %c0_i32, %c0_i32_0 : i32, i32
  }
  func.func @transform_3(%arg0: i32) -> (i32, i32) {
    %c0_i32 = arith.constant 0 : i32
    %c0_i32_0 = arith.constant 0 : i32
    %c0_i32_1 = arith.constant 0 : i32
    return %c0_i32, %c0_i32_0 : i32, i32
  }
  func.func @transform_4(%arg0: i32) -> (i32, i32) {
    %c0_i32 = arith.constant 0 : i32
    %c0_i32_0 = arith.constant 0 : i32
    %c0_i32_1 = arith.constant 0 : i32
    return %c0_i32, %c0_i32_0 : i32, i32
  }
  func.func @transform_5(%arg0: i32) -> (i32, i32) {
    %c0_i32 = arith.constant 0 : i32
    %c0_i32_0 = arith.constant 0 : i32
    %c0_i32_1 = arith.constant 0 : i32
    return %c0_i32, %c0_i32_0 : i32, i32
  }
  func.func @transform_6(%arg0: i32) -> (i32, i32) {
    %c0_i32 = arith.constant 0 : i32
    %c0_i32_0 = arith.constant 0 : i32
    %c0_i32_1 = arith.constant 0 : i32
    return %c0_i32, %c0_i32_0 : i32, i32
  }
  func.func @transform_7(%arg0: i32) -> (i32, i32) {
    %c0_i32 = arith.constant 0 : i32
    %c0_i32_0 = arith.constant 0 : i32
    %c0_i32_1 = arith.constant 0 : i32
    return %c0_i32, %c0_i32_0 : i32, i32
  }
  func.func @transform_8(%arg0: i32) -> (i32, i32) {
    %c0_i32 = arith.constant 0 : i32
    %c0_i32_0 = arith.constant 0 : i32
    %c0_i32_1 = arith.constant 0 : i32
    return %c0_i32, %c0_i32_0 : i32, i32
  }
  func.func @transform_9(%arg0: i32) -> (i32, i32) {
    %c0_i32 = arith.constant 0 : i32
    %c0_i32_0 = arith.constant 0 : i32
    %c0_i32_1 = arith.constant 0 : i32
    return %c0_i32, %c0_i32_0 : i32, i32
  }
  func.func @transform_10(%arg0: i32) -> (i32, i32) {
    %c0_i32 = arith.constant 0 : i32
    %c0_i32_0 = arith.constant 0 : i32
    return %arg0, %c0_i32 : i32, i32
  }
  func.func @transform_11(%arg0: i32) -> (i32, i32) {
    %c0_i32 = arith.constant 0 : i32
    %c0_i32_0 = arith.constant 0 : i32
    return %arg0, %c0_i32 : i32, i32
  }
  func.func @transform_12(%arg0: i32) -> (i32, i32) {
    %c0_i32 = arith.constant 0 : i32
    %c0_i32_0 = arith.constant 0 : i32
    return %arg0, %c0_i32 : i32, i32
  }
}

module attributes {stable_mosaic.version = 11 : i64} {
  func.func @_kv_proj_kernel(%arg0: i32, %arg1: memref<32x128xf32, #tpu.memory_space<vmem>>, %arg2: memref<32x128xf32, #tpu.memory_space<vmem>>, %arg3: memref<128x128xf32, #tpu.memory_space<vmem>>, %arg4: memref<1x128xf32, #tpu.memory_space<vmem>>, %arg5: memref<128x128xf32, #tpu.memory_space<vmem>>, %arg6: memref<1x128xf32, #tpu.memory_space<vmem>>, %arg7: memref<32x128xf32, #tpu.memory_space<vmem>>, %arg8: memref<32x128xf32, #tpu.memory_space<vmem>>) attributes {dimension_semantics = [#tpu.dimension_semantics<parallel>], iteration_bounds = array<i64: 1>, scalar_prefetch = 0 : i64, scratch_operands = 0 : i64, tpu.core_type = #tpu.core_type<tc>, window_params = [{transform_indices = @transform_0, window_bounds = array<i64: 32, 128>}, {transform_indices = @transform_1, window_bounds = array<i64: 32, 128>}, {pipeline_mode = #tpu.pipeline_mode<synchronous>, transform_indices = @transform_2, window_bounds = array<i64: 128, 128>}, {pipeline_mode = #tpu.pipeline_mode<synchronous>, transform_indices = @transform_3, window_bounds = array<i64: 1, 128>}, {pipeline_mode = #tpu.pipeline_mode<synchronous>, transform_indices = @transform_4, window_bounds = array<i64: 128, 128>}, {pipeline_mode = #tpu.pipeline_mode<synchronous>, transform_indices = @transform_5, window_bounds = array<i64: 1, 128>}, {transform_indices = @transform_6, window_bounds = array<i64: 32, 128>}, {transform_indices = @transform_7, window_bounds = array<i64: 32, 128>}]} {
    %c0 = arith.constant 0 : index
    %c0_0 = arith.constant 0 : index
    %0 = vector.load %arg1[%c0, %c0_0] : memref<32x128xf32, #tpu.memory_space<vmem>>, vector<32x128xf32>
    %c0_1 = arith.constant 0 : index
    %c0_2 = arith.constant 0 : index
    %1 = vector.load %arg2[%c0_1, %c0_2] : memref<32x128xf32, #tpu.memory_space<vmem>>, vector<32x128xf32>
    %2 = arith.addf %0, %1 : vector<32x128xf32>
    %c0_3 = arith.constant 0 : index
    %c0_4 = arith.constant 0 : index
    %3 = vector.load %arg3[%c0_3, %c0_4] : memref<128x128xf32, #tpu.memory_space<vmem>>, vector<128x128xf32>
    %cst = arith.constant dense<0.000000e+00> : vector<32x128xf32>
    %4 = tpu.matmul %2, %3, %cst {dimension_numbers = #tpu.dot_dimension_numbers<[1], [0], [0], [1], [0, 0, 1, 1], [], []>} : vector<32x128xf32>, vector<128x128xf32>, vector<32x128xf32> -> vector<32x128xf32>
    %c0_5 = arith.constant 0 : index
    %c0_6 = arith.constant 0 : index
    %5 = vector.load %arg4[%c0_5, %c0_6] : memref<1x128xf32, #tpu.memory_space<vmem>>, vector<1x128xf32>
    %6 = vector.broadcast %5 : vector<1x128xf32> to vector<32x128xf32>
    %7 = arith.addf %4, %6 : vector<32x128xf32>
    %c0_7 = arith.constant 0 : index
    %c0_8 = arith.constant 0 : index
    %8 = vector.load %arg7[%c0_7, %c0_8] : memref<32x128xf32, #tpu.memory_space<vmem>>, vector<32x128xf32>
    tpu.vector_store %arg7[%c0_7, %c0_8], %7 {strides = array<i32>} : memref<32x128xf32, #tpu.memory_space<vmem>>, vector<32x128xf32>,
    %c0_9 = arith.constant 0 : index
    %c0_10 = arith.constant 0 : index
    %9 = vector.load %arg5[%c0_9, %c0_10] : memref<128x128xf32, #tpu.memory_space<vmem>>, vector<128x128xf32>
    %cst_11 = arith.constant dense<0.000000e+00> : vector<32x128xf32>
    %10 = tpu.matmul %0, %9, %cst_11 {dimension_numbers = #tpu.dot_dimension_numbers<[1], [0], [0], [1], [0, 0, 1, 1], [], []>} : vector<32x128xf32>, vector<128x128xf32>, vector<32x128xf32> -> vector<32x128xf32>
    %c0_12 = arith.constant 0 : index
    %c0_13 = arith.constant 0 : index
    %11 = vector.load %arg6[%c0_12, %c0_13] : memref<1x128xf32, #tpu.memory_space<vmem>>, vector<1x128xf32>
    %12 = vector.broadcast %11 : vector<1x128xf32> to vector<32x128xf32>
    %13 = arith.addf %10, %12 : vector<32x128xf32>
    %c0_14 = arith.constant 0 : index
    %c0_15 = arith.constant 0 : index
    %14 = vector.load %arg8[%c0_14, %c0_15] : memref<32x128xf32, #tpu.memory_space<vmem>>, vector<32x128xf32>
    tpu.vector_store %arg8[%c0_14, %c0_15], %13 {strides = array<i32>} : memref<32x128xf32, #tpu.memory_space<vmem>>, vector<32x128xf32>,
    return
  }
  func.func @transform_0(%arg0: i32) -> (i32, i32) {
    %c0_i32 = arith.constant 0 : i32
    %c0_i32_0 = arith.constant 0 : i32
    return %arg0, %c0_i32 : i32, i32
  }
  func.func @transform_1(%arg0: i32) -> (i32, i32) {
    %c0_i32 = arith.constant 0 : i32
    %c0_i32_0 = arith.constant 0 : i32
    return %arg0, %c0_i32 : i32, i32
  }
  func.func @transform_2(%arg0: i32) -> (i32, i32) {
    %c0_i32 = arith.constant 0 : i32
    %c0_i32_0 = arith.constant 0 : i32
    %c0_i32_1 = arith.constant 0 : i32
    return %c0_i32, %c0_i32_0 : i32, i32
  }
  func.func @transform_3(%arg0: i32) -> (i32, i32) {
    %c0_i32 = arith.constant 0 : i32
    %c0_i32_0 = arith.constant 0 : i32
    %c0_i32_1 = arith.constant 0 : i32
    return %c0_i32, %c0_i32_0 : i32, i32
  }
  func.func @transform_4(%arg0: i32) -> (i32, i32) {
    %c0_i32 = arith.constant 0 : i32
    %c0_i32_0 = arith.constant 0 : i32
    %c0_i32_1 = arith.constant 0 : i32
    return %c0_i32, %c0_i32_0 : i32, i32
  }
  func.func @transform_5(%arg0: i32) -> (i32, i32) {
    %c0_i32 = arith.constant 0 : i32
    %c0_i32_0 = arith.constant 0 : i32
    %c0_i32_1 = arith.constant 0 : i32
    return %c0_i32, %c0_i32_0 : i32, i32
  }
  func.func @transform_6(%arg0: i32) -> (i32, i32) {
    %c0_i32 = arith.constant 0 : i32
    %c0_i32_0 = arith.constant 0 : i32
    return %arg0, %c0_i32 : i32, i32
  }
  func.func @transform_7(%arg0: i32) -> (i32, i32) {
    %c0_i32 = arith.constant 0 : i32
    %c0_i32_0 = arith.constant 0 : i32
    return %arg0, %c0_i32 : i32, i32
  }
}

module attributes {stable_mosaic.version = 11 : i64} {
  func.func @_qkv_proj_kernel(%arg0: i32, %arg1: memref<16x128xf32, #tpu.memory_space<vmem>>, %arg2: memref<16x128xf32, #tpu.memory_space<vmem>>, %arg3: memref<1x128xf32, #tpu.memory_space<vmem>>, %arg4: memref<1x128xf32, #tpu.memory_space<vmem>>, %arg5: memref<128x128xf32, #tpu.memory_space<vmem>>, %arg6: memref<1x128xf32, #tpu.memory_space<vmem>>, %arg7: memref<128x128xf32, #tpu.memory_space<vmem>>, %arg8: memref<1x128xf32, #tpu.memory_space<vmem>>, %arg9: memref<128x128xf32, #tpu.memory_space<vmem>>, %arg10: memref<1x128xf32, #tpu.memory_space<vmem>>, %arg11: memref<16x128xf32, #tpu.memory_space<vmem>>, %arg12: memref<16x128xf32, #tpu.memory_space<vmem>>, %arg13: memref<16x128xf32, #tpu.memory_space<vmem>>) attributes {dimension_semantics = [#tpu.dimension_semantics<parallel>], iteration_bounds = array<i64: 1>, scalar_prefetch = 0 : i64, scratch_operands = 0 : i64, tpu.core_type = #tpu.core_type<tc>, window_params = [{transform_indices = @transform_0, window_bounds = array<i64: 16, 128>}, {transform_indices = @transform_1, window_bounds = array<i64: 16, 128>}, {pipeline_mode = #tpu.pipeline_mode<synchronous>, transform_indices = @transform_2, window_bounds = array<i64: 1, 128>}, {pipeline_mode = #tpu.pipeline_mode<synchronous>, transform_indices = @transform_3, window_bounds = array<i64: 1, 128>}, {pipeline_mode = #tpu.pipeline_mode<synchronous>, transform_indices = @transform_4, window_bounds = array<i64: 128, 128>}, {pipeline_mode = #tpu.pipeline_mode<synchronous>, transform_indices = @transform_5, window_bounds = array<i64: 1, 128>}, {pipeline_mode = #tpu.pipeline_mode<synchronous>, transform_indices = @transform_6, window_bounds = array<i64: 128, 128>}, {pipeline_mode = #tpu.pipeline_mode<synchronous>, transform_indices = @transform_7, window_bounds = array<i64: 1, 128>}, {pipeline_mode = #tpu.pipeline_mode<synchronous>, transform_indices = @transform_8, window_bounds = array<i64: 128, 128>}, {pipeline_mode = #tpu.pipeline_mode<synchronous>, transform_indices = @transform_9, window_bounds = array<i64: 1, 128>}, {transform_indices = @transform_10, window_bounds = array<i64: 16, 128>}, {transform_indices = @transform_11, window_bounds = array<i64: 16, 128>}, {transform_indices = @transform_12, window_bounds = array<i64: 16, 128>}]} {
    %c0 = arith.constant 0 : index
    %c0_0 = arith.constant 0 : index
    %0 = vector.load %arg1[%c0, %c0_0] : memref<16x128xf32, #tpu.memory_space<vmem>>, vector<16x128xf32>
    %c0_1 = arith.constant 0 : index
    %c0_2 = arith.constant 0 : index
    %1 = vector.load %arg2[%c0_1, %c0_2] : memref<16x128xf32, #tpu.memory_space<vmem>>, vector<16x128xf32>
    %2 = arith.addf %0, %1 : vector<16x128xf32>
    %c0_3 = arith.constant 0 : index
    %c0_4 = arith.constant 0 : index
    %3 = vector.load %arg5[%c0_3, %c0_4] : memref<128x128xf32, #tpu.memory_space<vmem>>, vector<128x128xf32>
    %cst = arith.constant dense<0.000000e+00> : vector<16x128xf32>
    %4 = tpu.matmul %2, %3, %cst {dimension_numbers = #tpu.dot_dimension_numbers<[1], [0], [0], [1], [0, 0, 1, 1], [], []>} : vector<16x128xf32>, vector<128x128xf32>, vector<16x128xf32> -> vector<16x128xf32>
    %c0_5 = arith.constant 0 : index
    %c0_6 = arith.constant 0 : index
    %5 = vector.load %arg6[%c0_5, %c0_6] : memref<1x128xf32, #tpu.memory_space<vmem>>, vector<1x128xf32>
    %6 = vector.broadcast %5 : vector<1x128xf32> to vector<16x128xf32>
    %7 = arith.addf %4, %6 : vector<16x128xf32>
    %c0_7 = arith.constant 0 : index
    %c0_8 = arith.constant 0 : index
    %8 = vector.load %arg11[%c0_7, %c0_8] : memref<16x128xf32, #tpu.memory_space<vmem>>, vector<16x128xf32>
    tpu.vector_store %arg11[%c0_7, %c0_8], %7 {strides = array<i32>} : memref<16x128xf32, #tpu.memory_space<vmem>>, vector<16x128xf32>,
    %c0_9 = arith.constant 0 : index
    %c0_10 = arith.constant 0 : index
    %9 = vector.load %arg7[%c0_9, %c0_10] : memref<128x128xf32, #tpu.memory_space<vmem>>, vector<128x128xf32>
    %cst_11 = arith.constant dense<0.000000e+00> : vector<16x128xf32>
    %10 = tpu.matmul %2, %9, %cst_11 {dimension_numbers = #tpu.dot_dimension_numbers<[1], [0], [0], [1], [0, 0, 1, 1], [], []>} : vector<16x128xf32>, vector<128x128xf32>, vector<16x128xf32> -> vector<16x128xf32>
    %c0_12 = arith.constant 0 : index
    %c0_13 = arith.constant 0 : index
    %11 = vector.load %arg8[%c0_12, %c0_13] : memref<1x128xf32, #tpu.memory_space<vmem>>, vector<1x128xf32>
    %12 = vector.broadcast %11 : vector<1x128xf32> to vector<16x128xf32>
    %13 = arith.addf %10, %12 : vector<16x128xf32>
    %c0_14 = arith.constant 0 : index
    %c0_15 = arith.constant 0 : index
    %14 = vector.load %arg12[%c0_14, %c0_15] : memref<16x128xf32, #tpu.memory_space<vmem>>, vector<16x128xf32>
    tpu.vector_store %arg12[%c0_14, %c0_15], %13 {strides = array<i32>} : memref<16x128xf32, #tpu.memory_space<vmem>>, vector<16x128xf32>,
    %c0_16 = arith.constant 0 : index
    %c0_17 = arith.constant 0 : index
    %15 = vector.load %arg9[%c0_16, %c0_17] : memref<128x128xf32, #tpu.memory_space<vmem>>, vector<128x128xf32>
    %cst_18 = arith.constant dense<0.000000e+00> : vector<16x128xf32>
    %16 = tpu.matmul %0, %15, %cst_18 {dimension_numbers = #tpu.dot_dimension_numbers<[1], [0], [0], [1], [0, 0, 1, 1], [], []>} : vector<16x128xf32>, vector<128x128xf32>, vector<16x128xf32> -> vector<16x128xf32>
    %c0_19 = arith.constant 0 : index
    %c0_20 = arith.constant 0 : index
    %17 = vector.load %arg10[%c0_19, %c0_20] : memref<1x128xf32, #tpu.memory_space<vmem>>, vector<1x128xf32>
    %18 = vector.broadcast %17 : vector<1x128xf32> to vector<16x128xf32>
    %19 = arith.addf %16, %18 : vector<16x128xf32>
    %c0_21 = arith.constant 0 : index
    %c0_22 = arith.constant 0 : index
    %20 = vector.load %arg13[%c0_21, %c0_22] : memref<16x128xf32, #tpu.memory_space<vmem>>, vector<16x128xf32>
    tpu.vector_store %arg13[%c0_21, %c0_22], %19 {strides = array<i32>} : memref<16x128xf32, #tpu.memory_space<vmem>>, vector<16x128xf32>,
    return
  }
  func.func @transform_0(%arg0: i32) -> (i32, i32) {
    %c0_i32 = arith.constant 0 : i32
    %c0_i32_0 = arith.constant 0 : i32
    return %arg0, %c0_i32 : i32, i32
  }
  func.func @transform_1(%arg0: i32) -> (i32, i32) {
    %c0_i32 = arith.constant 0 : i32
    %c0_i32_0 = arith.constant 0 : i32
    return %arg0, %c0_i32 : i32, i32
  }
  func.func @transform_2(%arg0: i32) -> (i32, i32) {
    %c0_i32 = arith.constant 0 : i32
    %c0_i32_0 = arith.constant 0 : i32
    %c0_i32_1 = arith.constant 0 : i32
    return %c0_i32, %c0_i32_0 : i32, i32
  }
  func.func @transform_3(%arg0: i32) -> (i32, i32) {
    %c0_i32 = arith.constant 0 : i32
    %c0_i32_0 = arith.constant 0 : i32
    %c0_i32_1 = arith.constant 0 : i32
    return %c0_i32, %c0_i32_0 : i32, i32
  }
  func.func @transform_4(%arg0: i32) -> (i32, i32) {
    %c0_i32 = arith.constant 0 : i32
    %c0_i32_0 = arith.constant 0 : i32
    %c0_i32_1 = arith.constant 0 : i32
    return %c0_i32, %c0_i32_0 : i32, i32
  }
  func.func @transform_5(%arg0: i32) -> (i32, i32) {
    %c0_i32 = arith.constant 0 : i32
    %c0_i32_0 = arith.constant 0 : i32
    %c0_i32_1 = arith.constant 0 : i32
    return %c0_i32, %c0_i32_0 : i32, i32
  }
  func.func @transform_6(%arg0: i32) -> (i32, i32) {
    %c0_i32 = arith.constant 0 : i32
    %c0_i32_0 = arith.constant 0 : i32
    %c0_i32_1 = arith.constant 0 : i32
    return %c0_i32, %c0_i32_0 : i32, i32
  }
  func.func @transform_7(%arg0: i32) -> (i32, i32) {
    %c0_i32 = arith.constant 0 : i32
    %c0_i32_0 = arith.constant 0 : i32
    %c0_i32_1 = arith.constant 0 : i32
    return %c0_i32, %c0_i32_0 : i32, i32
  }
  func.func @transform_8(%arg0: i32) -> (i32, i32) {
    %c0_i32 = arith.constant 0 : i32
    %c0_i32_0 = arith.constant 0 : i32
    %c0_i32_1 = arith.constant 0 : i32
    return %c0_i32, %c0_i32_0 : i32, i32
  }
  func.func @transform_9(%arg0: i32) -> (i32, i32) {
    %c0_i32 = arith.constant 0 : i32
    %c0_i32_0 = arith.constant 0 : i32
    %c0_i32_1 = arith.constant 0 : i32
    return %c0_i32, %c0_i32_0 : i32, i32
  }
  func.func @transform_10(%arg0: i32) -> (i32, i32) {
    %c0_i32 = arith.constant 0 : i32
    %c0_i32_0 = arith.constant 0 : i32
    return %arg0, %c0_i32 : i32, i32
  }
  func.func @transform_11(%arg0: i32) -> (i32, i32) {
    %c0_i32 = arith.constant 0 : i32
    %c0_i32_0 = arith.constant 0 : i32
    return %arg0, %c0_i32 : i32, i32
  }
  func.func @transform_12(%arg0: i32) -> (i32, i32) {
    %c0_i32 = arith.constant 0 : i32
    %c0_i32_0 = arith.constant 0 : i32
    return %arg0, %c0_i32 : i32, i32
  }
}

module attributes {stable_mosaic.version = 11 : i64} {
  func.func @_mha_ln_kernel(%arg0: i32, %arg1: memref<1x8x128xf32, #tpu.memory_space<vmem>>, %arg2: memref<1x8x128xf32, #tpu.memory_space<vmem>>, %arg3: memref<1x8x128xf32, #tpu.memory_space<vmem>>, %arg4: memref<1x1x8xf32, #tpu.memory_space<vmem>>, %arg5: memref<128x128xf32, #tpu.memory_space<vmem>>, %arg6: memref<1x128xf32, #tpu.memory_space<vmem>>, %arg7: memref<1x8x128xf32, #tpu.memory_space<vmem>>, %arg8: memref<1x128xf32, #tpu.memory_space<vmem>>, %arg9: memref<1x128xf32, #tpu.memory_space<vmem>>, %arg10: memref<1x8x128xf32, #tpu.memory_space<vmem>>) attributes {dimension_semantics = [#tpu.dimension_semantics<parallel>], iteration_bounds = array<i64: 2>, scalar_prefetch = 0 : i64, scratch_operands = 0 : i64, tpu.core_type = #tpu.core_type<tc>, window_params = [{transform_indices = @transform_0, window_bounds = array<i64: 1, 8, 128>}, {transform_indices = @transform_1, window_bounds = array<i64: 1, 8, 128>}, {transform_indices = @transform_2, window_bounds = array<i64: 1, 8, 128>}, {transform_indices = @transform_3, window_bounds = array<i64: 1, 1, 8>}, {pipeline_mode = #tpu.pipeline_mode<synchronous>, transform_indices = @transform_4, window_bounds = array<i64: 128, 128>}, {pipeline_mode = #tpu.pipeline_mode<synchronous>, transform_indices = @transform_5, window_bounds = array<i64: 1, 128>}, {transform_indices = @transform_6, window_bounds = array<i64: 1, 8, 128>}, {pipeline_mode = #tpu.pipeline_mode<synchronous>, transform_indices = @transform_7, window_bounds = array<i64: 1, 128>}, {pipeline_mode = #tpu.pipeline_mode<synchronous>, transform_indices = @transform_8, window_bounds = array<i64: 1, 128>}, {transform_indices = @transform_9, window_bounds = array<i64: 1, 8, 128>}]} {
    %c0 = arith.constant 0 : index
    %c0_0 = arith.constant 0 : index
    %c0_1 = arith.constant 0 : index
    %0 = vector.load %arg1[%c0, %c0_0, %c0_1] : memref<1x8x128xf32, #tpu.memory_space<vmem>>, vector<1x8x128xf32>
    %1 = vector.shape_cast %0 : vector<1x8x128xf32> to vector<8x128xf32>
    %cst = arith.constant 1.250000e-01 : f32
    %2 = vector.broadcast %cst : f32 to vector<8x128xf32>
    %3 = arith.mulf %1, %2 : vector<8x128xf32>
    %c0_2 = arith.constant 0 : index
    %c0_3 = arith.constant 0 : index
    %c0_4 = arith.constant 0 : index
    %4 = vector.load %arg2[%c0_2, %c0_3, %c0_4] : memref<1x8x128xf32, #tpu.memory_space<vmem>>, vector<1x8x128xf32>
    %5 = vector.shape_cast %4 : vector<1x8x128xf32> to vector<8x128xf32>
    %c0_5 = arith.constant 0 : index
    %c0_6 = arith.constant 0 : index
    %c0_7 = arith.constant 0 : index
    %6 = vector.load %arg3[%c0_5, %c0_6, %c0_7] : memref<1x8x128xf32, #tpu.memory_space<vmem>>, vector<1x8x128xf32>
    %7 = vector.shape_cast %6 : vector<1x8x128xf32> to vector<8x128xf32>
    %c0_8 = arith.constant 0 : index
    %c0_9 = arith.constant 0 : index
    %c0_10 = arith.constant 0 : index
    %8 = vector.load %arg4[%c0_8, %c0_9, %c0_10] : memref<1x1x8xf32, #tpu.memory_space<vmem>>, vector<1x1x8xf32>
    %9 = vector.shape_cast %8 : vector<1x1x8xf32> to vector<1x8xf32>
    %c0_11 = arith.constant 0 : index
    %c0_12 = arith.constant 0 : index
    %10 = vector.load %arg5[%c0_11, %c0_12] : memref<128x128xf32, #tpu.memory_space<vmem>>, vector<128x128xf32>
    %cst_13 = arith.constant 0.000000e+00 : f32
    %11 = vector.broadcast %cst_13 : f32 to vector<8x128xf32>
    %12 = vector.extract_strided_slice %3 {offsets = [0, 0], sizes = [8, 64], strides = [1, 1]} : vector<8x128xf32> to vector<8x64xf32>
    %13 = vector.extract_strided_slice %5 {offsets = [0, 0], sizes = [8, 64], strides = [1, 1]} : vector<8x128xf32> to vector<8x64xf32>
    %cst_14 = arith.constant dense<0.000000e+00> : vector<8x8xf32>
    %14 = tpu.matmul %12, %13, %cst_14 {dimension_numbers = #tpu.dot_dimension_numbers<[1], [1], [0], [0], [0, 0, 1, 0], [], []>} : vector<8x64xf32>, vector<8x64xf32>, vector<8x8xf32> -> vector<8x8xf32>
    %15 = vector.broadcast %9 : vector<1x8xf32> to vector<8x8xf32>
    %16 = arith.addf %14, %15 : vector<8x8xf32>
    %cst_15 = arith.constant dense<0xFF800000> : vector<8xf32>
    %17 = vector.multi_reduction <maximumf>, %16, %cst_15 [1] : vector<8x8xf32> to vector<8xf32>
    %18 = vector.shape_cast %17 : vector<8xf32> to vector<8x1xf32>
    %19 = vector.broadcast %18 : vector<8x1xf32> to vector<8x8xf32>
    %20 = arith.subf %16, %19 : vector<8x8xf32>
    %21 = math.exp %20 : vector<8x8xf32>
    %cst_16 = arith.constant dense<0.000000e+00> : vector<8xf32>
    %22 = vector.multi_reduction <add>, %21, %cst_16 [1] : vector<8x8xf32> to vector<8xf32>
    %23 = vector.shape_cast %22 : vector<8xf32> to vector<8x1xf32>
    %24 = tpu.reciprocal %23 {approx = true} : vector<8x1xf32> -> vector<8x1xf32>
    %25 = vector.broadcast %24 : vector<8x1xf32> to vector<8x8xf32>
    %26 = arith.mulf %21, %25 : vector<8x8xf32>
    %27 = vector.extract_strided_slice %7 {offsets = [0, 0], sizes = [8, 64], strides = [1, 1]} : vector<8x128xf32> to vector<8x64xf32>
    %cst_17 = arith.constant dense<0.000000e+00> : vector<8x64xf32>
    %28 = tpu.matmul %26, %27, %cst_17 {dimension_numbers = #tpu.dot_dimension_numbers<[1], [0], [0], [1], [0, 0, 1, 1], [], []>} : vector<8x8xf32>, vector<8x64xf32>, vector<8x64xf32> -> vector<8x64xf32>
    %29 = vector.extract_strided_slice %10 {offsets = [0, 0], sizes = [64, 128], strides = [1, 1]} : vector<128x128xf32> to vector<64x128xf32>
    %cst_18 = arith.constant dense<0.000000e+00> : vector<8x128xf32>
    %30 = tpu.matmul %28, %29, %cst_18 {dimension_numbers = #tpu.dot_dimension_numbers<[1], [0], [0], [1], [0, 0, 1, 1], [], []>} : vector<8x64xf32>, vector<64x128xf32>, vector<8x128xf32> -> vector<8x128xf32>
    %31 = arith.addf %11, %30 : vector<8x128xf32>
    %32 = vector.extract_strided_slice %3 {offsets = [0, 64], sizes = [8, 64], strides = [1, 1]} : vector<8x128xf32> to vector<8x64xf32>
    %33 = vector.extract_strided_slice %5 {offsets = [0, 64], sizes = [8, 64], strides = [1, 1]} : vector<8x128xf32> to vector<8x64xf32>
    %cst_19 = arith.constant dense<0.000000e+00> : vector<8x8xf32>
    %34 = tpu.matmul %32, %33, %cst_19 {dimension_numbers = #tpu.dot_dimension_numbers<[1], [1], [0], [0], [0, 0, 1, 0], [], []>} : vector<8x64xf32>, vector<8x64xf32>, vector<8x8xf32> -> vector<8x8xf32>
    %35 = vector.broadcast %9 : vector<1x8xf32> to vector<8x8xf32>
    %36 = arith.addf %34, %35 : vector<8x8xf32>
    %cst_20 = arith.constant dense<0xFF800000> : vector<8xf32>
    %37 = vector.multi_reduction <maximumf>, %36, %cst_20 [1] : vector<8x8xf32> to vector<8xf32>
    %38 = vector.shape_cast %37 : vector<8xf32> to vector<8x1xf32>
    %39 = vector.broadcast %38 : vector<8x1xf32> to vector<8x8xf32>
    %40 = arith.subf %36, %39 : vector<8x8xf32>
    %41 = math.exp %40 : vector<8x8xf32>
    %cst_21 = arith.constant dense<0.000000e+00> : vector<8xf32>
    %42 = vector.multi_reduction <add>, %41, %cst_21 [1] : vector<8x8xf32> to vector<8xf32>
    %43 = vector.shape_cast %42 : vector<8xf32> to vector<8x1xf32>
    %44 = tpu.reciprocal %43 {approx = true} : vector<8x1xf32> -> vector<8x1xf32>
    %45 = vector.broadcast %44 : vector<8x1xf32> to vector<8x8xf32>
    %46 = arith.mulf %41, %45 : vector<8x8xf32>
    %47 = vector.extract_strided_slice %7 {offsets = [0, 64], sizes = [8, 64], strides = [1, 1]} : vector<8x128xf32> to vector<8x64xf32>
    %cst_22 = arith.constant dense<0.000000e+00> : vector<8x64xf32>
    %48 = tpu.matmul %46, %47, %cst_22 {dimension_numbers = #tpu.dot_dimension_numbers<[1], [0], [0], [1], [0, 0, 1, 1], [], []>} : vector<8x8xf32>, vector<8x64xf32>, vector<8x64xf32> -> vector<8x64xf32>
    %49 = vector.extract_strided_slice %10 {offsets = [64, 0], sizes = [64, 128], strides = [1, 1]} : vector<128x128xf32> to vector<64x128xf32>
    %cst_23 = arith.constant dense<0.000000e+00> : vector<8x128xf32>
    %50 = tpu.matmul %48, %49, %cst_23 {dimension_numbers = #tpu.dot_dimension_numbers<[1], [0], [0], [1], [0, 0, 1, 1], [], []>} : vector<8x64xf32>, vector<64x128xf32>, vector<8x128xf32> -> vector<8x128xf32>
    %51 = arith.addf %31, %50 : vector<8x128xf32>
    %c0_24 = arith.constant 0 : index
    %c0_25 = arith.constant 0 : index
    %c0_26 = arith.constant 0 : index
    %52 = vector.load %arg7[%c0_24, %c0_25, %c0_26] : memref<1x8x128xf32, #tpu.memory_space<vmem>>, vector<1x8x128xf32>
    %53 = vector.shape_cast %52 : vector<1x8x128xf32> to vector<8x128xf32>
    %54 = arith.addf %53, %51 : vector<8x128xf32>
    %c0_27 = arith.constant 0 : index
    %c0_28 = arith.constant 0 : index
    %55 = vector.load %arg6[%c0_27, %c0_28] : memref<1x128xf32, #tpu.memory_space<vmem>>, vector<1x128xf32>
    %56 = vector.broadcast %55 : vector<1x128xf32> to vector<8x128xf32>
    %57 = arith.addf %54, %56 : vector<8x128xf32>
    %c0_29 = arith.constant 0 : index
    %c0_30 = arith.constant 0 : index
    %58 = vector.load %arg8[%c0_29, %c0_30] : memref<1x128xf32, #tpu.memory_space<vmem>>, vector<1x128xf32>
    %c0_31 = arith.constant 0 : index
    %c0_32 = arith.constant 0 : index
    %59 = vector.load %arg9[%c0_31, %c0_32] : memref<1x128xf32, #tpu.memory_space<vmem>>, vector<1x128xf32>
    %cst_33 = arith.constant dense<0.000000e+00> : vector<8xf32>
    %60 = vector.multi_reduction <add>, %57, %cst_33 [1] : vector<8x128xf32> to vector<8xf32>
    %61 = vector.shape_cast %60 : vector<8xf32> to vector<8x1xf32>
    %cst_34 = arith.constant 1.280000e+02 : f32
    %62 = vector.broadcast %cst_34 : f32 to vector<8x1xf32>
    %63 = arith.divf %61, %62 : vector<8x1xf32>
    %64 = vector.broadcast %63 : vector<8x1xf32> to vector<8x128xf32>
    %65 = arith.subf %57, %64 : vector<8x128xf32>
    %66 = arith.mulf %65, %65 : vector<8x128xf32>
    %cst_35 = arith.constant dense<0.000000e+00> : vector<8xf32>
    %67 = vector.multi_reduction <add>, %66, %cst_35 [1] : vector<8x128xf32> to vector<8xf32>
    %68 = vector.shape_cast %67 : vector<8xf32> to vector<8x1xf32>
    %cst_36 = arith.constant 1.280000e+02 : f32
    %69 = vector.broadcast %cst_36 : f32 to vector<8x1xf32>
    %70 = arith.divf %68, %69 : vector<8x1xf32>
    %71 = vector.broadcast %63 : vector<8x1xf32> to vector<8x128xf32>
    %72 = arith.subf %57, %71 : vector<8x128xf32>
    %cst_37 = arith.constant 9.99999974E-6 : f32
    %73 = vector.broadcast %cst_37 : f32 to vector<8x1xf32>
    %74 = arith.addf %70, %73 : vector<8x1xf32>
    %75 = math.rsqrt %74 : vector<8x1xf32>
    %76 = vector.broadcast %75 : vector<8x1xf32> to vector<8x128xf32>
    %77 = arith.mulf %72, %76 : vector<8x128xf32>
    %78 = vector.broadcast %58 : vector<1x128xf32> to vector<8x128xf32>
    %79 = arith.mulf %77, %78 : vector<8x128xf32>
    %80 = vector.broadcast %59 : vector<1x128xf32> to vector<8x128xf32>
    %81 = arith.addf %79, %80 : vector<8x128xf32>
    %c0_38 = arith.constant 0 : index
    %c0_39 = arith.constant 0 : index
    %c0_40 = arith.constant 0 : index
    %82 = vector.load %arg10[%c0_38, %c0_39, %c0_40] : memref<1x8x128xf32, #tpu.memory_space<vmem>>, vector<1x8x128xf32>
    %83 = vector.shape_cast %82 : vector<1x8x128xf32> to vector<8x128xf32>
    %84 = vector.shape_cast %81 : vector<8x128xf32> to vector<1x8x128xf32>
    tpu.vector_store %arg10[%c0_38, %c0_39, %c0_40], %84 {strides = array<i32>} : memref<1x8x128xf32, #tpu.memory_space<vmem>>, vector<1x8x128xf32>,
    return
  }
  func.func @transform_0(%arg0: i32) -> (i32, i32, i32) {
    %c0_i32 = arith.constant 0 : i32
    %c0_i32_0 = arith.constant 0 : i32
    %c0_i32_1 = arith.constant 0 : i32
    return %arg0, %c0_i32, %c0_i32_0 : i32, i32, i32
  }
  func.func @transform_1(%arg0: i32) -> (i32, i32, i32) {
    %c0_i32 = arith.constant 0 : i32
    %c0_i32_0 = arith.constant 0 : i32
    %c0_i32_1 = arith.constant 0 : i32
    return %arg0, %c0_i32, %c0_i32_0 : i32, i32, i32
  }
  func.func @transform_2(%arg0: i32) -> (i32, i32, i32) {
    %c0_i32 = arith.constant 0 : i32
    %c0_i32_0 = arith.constant 0 : i32
    %c0_i32_1 = arith.constant 0 : i32
    return %arg0, %c0_i32, %c0_i32_0 : i32, i32, i32
  }
  func.func @transform_3(%arg0: i32) -> (i32, i32, i32) {
    %c0_i32 = arith.constant 0 : i32
    %c0_i32_0 = arith.constant 0 : i32
    %c0_i32_1 = arith.constant 0 : i32
    return %arg0, %c0_i32, %c0_i32_0 : i32, i32, i32
  }
  func.func @transform_4(%arg0: i32) -> (i32, i32) {
    %c0_i32 = arith.constant 0 : i32
    %c0_i32_0 = arith.constant 0 : i32
    %c0_i32_1 = arith.constant 0 : i32
    return %c0_i32, %c0_i32_0 : i32, i32
  }
  func.func @transform_5(%arg0: i32) -> (i32, i32) {
    %c0_i32 = arith.constant 0 : i32
    %c0_i32_0 = arith.constant 0 : i32
    %c0_i32_1 = arith.constant 0 : i32
    return %c0_i32, %c0_i32_0 : i32, i32
  }
  func.func @transform_6(%arg0: i32) -> (i32, i32, i32) {
    %c0_i32 = arith.constant 0 : i32
    %c0_i32_0 = arith.constant 0 : i32
    %c0_i32_1 = arith.constant 0 : i32
    return %arg0, %c0_i32, %c0_i32_0 : i32, i32, i32
  }
  func.func @transform_7(%arg0: i32) -> (i32, i32) {
    %c0_i32 = arith.constant 0 : i32
    %c0_i32_0 = arith.constant 0 : i32
    %c0_i32_1 = arith.constant 0 : i32
    return %c0_i32, %c0_i32_0 : i32, i32
  }
  func.func @transform_8(%arg0: i32) -> (i32, i32) {
    %c0_i32 = arith.constant 0 : i32
    %c0_i32_0 = arith.constant 0 : i32
    %c0_i32_1 = arith.constant 0 : i32
    return %c0_i32, %c0_i32_0 : i32, i32
  }
  func.func @transform_9(%arg0: i32) -> (i32, i32, i32) {
    %c0_i32 = arith.constant 0 : i32
    %c0_i32_0 = arith.constant 0 : i32
    %c0_i32_1 = arith.constant 0 : i32
    return %arg0, %c0_i32, %c0_i32_0 : i32, i32, i32
  }
}

module attributes {stable_mosaic.version = 11 : i64} {
  func.func @_posadd_linear_kernel(%arg0: i32, %arg1: memref<16x128xf32, #tpu.memory_space<vmem>>, %arg2: memref<16x128xf32, #tpu.memory_space<vmem>>, %arg3: memref<128x128xf32, #tpu.memory_space<vmem>>, %arg4: memref<1x128xf32, #tpu.memory_space<vmem>>, %arg5: memref<16x128xf32, #tpu.memory_space<vmem>>) attributes {dimension_semantics = [#tpu.dimension_semantics<parallel>], iteration_bounds = array<i64: 1>, scalar_prefetch = 0 : i64, scratch_operands = 0 : i64, tpu.core_type = #tpu.core_type<tc>, window_params = [{transform_indices = @transform_0, window_bounds = array<i64: 16, 128>}, {transform_indices = @transform_1, window_bounds = array<i64: 16, 128>}, {pipeline_mode = #tpu.pipeline_mode<synchronous>, transform_indices = @transform_2, window_bounds = array<i64: 128, 128>}, {pipeline_mode = #tpu.pipeline_mode<synchronous>, transform_indices = @transform_3, window_bounds = array<i64: 1, 128>}, {transform_indices = @transform_4, window_bounds = array<i64: 16, 128>}]} {
    %c0 = arith.constant 0 : index
    %c0_0 = arith.constant 0 : index
    %0 = vector.load %arg1[%c0, %c0_0] : memref<16x128xf32, #tpu.memory_space<vmem>>, vector<16x128xf32>
    %c0_1 = arith.constant 0 : index
    %c0_2 = arith.constant 0 : index
    %1 = vector.load %arg2[%c0_1, %c0_2] : memref<16x128xf32, #tpu.memory_space<vmem>>, vector<16x128xf32>
    %2 = arith.addf %0, %1 : vector<16x128xf32>
    %c0_3 = arith.constant 0 : index
    %c0_4 = arith.constant 0 : index
    %3 = vector.load %arg3[%c0_3, %c0_4] : memref<128x128xf32, #tpu.memory_space<vmem>>, vector<128x128xf32>
    %cst = arith.constant dense<0.000000e+00> : vector<16x128xf32>
    %4 = tpu.matmul %2, %3, %cst {dimension_numbers = #tpu.dot_dimension_numbers<[1], [0], [0], [1], [0, 0, 1, 1], [], []>} : vector<16x128xf32>, vector<128x128xf32>, vector<16x128xf32> -> vector<16x128xf32>
    %c0_5 = arith.constant 0 : index
    %c0_6 = arith.constant 0 : index
    %5 = vector.load %arg4[%c0_5, %c0_6] : memref<1x128xf32, #tpu.memory_space<vmem>>, vector<1x128xf32>
    %6 = vector.broadcast %5 : vector<1x128xf32> to vector<16x128xf32>
    %7 = arith.addf %4, %6 : vector<16x128xf32>
    %c0_7 = arith.constant 0 : index
    %c0_8 = arith.constant 0 : index
    %8 = vector.load %arg5[%c0_7, %c0_8] : memref<16x128xf32, #tpu.memory_space<vmem>>, vector<16x128xf32>
    tpu.vector_store %arg5[%c0_7, %c0_8], %7 {strides = array<i32>} : memref<16x128xf32, #tpu.memory_space<vmem>>, vector<16x128xf32>,
    return
  }
  func.func @transform_0(%arg0: i32) -> (i32, i32) {
    %c0_i32 = arith.constant 0 : i32
    %c0_i32_0 = arith.constant 0 : i32
    return %arg0, %c0_i32 : i32, i32
  }
  func.func @transform_1(%arg0: i32) -> (i32, i32) {
    %c0_i32 = arith.constant 0 : i32
    %c0_i32_0 = arith.constant 0 : i32
    return %arg0, %c0_i32 : i32, i32
  }
  func.func @transform_2(%arg0: i32) -> (i32, i32) {
    %c0_i32 = arith.constant 0 : i32
    %c0_i32_0 = arith.constant 0 : i32
    %c0_i32_1 = arith.constant 0 : i32
    return %c0_i32, %c0_i32_0 : i32, i32
  }
  func.func @transform_3(%arg0: i32) -> (i32, i32) {
    %c0_i32 = arith.constant 0 : i32
    %c0_i32_0 = arith.constant 0 : i32
    %c0_i32_1 = arith.constant 0 : i32
    return %c0_i32, %c0_i32_0 : i32, i32
  }
  func.func @transform_4(%arg0: i32) -> (i32, i32) {
    %c0_i32 = arith.constant 0 : i32
    %c0_i32_0 = arith.constant 0 : i32
    return %arg0, %c0_i32 : i32, i32
  }
}

module attributes {stable_mosaic.version = 11 : i64} {
  func.func @_mha_ln_kernel(%arg0: i32, %arg1: memref<1x8x128xf32, #tpu.memory_space<vmem>>, %arg2: memref<1x16x128xf32, #tpu.memory_space<vmem>>, %arg3: memref<1x16x128xf32, #tpu.memory_space<vmem>>, %arg4: memref<1x1x16xf32, #tpu.memory_space<vmem>>, %arg5: memref<128x128xf32, #tpu.memory_space<vmem>>, %arg6: memref<1x128xf32, #tpu.memory_space<vmem>>, %arg7: memref<1x8x128xf32, #tpu.memory_space<vmem>>, %arg8: memref<1x128xf32, #tpu.memory_space<vmem>>, %arg9: memref<1x128xf32, #tpu.memory_space<vmem>>, %arg10: memref<1x8x128xf32, #tpu.memory_space<vmem>>) attributes {dimension_semantics = [#tpu.dimension_semantics<parallel>], iteration_bounds = array<i64: 2>, scalar_prefetch = 0 : i64, scratch_operands = 0 : i64, tpu.core_type = #tpu.core_type<tc>, window_params = [{transform_indices = @transform_0, window_bounds = array<i64: 1, 8, 128>}, {transform_indices = @transform_1, window_bounds = array<i64: 1, 16, 128>}, {transform_indices = @transform_2, window_bounds = array<i64: 1, 16, 128>}, {transform_indices = @transform_3, window_bounds = array<i64: 1, 1, 16>}, {pipeline_mode = #tpu.pipeline_mode<synchronous>, transform_indices = @transform_4, window_bounds = array<i64: 128, 128>}, {pipeline_mode = #tpu.pipeline_mode<synchronous>, transform_indices = @transform_5, window_bounds = array<i64: 1, 128>}, {transform_indices = @transform_6, window_bounds = array<i64: 1, 8, 128>}, {pipeline_mode = #tpu.pipeline_mode<synchronous>, transform_indices = @transform_7, window_bounds = array<i64: 1, 128>}, {pipeline_mode = #tpu.pipeline_mode<synchronous>, transform_indices = @transform_8, window_bounds = array<i64: 1, 128>}, {transform_indices = @transform_9, window_bounds = array<i64: 1, 8, 128>}]} {
    %c0 = arith.constant 0 : index
    %c0_0 = arith.constant 0 : index
    %c0_1 = arith.constant 0 : index
    %0 = vector.load %arg1[%c0, %c0_0, %c0_1] : memref<1x8x128xf32, #tpu.memory_space<vmem>>, vector<1x8x128xf32>
    %1 = vector.shape_cast %0 : vector<1x8x128xf32> to vector<8x128xf32>
    %cst = arith.constant 1.250000e-01 : f32
    %2 = vector.broadcast %cst : f32 to vector<8x128xf32>
    %3 = arith.mulf %1, %2 : vector<8x128xf32>
    %c0_2 = arith.constant 0 : index
    %c0_3 = arith.constant 0 : index
    %c0_4 = arith.constant 0 : index
    %4 = vector.load %arg2[%c0_2, %c0_3, %c0_4] : memref<1x16x128xf32, #tpu.memory_space<vmem>>, vector<1x16x128xf32>
    %5 = vector.shape_cast %4 : vector<1x16x128xf32> to vector<16x128xf32>
    %c0_5 = arith.constant 0 : index
    %c0_6 = arith.constant 0 : index
    %c0_7 = arith.constant 0 : index
    %6 = vector.load %arg3[%c0_5, %c0_6, %c0_7] : memref<1x16x128xf32, #tpu.memory_space<vmem>>, vector<1x16x128xf32>
    %7 = vector.shape_cast %6 : vector<1x16x128xf32> to vector<16x128xf32>
    %c0_8 = arith.constant 0 : index
    %c0_9 = arith.constant 0 : index
    %c0_10 = arith.constant 0 : index
    %8 = vector.load %arg4[%c0_8, %c0_9, %c0_10] : memref<1x1x16xf32, #tpu.memory_space<vmem>>, vector<1x1x16xf32>
    %9 = vector.shape_cast %8 : vector<1x1x16xf32> to vector<1x16xf32>
    %c0_11 = arith.constant 0 : index
    %c0_12 = arith.constant 0 : index
    %10 = vector.load %arg5[%c0_11, %c0_12] : memref<128x128xf32, #tpu.memory_space<vmem>>, vector<128x128xf32>
    %cst_13 = arith.constant 0.000000e+00 : f32
    %11 = vector.broadcast %cst_13 : f32 to vector<8x128xf32>
    %12 = vector.extract_strided_slice %3 {offsets = [0, 0], sizes = [8, 64], strides = [1, 1]} : vector<8x128xf32> to vector<8x64xf32>
    %13 = vector.extract_strided_slice %5 {offsets = [0, 0], sizes = [16, 64], strides = [1, 1]} : vector<16x128xf32> to vector<16x64xf32>
    %cst_14 = arith.constant dense<0.000000e+00> : vector<8x16xf32>
    %14 = tpu.matmul %12, %13, %cst_14 {dimension_numbers = #tpu.dot_dimension_numbers<[1], [1], [0], [0], [0, 0, 1, 0], [], []>} : vector<8x64xf32>, vector<16x64xf32>, vector<8x16xf32> -> vector<8x16xf32>
    %15 = vector.broadcast %9 : vector<1x16xf32> to vector<8x16xf32>
    %16 = arith.addf %14, %15 : vector<8x16xf32>
    %cst_15 = arith.constant dense<0xFF800000> : vector<8xf32>
    %17 = vector.multi_reduction <maximumf>, %16, %cst_15 [1] : vector<8x16xf32> to vector<8xf32>
    %18 = vector.shape_cast %17 : vector<8xf32> to vector<8x1xf32>
    %19 = vector.broadcast %18 : vector<8x1xf32> to vector<8x16xf32>
    %20 = arith.subf %16, %19 : vector<8x16xf32>
    %21 = math.exp %20 : vector<8x16xf32>
    %cst_16 = arith.constant dense<0.000000e+00> : vector<8xf32>
    %22 = vector.multi_reduction <add>, %21, %cst_16 [1] : vector<8x16xf32> to vector<8xf32>
    %23 = vector.shape_cast %22 : vector<8xf32> to vector<8x1xf32>
    %24 = tpu.reciprocal %23 {approx = true} : vector<8x1xf32> -> vector<8x1xf32>
    %25 = vector.broadcast %24 : vector<8x1xf32> to vector<8x16xf32>
    %26 = arith.mulf %21, %25 : vector<8x16xf32>
    %27 = vector.extract_strided_slice %7 {offsets = [0, 0], sizes = [16, 64], strides = [1, 1]} : vector<16x128xf32> to vector<16x64xf32>
    %cst_17 = arith.constant dense<0.000000e+00> : vector<8x64xf32>
    %28 = tpu.matmul %26, %27, %cst_17 {dimension_numbers = #tpu.dot_dimension_numbers<[1], [0], [0], [1], [0, 0, 1, 1], [], []>} : vector<8x16xf32>, vector<16x64xf32>, vector<8x64xf32> -> vector<8x64xf32>
    %29 = vector.extract_strided_slice %10 {offsets = [0, 0], sizes = [64, 128], strides = [1, 1]} : vector<128x128xf32> to vector<64x128xf32>
    %cst_18 = arith.constant dense<0.000000e+00> : vector<8x128xf32>
    %30 = tpu.matmul %28, %29, %cst_18 {dimension_numbers = #tpu.dot_dimension_numbers<[1], [0], [0], [1], [0, 0, 1, 1], [], []>} : vector<8x64xf32>, vector<64x128xf32>, vector<8x128xf32> -> vector<8x128xf32>
    %31 = arith.addf %11, %30 : vector<8x128xf32>
    %32 = vector.extract_strided_slice %3 {offsets = [0, 64], sizes = [8, 64], strides = [1, 1]} : vector<8x128xf32> to vector<8x64xf32>
    %33 = vector.extract_strided_slice %5 {offsets = [0, 64], sizes = [16, 64], strides = [1, 1]} : vector<16x128xf32> to vector<16x64xf32>
    %cst_19 = arith.constant dense<0.000000e+00> : vector<8x16xf32>
    %34 = tpu.matmul %32, %33, %cst_19 {dimension_numbers = #tpu.dot_dimension_numbers<[1], [1], [0], [0], [0, 0, 1, 0], [], []>} : vector<8x64xf32>, vector<16x64xf32>, vector<8x16xf32> -> vector<8x16xf32>
    %35 = vector.broadcast %9 : vector<1x16xf32> to vector<8x16xf32>
    %36 = arith.addf %34, %35 : vector<8x16xf32>
    %cst_20 = arith.constant dense<0xFF800000> : vector<8xf32>
    %37 = vector.multi_reduction <maximumf>, %36, %cst_20 [1] : vector<8x16xf32> to vector<8xf32>
    %38 = vector.shape_cast %37 : vector<8xf32> to vector<8x1xf32>
    %39 = vector.broadcast %38 : vector<8x1xf32> to vector<8x16xf32>
    %40 = arith.subf %36, %39 : vector<8x16xf32>
    %41 = math.exp %40 : vector<8x16xf32>
    %cst_21 = arith.constant dense<0.000000e+00> : vector<8xf32>
    %42 = vector.multi_reduction <add>, %41, %cst_21 [1] : vector<8x16xf32> to vector<8xf32>
    %43 = vector.shape_cast %42 : vector<8xf32> to vector<8x1xf32>
    %44 = tpu.reciprocal %43 {approx = true} : vector<8x1xf32> -> vector<8x1xf32>
    %45 = vector.broadcast %44 : vector<8x1xf32> to vector<8x16xf32>
    %46 = arith.mulf %41, %45 : vector<8x16xf32>
    %47 = vector.extract_strided_slice %7 {offsets = [0, 64], sizes = [16, 64], strides = [1, 1]} : vector<16x128xf32> to vector<16x64xf32>
    %cst_22 = arith.constant dense<0.000000e+00> : vector<8x64xf32>
    %48 = tpu.matmul %46, %47, %cst_22 {dimension_numbers = #tpu.dot_dimension_numbers<[1], [0], [0], [1], [0, 0, 1, 1], [], []>} : vector<8x16xf32>, vector<16x64xf32>, vector<8x64xf32> -> vector<8x64xf32>
    %49 = vector.extract_strided_slice %10 {offsets = [64, 0], sizes = [64, 128], strides = [1, 1]} : vector<128x128xf32> to vector<64x128xf32>
    %cst_23 = arith.constant dense<0.000000e+00> : vector<8x128xf32>
    %50 = tpu.matmul %48, %49, %cst_23 {dimension_numbers = #tpu.dot_dimension_numbers<[1], [0], [0], [1], [0, 0, 1, 1], [], []>} : vector<8x64xf32>, vector<64x128xf32>, vector<8x128xf32> -> vector<8x128xf32>
    %51 = arith.addf %31, %50 : vector<8x128xf32>
    %c0_24 = arith.constant 0 : index
    %c0_25 = arith.constant 0 : index
    %c0_26 = arith.constant 0 : index
    %52 = vector.load %arg7[%c0_24, %c0_25, %c0_26] : memref<1x8x128xf32, #tpu.memory_space<vmem>>, vector<1x8x128xf32>
    %53 = vector.shape_cast %52 : vector<1x8x128xf32> to vector<8x128xf32>
    %54 = arith.addf %53, %51 : vector<8x128xf32>
    %c0_27 = arith.constant 0 : index
    %c0_28 = arith.constant 0 : index
    %55 = vector.load %arg6[%c0_27, %c0_28] : memref<1x128xf32, #tpu.memory_space<vmem>>, vector<1x128xf32>
    %56 = vector.broadcast %55 : vector<1x128xf32> to vector<8x128xf32>
    %57 = arith.addf %54, %56 : vector<8x128xf32>
    %c0_29 = arith.constant 0 : index
    %c0_30 = arith.constant 0 : index
    %58 = vector.load %arg8[%c0_29, %c0_30] : memref<1x128xf32, #tpu.memory_space<vmem>>, vector<1x128xf32>
    %c0_31 = arith.constant 0 : index
    %c0_32 = arith.constant 0 : index
    %59 = vector.load %arg9[%c0_31, %c0_32] : memref<1x128xf32, #tpu.memory_space<vmem>>, vector<1x128xf32>
    %cst_33 = arith.constant dense<0.000000e+00> : vector<8xf32>
    %60 = vector.multi_reduction <add>, %57, %cst_33 [1] : vector<8x128xf32> to vector<8xf32>
    %61 = vector.shape_cast %60 : vector<8xf32> to vector<8x1xf32>
    %cst_34 = arith.constant 1.280000e+02 : f32
    %62 = vector.broadcast %cst_34 : f32 to vector<8x1xf32>
    %63 = arith.divf %61, %62 : vector<8x1xf32>
    %64 = vector.broadcast %63 : vector<8x1xf32> to vector<8x128xf32>
    %65 = arith.subf %57, %64 : vector<8x128xf32>
    %66 = arith.mulf %65, %65 : vector<8x128xf32>
    %cst_35 = arith.constant dense<0.000000e+00> : vector<8xf32>
    %67 = vector.multi_reduction <add>, %66, %cst_35 [1] : vector<8x128xf32> to vector<8xf32>
    %68 = vector.shape_cast %67 : vector<8xf32> to vector<8x1xf32>
    %cst_36 = arith.constant 1.280000e+02 : f32
    %69 = vector.broadcast %cst_36 : f32 to vector<8x1xf32>
    %70 = arith.divf %68, %69 : vector<8x1xf32>
    %71 = vector.broadcast %63 : vector<8x1xf32> to vector<8x128xf32>
    %72 = arith.subf %57, %71 : vector<8x128xf32>
    %cst_37 = arith.constant 9.99999974E-6 : f32
    %73 = vector.broadcast %cst_37 : f32 to vector<8x1xf32>
    %74 = arith.addf %70, %73 : vector<8x1xf32>
    %75 = math.rsqrt %74 : vector<8x1xf32>
    %76 = vector.broadcast %75 : vector<8x1xf32> to vector<8x128xf32>
    %77 = arith.mulf %72, %76 : vector<8x128xf32>
    %78 = vector.broadcast %58 : vector<1x128xf32> to vector<8x128xf32>
    %79 = arith.mulf %77, %78 : vector<8x128xf32>
    %80 = vector.broadcast %59 : vector<1x128xf32> to vector<8x128xf32>
    %81 = arith.addf %79, %80 : vector<8x128xf32>
    %c0_38 = arith.constant 0 : index
    %c0_39 = arith.constant 0 : index
    %c0_40 = arith.constant 0 : index
    %82 = vector.load %arg10[%c0_38, %c0_39, %c0_40] : memref<1x8x128xf32, #tpu.memory_space<vmem>>, vector<1x8x128xf32>
    %83 = vector.shape_cast %82 : vector<1x8x128xf32> to vector<8x128xf32>
    %84 = vector.shape_cast %81 : vector<8x128xf32> to vector<1x8x128xf32>
    tpu.vector_store %arg10[%c0_38, %c0_39, %c0_40], %84 {strides = array<i32>} : memref<1x8x128xf32, #tpu.memory_space<vmem>>, vector<1x8x128xf32>,
    return
  }
  func.func @transform_0(%arg0: i32) -> (i32, i32, i32) {
    %c0_i32 = arith.constant 0 : i32
    %c0_i32_0 = arith.constant 0 : i32
    %c0_i32_1 = arith.constant 0 : i32
    return %arg0, %c0_i32, %c0_i32_0 : i32, i32, i32
  }
  func.func @transform_1(%arg0: i32) -> (i32, i32, i32) {
    %c0_i32 = arith.constant 0 : i32
    %c0_i32_0 = arith.constant 0 : i32
    %c0_i32_1 = arith.constant 0 : i32
    return %arg0, %c0_i32, %c0_i32_0 : i32, i32, i32
  }
  func.func @transform_2(%arg0: i32) -> (i32, i32, i32) {
    %c0_i32 = arith.constant 0 : i32
    %c0_i32_0 = arith.constant 0 : i32
    %c0_i32_1 = arith.constant 0 : i32
    return %arg0, %c0_i32, %c0_i32_0 : i32, i32, i32
  }
  func.func @transform_3(%arg0: i32) -> (i32, i32, i32) {
    %c0_i32 = arith.constant 0 : i32
    %c0_i32_0 = arith.constant 0 : i32
    %c0_i32_1 = arith.constant 0 : i32
    return %arg0, %c0_i32, %c0_i32_0 : i32, i32, i32
  }
  func.func @transform_4(%arg0: i32) -> (i32, i32) {
    %c0_i32 = arith.constant 0 : i32
    %c0_i32_0 = arith.constant 0 : i32
    %c0_i32_1 = arith.constant 0 : i32
    return %c0_i32, %c0_i32_0 : i32, i32
  }
  func.func @transform_5(%arg0: i32) -> (i32, i32) {
    %c0_i32 = arith.constant 0 : i32
    %c0_i32_0 = arith.constant 0 : i32
    %c0_i32_1 = arith.constant 0 : i32
    return %c0_i32, %c0_i32_0 : i32, i32
  }
  func.func @transform_6(%arg0: i32) -> (i32, i32, i32) {
    %c0_i32 = arith.constant 0 : i32
    %c0_i32_0 = arith.constant 0 : i32
    %c0_i32_1 = arith.constant 0 : i32
    return %arg0, %c0_i32, %c0_i32_0 : i32, i32, i32
  }
  func.func @transform_7(%arg0: i32) -> (i32, i32) {
    %c0_i32 = arith.constant 0 : i32
    %c0_i32_0 = arith.constant 0 : i32
    %c0_i32_1 = arith.constant 0 : i32
    return %c0_i32, %c0_i32_0 : i32, i32
  }
  func.func @transform_8(%arg0: i32) -> (i32, i32) {
    %c0_i32 = arith.constant 0 : i32
    %c0_i32_0 = arith.constant 0 : i32
    %c0_i32_1 = arith.constant 0 : i32
    return %c0_i32, %c0_i32_0 : i32, i32
  }
  func.func @transform_9(%arg0: i32) -> (i32, i32, i32) {
    %c0_i32 = arith.constant 0 : i32
    %c0_i32_0 = arith.constant 0 : i32
    %c0_i32_1 = arith.constant 0 : i32
    return %arg0, %c0_i32, %c0_i32_0 : i32, i32, i32
  }
}

module attributes {stable_mosaic.version = 11 : i64} {
  func.func @_ffn_fused_kernel(%arg0: i32, %arg1: i32, %arg2: memref<16x128xf32, #tpu.memory_space<vmem>>, %arg3: memref<128x128xf32, #tpu.memory_space<vmem>>, %arg4: memref<1x128xf32, #tpu.memory_space<vmem>>, %arg5: memref<128x128xf32, #tpu.memory_space<vmem>>, %arg6: memref<1x128xf32, #tpu.memory_space<vmem>>, %arg7: memref<16x128xf32, #tpu.memory_space<vmem>>, %arg8: memref<1x128xf32, #tpu.memory_space<vmem>>, %arg9: memref<1x128xf32, #tpu.memory_space<vmem>>, %arg10: memref<16x128xf32, #tpu.memory_space<vmem>>, %arg11: memref<16x128xf32, #tpu.memory_space<vmem>>) attributes {dimension_semantics = [#tpu.dimension_semantics<parallel>, #tpu.dimension_semantics<arbitrary>], iteration_bounds = array<i64: 1, 1>, scalar_prefetch = 0 : i64, scratch_operands = 1 : i64, tpu.core_type = #tpu.core_type<tc>, window_params = [{transform_indices = @transform_0, window_bounds = array<i64: 16, 128>}, {transform_indices = @transform_1, window_bounds = array<i64: 128, 128>}, {transform_indices = @transform_2, window_bounds = array<i64: 1, 128>}, {transform_indices = @transform_3, window_bounds = array<i64: 128, 128>}, {pipeline_mode = #tpu.pipeline_mode<synchronous>, transform_indices = @transform_4, window_bounds = array<i64: 1, 128>}, {transform_indices = @transform_5, window_bounds = array<i64: 16, 128>}, {pipeline_mode = #tpu.pipeline_mode<synchronous>, transform_indices = @transform_6, window_bounds = array<i64: 1, 128>}, {pipeline_mode = #tpu.pipeline_mode<synchronous>, transform_indices = @transform_7, window_bounds = array<i64: 1, 128>}, {transform_indices = @transform_8, window_bounds = array<i64: 16, 128>}]} {
    %c0_i32 = arith.constant 0 : i32
    %0 = arith.cmpi eq, %arg1, %c0_i32 : i32
    %1 = arith.extui %0 : i1 to i32
    %c0_i32_0 = arith.constant 0 : i32
    %2 = arith.cmpi ne, %1, %c0_i32_0 : i32
    scf.if %2 {
      %cst_16 = arith.constant 0.000000e+00 : f32
      %19 = vector.broadcast %cst_16 : f32 to vector<16x128xf32>
      %c0_17 = arith.constant 0 : index
      %c0_18 = arith.constant 0 : index
      %20 = vector.load %arg11[%c0_17, %c0_18] : memref<16x128xf32, #tpu.memory_space<vmem>>, vector<16x128xf32>
      tpu.vector_store %arg11[%c0_17, %c0_18], %19 {strides = array<i32>} : memref<16x128xf32, #tpu.memory_space<vmem>>, vector<16x128xf32>,
    } else {
    }
    %c0 = arith.constant 0 : index
    %c0_1 = arith.constant 0 : index
    %3 = vector.load %arg2[%c0, %c0_1] : memref<16x128xf32, #tpu.memory_space<vmem>>, vector<16x128xf32>
    %c0_2 = arith.constant 0 : index
    %c0_3 = arith.constant 0 : index
    %4 = vector.load %arg3[%c0_2, %c0_3] : memref<128x128xf32, #tpu.memory_space<vmem>>, vector<128x128xf32>
    %cst = arith.constant dense<0.000000e+00> : vector<16x128xf32>
    %5 = tpu.matmul %3, %4, %cst {dimension_numbers = #tpu.dot_dimension_numbers<[1], [0], [0], [1], [0, 0, 1, 1], [], []>} : vector<16x128xf32>, vector<128x128xf32>, vector<16x128xf32> -> vector<16x128xf32>
    %c0_4 = arith.constant 0 : index
    %c0_5 = arith.constant 0 : index
    %6 = vector.load %arg4[%c0_4, %c0_5] : memref<1x128xf32, #tpu.memory_space<vmem>>, vector<1x128xf32>
    %7 = vector.broadcast %6 : vector<1x128xf32> to vector<16x128xf32>
    %8 = arith.addf %5, %7 : vector<16x128xf32>
    %cst_6 = arith.constant 0.000000e+00 : f32
    %9 = vector.broadcast %cst_6 : f32 to vector<16x128xf32>
    %10 = arith.maximumf %8, %9 : vector<16x128xf32>
    %c0_7 = arith.constant 0 : index
    %c0_8 = arith.constant 0 : index
    %11 = vector.load %arg11[%c0_7, %c0_8] : memref<16x128xf32, #tpu.memory_space<vmem>>, vector<16x128xf32>
    %c0_9 = arith.constant 0 : index
    %c0_10 = arith.constant 0 : index
    %12 = vector.load %arg5[%c0_9, %c0_10] : memref<128x128xf32, #tpu.memory_space<vmem>>, vector<128x128xf32>
    %cst_11 = arith.constant dense<0.000000e+00> : vector<16x128xf32>
    %13 = tpu.matmul %10, %12, %cst_11 {dimension_numbers = #tpu.dot_dimension_numbers<[1], [0], [0], [1], [0, 0, 1, 1], [], []>} : vector<16x128xf32>, vector<128x128xf32>, vector<16x128xf32> -> vector<16x128xf32>
    %14 = arith.addf %11, %13 : vector<16x128xf32>
    %c0_12 = arith.constant 0 : index
    %c0_13 = arith.constant 0 : index
    %15 = vector.load %arg11[%c0_12, %c0_13] : memref<16x128xf32, #tpu.memory_space<vmem>>, vector<16x128xf32>
    tpu.vector_store %arg11[%c0_12, %c0_13], %14 {strides = array<i32>} : memref<16x128xf32, #tpu.memory_space<vmem>>, vector<16x128xf32>,
    %c0_i32_14 = arith.constant 0 : i32
    %16 = arith.cmpi eq, %arg1, %c0_i32_14 : i32
    %17 = arith.extui %16 : i1 to i32
    %c0_i32_15 = arith.constant 0 : i32
    %18 = arith.cmpi ne, %17, %c0_i32_15 : i32
    scf.if %18 {
      %c0_16 = arith.constant 0 : index
      %c0_17 = arith.constant 0 : index
      %19 = vector.load %arg7[%c0_16, %c0_17] : memref<16x128xf32, #tpu.memory_space<vmem>>, vector<16x128xf32>
      %c0_18 = arith.constant 0 : index
      %c0_19 = arith.constant 0 : index
      %20 = vector.load %arg11[%c0_18, %c0_19] : memref<16x128xf32, #tpu.memory_space<vmem>>, vector<16x128xf32>
      %21 = arith.addf %19, %20 : vector<16x128xf32>
      %c0_20 = arith.constant 0 : index
      %c0_21 = arith.constant 0 : index
      %22 = vector.load %arg6[%c0_20, %c0_21] : memref<1x128xf32, #tpu.memory_space<vmem>>, vector<1x128xf32>
      %23 = vector.broadcast %22 : vector<1x128xf32> to vector<16x128xf32>
      %24 = arith.addf %21, %23 : vector<16x128xf32>
      %c0_22 = arith.constant 0 : index
      %c0_23 = arith.constant 0 : index
      %25 = vector.load %arg8[%c0_22, %c0_23] : memref<1x128xf32, #tpu.memory_space<vmem>>, vector<1x128xf32>
      %c0_24 = arith.constant 0 : index
      %c0_25 = arith.constant 0 : index
      %26 = vector.load %arg9[%c0_24, %c0_25] : memref<1x128xf32, #tpu.memory_space<vmem>>, vector<1x128xf32>
      %cst_26 = arith.constant dense<0.000000e+00> : vector<16xf32>
      %27 = vector.multi_reduction <add>, %24, %cst_26 [1] : vector<16x128xf32> to vector<16xf32>
      %28 = vector.shape_cast %27 : vector<16xf32> to vector<16x1xf32>
      %cst_27 = arith.constant 1.280000e+02 : f32
      %29 = vector.broadcast %cst_27 : f32 to vector<16x1xf32>
      %30 = arith.divf %28, %29 : vector<16x1xf32>
      %31 = vector.broadcast %30 : vector<16x1xf32> to vector<16x128xf32>
      %32 = arith.subf %24, %31 : vector<16x128xf32>
      %33 = arith.mulf %32, %32 : vector<16x128xf32>
      %cst_28 = arith.constant dense<0.000000e+00> : vector<16xf32>
      %34 = vector.multi_reduction <add>, %33, %cst_28 [1] : vector<16x128xf32> to vector<16xf32>
      %35 = vector.shape_cast %34 : vector<16xf32> to vector<16x1xf32>
      %cst_29 = arith.constant 1.280000e+02 : f32
      %36 = vector.broadcast %cst_29 : f32 to vector<16x1xf32>
      %37 = arith.divf %35, %36 : vector<16x1xf32>
      %38 = vector.broadcast %30 : vector<16x1xf32> to vector<16x128xf32>
      %39 = arith.subf %24, %38 : vector<16x128xf32>
      %cst_30 = arith.constant 9.99999974E-6 : f32
      %40 = vector.broadcast %cst_30 : f32 to vector<16x1xf32>
      %41 = arith.addf %37, %40 : vector<16x1xf32>
      %42 = math.rsqrt %41 : vector<16x1xf32>
      %43 = vector.broadcast %42 : vector<16x1xf32> to vector<16x128xf32>
      %44 = arith.mulf %39, %43 : vector<16x128xf32>
      %45 = vector.broadcast %25 : vector<1x128xf32> to vector<16x128xf32>
      %46 = arith.mulf %44, %45 : vector<16x128xf32>
      %47 = vector.broadcast %26 : vector<1x128xf32> to vector<16x128xf32>
      %48 = arith.addf %46, %47 : vector<16x128xf32>
      %c0_31 = arith.constant 0 : index
      %c0_32 = arith.constant 0 : index
      %49 = vector.load %arg10[%c0_31, %c0_32] : memref<16x128xf32, #tpu.memory_space<vmem>>, vector<16x128xf32>
      tpu.vector_store %arg10[%c0_31, %c0_32], %48 {strides = array<i32>} : memref<16x128xf32, #tpu.memory_space<vmem>>, vector<16x128xf32>,
    } else {
    }
    return
  }
  func.func @transform_0(%arg0: i32, %arg1: i32) -> (i32, i32) {
    %c0_i32 = arith.constant 0 : i32
    %c0_i32_0 = arith.constant 0 : i32
    return %arg0, %c0_i32 : i32, i32
  }
  func.func @transform_1(%arg0: i32, %arg1: i32) -> (i32, i32) {
    %c0_i32 = arith.constant 0 : i32
    %c0_i32_0 = arith.constant 0 : i32
    return %c0_i32, %arg1 : i32, i32
  }
  func.func @transform_2(%arg0: i32, %arg1: i32) -> (i32, i32) {
    %c0_i32 = arith.constant 0 : i32
    %c0_i32_0 = arith.constant 0 : i32
    return %c0_i32, %arg1 : i32, i32
  }
  func.func @transform_3(%arg0: i32, %arg1: i32) -> (i32, i32) {
    %c0_i32 = arith.constant 0 : i32
    %c0_i32_0 = arith.constant 0 : i32
    return %arg1, %c0_i32 : i32, i32
  }
  func.func @transform_4(%arg0: i32, %arg1: i32) -> (i32, i32) {
    %c0_i32 = arith.constant 0 : i32
    %c0_i32_0 = arith.constant 0 : i32
    %c0_i32_1 = arith.constant 0 : i32
    return %c0_i32, %c0_i32_0 : i32, i32
  }
  func.func @transform_5(%arg0: i32, %arg1: i32) -> (i32, i32) {
    %c0_i32 = arith.constant 0 : i32
    %c0_i32_0 = arith.constant 0 : i32
    return %arg0, %c0_i32 : i32, i32
  }
  func.func @transform_6(%arg0: i32, %arg1: i32) -> (i32, i32) {
    %c0_i32 = arith.constant 0 : i32
    %c0_i32_0 = arith.constant 0 : i32
    %c0_i32_1 = arith.constant 0 : i32
    return %c0_i32, %c0_i32_0 : i32, i32
  }
  func.func @transform_7(%arg0: i32, %arg1: i32) -> (i32, i32) {
    %c0_i32 = arith.constant 0 : i32
    %c0_i32_0 = arith.constant 0 : i32
    %c0_i32_1 = arith.constant 0 : i32
    return %c0_i32, %c0_i32_0 : i32, i32
  }
  func.func @transform_8(%arg0: i32, %arg1: i32) -> (i32, i32) {
    %c0_i32 = arith.constant 0 : i32
    %c0_i32_0 = arith.constant 0 : i32
    return %arg0, %c0_i32 : i32, i32
  }
}

module attributes {stable_mosaic.version = 11 : i64} {
  func.func @_ffn_fused_kernel(%arg0: i32, %arg1: i32, %arg2: memref<16x128xf32, #tpu.memory_space<vmem>>, %arg3: memref<128x128xf32, #tpu.memory_space<vmem>>, %arg4: memref<1x128xf32, #tpu.memory_space<vmem>>, %arg5: memref<128x128xf32, #tpu.memory_space<vmem>>, %arg6: memref<1x128xf32, #tpu.memory_space<vmem>>, %arg7: memref<16x128xf32, #tpu.memory_space<vmem>>, %arg8: memref<1x128xf32, #tpu.memory_space<vmem>>, %arg9: memref<1x128xf32, #tpu.memory_space<vmem>>, %arg10: memref<16x128xf32, #tpu.memory_space<vmem>>, %arg11: memref<16x128xf32, #tpu.memory_space<vmem>>) attributes {dimension_semantics = [#tpu.dimension_semantics<parallel>, #tpu.dimension_semantics<arbitrary>], iteration_bounds = array<i64: 1, 1>, scalar_prefetch = 0 : i64, scratch_operands = 1 : i64, tpu.core_type = #tpu.core_type<tc>, window_params = [{transform_indices = @transform_0, window_bounds = array<i64: 16, 128>}, {transform_indices = @transform_1, window_bounds = array<i64: 128, 128>}, {transform_indices = @transform_2, window_bounds = array<i64: 1, 128>}, {transform_indices = @transform_3, window_bounds = array<i64: 128, 128>}, {pipeline_mode = #tpu.pipeline_mode<synchronous>, transform_indices = @transform_4, window_bounds = array<i64: 1, 128>}, {transform_indices = @transform_5, window_bounds = array<i64: 16, 128>}, {pipeline_mode = #tpu.pipeline_mode<synchronous>, transform_indices = @transform_6, window_bounds = array<i64: 1, 128>}, {pipeline_mode = #tpu.pipeline_mode<synchronous>, transform_indices = @transform_7, window_bounds = array<i64: 1, 128>}, {transform_indices = @transform_8, window_bounds = array<i64: 16, 128>}]} {
    %c0_i32 = arith.constant 0 : i32
    %0 = arith.cmpi eq, %arg1, %c0_i32 : i32
    %1 = arith.extui %0 : i1 to i32
    %c0_i32_0 = arith.constant 0 : i32
    %2 = arith.cmpi ne, %1, %c0_i32_0 : i32
    scf.if %2 {
      %cst_16 = arith.constant 0.000000e+00 : f32
      %19 = vector.broadcast %cst_16 : f32 to vector<16x128xf32>
      %c0_17 = arith.constant 0 : index
      %c0_18 = arith.constant 0 : index
      %20 = vector.load %arg11[%c0_17, %c0_18] : memref<16x128xf32, #tpu.memory_space<vmem>>, vector<16x128xf32>
      tpu.vector_store %arg11[%c0_17, %c0_18], %19 {strides = array<i32>} : memref<16x128xf32, #tpu.memory_space<vmem>>, vector<16x128xf32>,
    } else {
    }
    %c0 = arith.constant 0 : index
    %c0_1 = arith.constant 0 : index
    %3 = vector.load %arg2[%c0, %c0_1] : memref<16x128xf32, #tpu.memory_space<vmem>>, vector<16x128xf32>
    %c0_2 = arith.constant 0 : index
    %c0_3 = arith.constant 0 : index
    %4 = vector.load %arg3[%c0_2, %c0_3] : memref<128x128xf32, #tpu.memory_space<vmem>>, vector<128x128xf32>
    %cst = arith.constant dense<0.000000e+00> : vector<16x128xf32>
    %5 = tpu.matmul %3, %4, %cst {dimension_numbers = #tpu.dot_dimension_numbers<[1], [0], [0], [1], [0, 0, 1, 1], [], []>} : vector<16x128xf32>, vector<128x128xf32>, vector<16x128xf32> -> vector<16x128xf32>
    %c0_4 = arith.constant 0 : index
    %c0_5 = arith.constant 0 : index
    %6 = vector.load %arg4[%c0_4, %c0_5] : memref<1x128xf32, #tpu.memory_space<vmem>>, vector<1x128xf32>
    %7 = vector.broadcast %6 : vector<1x128xf32> to vector<16x128xf32>
    %8 = arith.addf %5, %7 : vector<16x128xf32>
    %cst_6 = arith.constant 0.000000e+00 : f32
    %9 = vector.broadcast %cst_6 : f32 to vector<16x128xf32>
    %10 = arith.maximumf %8, %9 : vector<16x128xf32>
    %c0_7 = arith.constant 0 : index
    %c0_8 = arith.constant 0 : index
    %11 = vector.load %arg11[%c0_7, %c0_8] : memref<16x128xf32, #tpu.memory_space<vmem>>, vector<16x128xf32>
    %c0_9 = arith.constant 0 : index
    %c0_10 = arith.constant 0 : index
    %12 = vector.load %arg5[%c0_9, %c0_10] : memref<128x128xf32, #tpu.memory_space<vmem>>, vector<128x128xf32>
    %cst_11 = arith.constant dense<0.000000e+00> : vector<16x128xf32>
    %13 = tpu.matmul %10, %12, %cst_11 {dimension_numbers = #tpu.dot_dimension_numbers<[1], [0], [0], [1], [0, 0, 1, 1], [], []>} : vector<16x128xf32>, vector<128x128xf32>, vector<16x128xf32> -> vector<16x128xf32>
    %14 = arith.addf %11, %13 : vector<16x128xf32>
    %c0_12 = arith.constant 0 : index
    %c0_13 = arith.constant 0 : index
    %15 = vector.load %arg11[%c0_12, %c0_13] : memref<16x128xf32, #tpu.memory_space<vmem>>, vector<16x128xf32>
    tpu.vector_store %arg11[%c0_12, %c0_13], %14 {strides = array<i32>} : memref<16x128xf32, #tpu.memory_space<vmem>>, vector<16x128xf32>,
    %c0_i32_14 = arith.constant 0 : i32
    %16 = arith.cmpi eq, %arg1, %c0_i32_14 : i32
    %17 = arith.extui %16 : i1 to i32
    %c0_i32_15 = arith.constant 0 : i32
    %18 = arith.cmpi ne, %17, %c0_i32_15 : i32
    scf.if %18 {
      %c0_16 = arith.constant 0 : index
      %c0_17 = arith.constant 0 : index
      %19 = vector.load %arg7[%c0_16, %c0_17] : memref<16x128xf32, #tpu.memory_space<vmem>>, vector<16x128xf32>
      %c0_18 = arith.constant 0 : index
      %c0_19 = arith.constant 0 : index
      %20 = vector.load %arg11[%c0_18, %c0_19] : memref<16x128xf32, #tpu.memory_space<vmem>>, vector<16x128xf32>
      %21 = arith.addf %19, %20 : vector<16x128xf32>
      %c0_20 = arith.constant 0 : index
      %c0_21 = arith.constant 0 : index
      %22 = vector.load %arg6[%c0_20, %c0_21] : memref<1x128xf32, #tpu.memory_space<vmem>>, vector<1x128xf32>
      %23 = vector.broadcast %22 : vector<1x128xf32> to vector<16x128xf32>
      %24 = arith.addf %21, %23 : vector<16x128xf32>
      %c0_22 = arith.constant 0 : index
      %c0_23 = arith.constant 0 : index
      %25 = vector.load %arg8[%c0_22, %c0_23] : memref<1x128xf32, #tpu.memory_space<vmem>>, vector<1x128xf32>
      %c0_24 = arith.constant 0 : index
      %c0_25 = arith.constant 0 : index
      %26 = vector.load %arg9[%c0_24, %c0_25] : memref<1x128xf32, #tpu.memory_space<vmem>>, vector<1x128xf32>
      %cst_26 = arith.constant dense<0.000000e+00> : vector<16xf32>
      %27 = vector.multi_reduction <add>, %24, %cst_26 [1] : vector<16x128xf32> to vector<16xf32>
      %28 = vector.shape_cast %27 : vector<16xf32> to vector<16x1xf32>
      %cst_27 = arith.constant 1.280000e+02 : f32
      %29 = vector.broadcast %cst_27 : f32 to vector<16x1xf32>
      %30 = arith.divf %28, %29 : vector<16x1xf32>
      %31 = vector.broadcast %30 : vector<16x1xf32> to vector<16x128xf32>
      %32 = arith.subf %24, %31 : vector<16x128xf32>
      %33 = arith.mulf %32, %32 : vector<16x128xf32>
      %cst_28 = arith.constant dense<0.000000e+00> : vector<16xf32>
      %34 = vector.multi_reduction <add>, %33, %cst_28 [1] : vector<16x128xf32> to vector<16xf32>
      %35 = vector.shape_cast %34 : vector<16xf32> to vector<16x1xf32>
      %cst_29 = arith.constant 1.280000e+02 : f32
      %36 = vector.broadcast %cst_29 : f32 to vector<16x1xf32>
      %37 = arith.divf %35, %36 : vector<16x1xf32>
      %38 = vector.broadcast %30 : vector<16x1xf32> to vector<16x128xf32>
      %39 = arith.subf %24, %38 : vector<16x128xf32>
      %cst_30 = arith.constant 9.99999974E-6 : f32
      %40 = vector.broadcast %cst_30 : f32 to vector<16x1xf32>
      %41 = arith.addf %37, %40 : vector<16x1xf32>
      %42 = math.rsqrt %41 : vector<16x1xf32>
      %43 = vector.broadcast %42 : vector<16x1xf32> to vector<16x128xf32>
      %44 = arith.mulf %39, %43 : vector<16x128xf32>
      %45 = vector.broadcast %25 : vector<1x128xf32> to vector<16x128xf32>
      %46 = arith.mulf %44, %45 : vector<16x128xf32>
      %47 = vector.broadcast %26 : vector<1x128xf32> to vector<16x128xf32>
      %48 = arith.addf %46, %47 : vector<16x128xf32>
      %c0_31 = arith.constant 0 : index
      %c0_32 = arith.constant 0 : index
      %49 = vector.load %arg10[%c0_31, %c0_32] : memref<16x128xf32, #tpu.memory_space<vmem>>, vector<16x128xf32>
      tpu.vector_store %arg10[%c0_31, %c0_32], %48 {strides = array<i32>} : memref<16x128xf32, #tpu.memory_space<vmem>>, vector<16x128xf32>,
    } else {
    }
    return
  }
  func.func @transform_0(%arg0: i32, %arg1: i32) -> (i32, i32) {
    %c0_i32 = arith.constant 0 : i32
    %c0_i32_0 = arith.constant 0 : i32
    return %arg0, %c0_i32 : i32, i32
  }
  func.func @transform_1(%arg0: i32, %arg1: i32) -> (i32, i32) {
    %c0_i32 = arith.constant 0 : i32
    %c0_i32_0 = arith.constant 0 : i32
    return %c0_i32, %arg1 : i32, i32
  }
  func.func @transform_2(%arg0: i32, %arg1: i32) -> (i32, i32) {
    %c0_i32 = arith.constant 0 : i32
    %c0_i32_0 = arith.constant 0 : i32
    return %c0_i32, %arg1 : i32, i32
  }
  func.func @transform_3(%arg0: i32, %arg1: i32) -> (i32, i32) {
    %c0_i32 = arith.constant 0 : i32
    %c0_i32_0 = arith.constant 0 : i32
    return %arg1, %c0_i32 : i32, i32
  }
  func.func @transform_4(%arg0: i32, %arg1: i32) -> (i32, i32) {
    %c0_i32 = arith.constant 0 : i32
    %c0_i32_0 = arith.constant 0 : i32
    %c0_i32_1 = arith.constant 0 : i32
    return %c0_i32, %c0_i32_0 : i32, i32
  }
  func.func @transform_5(%arg0: i32, %arg1: i32) -> (i32, i32) {
    %c0_i32 = arith.constant 0 : i32
    %c0_i32_0 = arith.constant 0 : i32
    return %arg0, %c0_i32 : i32, i32
  }
  func.func @transform_6(%arg0: i32, %arg1: i32) -> (i32, i32) {
    %c0_i32 = arith.constant 0 : i32
    %c0_i32_0 = arith.constant 0 : i32
    %c0_i32_1 = arith.constant 0 : i32
    return %c0_i32, %c0_i32_0 : i32, i32
  }
  func.func @transform_7(%arg0: i32, %arg1: i32) -> (i32, i32) {
    %c0_i32 = arith.constant 0 : i32
    %c0_i32_0 = arith.constant 0 : i32
    %c0_i32_1 = arith.constant 0 : i32
    return %c0_i32, %c0_i32_0 : i32, i32
  }
  func.func @transform_8(%arg0: i32, %arg1: i32) -> (i32, i32) {
    %c0_i32 = arith.constant 0 : i32
    %c0_i32_0 = arith.constant 0 : i32
    return %arg0, %c0_i32 : i32, i32
  }
}

</mosaic_0001>

<llo_original>
// kernel: transformer_forward.20
$region0: #{transformer_forward.20}
  #allocation0 [shape = 'u32[]', space=smem, size = 0x4, offset = 0x4, fixed_abs, tag = 'smem constant byte address 0x4 - core index']
  #allocation1 [shape = 'u32[144,128]{1,0:T(1,128)}', space=vmem, size = 0x12000, scoped, tag = 'internal scratch']
  #allocation2 [shape = 'f32[32,128]{1,0:T(8,128)}', space=vmem, size = 0x4000, scoped, tag = 'scratch operand']
  %s0 = inlined_call_operand.vmem [shape: f32[32,128], index: 0, kind: input, shape index: {}]
  %s1 = inlined_call_operand.vmem [shape: f32[128,128], index: 1, kind: input, shape index: {}]
  %s2 = inlined_call_operand.vmem [shape: f32[1,128], index: 2, kind: input, shape index: {}]
  %s3 = inlined_call_operand.vmem [shape: f32[128,128], index: 3, kind: input, shape index: {}]
  %s4 = inlined_call_operand.vmem [shape: f32[1,128], index: 4, kind: input, shape index: {}]
  %s5 = inlined_call_operand.vmem [shape: f32[32,128], index: 5, kind: input, shape index: {}]
  %s6 = inlined_call_operand.vmem [shape: f32[1,128], index: 6, kind: input, shape index: {}]
  %s7 = inlined_call_operand.vmem [shape: f32[1,128], index: 7, kind: input, shape index: {}]
  %s8 = inlined_call_operand.vmem [shape: f32[32,128], index: 8, kind: output, shape index: {}]
  %s9 = sld [smem:[#allocation0]]
  $region50: #{transformer_forward.20} parent=0
    _
  %s11 = ssub.s32 1, %s9
  %s12 = scalar_select 0, %s11, %s9
  // Predicated region
  $region2: #{transformer_forward.20} parent=0 // pred_check
    _
  $region3: #{transformer_forward.20} parent=0 // pred_check_branch
    %14 = sbr.rel (0) target = $region5
  $region4: #{transformer_forward.20} parent=0 // pred_region
    _
  $region5: #{transformer_forward.20} parent=0 // pred_fallthru
    _
  // Predicated region
  $region6: #{transformer_forward.20} parent=0 // pred_check
    _
  $region7: #{transformer_forward.20} parent=0 // pred_check_branch
    %16 = sbr.rel (0) target = $region9
  $region8: #{transformer_forward.20} parent=0 // pred_region
    _
  $region9: #{transformer_forward.20} parent=0 // pred_fallthru
    _
  // Predicated region
  $region10: #{transformer_forward.20} parent=0 // pred_check
    _
  $region11: #{transformer_forward.20} parent=0 // pred_check_branch
    %18 = sbr.rel (0) target = $region13
  $region12: #{transformer_forward.20} parent=0 // pred_region
    _
  $region13: #{transformer_forward.20} parent=0 // pred_fallthru
    _
  // Predicated region
  $region14: #{transformer_forward.20} parent=0 // pred_check
    _
  $region15: #{transformer_forward.20} parent=0 // pred_check_branch
    %20 = sbr.rel (0) target = $region17
  $region16: #{transformer_forward.20} parent=0 // pred_region
    _
  $region17: #{transformer_forward.20} parent=0 // pred_fallthru
    _
  // Predicated region
  $region18: #{transformer_forward.20} parent=0 // pred_check
    _
  $region19: #{transformer_forward.20} parent=0 // pred_check_branch
    %22 = sbr.rel (0) target = $region21
  $region20: #{transformer_forward.20} parent=0 // pred_region
    _
  $region21: #{transformer_forward.20} parent=0 // pred_fallthru
    _
  // Predicated region
  $region22: #{transformer_forward.20} parent=0 // pred_check
    _
  $region23: #{transformer_forward.20} parent=0 // pred_check_branch
    %24 = sbr.rel (0) target = $region25
  $region24: #{transformer_forward.20} parent=0 // pred_region
    _
  $region25: #{transformer_forward.20} parent=0 // pred_fallthru
    _
  // Predicated region
  $region26: #{transformer_forward.20} parent=0 // pred_check
    _
  $region27: #{transformer_forward.20} parent=0 // pred_check_branch
    %26 = sbr.rel (0) target = $region29
  $region28: #{transformer_forward.20} parent=0 // pred_region
    _
  $region29: #{transformer_forward.20} parent=0 // pred_fallthru
    _
  // Predicated region
  $region30: #{transformer_forward.20} parent=0 // pred_check
    _
  $region31: #{transformer_forward.20} parent=0 // pred_check_branch
    %28 = sbr.rel (0) target = $region33
  $region32: #{transformer_forward.20} parent=0 // pred_region
    _
  $region33: #{transformer_forward.20} parent=0 // pred_fallthru
    _
  %p29 = scmp.eq.s32.totalorder 0, 0
  // Predicated region
  $region34: #{transformer_forward.20} parent=0 // pred_check
    %p30 = pneg %p29
  $region35: #{transformer_forward.20} parent=0 // pred_check_branch
    %32 = sbr.rel (%p30) target = $region37
  $region36: #{transformer_forward.20} parent=0 // pred_region
    %33 = vst [vmem:[#allocation2] sm:$0xff] 0.0
    %34 = vst [vmem:[#allocation2 + $0x8] sm:$0xff] 0.0
    %35 = vst [vmem:[#allocation2 + $0x10] sm:$0xff] 0.0
    %36 = vst [vmem:[#allocation2 + $0x18] sm:$0xff] 0.0
  $region37: #{transformer_forward.20} parent=0 // pred_fallthru
    _
  %v37 = vld [vmem:[%s0] sm:$0xff]
  %v38 = vld [vmem:[%s0 + $0x8] sm:$0xff]
  %v39 = vld [vmem:[%s0 + $0x10] sm:$0xff]
  %v40 = vld [vmem:[%s0 + $0x18] sm:$0xff]
  %v41 = vld [vmem:[%s1] sm:$0xff]
  %v42 = vld [vmem:[%s1 + $0x8] sm:$0xff]
  %v43 = vld [vmem:[%s1 + $0x10] sm:$0xff]
  %v44 = vld [vmem:[%s1 + $0x18] sm:$0xff]
  %v45 = vld [vmem:[%s1 + $0x20] sm:$0xff]
  %v46 = vld [vmem:[%s1 + $0x28] sm:$0xff]
  %v47 = vld [vmem:[%s1 + $0x30] sm:$0xff]
  %v48 = vld [vmem:[%s1 + $0x38] sm:$0xff]
  %v49 = vld [vmem:[%s1 + $0x40] sm:$0xff]
  %v50 = vld [vmem:[%s1 + $0x48] sm:$0xff]
  %v51 = vld [vmem:[%s1 + $0x50] sm:$0xff]
  %v52 = vld [vmem:[%s1 + $0x58] sm:$0xff]
  %v53 = vld [vmem:[%s1 + $0x60] sm:$0xff]
  %v54 = vld [vmem:[%s1 + $0x68] sm:$0xff]
  %v55 = vld [vmem:[%s1 + $0x70] sm:$0xff]
  %v56 = vld [vmem:[%s1 + $0x78] sm:$0xff]
  %v57 = vld [vmem:[%s2] sm:$0x1]
  %v59 = vlaneseq
  %v60 = vshrl.u32 %v59, 7
  %v61 = vsub.s32 0, %v60
  %v62 = vrot.slane %v57, %v61
  %64 = vmatprep.subr.mxu0 0.0
  %65 = vmatpush1.msra.mxu0 %v41
  %66 = vmatprep.subr.mxu0 0.0
  %67 = vmatpush1.msra.mxu0 %v42
  %68 = vmatprep.subr.mxu0 0.0
  %69 = vmatpush1.msra.mxu0 %v43
  %70 = vmatprep.subr.mxu0 0.0
  %71 = vmatpush1.msra.mxu0 %v44
  %72 = vmatprep.subr.mxu0 0.0
  %73 = vmatpush1.msra.mxu0 %v45
  %74 = vmatprep.subr.mxu0 0.0
  %75 = vmatpush1.msra.mxu0 %v46
  %76 = vmatprep.subr.mxu0 0.0
  %77 = vmatpush1.msra.mxu0 %v47
  %78 = vmatprep.subr.mxu0 0.0
  %79 = vmatpush1.msra.mxu0 %v48
  %80 = vmatprep.subr.mxu0 0.0
  %81 = vmatpush1.msra.mxu0 %v49
  %82 = vmatprep.subr.mxu0 0.0
  %83 = vmatpush1.msra.mxu0 %v50
  %84 = vmatprep.subr.mxu0 0.0
  %85 = vmatpush1.msra.mxu0 %v51
  %86 = vmatprep.subr.mxu0 0.0
  %87 = vmatpush1.msra.mxu0 %v52
  %88 = vmatprep.subr.mxu0 0.0
  %89 = vmatpush1.msra.mxu0 %v53
  %90 = vmatprep.subr.mxu0 0.0
  %91 = vmatpush1.msra.mxu0 %v54
  %92 = vmatprep.subr.mxu0 0.0
  %93 = vmatpush1.msra.mxu0 %v55
  %94 = vmatprep.subr.mxu0 0.0
  %95 = vmatpush1.msra.mxu0 %v56
  %96 = vmatprep.subr.mxu0 0.0
  %97 = vmatpush1.msra.mxu0 0.0
  %98 = vmatprep.subr.mxu0 0.0
  %99 = vmatpush1.msra.mxu0 0.0
  %100 = vmatprep.subr.mxu0 0.0
  %101 = vmatpush1.msra.mxu0 0.0
  %102 = vmatprep.subr.mxu0 0.0
  %103 = vmatpush1.msra.mxu0 0.0
  %104 = vmatprep.subr.mxu0 0.0
  %105 = vmatpush1.msra.mxu0 0.0
  %106 = vmatprep.subr.mxu0 0.0
  %107 = vmatpush1.msra.mxu0 0.0
  %108 = vmatprep.subr.mxu0 0.0
  %109 = vmatpush1.msra.mxu0 0.0
  %110 = vmatprep.subr.mxu0 0.0
  %111 = vmatpush1.msra.mxu0 0.0
  %112 = vmatprep.subr.mxu0 0.0
  %113 = vmatpush1.msra.mxu0 0.0
  %114 = vmatprep.subr.mxu0 0.0
  %115 = vmatpush1.msra.mxu0 0.0
  %116 = vmatprep.subr.mxu0 0.0
  %117 = vmatpush1.msra.mxu0 0.0
  %118 = vmatprep.subr.mxu0 0.0
  %119 = vmatpush1.msra.mxu0 0.0
  %120 = vmatprep.subr.mxu0 0.0
  %121 = vmatpush1.msra.mxu0 0.0
  %122 = vmatprep.subr.mxu0 0.0
  %123 = vmatpush1.msra.mxu0 0.0
  %124 = vmatprep.subr.mxu0 0.0
  %125 = vmatpush1.msra.mxu0 0.0
  %126 = vmatprep.subr.mxu0 0.0
  %127 = vmatpush1.msra.mxu0 0.0
  %128 = vmatprep.mubr.f32.mxu0 0.0
  %129 = vmatmul.mubr.f32.gmra.mrb[0].mxu0 %v37
  %v130 = vpop.f32.mrb[0].mxu0
  %v131 = vadd.f32 %v62, %v130
  %v132 = vpop.f32.mrb[0].mxu0
  %133 = vmatprep.mubr.f32.mxu0 0.0
  %134 = vmatmul.mubr.f32.gmra.mrb[0].mxu0 %v38
  %v135 = vpop.f32.mrb[0].mxu0
  %v136 = vadd.f32 %v62, %v135
  %v137 = vpop.f32.mrb[0].mxu0
  %138 = vmatprep.mubr.f32.mxu0 0.0
  %139 = vmatmul.mubr.f32.gmra.mrb[0].mxu0 %v39
  %v140 = vpop.f32.mrb[0].mxu0
  %v141 = vadd.f32 %v62, %v140
  %v142 = vpop.f32.mrb[0].mxu0
  %143 = vmatprep.mubr.f32.mxu0 0.0
  %144 = vmatmul.mubr.f32.gmra.mrb[0].mxu0 %v40
  %v145 = vpop.f32.mrb[0].mxu0
  %v146 = vadd.f32 %v62, %v145
  %v147 = vpop.f32.mrb[0].mxu0
  %148 = vdwg.mxu0
  %v149 = vmax.f32 %v131, 0.0
  %v150 = vmax.f32 %v136, 0.0
  %v151 = vmax.f32 %v141, 0.0
  %v152 = vmax.f32 %v146, 0.0
  %v153 = vld [vmem:[#allocation2] sm:$0xff]
  %v154 = vld [vmem:[#allocation2 + $0x8] sm:$0xff]
  %v155 = vld [vmem:[#allocation2 + $0x10] sm:$0xff]
  %v156 = vld [vmem:[#allocation2 + $0x18] sm:$0xff]
  %v157 = vld [vmem:[%s3] sm:$0xff]
  %v158 = vld [vmem:[%s3 + $0x8] sm:$0xff]
  %v159 = vld [vmem:[%s3 + $0x10] sm:$0xff]
  %v160 = vld [vmem:[%s3 + $0x18] sm:$0xff]
  %v161 = vld [vmem:[%s3 + $0x20] sm:$0xff]
  %v162 = vld [vmem:[%s3 + $0x28] sm:$0xff]
  %v163 = vld [vmem:[%s3 + $0x30] sm:$0xff]
  %v164 = vld [vmem:[%s3 + $0x38] sm:$0xff]
  %v165 = vld [vmem:[%s3 + $0x40] sm:$0xff]
  %v166 = vld [vmem:[%s3 + $0x48] sm:$0xff]
  %v167 = vld [vmem:[%s3 + $0x50] sm:$0xff]
  %v168 = vld [vmem:[%s3 + $0x58] sm:$0xff]
  %v169 = vld [vmem:[%s3 + $0x60] sm:$0xff]
  %v170 = vld [vmem:[%s3 + $0x68] sm:$0xff]
  %v171 = vld [vmem:[%s3 + $0x70] sm:$0xff]
  %v172 = vld [vmem:[%s3 + $0x78] sm:$0xff]
  %173 = vmatprep.subr.mxu0 0.0
  %174 = vmatpush1.msra.mxu0 %v157
  %175 = vmatprep.subr.mxu0 0.0
  %176 = vmatpush1.msra.mxu0 %v158
  %177 = vmatprep.subr.mxu0 0.0
  %178 = vmatpush1.msra.mxu0 %v159
  %179 = vmatprep.subr.mxu0 0.0
  %180 = vmatpush1.msra.mxu0 %v160
  %181 = vmatprep.subr.mxu0 0.0
  %182 = vmatpush1.msra.mxu0 %v161
  %183 = vmatprep.subr.mxu0 0.0
  %184 = vmatpush1.msra.mxu0 %v162
  %185 = vmatprep.subr.mxu0 0.0
  %186 = vmatpush1.msra.mxu0 %v163
  %187 = vmatprep.subr.mxu0 0.0
  %188 = vmatpush1.msra.mxu0 %v164
  %189 = vmatprep.subr.mxu0 0.0
  %190 = vmatpush1.msra.mxu0 %v165
  %191 = vmatprep.subr.mxu0 0.0
  %192 = vmatpush1.msra.mxu0 %v166
  %193 = vmatprep.subr.mxu0 0.0
  %194 = vmatpush1.msra.mxu0 %v167
  %195 = vmatprep.subr.mxu0 0.0
  %196 = vmatpush1.msra.mxu0 %v168
  %197 = vmatprep.subr.mxu0 0.0
  %198 = vmatpush1.msra.mxu0 %v169
  %199 = vmatprep.subr.mxu0 0.0
  %200 = vmatpush1.msra.mxu0 %v170
  %201 = vmatprep.subr.mxu0 0.0
  %202 = vmatpush1.msra.mxu0 %v171
  %203 = vmatprep.subr.mxu0 0.0
  %204 = vmatpush1.msra.mxu0 %v172
  %205 = vmatprep.subr.mxu0 0.0
  %206 = vmatpush1.msra.mxu0 0.0
  %207 = vmatprep.subr.mxu0 0.0
  %208 = vmatpush1.msra.mxu0 0.0
  %209 = vmatprep.subr.mxu0 0.0
  %210 = vmatpush1.msra.mxu0 0.0
  %211 = vmatprep.subr.mxu0 0.0
  %212 = vmatpush1.msra.mxu0 0.0
  %213 = vmatprep.subr.mxu0 0.0
  %214 = vmatpush1.msra.mxu0 0.0
  %215 = vmatprep.subr.mxu0 0.0
  %216 = vmatpush1.msra.mxu0 0.0
  %217 = vmatprep.subr.mxu0 0.0
  %218 = vmatpush1.msra.mxu0 0.0
  %219 = vmatprep.subr.mxu0 0.0
  %220 = vmatpush1.msra.mxu0 0.0
  %221 = vmatprep.subr.mxu0 0.0
  %222 = vmatpush1.msra.mxu0 0.0
  %223 = vmatprep.subr.mxu0 0.0
  %224 = vmatpush1.msra.mxu0 0.0
  %225 = vmatprep.subr.mxu0 0.0
  %226 = vmatpush1.msra.mxu0 0.0
  %227 = vmatprep.subr.mxu0 0.0
  %228 = vmatpush1.msra.mxu0 0.0
  %229 = vmatprep.subr.mxu0 0.0
  %230 = vmatpush1.msra.mxu0 0.0
  %231 = vmatprep.subr.mxu0 0.0
  %232 = vmatpush1.msra.mxu0 0.0
  %233 = vmatprep.subr.mxu0 0.0
  %234 = vmatpush1.msra.mxu0 0.0
  %235 = vmatprep.subr.mxu0 0.0
  %236 = vmatpush1.msra.mxu0 0.0
  %237 = vmatprep.mubr.f32.mxu0 0.0
  %238 = vmatmul.mubr.f32.gmra.mrb[0].mxu0 %v149
  %v239 = vpop.f32.mrb[0].mxu0
  %v240 = vadd.f32 0.0, %v239
  %v241 = vpop.f32.mrb[0].mxu0
  %242 = vmatprep.mubr.f32.mxu0 0.0
  %243 = vmatmul.mubr.f32.gmra.mrb[0].mxu0 %v150
  %v244 = vpop.f32.mrb[0].mxu0
  %v245 = vadd.f32 0.0, %v244
  %v246 = vpop.f32.mrb[0].mxu0
  %247 = vmatprep.mubr.f32.mxu0 0.0
  %248 = vmatmul.mubr.f32.gmra.mrb[0].mxu0 %v151
  %v249 = vpop.f32.mrb[0].mxu0
  %v250 = vadd.f32 0.0, %v249
  %v251 = vpop.f32.mrb[0].mxu0
  %252 = vmatprep.mubr.f32.mxu0 0.0
  %253 = vmatmul.mubr.f32.gmra.mrb[0].mxu0 %v152
  %v254 = vpop.f32.mrb[0].mxu0
  %v255 = vadd.f32 0.0, %v254
  %v256 = vpop.f32.mrb[0].mxu0
  %257 = vdwg.mxu0
  %v258 = vadd.f32 %v153, %v240
  %v259 = vadd.f32 %v154, %v245
  %v260 = vadd.f32 %v155, %v250
  %v261 = vadd.f32 %v156, %v255
  %262 = vst [vmem:[#allocation2] sm:$0xff] %v258
  %263 = vst [vmem:[#allocation2 + $0x8] sm:$0xff] %v259
  %264 = vst [vmem:[#allocation2 + $0x10] sm:$0xff] %v260
  %265 = vst [vmem:[#allocation2 + $0x18] sm:$0xff] %v261
  // Predicated region
  $region38: #{transformer_forward.20} parent=0 // pred_check
    %p266 = pneg %p29
  $region39: #{transformer_forward.20} parent=0 // pred_check_branch
    %268 = sbr.rel (%p266) target = $region41
  $region40: #{transformer_forward.20} parent=0 // pred_region
    %v269 = vld [vmem:[%s5] sm:$0xff]
    %v270 = vld [vmem:[%s5 + $0x8] sm:$0xff]
    %v271 = vld [vmem:[%s5 + $0x10] sm:$0xff]
    %v272 = vld [vmem:[%s5 + $0x18] sm:$0xff]
    %v273 = vld [vmem:[#allocation2] sm:$0xff]
    %v274 = vld [vmem:[#allocation2 + $0x8] sm:$0xff]
    %v275 = vld [vmem:[#allocation2 + $0x10] sm:$0xff]
    %v276 = vld [vmem:[#allocation2 + $0x18] sm:$0xff]
    %v277 = vadd.f32 %v269, %v273
    %v278 = vadd.f32 %v270, %v274
    %v279 = vadd.f32 %v271, %v275
    %v280 = vadd.f32 %v272, %v276
    %v281 = vld [vmem:[%s4] sm:$0x1]
    %v283 = vlaneseq
    %v284 = vshrl.u32 %v283, 7
    %v285 = vsub.s32 0, %v284
    %v286 = vrot.slane %v281, %v285
    %v288 = vadd.f32 %v277, %v286
    %v289 = vadd.f32 %v278, %v286
    %v290 = vadd.f32 %v279, %v286
    %v291 = vadd.f32 %v280, %v286
    %v292 = vld [vmem:[%s6] sm:$0x1]
    %v293 = vld [vmem:[%s7] sm:$0x1]
    %294 = vadd.xlane.f32.xlu0 %v288
    %v295 = vpop.xlane.xlu0 %294
    %296 = vadd.xlane.f32.xlu0 %v289
    %v297 = vpop.xlane.xlu0 %296
    %298 = vadd.xlane.f32.xlu0 %v290
    %v299 = vpop.xlane.xlu0 %298
    %300 = vadd.xlane.f32.xlu0 %v291
    %v301 = vpop.xlane.xlu0 %300
    %v302 = vrcp.pop 128.0
    %v303 = vmul.f32 %v295, %v302
    %v304 = vmul.f32 %v297, %v302
    %v305 = vmul.f32 %v299, %v302
    %v306 = vmul.f32 %v301, %v302
    %v307 = vsub.f32 %v288, %v303
    %v308 = vsub.f32 %v289, %v304
    %v309 = vsub.f32 %v290, %v305
    %v310 = vsub.f32 %v291, %v306
    %v311 = vmul.f32 %v307, %v307
    %v312 = vmul.f32 %v308, %v308
    %v313 = vmul.f32 %v309, %v309
    %v314 = vmul.f32 %v310, %v310
    %315 = vadd.xlane.f32.xlu0 %v311
    %v316 = vpop.xlane.xlu0 %315
    %317 = vadd.xlane.f32.xlu0 %v312
    %v318 = vpop.xlane.xlu0 %317
    %319 = vadd.xlane.f32.xlu0 %v313
    %v320 = vpop.xlane.xlu0 %319
    %321 = vadd.xlane.f32.xlu0 %v314
    %v322 = vpop.xlane.xlu0 %321
    %v323 = vmul.f32 %v316, %v302
    %v324 = vmul.f32 %v318, %v302
    %v325 = vmul.f32 %v320, %v302
    %v326 = vmul.f32 %v322, %v302
    %v327 = vadd.f32 %v323, 1e-05
    %v328 = vadd.f32 %v324, 1e-05
    %v329 = vadd.f32 %v325, 1e-05
    %v330 = vadd.f32 %v326, 1e-05
    %v331 = vrsqrt.pop %v327
    %v332 = vrsqrt.pop %v328
    %v333 = vrsqrt.pop %v329
    %v334 = vrsqrt.pop %v330
    %v335 = vmul.f32 %v307, %v331
    %v336 = vmul.f32 %v308, %v332
    %v337 = vmul.f32 %v309, %v333
    %v338 = vmul.f32 %v310, %v334
    %v340 = vlaneseq
    %v341 = vshrl.u32 %v340, 7
    %v342 = vsub.s32 0, %v341
    %v343 = vrot.slane %v292, %v342
    %v345 = vmul.f32 %v335, %v343
    %v346 = vmul.f32 %v336, %v343
    %v347 = vmul.f32 %v337, %v343
    %v348 = vmul.f32 %v338, %v343
    %v350 = vlaneseq
    %v351 = vshrl.u32 %v350, 7
    %v352 = vsub.s32 0, %v351
    %v353 = vrot.slane %v293, %v352
    %v355 = vadd.f32 %v345, %v353
    %v356 = vadd.f32 %v346, %v353
    %v357 = vadd.f32 %v347, %v353
    %v358 = vadd.f32 %v348, %v353
    %359 = vst [vmem:[%s8] sm:$0xff] %v355
    %360 = vst [vmem:[%s8 + $0x8] sm:$0xff] %v356
    %361 = vst [vmem:[%s8 + $0x10] sm:$0xff] %v357
    %362 = vst [vmem:[%s8 + $0x18] sm:$0xff] %v358
  $region41: #{transformer_forward.20} parent=0 // pred_fallthru
    _
  // Predicated region
  $region42: #{transformer_forward.20} parent=0 // pred_check
    _
  $region43: #{transformer_forward.20} parent=0 // pred_check_branch
    %364 = sbr.rel (0) target = $region45
  $region44: #{transformer_forward.20} parent=0 // pred_region
    _
  $region45: #{transformer_forward.20} parent=0 // pred_fallthru
    _
  // Predicated region
  $region46: #{transformer_forward.20} parent=0 // pred_check
    _
  $region47: #{transformer_forward.20} parent=0 // pred_check_branch
    %366 = sbr.rel (0) target = $region49
  $region48: #{transformer_forward.20} parent=0 // pred_region
    _
  $region49: #{transformer_forward.20} parent=0 // pred_fallthru
    _

// kernel: transformer_forward.21
$region0: #{transformer_forward.21}
  #allocation0 [shape = 'u32[]', space=smem, size = 0x4, offset = 0x4, fixed_abs, tag = 'smem constant byte address 0x4 - core index']
  #allocation1 [shape = 'u32[144,128]{1,0:T(1,128)}', space=vmem, size = 0x12000, scoped, tag = 'internal scratch']
  %s0 = inlined_call_operand.vmem [shape: f32[32,128], index: 0, kind: input, shape index: {}]
  %s1 = inlined_call_operand.vmem [shape: f32[32,128], index: 1, kind: input, shape index: {}]
  %s2 = inlined_call_operand.vmem [shape: f32[1,128], index: 2, kind: input, shape index: {}]
  %s3 = inlined_call_operand.vmem [shape: f32[1,128], index: 3, kind: input, shape index: {}]
  %s4 = inlined_call_operand.vmem [shape: f32[128,128], index: 4, kind: input, shape index: {}]
  %s5 = inlined_call_operand.vmem [shape: f32[1,128], index: 5, kind: input, shape index: {}]
  %s6 = inlined_call_operand.vmem [shape: f32[128,128], index: 6, kind: input, shape index: {}]
  %s7 = inlined_call_operand.vmem [shape: f32[1,128], index: 7, kind: input, shape index: {}]
  %s8 = inlined_call_operand.vmem [shape: f32[128,128], index: 8, kind: input, shape index: {}]
  %s9 = inlined_call_operand.vmem [shape: f32[1,128], index: 9, kind: input, shape index: {}]
  %s10 = inlined_call_operand.vmem [shape: f32[32,128], index: 10, kind: output, shape index: {0}]
  %s11 = inlined_call_operand.vmem [shape: f32[32,128], index: 11, kind: output, shape index: {1}]
  %s12 = inlined_call_operand.vmem [shape: f32[32,128], index: 12, kind: output, shape index: {2}]
  %13 = xla_tuple %s10, %s11, %s12
  %s14 = sld [smem:[#allocation0]]
  $region66: #{transformer_forward.21} parent=0
    _
  %s16 = ssub.s32 1, %s14
  %s17 = scalar_select 0, %s16, %s14
  // Predicated region
  $region2: #{transformer_forward.21} parent=0 // pred_check
    _
  $region3: #{transformer_forward.21} parent=0 // pred_check_branch
    %19 = sbr.rel (0) target = $region5
  $region4: #{transformer_forward.21} parent=0 // pred_region
    _
  $region5: #{transformer_forward.21} parent=0 // pred_fallthru
    _
  // Predicated region
  $region6: #{transformer_forward.21} parent=0 // pred_check
    _
  $region7: #{transformer_forward.21} parent=0 // pred_check_branch
    %21 = sbr.rel (0) target = $region9
  $region8: #{transformer_forward.21} parent=0 // pred_region
    _
  $region9: #{transformer_forward.21} parent=0 // pred_fallthru
    _
  // Predicated region
  $region10: #{transformer_forward.21} parent=0 // pred_check
    _
  $region11: #{transformer_forward.21} parent=0 // pred_check_branch
    %23 = sbr.rel (0) target = $region13
  $region12: #{transformer_forward.21} parent=0 // pred_region
    _
  $region13: #{transformer_forward.21} parent=0 // pred_fallthru
    _
  // Predicated region
  $region14: #{transformer_forward.21} parent=0 // pred_check
    _
  $region15: #{transformer_forward.21} parent=0 // pred_check_branch
    %25 = sbr.rel (0) target = $region17
  $region16: #{transformer_forward.21} parent=0 // pred_region
    _
  $region17: #{transformer_forward.21} parent=0 // pred_fallthru
    _
  // Predicated region
  $region18: #{transformer_forward.21} parent=0 // pred_check
    _
  $region19: #{transformer_forward.21} parent=0 // pred_check_branch
    %27 = sbr.rel (0) target = $region21
  $region20: #{transformer_forward.21} parent=0 // pred_region
    _
  $region21: #{transformer_forward.21} parent=0 // pred_fallthru
    _
  // Predicated region
  $region22: #{transformer_forward.21} parent=0 // pred_check
    _
  $region23: #{transformer_forward.21} parent=0 // pred_check_branch
    %29 = sbr.rel (0) target = $region25
  $region24: #{transformer_forward.21} parent=0 // pred_region
    _
  $region25: #{transformer_forward.21} parent=0 // pred_fallthru
    _
  // Predicated region
  $region26: #{transformer_forward.21} parent=0 // pred_check
    _
  $region27: #{transformer_forward.21} parent=0 // pred_check_branch
    %31 = sbr.rel (0) target = $region29
  $region28: #{transformer_forward.21} parent=0 // pred_region
    _
  $region29: #{transformer_forward.21} parent=0 // pred_fallthru
    _
  // Predicated region
  $region30: #{transformer_forward.21} parent=0 // pred_check
    _
  $region31: #{transformer_forward.21} parent=0 // pred_check_branch
    %33 = sbr.rel (0) target = $region33
  $region32: #{transformer_forward.21} parent=0 // pred_region
    _
  $region33: #{transformer_forward.21} parent=0 // pred_fallthru
    _
  // Predicated region
  $region34: #{transformer_forward.21} parent=0 // pred_check
    _
  $region35: #{transformer_forward.21} parent=0 // pred_check_branch
    %35 = sbr.rel (0) target = $region37
  $region36: #{transformer_forward.21} parent=0 // pred_region
    _
  $region37: #{transformer_forward.21} parent=0 // pred_fallthru
    _
  // Predicated region
  $region38: #{transformer_forward.21} parent=0 // pred_check
    _
  $region39: #{transformer_forward.21} parent=0 // pred_check_branch
    %37 = sbr.rel (0) target = $region41
  $region40: #{transformer_forward.21} parent=0 // pred_region
    _
  $region41: #{transformer_forward.21} parent=0 // pred_fallthru
    _
  %v38 = vld [vmem:[%s0] sm:$0xff]
  %v39 = vld [vmem:[%s0 + $0x8] sm:$0xff]
  %v40 = vld [vmem:[%s0 + $0x10] sm:$0xff]
  %v41 = vld [vmem:[%s0 + $0x18] sm:$0xff]
  %v42 = vld [vmem:[%s2] sm:$0x1]
  %v43 = vld [vmem:[%s3] sm:$0x1]
  %44 = vadd.xlane.f32.xlu0 %v38
  %v45 = vpop.xlane.xlu0 %44
  %46 = vadd.xlane.f32.xlu0 %v39
  %v47 = vpop.xlane.xlu0 %46
  %48 = vadd.xlane.f32.xlu0 %v40
  %v49 = vpop.xlane.xlu0 %48
  %50 = vadd.xlane.f32.xlu0 %v41
  %v51 = vpop.xlane.xlu0 %50
  %v52 = vrcp.pop 128.0
  %v53 = vmul.f32 %v45, %v52
  %v54 = vmul.f32 %v47, %v52
  %v55 = vmul.f32 %v49, %v52
  %v56 = vmul.f32 %v51, %v52
  %v57 = vsub.f32 %v38, %v53
  %v58 = vsub.f32 %v39, %v54
  %v59 = vsub.f32 %v40, %v55
  %v60 = vsub.f32 %v41, %v56
  %v61 = vmul.f32 %v57, %v57
  %v62 = vmul.f32 %v58, %v58
  %v63 = vmul.f32 %v59, %v59
  %v64 = vmul.f32 %v60, %v60
  %65 = vadd.xlane.f32.xlu0 %v61
  %v66 = vpop.xlane.xlu0 %65
  %67 = vadd.xlane.f32.xlu0 %v62
  %v68 = vpop.xlane.xlu0 %67
  %69 = vadd.xlane.f32.xlu0 %v63
  %v70 = vpop.xlane.xlu0 %69
  %71 = vadd.xlane.f32.xlu0 %v64
  %v72 = vpop.xlane.xlu0 %71
  %v73 = vmul.f32 %v66, %v52
  %v74 = vmul.f32 %v68, %v52
  %v75 = vmul.f32 %v70, %v52
  %v76 = vmul.f32 %v72, %v52
  %v77 = vadd.f32 %v73, 1e-05
  %v78 = vadd.f32 %v74, 1e-05
  %v79 = vadd.f32 %v75, 1e-05
  %v80 = vadd.f32 %v76, 1e-05
  %v81 = vrsqrt.pop %v77
  %v82 = vrsqrt.pop %v78
  %v83 = vrsqrt.pop %v79
  %v84 = vrsqrt.pop %v80
  %v85 = vmul.f32 %v57, %v81
  %v86 = vmul.f32 %v58, %v82
  %v87 = vmul.f32 %v59, %v83
  %v88 = vmul.f32 %v60, %v84
  %v90 = vlaneseq
  %v91 = vshrl.u32 %v90, 7
  %v92 = vsub.s32 0, %v91
  %v93 = vrot.slane %v42, %v92
  %v95 = vmul.f32 %v85, %v93
  %v96 = vmul.f32 %v86, %v93
  %v97 = vmul.f32 %v87, %v93
  %v98 = vmul.f32 %v88, %v93
  %v100 = vlaneseq
  %v101 = vshrl.u32 %v100, 7
  %v102 = vsub.s32 0, %v101
  %v103 = vrot.slane %v43, %v102
  %v105 = vadd.f32 %v95, %v103
  %v106 = vadd.f32 %v96, %v103
  %v107 = vadd.f32 %v97, %v103
  %v108 = vadd.f32 %v98, %v103
  %v109 = vld [vmem:[%s1] sm:$0xff]
  %v110 = vld [vmem:[%s1 + $0x8] sm:$0xff]
  %v111 = vld [vmem:[%s1 + $0x10] sm:$0xff]
  %v112 = vld [vmem:[%s1 + $0x18] sm:$0xff]
  %v113 = vadd.f32 %v105, %v109
  %v114 = vadd.f32 %v106, %v110
  %v115 = vadd.f32 %v107, %v111
  %v116 = vadd.f32 %v108, %v112
  %v117 = vld [vmem:[%s4] sm:$0xff]
  %v118 = vld [vmem:[%s4 + $0x8] sm:$0xff]
  %v119 = vld [vmem:[%s4 + $0x10] sm:$0xff]
  %v120 = vld [vmem:[%s4 + $0x18] sm:$0xff]
  %v121 = vld [vmem:[%s4 + $0x20] sm:$0xff]
  %v122 = vld [vmem:[%s4 + $0x28] sm:$0xff]
  %v123 = vld [vmem:[%s4 + $0x30] sm:$0xff]
  %v124 = vld [vmem:[%s4 + $0x38] sm:$0xff]
  %v125 = vld [vmem:[%s4 + $0x40] sm:$0xff]
  %v126 = vld [vmem:[%s4 + $0x48] sm:$0xff]
  %v127 = vld [vmem:[%s4 + $0x50] sm:$0xff]
  %v128 = vld [vmem:[%s4 + $0x58] sm:$0xff]
  %v129 = vld [vmem:[%s4 + $0x60] sm:$0xff]
  %v130 = vld [vmem:[%s4 + $0x68] sm:$0xff]
  %v131 = vld [vmem:[%s4 + $0x70] sm:$0xff]
  %v132 = vld [vmem:[%s4 + $0x78] sm:$0xff]
  %v133 = vld [vmem:[%s5] sm:$0x1]
  %v135 = vlaneseq
  %v136 = vshrl.u32 %v135, 7
  %v137 = vsub.s32 0, %v136
  %v138 = vrot.slane %v133, %v137
  %140 = vmatprep.subr.mxu0 0.0
  %141 = vmatpush1.msra.mxu0 %v117
  %142 = vmatprep.subr.mxu0 0.0
  %143 = vmatpush1.msra.mxu0 %v118
  %144 = vmatprep.subr.mxu0 0.0
  %145 = vmatpush1.msra.mxu0 %v119
  %146 = vmatprep.subr.mxu0 0.0
  %147 = vmatpush1.msra.mxu0 %v120
  %148 = vmatprep.subr.mxu0 0.0
  %149 = vmatpush1.msra.mxu0 %v121
  %150 = vmatprep.subr.mxu0 0.0
  %151 = vmatpush1.msra.mxu0 %v122
  %152 = vmatprep.subr.mxu0 0.0
  %153 = vmatpush1.msra.mxu0 %v123
  %154 = vmatprep.subr.mxu0 0.0
  %155 = vmatpush1.msra.mxu0 %v124
  %156 = vmatprep.subr.mxu0 0.0
  %157 = vmatpush1.msra.mxu0 %v125
  %158 = vmatprep.subr.mxu0 0.0
  %159 = vmatpush1.msra.mxu0 %v126
  %160 = vmatprep.subr.mxu0 0.0
  %161 = vmatpush1.msra.mxu0 %v127
  %162 = vmatprep.subr.mxu0 0.0
  %163 = vmatpush1.msra.mxu0 %v128
  %164 = vmatprep.subr.mxu0 0.0
  %165 = vmatpush1.msra.mxu0 %v129
  %166 = vmatprep.subr.mxu0 0.0
  %167 = vmatpush1.msra.mxu0 %v130
  %168 = vmatprep.subr.mxu0 0.0
  %169 = vmatpush1.msra.mxu0 %v131
  %170 = vmatprep.subr.mxu0 0.0
  %171 = vmatpush1.msra.mxu0 %v132
  %172 = vmatprep.subr.mxu0 0.0
  %173 = vmatpush1.msra.mxu0 0.0
  %174 = vmatprep.subr.mxu0 0.0
  %175 = vmatpush1.msra.mxu0 0.0
  %176 = vmatprep.subr.mxu0 0.0
  %177 = vmatpush1.msra.mxu0 0.0
  %178 = vmatprep.subr.mxu0 0.0
  %179 = vmatpush1.msra.mxu0 0.0
  %180 = vmatprep.subr.mxu0 0.0
  %181 = vmatpush1.msra.mxu0 0.0
  %182 = vmatprep.subr.mxu0 0.0
  %183 = vmatpush1.msra.mxu0 0.0
  %184 = vmatprep.subr.mxu0 0.0
  %185 = vmatpush1.msra.mxu0 0.0
  %186 = vmatprep.subr.mxu0 0.0
  %187 = vmatpush1.msra.mxu0 0.0
  %188 = vmatprep.subr.mxu0 0.0
  %189 = vmatpush1.msra.mxu0 0.0
  %190 = vmatprep.subr.mxu0 0.0
  %191 = vmatpush1.msra.mxu0 0.0
  %192 = vmatprep.subr.mxu0 0.0
  %193 = vmatpush1.msra.mxu0 0.0
  %194 = vmatprep.subr.mxu0 0.0
  %195 = vmatpush1.msra.mxu0 0.0
  %196 = vmatprep.subr.mxu0 0.0
  %197 = vmatpush1.msra.mxu0 0.0
  %198 = vmatprep.subr.mxu0 0.0
  %199 = vmatpush1.msra.mxu0 0.0
  %200 = vmatprep.subr.mxu0 0.0
  %201 = vmatpush1.msra.mxu0 0.0
  %202 = vmatprep.subr.mxu0 0.0
  %203 = vmatpush1.msra.mxu0 0.0
  %204 = vmatprep.mubr.f32.mxu0 0.0
  %205 = vmatmul.mubr.f32.gmra.mrb[0].mxu0 %v113
  %v206 = vpop.f32.mrb[0].mxu0
  %v207 = vadd.f32 %v138, %v206
  %v208 = vpop.f32.mrb[0].mxu0
  %209 = vmatprep.mubr.f32.mxu0 0.0
  %210 = vmatmul.mubr.f32.gmra.mrb[0].mxu0 %v114
  %v211 = vpop.f32.mrb[0].mxu0
  %v212 = vadd.f32 %v138, %v211
  %v213 = vpop.f32.mrb[0].mxu0
  %214 = vmatprep.mubr.f32.mxu0 0.0
  %215 = vmatmul.mubr.f32.gmra.mrb[0].mxu0 %v115
  %v216 = vpop.f32.mrb[0].mxu0
  %v217 = vadd.f32 %v138, %v216
  %v218 = vpop.f32.mrb[0].mxu0
  %219 = vmatprep.mubr.f32.mxu0 0.0
  %220 = vmatmul.mubr.f32.gmra.mrb[0].mxu0 %v116
  %v221 = vpop.f32.mrb[0].mxu0
  %v222 = vadd.f32 %v138, %v221
  %v223 = vpop.f32.mrb[0].mxu0
  %224 = vdwg.mxu0
  %225 = vst [vmem:[%s10] sm:$0xff] %v207
  %226 = vst [vmem:[%s10 + $0x8] sm:$0xff] %v212
  %227 = vst [vmem:[%s10 + $0x10] sm:$0xff] %v217
  %228 = vst [vmem:[%s10 + $0x18] sm:$0xff] %v222
  %v229 = vld [vmem:[%s6] sm:$0xff]
  %v230 = vld [vmem:[%s6 + $0x8] sm:$0xff]
  %v231 = vld [vmem:[%s6 + $0x10] sm:$0xff]
  %v232 = vld [vmem:[%s6 + $0x18] sm:$0xff]
  %v233 = vld [vmem:[%s6 + $0x20] sm:$0xff]
  %v234 = vld [vmem:[%s6 + $0x28] sm:$0xff]
  %v235 = vld [vmem:[%s6 + $0x30] sm:$0xff]
  %v236 = vld [vmem:[%s6 + $0x38] sm:$0xff]
  %v237 = vld [vmem:[%s6 + $0x40] sm:$0xff]
  %v238 = vld [vmem:[%s6 + $0x48] sm:$0xff]
  %v239 = vld [vmem:[%s6 + $0x50] sm:$0xff]
  %v240 = vld [vmem:[%s6 + $0x58] sm:$0xff]
  %v241 = vld [vmem:[%s6 + $0x60] sm:$0xff]
  %v242 = vld [vmem:[%s6 + $0x68] sm:$0xff]
  %v243 = vld [vmem:[%s6 + $0x70] sm:$0xff]
  %v244 = vld [vmem:[%s6 + $0x78] sm:$0xff]
  %v245 = vld [vmem:[%s7] sm:$0x1]
  %v247 = vlaneseq
  %v248 = vshrl.u32 %v247, 7
  %v249 = vsub.s32 0, %v248
  %v250 = vrot.slane %v245, %v249
  %252 = vmatprep.subr.mxu0 0.0
  %253 = vmatpush1.msra.mxu0 %v229
  %254 = vmatprep.subr.mxu0 0.0
  %255 = vmatpush1.msra.mxu0 %v230
  %256 = vmatprep.subr.mxu0 0.0
  %257 = vmatpush1.msra.mxu0 %v231
  %258 = vmatprep.subr.mxu0 0.0
  %259 = vmatpush1.msra.mxu0 %v232
  %260 = vmatprep.subr.mxu0 0.0
  %261 = vmatpush1.msra.mxu0 %v233
  %262 = vmatprep.subr.mxu0 0.0
  %263 = vmatpush1.msra.mxu0 %v234
  %264 = vmatprep.subr.mxu0 0.0
  %265 = vmatpush1.msra.mxu0 %v235
  %266 = vmatprep.subr.mxu0 0.0
  %267 = vmatpush1.msra.mxu0 %v236
  %268 = vmatprep.subr.mxu0 0.0
  %269 = vmatpush1.msra.mxu0 %v237
  %270 = vmatprep.subr.mxu0 0.0
  %271 = vmatpush1.msra.mxu0 %v238
  %272 = vmatprep.subr.mxu0 0.0
  %273 = vmatpush1.msra.mxu0 %v239
  %274 = vmatprep.subr.mxu0 0.0
  %275 = vmatpush1.msra.mxu0 %v240
  %276 = vmatprep.subr.mxu0 0.0
  %277 = vmatpush1.msra.mxu0 %v241
  %278 = vmatprep.subr.mxu0 0.0
  %279 = vmatpush1.msra.mxu0 %v242
  %280 = vmatprep.subr.mxu0 0.0
  %281 = vmatpush1.msra.mxu0 %v243
  %282 = vmatprep.subr.mxu0 0.0
  %283 = vmatpush1.msra.mxu0 %v244
  %284 = vmatprep.subr.mxu0 0.0
  %285 = vmatpush1.msra.mxu0 0.0
  %286 = vmatprep.subr.mxu0 0.0
  %287 = vmatpush1.msra.mxu0 0.0
  %288 = vmatprep.subr.mxu0 0.0
  %289 = vmatpush1.msra.mxu0 0.0
  %290 = vmatprep.subr.mxu0 0.0
  %291 = vmatpush1.msra.mxu0 0.0
  %292 = vmatprep.subr.mxu0 0.0
  %293 = vmatpush1.msra.mxu0 0.0
  %294 = vmatprep.subr.mxu0 0.0
  %295 = vmatpush1.msra.mxu0 0.0
  %296 = vmatprep.subr.mxu0 0.0
  %297 = vmatpush1.msra.mxu0 0.0
  %298 = vmatprep.subr.mxu0 0.0
  %299 = vmatpush1.msra.mxu0 0.0
  %300 = vmatprep.subr.mxu0 0.0
  %301 = vmatpush1.msra.mxu0 0.0
  %302 = vmatprep.subr.mxu0 0.0
  %303 = vmatpush1.msra.mxu0 0.0
  %304 = vmatprep.subr.mxu0 0.0
  %305 = vmatpush1.msra.mxu0 0.0
  %306 = vmatprep.subr.mxu0 0.0
  %307 = vmatpush1.msra.mxu0 0.0
  %308 = vmatprep.subr.mxu0 0.0
  %309 = vmatpush1.msra.mxu0 0.0
  %310 = vmatprep.subr.mxu0 0.0
  %311 = vmatpush1.msra.mxu0 0.0
  %312 = vmatprep.subr.mxu0 0.0
  %313 = vmatpush1.msra.mxu0 0.0
  %314 = vmatprep.subr.mxu0 0.0
  %315 = vmatpush1.msra.mxu0 0.0
  %316 = vmatprep.mubr.f32.mxu0 0.0
  %317 = vmatmul.mubr.f32.gmra.mrb[0].mxu0 %v113
  %v318 = vpop.f32.mrb[0].mxu0
  %v319 = vadd.f32 %v250, %v318
  %v320 = vpop.f32.mrb[0].mxu0
  %321 = vmatprep.mubr.f32.mxu0 0.0
  %322 = vmatmul.mubr.f32.gmra.mrb[0].mxu0 %v114
  %v323 = vpop.f32.mrb[0].mxu0
  %v324 = vadd.f32 %v250, %v323
  %v325 = vpop.f32.mrb[0].mxu0
  %326 = vmatprep.mubr.f32.mxu0 0.0
  %327 = vmatmul.mubr.f32.gmra.mrb[0].mxu0 %v115
  %v328 = vpop.f32.mrb[0].mxu0
  %v329 = vadd.f32 %v250, %v328
  %v330 = vpop.f32.mrb[0].mxu0
  %331 = vmatprep.mubr.f32.mxu0 0.0
  %332 = vmatmul.mubr.f32.gmra.mrb[0].mxu0 %v116
  %v333 = vpop.f32.mrb[0].mxu0
  %v334 = vadd.f32 %v250, %v333
  %v335 = vpop.f32.mrb[0].mxu0
  %336 = vdwg.mxu0
  %337 = vst [vmem:[%s11] sm:$0xff] %v319
  %338 = vst [vmem:[%s11 + $0x8] sm:$0xff] %v324
  %339 = vst [vmem:[%s11 + $0x10] sm:$0xff] %v329
  %340 = vst [vmem:[%s11 + $0x18] sm:$0xff] %v334
  %v341 = vld [vmem:[%s8] sm:$0xff]
  %v342 = vld [vmem:[%s8 + $0x8] sm:$0xff]
  %v343 = vld [vmem:[%s8 + $0x10] sm:$0xff]
  %v344 = vld [vmem:[%s8 + $0x18] sm:$0xff]
  %v345 = vld [vmem:[%s8 + $0x20] sm:$0xff]
  %v346 = vld [vmem:[%s8 + $0x28] sm:$0xff]
  %v347 = vld [vmem:[%s8 + $0x30] sm:$0xff]
  %v348 = vld [vmem:[%s8 + $0x38] sm:$0xff]
  %v349 = vld [vmem:[%s8 + $0x40] sm:$0xff]
  %v350 = vld [vmem:[%s8 + $0x48] sm:$0xff]
  %v351 = vld [vmem:[%s8 + $0x50] sm:$0xff]
  %v352 = vld [vmem:[%s8 + $0x58] sm:$0xff]
  %v353 = vld [vmem:[%s8 + $0x60] sm:$0xff]
  %v354 = vld [vmem:[%s8 + $0x68] sm:$0xff]
  %v355 = vld [vmem:[%s8 + $0x70] sm:$0xff]
  %v356 = vld [vmem:[%s8 + $0x78] sm:$0xff]
  %v357 = vld [vmem:[%s9] sm:$0x1]
  %v359 = vlaneseq
  %v360 = vshrl.u32 %v359, 7
  %v361 = vsub.s32 0, %v360
  %v362 = vrot.slane %v357, %v361
  %364 = vmatprep.subr.mxu0 0.0
  %365 = vmatpush1.msra.mxu0 %v341
  %366 = vmatprep.subr.mxu0 0.0
  %367 = vmatpush1.msra.mxu0 %v342
  %368 = vmatprep.subr.mxu0 0.0
  %369 = vmatpush1.msra.mxu0 %v343
  %370 = vmatprep.subr.mxu0 0.0
  %371 = vmatpush1.msra.mxu0 %v344
  %372 = vmatprep.subr.mxu0 0.0
  %373 = vmatpush1.msra.mxu0 %v345
  %374 = vmatprep.subr.mxu0 0.0
  %375 = vmatpush1.msra.mxu0 %v346
  %376 = vmatprep.subr.mxu0 0.0
  %377 = vmatpush1.msra.mxu0 %v347
  %378 = vmatprep.subr.mxu0 0.0
  %379 = vmatpush1.msra.mxu0 %v348
  %380 = vmatprep.subr.mxu0 0.0
  %381 = vmatpush1.msra.mxu0 %v349
  %382 = vmatprep.subr.mxu0 0.0
  %383 = vmatpush1.msra.mxu0 %v350
  %384 = vmatprep.subr.mxu0 0.0
  %385 = vmatpush1.msra.mxu0 %v351
  %386 = vmatprep.subr.mxu0 0.0
  %387 = vmatpush1.msra.mxu0 %v352
  %388 = vmatprep.subr.mxu0 0.0
  %389 = vmatpush1.msra.mxu0 %v353
  %390 = vmatprep.subr.mxu0 0.0
  %391 = vmatpush1.msra.mxu0 %v354
  %392 = vmatprep.subr.mxu0 0.0
  %393 = vmatpush1.msra.mxu0 %v355
  %394 = vmatprep.subr.mxu0 0.0
  %395 = vmatpush1.msra.mxu0 %v356
  %396 = vmatprep.subr.mxu0 0.0
  %397 = vmatpush1.msra.mxu0 0.0
  %398 = vmatprep.subr.mxu0 0.0
  %399 = vmatpush1.msra.mxu0 0.0
  %400 = vmatprep.subr.mxu0 0.0
  %401 = vmatpush1.msra.mxu0 0.0
  %402 = vmatprep.subr.mxu0 0.0
  %403 = vmatpush1.msra.mxu0 0.0
  %404 = vmatprep.subr.mxu0 0.0
  %405 = vmatpush1.msra.mxu0 0.0
  %406 = vmatprep.subr.mxu0 0.0
  %407 = vmatpush1.msra.mxu0 0.0
  %408 = vmatprep.subr.mxu0 0.0
  %409 = vmatpush1.msra.mxu0 0.0
  %410 = vmatprep.subr.mxu0 0.0
  %411 = vmatpush1.msra.mxu0 0.0
  %412 = vmatprep.subr.mxu0 0.0
  %413 = vmatpush1.msra.mxu0 0.0
  %414 = vmatprep.subr.mxu0 0.0
  %415 = vmatpush1.msra.mxu0 0.0
  %416 = vmatprep.subr.mxu0 0.0
  %417 = vmatpush1.msra.mxu0 0.0
  %418 = vmatprep.subr.mxu0 0.0
  %419 = vmatpush1.msra.mxu0 0.0
  %420 = vmatprep.subr.mxu0 0.0
  %421 = vmatpush1.msra.mxu0 0.0
  %422 = vmatprep.subr.mxu0 0.0
  %423 = vmatpush1.msra.mxu0 0.0
  %424 = vmatprep.subr.mxu0 0.0
  %425 = vmatpush1.msra.mxu0 0.0
  %426 = vmatprep.subr.mxu0 0.0
  %427 = vmatpush1.msra.mxu0 0.0
  %428 = vmatprep.mubr.f32.mxu0 0.0
  %429 = vmatmul.mubr.f32.gmra.mrb[0].mxu0 %v105
  %v430 = vpop.f32.mrb[0].mxu0
  %v431 = vadd.f32 %v362, %v430
  %v432 = vpop.f32.mrb[0].mxu0
  %433 = vmatprep.mubr.f32.mxu0 0.0
  %434 = vmatmul.mubr.f32.gmra.mrb[0].mxu0 %v106
  %v435 = vpop.f32.mrb[0].mxu0
  %v436 = vadd.f32 %v362, %v435
  %v437 = vpop.f32.mrb[0].mxu0
  %438 = vmatprep.mubr.f32.mxu0 0.0
  %439 = vmatmul.mubr.f32.gmra.mrb[0].mxu0 %v107
  %v440 = vpop.f32.mrb[0].mxu0
  %v441 = vadd.f32 %v362, %v440
  %v442 = vpop.f32.mrb[0].mxu0
  %443 = vmatprep.mubr.f32.mxu0 0.0
  %444 = vmatmul.mubr.f32.gmra.mrb[0].mxu0 %v108
  %v445 = vpop.f32.mrb[0].mxu0
  %v446 = vadd.f32 %v362, %v445
  %v447 = vpop.f32.mrb[0].mxu0
  %448 = vdwg.mxu0
  %449 = vst [vmem:[%s12] sm:$0xff] %v431
  %450 = vst [vmem:[%s12 + $0x8] sm:$0xff] %v436
  %451 = vst [vmem:[%s12 + $0x10] sm:$0xff] %v441
  %452 = vst [vmem:[%s12 + $0x18] sm:$0xff] %v446
  // Predicated region
  $region42: #{transformer_forward.21} parent=0 // pred_check
    _
  $region43: #{transformer_forward.21} parent=0 // pred_check_branch
    %454 = sbr.rel (0) target = $region45
  $region44: #{transformer_forward.21} parent=0 // pred_region
    _
  $region45: #{transformer_forward.21} parent=0 // pred_fallthru
    _
  // Predicated region
  $region46: #{transformer_forward.21} parent=0 // pred_check
    _
  $region47: #{transformer_forward.21} parent=0 // pred_check_branch
    %456 = sbr.rel (0) target = $region49
  $region48: #{transformer_forward.21} parent=0 // pred_region
    _
  $region49: #{transformer_forward.21} parent=0 // pred_fallthru
    _
  // Predicated region
  $region50: #{transformer_forward.21} parent=0 // pred_check
    _
  $region51: #{transformer_forward.21} parent=0 // pred_check_branch
    %458 = sbr.rel (0) target = $region53
  $region52: #{transformer_forward.21} parent=0 // pred_region
    _
  $region53: #{transformer_forward.21} parent=0 // pred_fallthru
    _
  // Predicated region
  $region54: #{transformer_forward.21} parent=0 // pred_check
    _
  $region55: #{transformer_forward.21} parent=0 // pred_check_branch
    %460 = sbr.rel (0) target = $region57
  $region56: #{transformer_forward.21} parent=0 // pred_region
    _
  $region57: #{transformer_forward.21} parent=0 // pred_fallthru
    _
  // Predicated region
  $region58: #{transformer_forward.21} parent=0 // pred_check
    _
  $region59: #{transformer_forward.21} parent=0 // pred_check_branch
    %462 = sbr.rel (0) target = $region61
  $region60: #{transformer_forward.21} parent=0 // pred_region
    _
  $region61: #{transformer_forward.21} parent=0 // pred_fallthru
    _
  // Predicated region
  $region62: #{transformer_forward.21} parent=0 // pred_check
    _
  $region63: #{transformer_forward.21} parent=0 // pred_check_branch
    %464 = sbr.rel (0) target = $region65
  $region64: #{transformer_forward.21} parent=0 // pred_region
    _
  $region65: #{transformer_forward.21} parent=0 // pred_fallthru
    _

// kernel: transformer_forward.19
$region0: #{transformer_forward.19}
  #allocation0 [shape = 'u32[]', space=smem, size = 0x4, offset = 0x4, fixed_abs, tag = 'smem constant byte address 0x4 - core index']
  #allocation1 [shape = 'u32[144,128]{1,0:T(1,128)}', space=vmem, size = 0x12000, scoped, tag = 'internal scratch']
  %s0 = inlined_call_operand.vmem [shape: f32[2,16,128], index: 0, kind: input, shape index: {}]
  %s1 = inlined_call_operand.vmem [shape: f32[2,16,128], index: 1, kind: input, shape index: {}]
  %s2 = inlined_call_operand.vmem [shape: f32[2,16,128], index: 2, kind: input, shape index: {}]
  %s3 = inlined_call_operand.vmem [shape: f32[2,1,16], index: 3, kind: input, shape index: {}]
  %s4 = inlined_call_operand.vmem [shape: f32[128,128], index: 4, kind: input, shape index: {}]
  %s5 = inlined_call_operand.vmem [shape: f32[1,128], index: 5, kind: input, shape index: {}]
  %s6 = inlined_call_operand.vmem [shape: f32[2,16,128], index: 6, kind: input, shape index: {}]
  %s7 = inlined_call_operand.vmem [shape: f32[1,128], index: 7, kind: input, shape index: {}]
  %s8 = inlined_call_operand.vmem [shape: f32[1,128], index: 8, kind: input, shape index: {}]
  %s9 = inlined_call_operand.vmem [shape: f32[2,16,128], index: 9, kind: output, shape index: {0}]
  %s10 = inlined_call_operand.vmem [shape: f32[2,16,128], index: 10, kind: output, shape index: {1}]
  %11 = xla_tuple %s9, %s10
  %s12 = sld [smem:[#allocation0]]
  $region77: #{transformer_forward.19} parent=0
    _
  %s14 = ssub.s32 1, %s12
  %s15 = scalar_select 0, %s14, %s12
  loop: start=0, step=1, limit=4
  $region2: #{transformer_forward.19} parent=0 // loop_pre_header
    _
  $region3: #{transformer_forward.19} parent=0 // loop_header
    %s17 = sphi 0, %s21
    %p18 = scmp.ge.s32.totalorder %s17, 4
    %s27 = sphi 0, %s29
    %s30 = sphi 0, %s27
    %s31 = sphi 0, %s30
    %s47 = sphi 0, %s31
    %s53 = sphi 0, %s55
    %s56 = sphi 0, %s53
    %s57 = sphi 0, %s56
    %s73 = sphi 0, %s57
    %s79 = sphi 0, %s81
    %s82 = sphi 0, %s79
    %s83 = sphi 0, %s82
    %s99 = sphi 0, %s83
    %s105 = sphi 0, %s107
    %s108 = sphi 0, %s105
    %s109 = sphi 0, %s108
    %s125 = sphi 0, %s109
    %s129 = sphi 0, %s129
    %s131 = sphi 0, %s129
    %s132 = sphi 0, %s131
    %s146 = sphi 0, %s132
    %s150 = sphi 0, %s150
    %s152 = sphi 0, %s150
    %s153 = sphi 0, %s152
    %s167 = sphi 0, %s153
    %s173 = sphi 0, %s175
    %s176 = sphi 0, %s173
    %s177 = sphi 0, %s176
    %s193 = sphi 0, %s177
    %s197 = sphi 0, %s197
    %s199 = sphi 0, %s197
    %s200 = sphi 0, %s199
    %s214 = sphi 0, %s200
    %s218 = sphi 0, %s218
    %s220 = sphi 0, %s218
    %s221 = sphi 0, %s220
    %s235 = sphi 0, %s221
    %s241 = sphi 0, %s243
    %s244 = sphi 0, %s241
    %s245 = sphi 0, %s244
    %s261 = sphi 0, %s245
    %s267 = sphi 0, %s269
    %s270 = sphi 0, %s267
    %s271 = sphi 0, %s270
    %s287 = sphi 0, %s271
  $region4: #{transformer_forward.19} parent=0 // loop_header_branch
    %20 = sbr.rel (%p18) target = $region8
  $region5: #{transformer_forward.19} parent=0 // loop_body
    %s22 = ssub.s32 %s17, 1
    %s23 = ssub.s32 %s17, 2
    %s24 = sadd.s32 %s17, 1
    %s25 = ssub.s32 %s17, %s24
    %p26 = scmp.eq.s32.totalorder %s25, 0
    %s28 = sadd.s32 %s27, 1
    %s29 = scalar_select %p26, %s27, %s28
    %p32 = pneg %p26
    %p33 = scmp.eq.s32.totalorder %s17, 1
    %p34 = por %p32, %p33
    %p35 = scmp.ne.s32.totalorder %s27, %s30
    %p36 = scmp.eq.s32.totalorder %s17, 0
    %p37 = por %p35, %p36
    %p38 = scmp.ne.s32.totalorder %s27, %s30
    %p39 = scmp.eq.s32.totalorder %s22, 1
    %p40 = por %p38, %p39
    %p41 = scmp.ne.s32.totalorder %s30, %s31
    %p42 = scmp.eq.s32.totalorder %s22, 0
    %p43 = por %p41, %p42
    %p44 = scmp.ne.s32.totalorder %s30, %s31
    %p45 = scmp.eq.s32.totalorder %s23, 1
    %p46 = por %p44, %p45
    %p48 = scmp.ne.s32.totalorder %s31, %s47
    %p49 = scmp.eq.s32.totalorder %s23, 0
    %p50 = por %p48, %p49
    %s51 = ssub.s32 %s17, %s24
    %p52 = scmp.eq.s32.totalorder %s51, 0
    %s54 = sadd.s32 %s53, 1
    %s55 = scalar_select %p52, %s53, %s54
    %p58 = pneg %p52
    %p59 = scmp.eq.s32.totalorder %s17, 1
    %p60 = por %p58, %p59
    %p61 = scmp.ne.s32.totalorder %s53, %s56
    %p62 = scmp.eq.s32.totalorder %s17, 0
    %p63 = por %p61, %p62
    %p64 = scmp.ne.s32.totalorder %s53, %s56
    %p65 = scmp.eq.s32.totalorder %s22, 1
    %p66 = por %p64, %p65
    %p67 = scmp.ne.s32.totalorder %s56, %s57
    %p68 = scmp.eq.s32.totalorder %s22, 0
    %p69 = por %p67, %p68
    %p70 = scmp.ne.s32.totalorder %s56, %s57
    %p71 = scmp.eq.s32.totalorder %s23, 1
    %p72 = por %p70, %p71
    %p74 = scmp.ne.s32.totalorder %s57, %s73
    %p75 = scmp.eq.s32.totalorder %s23, 0
    %p76 = por %p74, %p75
    %s77 = ssub.s32 %s17, %s24
    %p78 = scmp.eq.s32.totalorder %s77, 0
    %s80 = sadd.s32 %s79, 1
    %s81 = scalar_select %p78, %s79, %s80
    %p84 = pneg %p78
    %p85 = scmp.eq.s32.totalorder %s17, 1
    %p86 = por %p84, %p85
    %p87 = scmp.ne.s32.totalorder %s79, %s82
    %p88 = scmp.eq.s32.totalorder %s17, 0
    %p89 = por %p87, %p88
    %p90 = scmp.ne.s32.totalorder %s79, %s82
    %p91 = scmp.eq.s32.totalorder %s22, 1
    %p92 = por %p90, %p91
    %p93 = scmp.ne.s32.totalorder %s82, %s83
    %p94 = scmp.eq.s32.totalorder %s22, 0
    %p95 = por %p93, %p94
    %p96 = scmp.ne.s32.totalorder %s82, %s83
    %p97 = scmp.eq.s32.totalorder %s23, 1
    %p98 = por %p96, %p97
    %p100 = scmp.ne.s32.totalorder %s83, %s99
    %p101 = scmp.eq.s32.totalorder %s23, 0
    %p102 = por %p100, %p101
    %s103 = ssub.s32 %s17, %s24
    %p104 = scmp.eq.s32.totalorder %s103, 0
    %s106 = sadd.s32 %s105, 1
    %s107 = scalar_select %p104, %s105, %s106
    %p110 = pneg %p104
    %p111 = scmp.eq.s32.totalorder %s17, 1
    %p112 = por %p110, %p111
    %p113 = scmp.ne.s32.totalorder %s105, %s108
    %p114 = scmp.eq.s32.totalorder %s17, 0
    %p115 = por %p113, %p114
    %p116 = scmp.ne.s32.totalorder %s105, %s108
    %p117 = scmp.eq.s32.totalorder %s22, 1
    %p118 = por %p116, %p117
    %p119 = scmp.ne.s32.totalorder %s108, %s109
    %p120 = scmp.eq.s32.totalorder %s22, 0
    %p121 = por %p119, %p120
    %p122 = scmp.ne.s32.totalorder %s108, %s109
    %p123 = scmp.eq.s32.totalorder %s23, 1
    %p124 = por %p122, %p123
    %p126 = scmp.ne.s32.totalorder %s109, %s125
    %p127 = scmp.eq.s32.totalorder %s23, 0
    %p128 = por %p126, %p127
    %s130 = sadd.s32 %s129, 1
    %p133 = scmp.eq.s32.totalorder %s17, 1
    %p134 = scmp.ne.s32.totalorder %s129, %s131
    %p135 = scmp.eq.s32.totalorder %s17, 0
    %p136 = por %p134, %p135
    %p137 = scmp.ne.s32.totalorder %s129, %s131
    %p138 = scmp.eq.s32.totalorder %s22, 1
    %p139 = por %p137, %p138
    %p140 = scmp.ne.s32.totalorder %s131, %s132
    %p141 = scmp.eq.s32.totalorder %s22, 0
    %p142 = por %p140, %p141
    %p143 = scmp.ne.s32.totalorder %s131, %s132
    %p144 = scmp.eq.s32.totalorder %s23, 1
    %p145 = por %p143, %p144
    %p147 = scmp.ne.s32.totalorder %s132, %s146
    %p148 = scmp.eq.s32.totalorder %s23, 0
    %p149 = por %p147, %p148
    %s151 = sadd.s32 %s150, 1
    %p154 = scmp.eq.s32.totalorder %s17, 1
    %p155 = scmp.ne.s32.totalorder %s150, %s152
    %p156 = scmp.eq.s32.totalorder %s17, 0
    %p157 = por %p155, %p156
    %p158 = scmp.ne.s32.totalorder %s150, %s152
    %p159 = scmp.eq.s32.totalorder %s22, 1
    %p160 = por %p158, %p159
    %p161 = scmp.ne.s32.totalorder %s152, %s153
    %p162 = scmp.eq.s32.totalorder %s22, 0
    %p163 = por %p161, %p162
    %p164 = scmp.ne.s32.totalorder %s152, %s153
    %p165 = scmp.eq.s32.totalorder %s23, 1
    %p166 = por %p164, %p165
    %p168 = scmp.ne.s32.totalorder %s153, %s167
    %p169 = scmp.eq.s32.totalorder %s23, 0
    %p170 = por %p168, %p169
    %s171 = ssub.s32 %s17, %s24
    %p172 = scmp.eq.s32.totalorder %s171, 0
    %s174 = sadd.s32 %s173, 1
    %s175 = scalar_select %p172, %s173, %s174
    %p178 = pneg %p172
    %p179 = scmp.eq.s32.totalorder %s17, 1
    %p180 = por %p178, %p179
    %p181 = scmp.ne.s32.totalorder %s173, %s176
    %p182 = scmp.eq.s32.totalorder %s17, 0
    %p183 = por %p181, %p182
    %p184 = scmp.ne.s32.totalorder %s173, %s176
    %p185 = scmp.eq.s32.totalorder %s22, 1
    %p186 = por %p184, %p185
    %p187 = scmp.ne.s32.totalorder %s176, %s177
    %p188 = scmp.eq.s32.totalorder %s22, 0
    %p189 = por %p187, %p188
    %p190 = scmp.ne.s32.totalorder %s176, %s177
    %p191 = scmp.eq.s32.totalorder %s23, 1
    %p192 = por %p190, %p191
    %p194 = scmp.ne.s32.totalorder %s177, %s193
    %p195 = scmp.eq.s32.totalorder %s23, 0
    %p196 = por %p194, %p195
    %s198 = sadd.s32 %s197, 1
    %p201 = scmp.eq.s32.totalorder %s17, 1
    %p202 = scmp.ne.s32.totalorder %s197, %s199
    %p203 = scmp.eq.s32.totalorder %s17, 0
    %p204 = por %p202, %p203
    %p205 = scmp.ne.s32.totalorder %s197, %s199
    %p206 = scmp.eq.s32.totalorder %s22, 1
    %p207 = por %p205, %p206
    %p208 = scmp.ne.s32.totalorder %s199, %s200
    %p209 = scmp.eq.s32.totalorder %s22, 0
    %p210 = por %p208, %p209
    %p211 = scmp.ne.s32.totalorder %s199, %s200
    %p212 = scmp.eq.s32.totalorder %s23, 1
    %p213 = por %p211, %p212
    %p215 = scmp.ne.s32.totalorder %s200, %s214
    %p216 = scmp.eq.s32.totalorder %s23, 0
    %p217 = por %p215, %p216
    %s219 = sadd.s32 %s218, 1
    %p222 = scmp.eq.s32.totalorder %s17, 1
    %p223 = scmp.ne.s32.totalorder %s218, %s220
    %p224 = scmp.eq.s32.totalorder %s17, 0
    %p225 = por %p223, %p224
    %p226 = scmp.ne.s32.totalorder %s218, %s220
    %p227 = scmp.eq.s32.totalorder %s22, 1
    %p228 = por %p226, %p227
    %p229 = scmp.ne.s32.totalorder %s220, %s221
    %p230 = scmp.eq.s32.totalorder %s22, 0
    %p231 = por %p229, %p230
    %p232 = scmp.ne.s32.totalorder %s220, %s221
    %p233 = scmp.eq.s32.totalorder %s23, 1
    %p234 = por %p232, %p233
    %p236 = scmp.ne.s32.totalorder %s221, %s235
    %p237 = scmp.eq.s32.totalorder %s23, 0
    %p238 = por %p236, %p237
    %s239 = ssub.s32 %s17, %s24
    %p240 = scmp.eq.s32.totalorder %s239, 0
    %s242 = sadd.s32 %s241, 1
    %s243 = scalar_select %p240, %s241, %s242
    %p246 = pneg %p240
    %p247 = scmp.eq.s32.totalorder %s17, 1
    %p248 = por %p246, %p247
    %p249 = scmp.ne.s32.totalorder %s241, %s244
    %p250 = scmp.eq.s32.totalorder %s17, 0
    %p251 = por %p249, %p250
    %p252 = scmp.ne.s32.totalorder %s241, %s244
    %p253 = scmp.eq.s32.totalorder %s22, 1
    %p254 = por %p252, %p253
    %p255 = scmp.ne.s32.totalorder %s244, %s245
    %p256 = scmp.eq.s32.totalorder %s22, 0
    %p257 = por %p255, %p256
    %p258 = scmp.ne.s32.totalorder %s244, %s245
    %p259 = scmp.eq.s32.totalorder %s23, 1
    %p260 = por %p258, %p259
    %p262 = scmp.ne.s32.totalorder %s245, %s261
    %p263 = scmp.eq.s32.totalorder %s23, 0
    %p264 = por %p262, %p263
    %s265 = ssub.s32 %s17, %s24
    %p266 = scmp.eq.s32.totalorder %s265, 0
    %s268 = sadd.s32 %s267, 1
    %s269 = scalar_select %p266, %s267, %s268
    %p272 = pneg %p266
    %p273 = scmp.eq.s32.totalorder %s17, 1
    %p274 = por %p272, %p273
    %p275 = scmp.ne.s32.totalorder %s267, %s270
    %p276 = scmp.eq.s32.totalorder %s17, 0
    %p277 = por %p275, %p276
    %p278 = scmp.ne.s32.totalorder %s267, %s270
    %p279 = scmp.eq.s32.totalorder %s22, 1
    %p280 = por %p278, %p279
    %p281 = scmp.ne.s32.totalorder %s270, %s271
    %p282 = scmp.eq.s32.totalorder %s22, 0
    %p283 = por %p281, %p282
    %p284 = scmp.ne.s32.totalorder %s270, %s271
    %p285 = scmp.eq.s32.totalorder %s23, 1
    %p286 = por %p284, %p285
    %p288 = scmp.ne.s32.totalorder %s271, %s287
    %p289 = scmp.eq.s32.totalorder %s23, 0
    %p290 = por %p288, %p289
    %p291 = scmp.le.s32.totalorder 1, %s17
    %p292 = scmp.lt.s32.totalorder %s17, 3
    %p293 = pnand %p291, %p292
    %p294 = pneg %p293
    // Predicated region
    $region9: #{transformer_forward.19} parent=5 // pred_check
      _
    $region10: #{transformer_forward.19} parent=5 // pred_check_branch
      %296 = sbr.rel (%p293) target = $region12
    $region11: #{transformer_forward.19} parent=5 // pred_region
      %s297 = ssub.s32 %s17, 1
      // Predicated region
      $region13: #{transformer_forward.19} parent=11 // pred_check
        %p298 = pneg %p142
      $region14: #{transformer_forward.19} parent=11 // pred_check_branch
        %300 = sbr.rel (%p298) target = $region16
      $region15: #{transformer_forward.19} parent=11 // pred_region
        _
      $region16: #{transformer_forward.19} parent=11 // pred_fallthru
        _
      // Predicated region
      $region17: #{transformer_forward.19} parent=11 // pred_check
        %p301 = pneg %p163
      $region18: #{transformer_forward.19} parent=11 // pred_check_branch
        %303 = sbr.rel (%p301) target = $region20
      $region19: #{transformer_forward.19} parent=11 // pred_region
        _
      $region20: #{transformer_forward.19} parent=11 // pred_fallthru
        _
      // Predicated region
      $region21: #{transformer_forward.19} parent=11 // pred_check
        %p304 = pneg %p210
      $region22: #{transformer_forward.19} parent=11 // pred_check_branch
        %306 = sbr.rel (%p304) target = $region24
      $region23: #{transformer_forward.19} parent=11 // pred_region
        _
      $region24: #{transformer_forward.19} parent=11 // pred_fallthru
        _
      // Predicated region
      $region25: #{transformer_forward.19} parent=11 // pred_check
        %p307 = pneg %p231
      $region26: #{transformer_forward.19} parent=11 // pred_check_branch
        %309 = sbr.rel (%p307) target = $region28
      $region27: #{transformer_forward.19} parent=11 // pred_region
        _
      $region28: #{transformer_forward.19} parent=11 // pred_fallthru
        _
    $region12: #{transformer_forward.19} parent=5 // pred_fallthru
      _
    %p310 = scmp.lt.s32.totalorder %s17, 2
    // Predicated region
    $region29: #{transformer_forward.19} parent=5 // pred_check
      %p311 = pneg %p310
    $region30: #{transformer_forward.19} parent=5 // pred_check_branch
      %313 = sbr.rel (%p311) target = $region32
    $region31: #{transformer_forward.19} parent=5 // pred_region
      // Predicated region
      $region33: #{transformer_forward.19} parent=31 // pred_check
        %p314 = pneg %p37
      $region34: #{transformer_forward.19} parent=31 // pred_check_branch
        %316 = sbr.rel (%p314) target = $region36
      $region35: #{transformer_forward.19} parent=31 // pred_region
        %p317 = scmp.lt.s32.totalorder %s17, 1
        %s318 = scalar_select %p317, %s17, 1
        %s319 = smul.addr %s318, 2
        %s320 = smul.addr %s319, 8
        %s321 = scalar_lea.vmem %s0, %s320
      $region36: #{transformer_forward.19} parent=31 // pred_fallthru
        _
      // Predicated region
      $region37: #{transformer_forward.19} parent=31 // pred_check
        %p322 = pneg %p63
      $region38: #{transformer_forward.19} parent=31 // pred_check_branch
        %324 = sbr.rel (%p322) target = $region40
      $region39: #{transformer_forward.19} parent=31 // pred_region
        %p325 = scmp.lt.s32.totalorder %s17, 1
        %s326 = scalar_select %p325, %s17, 1
        %s327 = smul.addr %s326, 2
        %s328 = smul.addr %s327, 8
        %s329 = scalar_lea.vmem %s1, %s328
      $region40: #{transformer_forward.19} parent=31 // pred_fallthru
        _
      // Predicated region
      $region41: #{transformer_forward.19} parent=31 // pred_check
        %p330 = pneg %p89
      $region42: #{transformer_forward.19} parent=31 // pred_check_branch
        %332 = sbr.rel (%p330) target = $region44
      $region43: #{transformer_forward.19} parent=31 // pred_region
        %p333 = scmp.lt.s32.totalorder %s17, 1
        %s334 = scalar_select %p333, %s17, 1
        %s335 = smul.addr %s334, 2
        %s336 = smul.addr %s335, 8
        %s337 = scalar_lea.vmem %s2, %s336
      $region44: #{transformer_forward.19} parent=31 // pred_fallthru
        _
      // Predicated region
      $region45: #{transformer_forward.19} parent=31 // pred_check
        %p338 = pneg %p115
      $region46: #{transformer_forward.19} parent=31 // pred_check_branch
        %340 = sbr.rel (%p338) target = $region48
      $region47: #{transformer_forward.19} parent=31 // pred_region
        %p341 = scmp.lt.s32.totalorder %s17, 1
        %s342 = scalar_select %p341, %s17, 1
        %s343 = scalar_lea.vmem %s3, %s342
      $region48: #{transformer_forward.19} parent=31 // pred_fallthru
        _
      // Predicated region
      $region49: #{transformer_forward.19} parent=31 // pred_check
        %p344 = pneg %p183
      $region50: #{transformer_forward.19} parent=31 // pred_check_branch
        %346 = sbr.rel (%p344) target = $region52
      $region51: #{transformer_forward.19} parent=31 // pred_region
        %p347 = scmp.lt.s32.totalorder %s17, 1
        %s348 = scalar_select %p347, %s17, 1
        %s349 = smul.addr %s348, 2
        %s350 = smul.addr %s349, 8
        %s351 = scalar_lea.vmem %s6, %s350
      $region52: #{transformer_forward.19} parent=31 // pred_fallthru
        _
    $region32: #{transformer_forward.19} parent=5 // pred_fallthru
      _
    %p352 = scmp.le.s32.totalorder 1, %s17
    %p353 = scmp.lt.s32.totalorder %s17, 3
    %p354 = pnand %p352, %p353
    %p355 = pneg %p354
    // Predicated region
    $region53: #{transformer_forward.19} parent=5 // pred_check
      _
    $region54: #{transformer_forward.19} parent=5 // pred_check_branch
      %357 = sbr.rel (%p354) target = $region56
    $region55: #{transformer_forward.19} parent=5 // pred_region
      %s358 = ssub.s32 %s17, 1
      %p359 = scmp.lt.s32.totalorder %s22, 1
      %s360 = scalar_select %p359, %s22, 1
      %s361 = smul.addr %s360, 2
      %s362 = smul.addr %s361, 8
      %s363 = scalar_lea.vmem %s0, %s362
      %p364 = pneg %p43
      %p365 = pneg %p40
      %p366 = scmp.lt.s32.totalorder %s22, 1
      %s367 = scalar_select %p366, %s22, 1
      %s368 = smul.addr %s367, 2
      %s369 = smul.addr %s368, 8
      %s370 = scalar_lea.vmem %s1, %s369
      %p371 = pneg %p69
      %p372 = pneg %p66
      %p373 = scmp.lt.s32.totalorder %s22, 1
      %s374 = scalar_select %p373, %s22, 1
      %s375 = smul.addr %s374, 2
      %s376 = smul.addr %s375, 8
      %s377 = scalar_lea.vmem %s2, %s376
      %p378 = pneg %p95
      %p379 = pneg %p92
      %p380 = scmp.lt.s32.totalorder %s22, 1
      %s381 = scalar_select %p380, %s22, 1
      %s382 = scalar_lea.vmem %s3, %s381
      %p383 = pneg %p121
      %p384 = pneg %p118
      %p385 = pneg %p142
      %p386 = pneg %p139
      %p387 = pneg %p163
      %p388 = pneg %p160
      %p389 = scmp.lt.s32.totalorder %s22, 1
      %s390 = scalar_select %p389, %s22, 1
      %s391 = smul.addr %s390, 2
      %s392 = smul.addr %s391, 8
      %s393 = scalar_lea.vmem %s6, %s392
      %p394 = pneg %p189
      %p395 = pneg %p186
      %p396 = pneg %p210
      %p397 = pneg %p207
      %p398 = pneg %p231
      %p399 = pneg %p228
      %p400 = pneg %p257
      %p401 = pneg %p254
      %p402 = scmp.lt.s32.totalorder %s22, 1
      %s403 = scalar_select %p402, %s22, 1
      %s404 = smul.addr %s403, 2
      %s405 = smul.addr %s404, 8
      %s406 = scalar_lea.vmem %s9, %s405
      %p407 = pneg %p283
      %p408 = pneg %p280
      %p409 = scmp.lt.s32.totalorder %s22, 1
      %s410 = scalar_select %p409, %s22, 1
      %s411 = smul.addr %s410, 2
      %s412 = smul.addr %s411, 8
      %s413 = scalar_lea.vmem %s10, %s412
      %p414 = scmp.lt.s32.totalorder %s22, 1
      %s415 = scalar_select %p414, %s22, 1
      %s416 = smul.addr %s415, 2
      %s417 = smul.addr %s416, 8
      %s418 = scalar_lea.vmem %s0, %s417
      %p419 = scmp.lt.s32.totalorder %s22, 1
      %s420 = scalar_select %p419, %s22, 1
      %s421 = smul.addr %s420, 2
      %s422 = smul.addr %s421, 8
      %s423 = scalar_lea.vmem %s1, %s422
      %p424 = scmp.lt.s32.totalorder %s22, 1
      %s425 = scalar_select %p424, %s22, 1
      %s426 = smul.addr %s425, 2
      %s427 = smul.addr %s426, 8
      %s428 = scalar_lea.vmem %s2, %s427
      %p429 = scmp.lt.s32.totalorder %s22, 1
      %s430 = scalar_select %p429, %s22, 1
      %s431 = scalar_lea.vmem %s3, %s430
      %p432 = scmp.lt.s32.totalorder %s22, 1
      %s433 = scalar_select %p432, %s22, 1
      %s434 = smul.addr %s433, 2
      %s435 = smul.addr %s434, 8
      %s436 = scalar_lea.vmem %s6, %s435
      %p437 = scmp.lt.s32.totalorder %s22, 1
      %s438 = scalar_select %p437, %s22, 1
      %s439 = smul.addr %s438, 2
      %s440 = smul.addr %s439, 8
      %s441 = scalar_lea.vmem %s9, %s440
      %p442 = scmp.lt.s32.totalorder %s22, 1
      %s443 = scalar_select %p442, %s22, 1
      %s444 = smul.addr %s443, 2
      %s445 = smul.addr %s444, 8
      %s446 = scalar_lea.vmem %s10, %s445
      %v447 = vld [vmem:[%s418] sm:$0xff]
      %v448 = vld [vmem:[%s418 + $0x8] sm:$0xff]
      %v449 = vmul.f32 %v447, 0.125
      %v450 = vmul.f32 %v448, 0.125
      %v451 = vld [vmem:[%s423] sm:$0xff]
      %v452 = vld [vmem:[%s423 + $0x8] sm:$0xff]
      %v453 = vld [vmem:[%s428] sm:$0xff]
      %v454 = vld [vmem:[%s428 + $0x8] sm:$0xff]
      %v455 = vld [vmem:[%s431] sm:$0x1]
      %v456 = vld [vmem:[%s4] sm:$0xff]
      %v457 = vld [vmem:[%s4 + $0x8] sm:$0xff]
      %v458 = vld [vmem:[%s4 + $0x10] sm:$0xff]
      %v459 = vld [vmem:[%s4 + $0x18] sm:$0xff]
      %v460 = vld [vmem:[%s4 + $0x20] sm:$0xff]
      %v461 = vld [vmem:[%s4 + $0x28] sm:$0xff]
      %v462 = vld [vmem:[%s4 + $0x30] sm:$0xff]
      %v463 = vld [vmem:[%s4 + $0x38] sm:$0xff]
      %v464 = vld [vmem:[%s4 + $0x40] sm:$0xff]
      %v465 = vld [vmem:[%s4 + $0x48] sm:$0xff]
      %v466 = vld [vmem:[%s4 + $0x50] sm:$0xff]
      %v467 = vld [vmem:[%s4 + $0x58] sm:$0xff]
      %v468 = vld [vmem:[%s4 + $0x60] sm:$0xff]
      %v469 = vld [vmem:[%s4 + $0x68] sm:$0xff]
      %v470 = vld [vmem:[%s4 + $0x70] sm:$0xff]
      %v471 = vld [vmem:[%s4 + $0x78] sm:$0xff]
      %v473 = vlaneseq
      %v474 = vshrl.u32 %v473, 7
      %v475 = vsub.s32 0, %v474
      %v476 = vrot.slane %v455, %v475
      %vm478 = vcmask 523264
      %v480 = vsel %vm478, %v449, 0
      %v483 = vsel %vm478, %v450, 0
      %v486 = vsel %vm478, %v451, 0
      %v489 = vsel %vm478, %v452, 0
      %491 = vmatprep.subr.mxu0 0.0
      %492 = vmatpush1.xpose.msra.mxu0 %v486
      %493 = vmatprep.subr.mxu0 0.0
      %494 = vmatpush1.xpose.msra.mxu0 %v489
      %495 = vmatprep.subr.mxu0 0.0
      %496 = vmatpush1.xpose.msra.mxu0 0.0
      %497 = vmatprep.subr.mxu0 0.0
      %498 = vmatpush1.xpose.msra.mxu0 0.0
      %499 = vmatprep.subr.mxu0 0.0
      %500 = vmatpush1.xpose.msra.mxu0 0.0
      %501 = vmatprep.subr.mxu0 0.0
      %502 = vmatpush1.xpose.msra.mxu0 0.0
      %503 = vmatprep.subr.mxu0 0.0
      %504 = vmatpush1.xpose.msra.mxu0 0.0
      %505 = vmatprep.subr.mxu0 0.0
      %506 = vmatpush1.xpose.msra.mxu0 0.0
      %507 = vmatprep.subr.mxu0 0.0
      %508 = vmatpush1.xpose.msra.mxu0 0.0
      %509 = vmatprep.subr.mxu0 0.0
      %510 = vmatpush1.xpose.msra.mxu0 0.0
      %511 = vmatprep.subr.mxu0 0.0
      %512 = vmatpush1.xpose.msra.mxu0 0.0
      %513 = vmatprep.subr.mxu0 0.0
      %514 = vmatpush1.xpose.msra.mxu0 0.0
      %515 = vmatprep.subr.mxu0 0.0
      %516 = vmatpush1.xpose.msra.mxu0 0.0
      %517 = vmatprep.subr.mxu0 0.0
      %518 = vmatpush1.xpose.msra.mxu0 0.0
      %519 = vmatprep.subr.mxu0 0.0
      %520 = vmatpush1.xpose.msra.mxu0 0.0
      %521 = vmatprep.subr.mxu0 0.0
      %522 = vmatpush1.xpose.msra.mxu0 0.0
      %523 = vmatprep.subr.mxu0 0.0
      %524 = vmatpush1.xpose.msra.mxu0 0.0
      %525 = vmatprep.subr.mxu0 0.0
      %526 = vmatpush1.xpose.msra.mxu0 0.0
      %527 = vmatprep.subr.mxu0 0.0
      %528 = vmatpush1.xpose.msra.mxu0 0.0
      %529 = vmatprep.subr.mxu0 0.0
      %530 = vmatpush1.xpose.msra.mxu0 0.0
      %531 = vmatprep.subr.mxu0 0.0
      %532 = vmatpush1.xpose.msra.mxu0 0.0
      %533 = vmatprep.subr.mxu0 0.0
      %534 = vmatpush1.xpose.msra.mxu0 0.0
      %535 = vmatprep.subr.mxu0 0.0
      %536 = vmatpush1.xpose.msra.mxu0 0.0
      %537 = vmatprep.subr.mxu0 0.0
      %538 = vmatpush1.xpose.msra.mxu0 0.0
      %539 = vmatprep.subr.mxu0 0.0
      %540 = vmatpush1.xpose.msra.mxu0 0.0
      %541 = vmatprep.subr.mxu0 0.0
      %542 = vmatpush1.xpose.msra.mxu0 0.0
      %543 = vmatprep.subr.mxu0 0.0
      %544 = vmatpush1.xpose.msra.mxu0 0.0
      %545 = vmatprep.subr.mxu0 0.0
      %546 = vmatpush1.xpose.msra.mxu0 0.0
      %547 = vmatprep.subr.mxu0 0.0
      %548 = vmatpush1.xpose.msra.mxu0 0.0
      %549 = vmatprep.subr.mxu0 0.0
      %550 = vmatpush1.xpose.msra.mxu0 0.0
      %551 = vmatprep.subr.mxu0 0.0
      %552 = vmatpush1.xpose.msra.mxu0 0.0
      %553 = vmatprep.subr.mxu0 0.0
      %554 = vmatpush1.xpose.msra.mxu0 0.0
      %555 = vmatprep.mubr.f32.mxu0 0.0
      %556 = vmatmul.mubr.f32.gmra.mrb[0].mxu0 %v480
      %v557 = vpop.f32.mrb[0].mxu0
      %v558 = vadd.f32 %v476, %v557
      %v559 = vpop.f32.mrb[0].mxu0
      %560 = vmatprep.mubr.f32.mxu0 0.0
      %561 = vmatmul.mubr.f32.gmra.mrb[0].mxu0 %v483
      %v562 = vpop.f32.mrb[0].mxu0
      %v563 = vadd.f32 %v476, %v562
      %v564 = vpop.f32.mrb[0].mxu0
      %565 = vdwg.mxu0
      %vm566 = vcmask 130048
      %v567 = vsel %vm566, %v558, -inf
      %568 = vmax.xlane.f32.xlu0 %v567
      %v569 = vpop.xlane.xlu0 %568
      %v570 = vsel %vm566, %v563, -inf
      %571 = vmax.xlane.f32.xlu0 %v570
      %v572 = vpop.xlane.xlu0 %571
      %v573 = vsub.f32 %v558, %v569
      %v574 = vsub.f32 %v563, %v572
      %v575 = vmul.f32 %v573, 1.442695
      %v576 = vpow.pop %v575
      %v577 = vmul.f32 %v574, 1.442695
      %v578 = vpow.pop %v577
      %v579 = vsel %vm566, %v576, 0.0
      %580 = vadd.xlane.f32.xlu0 %v579
      %v581 = vpop.xlane.xlu0 %580
      %v582 = vsel %vm566, %v578, 0.0
      %583 = vadd.xlane.f32.xlu0 %v582
      %v584 = vpop.xlane.xlu0 %583
      %v585 = vrcp.pop %v581
      %v586 = vrcp.pop %v584
      %v587 = vmul.f32 %v576, %v585
      %v588 = vmul.f32 %v578, %v586
      %v590 = vsel %vm566, %v587, 0
      %v593 = vsel %vm566, %v588, 0
      %595 = vmatprep.subr.mxu0 0.0
      %596 = vmatpush1.msra.mxu0 %v453
      %597 = vmatprep.subr.mxu0 0.0
      %598 = vmatpush1.msra.mxu0 %v454
      %599 = vmatprep.subr.mxu0 0.0
      %600 = vmatpush1.msra.mxu0 0.0
      %601 = vmatprep.subr.mxu0 0.0
      %602 = vmatpush1.msra.mxu0 0.0
      %603 = vmatprep.subr.mxu0 0.0
      %604 = vmatpush1.msra.mxu0 0.0
      %605 = vmatprep.subr.mxu0 0.0
      %606 = vmatpush1.msra.mxu0 0.0
      %607 = vmatprep.subr.mxu0 0.0
      %608 = vmatpush1.msra.mxu0 0.0
      %609 = vmatprep.subr.mxu0 0.0
      %610 = vmatpush1.msra.mxu0 0.0
      %611 = vmatprep.subr.mxu0 0.0
      %612 = vmatpush1.msra.mxu0 0.0
      %613 = vmatprep.subr.mxu0 0.0
      %614 = vmatpush1.msra.mxu0 0.0
      %615 = vmatprep.subr.mxu0 0.0
      %616 = vmatpush1.msra.mxu0 0.0
      %617 = vmatprep.subr.mxu0 0.0
      %618 = vmatpush1.msra.mxu0 0.0
      %619 = vmatprep.subr.mxu0 0.0
      %620 = vmatpush1.msra.mxu0 0.0
      %621 = vmatprep.subr.mxu0 0.0
      %622 = vmatpush1.msra.mxu0 0.0
      %623 = vmatprep.subr.mxu0 0.0
      %624 = vmatpush1.msra.mxu0 0.0
      %625 = vmatprep.subr.mxu0 0.0
      %626 = vmatpush1.msra.mxu0 0.0
      %627 = vmatprep.subr.mxu0 0.0
      %628 = vmatpush1.msra.mxu0 0.0
      %629 = vmatprep.subr.mxu0 0.0
      %630 = vmatpush1.msra.mxu0 0.0
      %631 = vmatprep.subr.mxu0 0.0
      %632 = vmatpush1.msra.mxu0 0.0
      %633 = vmatprep.subr.mxu0 0.0
      %634 = vmatpush1.msra.mxu0 0.0
      %635 = vmatprep.subr.mxu0 0.0
      %636 = vmatpush1.msra.mxu0 0.0
      %637 = vmatprep.subr.mxu0 0.0
      %638 = vmatpush1.msra.mxu0 0.0
      %639 = vmatprep.subr.mxu0 0.0
      %640 = vmatpush1.msra.mxu0 0.0
      %641 = vmatprep.subr.mxu0 0.0
      %642 = vmatpush1.msra.mxu0 0.0
      %643 = vmatprep.subr.mxu0 0.0
      %644 = vmatpush1.msra.mxu0 0.0
      %645 = vmatprep.subr.mxu0 0.0
      %646 = vmatpush1.msra.mxu0 0.0
      %647 = vmatprep.subr.mxu0 0.0
      %648 = vmatpush1.msra.mxu0 0.0
      %649 = vmatprep.subr.mxu0 0.0
      %650 = vmatpush1.msra.mxu0 0.0
      %651 = vmatprep.subr.mxu0 0.0
      %652 = vmatpush1.msra.mxu0 0.0
      %653 = vmatprep.subr.mxu0 0.0
      %654 = vmatpush1.msra.mxu0 0.0
      %655 = vmatprep.subr.mxu0 0.0
      %656 = vmatpush1.msra.mxu0 0.0
      %657 = vmatprep.subr.mxu0 0.0
      %658 = vmatpush1.msra.mxu0 0.0
      %659 = vmatprep.mubr.f32.mxu0 0.0
      %660 = vmatmul.mubr.f32.gmra.mrb[0].mxu0 %v590
      %v661 = vpop.f32.mrb[0].mxu0
      %v662 = vadd.f32 0.0, %v661
      %v663 = vpop.f32.mrb[0].mxu0
      %664 = vmatprep.mubr.f32.mxu0 0.0
      %665 = vmatmul.mubr.f32.gmra.mrb[0].mxu0 %v593
      %v666 = vpop.f32.mrb[0].mxu0
      %v667 = vadd.f32 0.0, %v666
      %v668 = vpop.f32.mrb[0].mxu0
      %669 = vdwg.mxu0
      %670 = vrot.lane.b32.xlu0 %v449, 64
      %v671 = vpop.permute.xlu0 %670
      %672 = vrot.lane.b32.xlu0 %v450, 64
      %v673 = vpop.permute.xlu0 %672
      %674 = vrot.lane.b32.xlu0 %v451, 64
      %v675 = vpop.permute.xlu0 %674
      %676 = vrot.lane.b32.xlu0 %v452, 64
      %v677 = vpop.permute.xlu0 %676
      %v678 = vsel %vm478, %v671, 0
      %v680 = vsel %vm478, %v673, 0
      %v682 = vsel %vm478, %v675, 0
      %v684 = vsel %vm478, %v677, 0
      %686 = vmatprep.subr.mxu0 0.0
      %687 = vmatpush1.xpose.msra.mxu0 %v682
      %688 = vmatprep.subr.mxu0 0.0
      %689 = vmatpush1.xpose.msra.mxu0 %v684
      %690 = vmatprep.subr.mxu0 0.0
      %691 = vmatpush1.xpose.msra.mxu0 0.0
      %692 = vmatprep.subr.mxu0 0.0
      %693 = vmatpush1.xpose.msra.mxu0 0.0
      %694 = vmatprep.subr.mxu0 0.0
      %695 = vmatpush1.xpose.msra.mxu0 0.0
      %696 = vmatprep.subr.mxu0 0.0
      %697 = vmatpush1.xpose.msra.mxu0 0.0
      %698 = vmatprep.subr.mxu0 0.0
      %699 = vmatpush1.xpose.msra.mxu0 0.0
      %700 = vmatprep.subr.mxu0 0.0
      %701 = vmatpush1.xpose.msra.mxu0 0.0
      %702 = vmatprep.subr.mxu0 0.0
      %703 = vmatpush1.xpose.msra.mxu0 0.0
      %704 = vmatprep.subr.mxu0 0.0
      %705 = vmatpush1.xpose.msra.mxu0 0.0
      %706 = vmatprep.subr.mxu0 0.0
      %707 = vmatpush1.xpose.msra.mxu0 0.0
      %708 = vmatprep.subr.mxu0 0.0
      %709 = vmatpush1.xpose.msra.mxu0 0.0
      %710 = vmatprep.subr.mxu0 0.0
      %711 = vmatpush1.xpose.msra.mxu0 0.0
      %712 = vmatprep.subr.mxu0 0.0
      %713 = vmatpush1.xpose.msra.mxu0 0.0
      %714 = vmatprep.subr.mxu0 0.0
      %715 = vmatpush1.xpose.msra.mxu0 0.0
      %716 = vmatprep.subr.mxu0 0.0
      %717 = vmatpush1.xpose.msra.mxu0 0.0
      %718 = vmatprep.subr.mxu0 0.0
      %719 = vmatpush1.xpose.msra.mxu0 0.0
      %720 = vmatprep.subr.mxu0 0.0
      %721 = vmatpush1.xpose.msra.mxu0 0.0
      %722 = vmatprep.subr.mxu0 0.0
      %723 = vmatpush1.xpose.msra.mxu0 0.0
      %724 = vmatprep.subr.mxu0 0.0
      %725 = vmatpush1.xpose.msra.mxu0 0.0
      %726 = vmatprep.subr.mxu0 0.0
      %727 = vmatpush1.xpose.msra.mxu0 0.0
      %728 = vmatprep.subr.mxu0 0.0
      %729 = vmatpush1.xpose.msra.mxu0 0.0
      %730 = vmatprep.subr.mxu0 0.0
      %731 = vmatpush1.xpose.msra.mxu0 0.0
      %732 = vmatprep.subr.mxu0 0.0
      %733 = vmatpush1.xpose.msra.mxu0 0.0
      %734 = vmatprep.subr.mxu0 0.0
      %735 = vmatpush1.xpose.msra.mxu0 0.0
      %736 = vmatprep.subr.mxu0 0.0
      %737 = vmatpush1.xpose.msra.mxu0 0.0
      %738 = vmatprep.subr.mxu0 0.0
      %739 = vmatpush1.xpose.msra.mxu0 0.0
      %740 = vmatprep.subr.mxu0 0.0
      %741 = vmatpush1.xpose.msra.mxu0 0.0
      %742 = vmatprep.subr.mxu0 0.0
      %743 = vmatpush1.xpose.msra.mxu0 0.0
      %744 = vmatprep.subr.mxu0 0.0
      %745 = vmatpush1.xpose.msra.mxu0 0.0
      %746 = vmatprep.subr.mxu0 0.0
      %747 = vmatpush1.xpose.msra.mxu0 0.0
      %748 = vmatprep.subr.mxu0 0.0
      %749 = vmatpush1.xpose.msra.mxu0 0.0
      %750 = vmatprep.mubr.f32.mxu0 0.0
      %751 = vmatmul.mubr.f32.gmra.mrb[0].mxu0 %v678
      %v752 = vpop.f32.mrb[0].mxu0
      %v753 = vadd.f32 %v476, %v752
      %v754 = vpop.f32.mrb[0].mxu0
      %755 = vmatprep.mubr.f32.mxu0 0.0
      %756 = vmatmul.mubr.f32.gmra.mrb[0].mxu0 %v680
      %v757 = vpop.f32.mrb[0].mxu0
      %v758 = vadd.f32 %v476, %v757
      %v759 = vpop.f32.mrb[0].mxu0
      %760 = vdwg.mxu0
      %v761 = vsel %vm566, %v753, -inf
      %762 = vmax.xlane.f32.xlu0 %v761
      %v763 = vpop.xlane.xlu0 %762
      %v764 = vsel %vm566, %v758, -inf
      %765 = vmax.xlane.f32.xlu0 %v764
      %v766 = vpop.xlane.xlu0 %765
      %v767 = vsub.f32 %v753, %v763
      %v768 = vsub.f32 %v758, %v766
      %v769 = vmul.f32 %v767, 1.442695
      %v770 = vpow.pop %v769
      %v771 = vmul.f32 %v768, 1.442695
      %v772 = vpow.pop %v771
      %v773 = vsel %vm566, %v770, 0.0
      %774 = vadd.xlane.f32.xlu0 %v773
      %v775 = vpop.xlane.xlu0 %774
      %v776 = vsel %vm566, %v772, 0.0
      %777 = vadd.xlane.f32.xlu0 %v776
      %v778 = vpop.xlane.xlu0 %777
      %v779 = vrcp.pop %v775
      %v780 = vrcp.pop %v778
      %v781 = vmul.f32 %v770, %v779
      %v782 = vmul.f32 %v772, %v780
      %785 = vrot.lane.b32.xlu0 %v453, 64
      %v786 = vpop.permute.xlu0 %785
      %787 = vrot.lane.b32.xlu0 %v454, 64
      %v788 = vpop.permute.xlu0 %787
      %v792 = vsel %vm566, %v781, 0
      %v795 = vsel %vm566, %v782, 0
      %797 = vmatprep.subr.mxu0 0.0
      %798 = vmatpush1.msra.mxu0 %v786
      %799 = vmatprep.subr.mxu0 0.0
      %800 = vmatpush1.msra.mxu0 %v788
      %801 = vmatprep.subr.mxu0 0.0
      %802 = vmatpush1.msra.mxu0 0.0
      %803 = vmatprep.subr.mxu0 0.0
      %804 = vmatpush1.msra.mxu0 0.0
      %805 = vmatprep.subr.mxu0 0.0
      %806 = vmatpush1.msra.mxu0 0.0
      %807 = vmatprep.subr.mxu0 0.0
      %808 = vmatpush1.msra.mxu0 0.0
      %809 = vmatprep.subr.mxu0 0.0
      %810 = vmatpush1.msra.mxu0 0.0
      %811 = vmatprep.subr.mxu0 0.0
      %812 = vmatpush1.msra.mxu0 0.0
      %813 = vmatprep.subr.mxu0 0.0
      %814 = vmatpush1.msra.mxu0 0.0
      %815 = vmatprep.subr.mxu0 0.0
      %816 = vmatpush1.msra.mxu0 0.0
      %817 = vmatprep.subr.mxu0 0.0
      %818 = vmatpush1.msra.mxu0 0.0
      %819 = vmatprep.subr.mxu0 0.0
      %820 = vmatpush1.msra.mxu0 0.0
      %821 = vmatprep.subr.mxu0 0.0
      %822 = vmatpush1.msra.mxu0 0.0
      %823 = vmatprep.subr.mxu0 0.0
      %824 = vmatpush1.msra.mxu0 0.0
      %825 = vmatprep.subr.mxu0 0.0
      %826 = vmatpush1.msra.mxu0 0.0
      %827 = vmatprep.subr.mxu0 0.0
      %828 = vmatpush1.msra.mxu0 0.0
      %829 = vmatprep.subr.mxu0 0.0
      %830 = vmatpush1.msra.mxu0 0.0
      %831 = vmatprep.subr.mxu0 0.0
      %832 = vmatpush1.msra.mxu0 0.0
      %833 = vmatprep.subr.mxu0 0.0
      %834 = vmatpush1.msra.mxu0 0.0
      %835 = vmatprep.subr.mxu0 0.0
      %836 = vmatpush1.msra.mxu0 0.0
      %837 = vmatprep.subr.mxu0 0.0
      %838 = vmatpush1.msra.mxu0 0.0
      %839 = vmatprep.subr.mxu0 0.0
      %840 = vmatpush1.msra.mxu0 0.0
      %841 = vmatprep.subr.mxu0 0.0
      %842 = vmatpush1.msra.mxu0 0.0
      %843 = vmatprep.subr.mxu0 0.0
      %844 = vmatpush1.msra.mxu0 0.0
      %845 = vmatprep.subr.mxu0 0.0
      %846 = vmatpush1.msra.mxu0 0.0
      %847 = vmatprep.subr.mxu0 0.0
      %848 = vmatpush1.msra.mxu0 0.0
      %849 = vmatprep.subr.mxu0 0.0
      %850 = vmatpush1.msra.mxu0 0.0
      %851 = vmatprep.subr.mxu0 0.0
      %852 = vmatpush1.msra.mxu0 0.0
      %853 = vmatprep.subr.mxu0 0.0
      %854 = vmatpush1.msra.mxu0 0.0
      %855 = vmatprep.subr.mxu0 0.0
      %856 = vmatpush1.msra.mxu0 0.0
      %857 = vmatprep.subr.mxu0 0.0
      %858 = vmatpush1.msra.mxu0 0.0
      %859 = vmatprep.subr.mxu0 0.0
      %860 = vmatpush1.msra.mxu0 0.0
      %861 = vmatprep.mubr.f32.mxu0 0.0
      %862 = vmatmul.mubr.f32.gmra.mrb[0].mxu0 %v792
      %v863 = vpop.f32.mrb[0].mxu0
      %v864 = vadd.f32 0.0, %v863
      %v865 = vpop.f32.mrb[0].mxu0
      %866 = vmatprep.mubr.f32.mxu0 0.0
      %867 = vmatmul.mubr.f32.gmra.mrb[0].mxu0 %v795
      %v868 = vpop.f32.mrb[0].mxu0
      %v869 = vadd.f32 0.0, %v868
      %v870 = vpop.f32.mrb[0].mxu0
      %871 = vdwg.mxu0
      %v873 = vsel %vm478, %v864, 0
      %v876 = vsel %vm478, %v869, 0
      %878 = vmatprep.subr.mxu0 0.0
      %879 = vmatpush1.msra.mxu0 %v464
      %880 = vmatprep.subr.mxu0 0.0
      %881 = vmatpush1.msra.mxu0 %v465
      %882 = vmatprep.subr.mxu0 0.0
      %883 = vmatpush1.msra.mxu0 %v466
      %884 = vmatprep.subr.mxu0 0.0
      %885 = vmatpush1.msra.mxu0 %v467
      %886 = vmatprep.subr.mxu0 0.0
      %887 = vmatpush1.msra.mxu0 %v468
      %888 = vmatprep.subr.mxu0 0.0
      %889 = vmatpush1.msra.mxu0 %v469
      %890 = vmatprep.subr.mxu0 0.0
      %891 = vmatpush1.msra.mxu0 %v470
      %892 = vmatprep.subr.mxu0 0.0
      %893 = vmatpush1.msra.mxu0 %v471
      %894 = vmatprep.subr.mxu0 0.0
      %895 = vmatpush1.msra.mxu0 0.0
      %896 = vmatprep.subr.mxu0 0.0
      %897 = vmatpush1.msra.mxu0 0.0
      %898 = vmatprep.subr.mxu0 0.0
      %899 = vmatpush1.msra.mxu0 0.0
      %900 = vmatprep.subr.mxu0 0.0
      %901 = vmatpush1.msra.mxu0 0.0
      %902 = vmatprep.subr.mxu0 0.0
      %903 = vmatpush1.msra.mxu0 0.0
      %904 = vmatprep.subr.mxu0 0.0
      %905 = vmatpush1.msra.mxu0 0.0
      %906 = vmatprep.subr.mxu0 0.0
      %907 = vmatpush1.msra.mxu0 0.0
      %908 = vmatprep.subr.mxu0 0.0
      %909 = vmatpush1.msra.mxu0 0.0
      %910 = vmatprep.subr.mxu0 0.0
      %911 = vmatpush1.msra.mxu0 0.0
      %912 = vmatprep.subr.mxu0 0.0
      %913 = vmatpush1.msra.mxu0 0.0
      %914 = vmatprep.subr.mxu0 0.0
      %915 = vmatpush1.msra.mxu0 0.0
      %916 = vmatprep.subr.mxu0 0.0
      %917 = vmatpush1.msra.mxu0 0.0
      %918 = vmatprep.subr.mxu0 0.0
      %919 = vmatpush1.msra.mxu0 0.0
      %920 = vmatprep.subr.mxu0 0.0
      %921 = vmatpush1.msra.mxu0 0.0
      %922 = vmatprep.subr.mxu0 0.0
      %923 = vmatpush1.msra.mxu0 0.0
      %924 = vmatprep.subr.mxu0 0.0
      %925 = vmatpush1.msra.mxu0 0.0
      %926 = vmatprep.subr.mxu0 0.0
      %927 = vmatpush1.msra.mxu0 0.0
      %928 = vmatprep.subr.mxu0 0.0
      %929 = vmatpush1.msra.mxu0 0.0
      %930 = vmatprep.subr.mxu0 0.0
      %931 = vmatpush1.msra.mxu0 0.0
      %932 = vmatprep.subr.mxu0 0.0
      %933 = vmatpush1.msra.mxu0 0.0
      %934 = vmatprep.subr.mxu0 0.0
      %935 = vmatpush1.msra.mxu0 0.0
      %936 = vmatprep.subr.mxu0 0.0
      %937 = vmatpush1.msra.mxu0 0.0
      %938 = vmatprep.subr.mxu0 0.0
      %939 = vmatpush1.msra.mxu0 0.0
      %940 = vmatprep.subr.mxu0 0.0
      %941 = vmatpush1.msra.mxu0 0.0
      %942 = vmatprep.mubr.f32.mxu0 0.0
      %943 = vmatmul.mubr.f32.gmra.mrb[0].mxu0 %v873
      %v944 = vpop.f32.mrb[0].mxu0
      %v945 = vadd.f32 0.0, %v944
      %v946 = vpop.f32.mrb[0].mxu0
      %947 = vmatprep.mubr.f32.mxu0 0.0
      %948 = vmatmul.mubr.f32.gmra.mrb[0].mxu0 %v876
      %v949 = vpop.f32.mrb[0].mxu0
      %v950 = vadd.f32 0.0, %v949
      %v951 = vpop.f32.mrb[0].mxu0
      %952 = vdwg.mxu0
      %v954 = vsel %vm478, %v662, 0
      %v957 = vsel %vm478, %v667, 0
      %959 = vmatprep.subr.mxu0 0.0
      %960 = vmatpush1.msra.mxu0 %v456
      %961 = vmatprep.subr.mxu0 0.0
      %962 = vmatpush1.msra.mxu0 %v457
      %963 = vmatprep.subr.mxu0 0.0
      %964 = vmatpush1.msra.mxu0 %v458
      %965 = vmatprep.subr.mxu0 0.0
      %966 = vmatpush1.msra.mxu0 %v459
      %967 = vmatprep.subr.mxu0 0.0
      %968 = vmatpush1.msra.mxu0 %v460
      %969 = vmatprep.subr.mxu0 0.0
      %970 = vmatpush1.msra.mxu0 %v461
      %971 = vmatprep.subr.mxu0 0.0
      %972 = vmatpush1.msra.mxu0 %v462
      %973 = vmatprep.subr.mxu0 0.0
      %974 = vmatpush1.msra.mxu0 %v463
      %975 = vmatprep.subr.mxu0 0.0
      %976 = vmatpush1.msra.mxu0 0.0
      %977 = vmatprep.subr.mxu0 0.0
      %978 = vmatpush1.msra.mxu0 0.0
      %979 = vmatprep.subr.mxu0 0.0
      %980 = vmatpush1.msra.mxu0 0.0
      %981 = vmatprep.subr.mxu0 0.0
      %982 = vmatpush1.msra.mxu0 0.0
      %983 = vmatprep.subr.mxu0 0.0
      %984 = vmatpush1.msra.mxu0 0.0
      %985 = vmatprep.subr.mxu0 0.0
      %986 = vmatpush1.msra.mxu0 0.0
      %987 = vmatprep.subr.mxu0 0.0
      %988 = vmatpush1.msra.mxu0 0.0
      %989 = vmatprep.subr.mxu0 0.0
      %990 = vmatpush1.msra.mxu0 0.0
      %991 = vmatprep.subr.mxu0 0.0
      %992 = vmatpush1.msra.mxu0 0.0
      %993 = vmatprep.subr.mxu0 0.0
      %994 = vmatpush1.msra.mxu0 0.0
      %995 = vmatprep.subr.mxu0 0.0
      %996 = vmatpush1.msra.mxu0 0.0
      %997 = vmatprep.subr.mxu0 0.0
      %998 = vmatpush1.msra.mxu0 0.0
      %999 = vmatprep.subr.mxu0 0.0
      %1000 = vmatpush1.msra.mxu0 0.0
      %1001 = vmatprep.subr.mxu0 0.0
      %1002 = vmatpush1.msra.mxu0 0.0
      %1003 = vmatprep.subr.mxu0 0.0
      %1004 = vmatpush1.msra.mxu0 0.0
      %1005 = vmatprep.subr.mxu0 0.0
      %1006 = vmatpush1.msra.mxu0 0.0
      %1007 = vmatprep.subr.mxu0 0.0
      %1008 = vmatpush1.msra.mxu0 0.0
      %1009 = vmatprep.subr.mxu0 0.0
      %1010 = vmatpush1.msra.mxu0 0.0
      %1011 = vmatprep.subr.mxu0 0.0
      %1012 = vmatpush1.msra.mxu0 0.0
      %1013 = vmatprep.subr.mxu0 0.0
      %1014 = vmatpush1.msra.mxu0 0.0
      %1015 = vmatprep.subr.mxu0 0.0
      %1016 = vmatpush1.msra.mxu0 0.0
      %1017 = vmatprep.subr.mxu0 0.0
      %1018 = vmatpush1.msra.mxu0 0.0
      %1019 = vmatprep.subr.mxu0 0.0
      %1020 = vmatpush1.msra.mxu0 0.0
      %1021 = vmatprep.subr.mxu0 0.0
      %1022 = vmatpush1.msra.mxu0 0.0
      %1023 = vmatprep.mubr.f32.mxu0 0.0
      %1024 = vmatmul.mubr.f32.gmra.mrb[0].mxu0 %v954
      %v1025 = vpop.f32.mrb[0].mxu0
      %v1026 = vadd.f32 %v945, %v1025
      %v1027 = vpop.f32.mrb[0].mxu0
      %1028 = vmatprep.mubr.f32.mxu0 0.0
      %1029 = vmatmul.mubr.f32.gmra.mrb[0].mxu0 %v957
      %v1030 = vpop.f32.mrb[0].mxu0
      %v1031 = vadd.f32 %v950, %v1030
      %v1032 = vpop.f32.mrb[0].mxu0
      %1033 = vdwg.mxu0
      %v1034 = vld [vmem:[%s436] sm:$0xff]
      %v1035 = vld [vmem:[%s436 + $0x8] sm:$0xff]
      %v1036 = vadd.f32 %v1034, %v1026
      %v1037 = vadd.f32 %v1035, %v1031
      %v1038 = vld [vmem:[%s5] sm:$0x1]
      %v1040 = vlaneseq
      %v1041 = vshrl.u32 %v1040, 7
      %v1042 = vsub.s32 0, %v1041
      %v1043 = vrot.slane %v1038, %v1042
      %v1045 = vadd.f32 %v1036, %v1043
      %v1046 = vadd.f32 %v1037, %v1043
      %1047 = vst [vmem:[%s441] sm:$0xff] %v1045
      %1048 = vst [vmem:[%s441 + $0x8] sm:$0xff] %v1046
      %v1049 = vld [vmem:[%s7] sm:$0x1]
      %v1050 = vld [vmem:[%s8] sm:$0x1]
      %1051 = vadd.xlane.f32.xlu0 %v1045
      %v1052 = vpop.xlane.xlu0 %1051
      %1053 = vadd.xlane.f32.xlu0 %v1046
      %v1054 = vpop.xlane.xlu0 %1053
      %v1055 = vrcp.pop 128.0
      %v1056 = vmul.f32 %v1052, %v1055
      %v1057 = vmul.f32 %v1054, %v1055
      %v1058 = vsub.f32 %v1045, %v1056
      %v1059 = vsub.f32 %v1046, %v1057
      %v1060 = vmul.f32 %v1058, %v1058
      %v1061 = vmul.f32 %v1059, %v1059
      %1062 = vadd.xlane.f32.xlu0 %v1060
      %v1063 = vpop.xlane.xlu0 %1062
      %1064 = vadd.xlane.f32.xlu0 %v1061
      %v1065 = vpop.xlane.xlu0 %1064
      %v1066 = vmul.f32 %v1063, %v1055
      %v1067 = vmul.f32 %v1065, %v1055
      %v1068 = vadd.f32 %v1066, 1e-05
      %v1069 = vadd.f32 %v1067, 1e-05
      %v1070 = vrsqrt.pop %v1068
      %v1071 = vrsqrt.pop %v1069
      %v1072 = vmul.f32 %v1058, %v1070
      %v1073 = vmul.f32 %v1059, %v1071
      %v1075 = vlaneseq
      %v1076 = vshrl.u32 %v1075, 7
      %v1077 = vsub.s32 0, %v1076
      %v1078 = vrot.slane %v1049, %v1077
      %v1080 = vmul.f32 %v1072, %v1078
      %v1081 = vmul.f32 %v1073, %v1078
      %v1083 = vlaneseq
      %v1084 = vshrl.u32 %v1083, 7
      %v1085 = vsub.s32 0, %v1084
      %v1086 = vrot.slane %v1050, %v1085
      %v1088 = vadd.f32 %v1080, %v1086
      %v1089 = vadd.f32 %v1081, %v1086
      %1090 = vst [vmem:[%s446] sm:$0xff] %v1088
      %1091 = vst [vmem:[%s446 + $0x8] sm:$0xff] %v1089
      %p1092 = scmp.lt.s32.totalorder %s22, 1
      %s1093 = scalar_select %p1092, %s22, 1
      %s1094 = smul.addr %s1093, 2
      %s1095 = smul.addr %s1094, 8
      %s1096 = scalar_lea.vmem %s9, %s1095
      %p1097 = scmp.lt.s32.totalorder %s22, 1
      %s1098 = scalar_select %p1097, %s22, 1
      %s1099 = smul.addr %s1098, 2
      %s1100 = smul.addr %s1099, 8
      %s1101 = scalar_lea.vmem %s10, %s1100
      // Predicated region
      $region57: #{transformer_forward.19} parent=55 // pred_check
        %p1102 = pneg %p254
      $region58: #{transformer_forward.19} parent=55 // pred_check_branch
        %1104 = sbr.rel (%p1102) target = $region60
      $region59: #{transformer_forward.19} parent=55 // pred_region
        _
      $region60: #{transformer_forward.19} parent=55 // pred_fallthru
        _
      // Predicated region
      $region61: #{transformer_forward.19} parent=55 // pred_check
        %p1105 = pneg %p280
      $region62: #{transformer_forward.19} parent=55 // pred_check_branch
        %1107 = sbr.rel (%p1105) target = $region64
      $region63: #{transformer_forward.19} parent=55 // pred_region
        _
      $region64: #{transformer_forward.19} parent=55 // pred_fallthru
        _
    $region56: #{transformer_forward.19} parent=5 // pred_fallthru
      _
    %p1108 = scmp.le.s32.totalorder 2, %s17
    // Predicated region
    $region65: #{transformer_forward.19} parent=5 // pred_check
      %p1109 = pneg %p1108
    $region66: #{transformer_forward.19} parent=5 // pred_check_branch
      %1111 = sbr.rel (%p1109) target = $region68
    $region67: #{transformer_forward.19} parent=5 // pred_region
      %s1112 = ssub.s32 %s17, 2
      // Predicated region
      $region69: #{transformer_forward.19} parent=67 // pred_check
        %p1113 = pneg %p260
      $region70: #{transformer_forward.19} parent=67 // pred_check_branch
        %1115 = sbr.rel (%p1113) target = $region72
      $region71: #{transformer_forward.19} parent=67 // pred_region
        %p1116 = scmp.lt.s32.totalorder %s23, 1
        %s1117 = scalar_select %p1116, %s23, 1
        %s1118 = smul.addr %s1117, 2
        %s1119 = smul.addr %s1118, 8
        %s1120 = scalar_lea.vmem %s9, %s1119
      $region72: #{transformer_forward.19} parent=67 // pred_fallthru
        _
      // Predicated region
      $region73: #{transformer_forward.19} parent=67 // pred_check
        %p1121 = pneg %p286
      $region74: #{transformer_forward.19} parent=67 // pred_check_branch
        %1123 = sbr.rel (%p1121) target = $region76
      $region75: #{transformer_forward.19} parent=67 // pred_region
        %p1124 = scmp.lt.s32.totalorder %s23, 1
        %s1125 = scalar_select %p1124, %s23, 1
        %s1126 = smul.addr %s1125, 2
        %s1127 = smul.addr %s1126, 8
        %s1128 = scalar_lea.vmem %s10, %s1127
      $region76: #{transformer_forward.19} parent=67 // pred_fallthru
        _
    $region68: #{transformer_forward.19} parent=5 // pred_fallthru
      _
  $region6: #{transformer_forward.19} parent=0 // loop_footer
    %s21 = sadd.s32 1, %s17
  $region7: #{transformer_forward.19} parent=0 // loop_footer_branch
    %16 = sbr.rel target = $region3
  $region8: #{transformer_forward.19} parent=0 // loop_exit
    _

// kernel: transformer_forward.18
$region0: #{transformer_forward.18}
  #allocation0 [shape = 'u32[]', space=smem, size = 0x4, offset = 0x4, fixed_abs, tag = 'smem constant byte address 0x4 - core index']
  #allocation1 [shape = 'u32[144,128]{1,0:T(1,128)}', space=vmem, size = 0x12000, scoped, tag = 'internal scratch']
  %s0 = inlined_call_operand.vmem [shape: f32[32,128], index: 0, kind: input, shape index: {}]
  %s1 = inlined_call_operand.vmem [shape: f32[32,128], index: 1, kind: input, shape index: {}]
  %s2 = inlined_call_operand.vmem [shape: f32[1,128], index: 2, kind: input, shape index: {}]
  %s3 = inlined_call_operand.vmem [shape: f32[1,128], index: 3, kind: input, shape index: {}]
  %s4 = inlined_call_operand.vmem [shape: f32[128,128], index: 4, kind: input, shape index: {}]
  %s5 = inlined_call_operand.vmem [shape: f32[1,128], index: 5, kind: input, shape index: {}]
  %s6 = inlined_call_operand.vmem [shape: f32[128,128], index: 6, kind: input, shape index: {}]
  %s7 = inlined_call_operand.vmem [shape: f32[1,128], index: 7, kind: input, shape index: {}]
  %s8 = inlined_call_operand.hbm [shape: f32[128,128], index: 8, kind: input, shape index: {}]
  %s9 = inlined_call_operand.vmem [shape: f32[1,128], index: 9, kind: input, shape index: {}]
  %s10 = inlined_call_operand.vmem [shape: f32[32,128], index: 10, kind: output, shape index: {0}]
  %s11 = inlined_call_operand.vmem [shape: f32[32,128], index: 11, kind: output, shape index: {1}]
  %s12 = inlined_call_operand.vmem [shape: f32[32,128], index: 12, kind: output, shape index: {2}]
  %13 = xla_tuple %s10, %s11, %s12
  %s14 = sld [smem:[#allocation0]]
  $region70: #{transformer_forward.18} parent=0
    _
  %s16 = ssub.s32 1, %s14
  %s17 = scalar_select 0, %s16, %s14
  $region1: #{transformer_forward.18} parent=0
    #allocation2 [shape = 'u8[65536]{0}', space=vmem, size = 0x10000, scoped, tag = 'input window, operand 8, single buffered']
    #allocation3 [shape = 's32[1]{0}', space=sflag, size = 0x4, scoped, tag = 'scoped memory for transformer_forward.18']
    %18 = vsyncpa [#allocation3], 0
    // Predicated region
    $region2: #{transformer_forward.18} parent=1 // pred_check
      _
    $region3: #{transformer_forward.18} parent=1 // pred_check_branch
      %20 = sbr.rel (0) target = $region5
    $region4: #{transformer_forward.18} parent=1 // pred_region
      _
    $region5: #{transformer_forward.18} parent=1 // pred_fallthru
      _
    // Predicated region
    $region6: #{transformer_forward.18} parent=1 // pred_check
      _
    $region7: #{transformer_forward.18} parent=1 // pred_check_branch
      %22 = sbr.rel (0) target = $region9
    $region8: #{transformer_forward.18} parent=1 // pred_region
      _
    $region9: #{transformer_forward.18} parent=1 // pred_fallthru
      _
    // Predicated region
    $region10: #{transformer_forward.18} parent=1 // pred_check
      _
    $region11: #{transformer_forward.18} parent=1 // pred_check_branch
      %24 = sbr.rel (0) target = $region13
    $region12: #{transformer_forward.18} parent=1 // pred_region
      _
    $region13: #{transformer_forward.18} parent=1 // pred_fallthru
      _
    // Predicated region
    $region14: #{transformer_forward.18} parent=1 // pred_check
      _
    $region15: #{transformer_forward.18} parent=1 // pred_check_branch
      %26 = sbr.rel (0) target = $region17
    $region16: #{transformer_forward.18} parent=1 // pred_region
      _
    $region17: #{transformer_forward.18} parent=1 // pred_fallthru
      _
    // Predicated region
    $region18: #{transformer_forward.18} parent=1 // pred_check
      _
    $region19: #{transformer_forward.18} parent=1 // pred_check_branch
      %28 = sbr.rel (0) target = $region21
    $region20: #{transformer_forward.18} parent=1 // pred_region
      _
    $region21: #{transformer_forward.18} parent=1 // pred_fallthru
      _
    // Predicated region
    $region22: #{transformer_forward.18} parent=1 // pred_check
      _
    $region23: #{transformer_forward.18} parent=1 // pred_check_branch
      %30 = sbr.rel (0) target = $region25
    $region24: #{transformer_forward.18} parent=1 // pred_region
      _
    $region25: #{transformer_forward.18} parent=1 // pred_fallthru
      _
    // Predicated region
    $region26: #{transformer_forward.18} parent=1 // pred_check
      _
    $region27: #{transformer_forward.18} parent=1 // pred_check_branch
      %32 = sbr.rel (0) target = $region29
    $region28: #{transformer_forward.18} parent=1 // pred_region
      _
    $region29: #{transformer_forward.18} parent=1 // pred_fallthru
      _
    // Predicated region
    $region30: #{transformer_forward.18} parent=1 // pred_check
      _
    $region31: #{transformer_forward.18} parent=1 // pred_check_branch
      %34 = sbr.rel (0) target = $region33
    $region32: #{transformer_forward.18} parent=1 // pred_region
      _
    $region33: #{transformer_forward.18} parent=1 // pred_fallthru
      _
    // Predicated region
    $region34: #{transformer_forward.18} parent=1 // pred_check
      _
    $region35: #{transformer_forward.18} parent=1 // pred_check_branch
      %36 = sbr.rel (0) target = $region37
    $region36: #{transformer_forward.18} parent=1 // pred_region
      %s38 = ssub.s32 2048, 2048
      %39 = vsyncadd [#allocation3], %s38
      %s40 = sshll.u32 [#allocation2], 4
      %s41 = int_to_ptr.vmem [resolvable:$true] %s40
      %46 = dma.hbm_to_vmem [thread:$0]  %s8, 2048, %s41, [#allocation3], 128, 128, 8
    $region37: #{transformer_forward.18} parent=1 // pred_fallthru
      _
    // Predicated region
    $region38: #{transformer_forward.18} parent=1 // pred_check
      _
    $region39: #{transformer_forward.18} parent=1 // pred_check_branch
      %48 = sbr.rel (0) target = $region41
    $region40: #{transformer_forward.18} parent=1 // pred_region
      _
    $region41: #{transformer_forward.18} parent=1 // pred_fallthru
      _
    // Predicated region
    $region42: #{transformer_forward.18} parent=1 // pred_check
      _
    $region43: #{transformer_forward.18} parent=1 // pred_check_branch
      %50 = sbr.rel (0) target = $region45
    $region44: #{transformer_forward.18} parent=1 // pred_region
      %51 = dma.done [#allocation3], 2048
    $region45: #{transformer_forward.18} parent=1 // pred_fallthru
      _
    %v52 = vld [vmem:[%s0] sm:$0xff]
    %v53 = vld [vmem:[%s0 + $0x8] sm:$0xff]
    %v54 = vld [vmem:[%s0 + $0x10] sm:$0xff]
    %v55 = vld [vmem:[%s0 + $0x18] sm:$0xff]
    %v56 = vld [vmem:[%s2] sm:$0x1]
    %v57 = vld [vmem:[%s3] sm:$0x1]
    %58 = vadd.xlane.f32.xlu0 %v52
    %v59 = vpop.xlane.xlu0 %58
    %60 = vadd.xlane.f32.xlu0 %v53
    %v61 = vpop.xlane.xlu0 %60
    %62 = vadd.xlane.f32.xlu0 %v54
    %v63 = vpop.xlane.xlu0 %62
    %64 = vadd.xlane.f32.xlu0 %v55
    %v65 = vpop.xlane.xlu0 %64
    %v66 = vrcp.pop 128.0
    %v67 = vmul.f32 %v59, %v66
    %v68 = vmul.f32 %v61, %v66
    %v69 = vmul.f32 %v63, %v66
    %v70 = vmul.f32 %v65, %v66
    %v71 = vsub.f32 %v52, %v67
    %v72 = vsub.f32 %v53, %v68
    %v73 = vsub.f32 %v54, %v69
    %v74 = vsub.f32 %v55, %v70
    %v75 = vmul.f32 %v71, %v71
    %v76 = vmul.f32 %v72, %v72
    %v77 = vmul.f32 %v73, %v73
    %v78 = vmul.f32 %v74, %v74
    %79 = vadd.xlane.f32.xlu0 %v75
    %v80 = vpop.xlane.xlu0 %79
    %81 = vadd.xlane.f32.xlu0 %v76
    %v82 = vpop.xlane.xlu0 %81
    %83 = vadd.xlane.f32.xlu0 %v77
    %v84 = vpop.xlane.xlu0 %83
    %85 = vadd.xlane.f32.xlu0 %v78
    %v86 = vpop.xlane.xlu0 %85
    %v87 = vmul.f32 %v80, %v66
    %v88 = vmul.f32 %v82, %v66
    %v89 = vmul.f32 %v84, %v66
    %v90 = vmul.f32 %v86, %v66
    %v91 = vadd.f32 %v87, 1e-05
    %v92 = vadd.f32 %v88, 1e-05
    %v93 = vadd.f32 %v89, 1e-05
    %v94 = vadd.f32 %v90, 1e-05
    %v95 = vrsqrt.pop %v91
    %v96 = vrsqrt.pop %v92
    %v97 = vrsqrt.pop %v93
    %v98 = vrsqrt.pop %v94
    %v99 = vmul.f32 %v71, %v95
    %v100 = vmul.f32 %v72, %v96
    %v101 = vmul.f32 %v73, %v97
    %v102 = vmul.f32 %v74, %v98
    %v104 = vlaneseq
    %v105 = vshrl.u32 %v104, 7
    %v106 = vsub.s32 0, %v105
    %v107 = vrot.slane %v56, %v106
    %v109 = vmul.f32 %v99, %v107
    %v110 = vmul.f32 %v100, %v107
    %v111 = vmul.f32 %v101, %v107
    %v112 = vmul.f32 %v102, %v107
    %v114 = vlaneseq
    %v115 = vshrl.u32 %v114, 7
    %v116 = vsub.s32 0, %v115
    %v117 = vrot.slane %v57, %v116
    %v119 = vadd.f32 %v109, %v117
    %v120 = vadd.f32 %v110, %v117
    %v121 = vadd.f32 %v111, %v117
    %v122 = vadd.f32 %v112, %v117
    %v123 = vld [vmem:[%s1] sm:$0xff]
    %v124 = vld [vmem:[%s1 + $0x8] sm:$0xff]
    %v125 = vld [vmem:[%s1 + $0x10] sm:$0xff]
    %v126 = vld [vmem:[%s1 + $0x18] sm:$0xff]
    %v127 = vadd.f32 %v119, %v123
    %v128 = vadd.f32 %v120, %v124
    %v129 = vadd.f32 %v121, %v125
    %v130 = vadd.f32 %v122, %v126
    %v131 = vld [vmem:[%s4] sm:$0xff]
    %v132 = vld [vmem:[%s4 + $0x8] sm:$0xff]
    %v133 = vld [vmem:[%s4 + $0x10] sm:$0xff]
    %v134 = vld [vmem:[%s4 + $0x18] sm:$0xff]
    %v135 = vld [vmem:[%s4 + $0x20] sm:$0xff]
    %v136 = vld [vmem:[%s4 + $0x28] sm:$0xff]
    %v137 = vld [vmem:[%s4 + $0x30] sm:$0xff]
    %v138 = vld [vmem:[%s4 + $0x38] sm:$0xff]
    %v139 = vld [vmem:[%s4 + $0x40] sm:$0xff]
    %v140 = vld [vmem:[%s4 + $0x48] sm:$0xff]
    %v141 = vld [vmem:[%s4 + $0x50] sm:$0xff]
    %v142 = vld [vmem:[%s4 + $0x58] sm:$0xff]
    %v143 = vld [vmem:[%s4 + $0x60] sm:$0xff]
    %v144 = vld [vmem:[%s4 + $0x68] sm:$0xff]
    %v145 = vld [vmem:[%s4 + $0x70] sm:$0xff]
    %v146 = vld [vmem:[%s4 + $0x78] sm:$0xff]
    %v147 = vld [vmem:[%s5] sm:$0x1]
    %v149 = vlaneseq
    %v150 = vshrl.u32 %v149, 7
    %v151 = vsub.s32 0, %v150
    %v152 = vrot.slane %v147, %v151
    %154 = vmatprep.subr.mxu0 0.0
    %155 = vmatpush1.msra.mxu0 %v131
    %156 = vmatprep.subr.mxu0 0.0
    %157 = vmatpush1.msra.mxu0 %v132
    %158 = vmatprep.subr.mxu0 0.0
    %159 = vmatpush1.msra.mxu0 %v133
    %160 = vmatprep.subr.mxu0 0.0
    %161 = vmatpush1.msra.mxu0 %v134
    %162 = vmatprep.subr.mxu0 0.0
    %163 = vmatpush1.msra.mxu0 %v135
    %164 = vmatprep.subr.mxu0 0.0
    %165 = vmatpush1.msra.mxu0 %v136
    %166 = vmatprep.subr.mxu0 0.0
    %167 = vmatpush1.msra.mxu0 %v137
    %168 = vmatprep.subr.mxu0 0.0
    %169 = vmatpush1.msra.mxu0 %v138
    %170 = vmatprep.subr.mxu0 0.0
    %171 = vmatpush1.msra.mxu0 %v139
    %172 = vmatprep.subr.mxu0 0.0
    %173 = vmatpush1.msra.mxu0 %v140
    %174 = vmatprep.subr.mxu0 0.0
    %175 = vmatpush1.msra.mxu0 %v141
    %176 = vmatprep.subr.mxu0 0.0
    %177 = vmatpush1.msra.mxu0 %v142
    %178 = vmatprep.subr.mxu0 0.0
    %179 = vmatpush1.msra.mxu0 %v143
    %180 = vmatprep.subr.mxu0 0.0
    %181 = vmatpush1.msra.mxu0 %v144
    %182 = vmatprep.subr.mxu0 0.0
    %183 = vmatpush1.msra.mxu0 %v145
    %184 = vmatprep.subr.mxu0 0.0
    %185 = vmatpush1.msra.mxu0 %v146
    %186 = vmatprep.subr.mxu0 0.0
    %187 = vmatpush1.msra.mxu0 0.0
    %188 = vmatprep.subr.mxu0 0.0
    %189 = vmatpush1.msra.mxu0 0.0
    %190 = vmatprep.subr.mxu0 0.0
    %191 = vmatpush1.msra.mxu0 0.0
    %192 = vmatprep.subr.mxu0 0.0
    %193 = vmatpush1.msra.mxu0 0.0
    %194 = vmatprep.subr.mxu0 0.0
    %195 = vmatpush1.msra.mxu0 0.0
    %196 = vmatprep.subr.mxu0 0.0
    %197 = vmatpush1.msra.mxu0 0.0
    %198 = vmatprep.subr.mxu0 0.0
    %199 = vmatpush1.msra.mxu0 0.0
    %200 = vmatprep.subr.mxu0 0.0
    %201 = vmatpush1.msra.mxu0 0.0
    %202 = vmatprep.subr.mxu0 0.0
    %203 = vmatpush1.msra.mxu0 0.0
    %204 = vmatprep.subr.mxu0 0.0
    %205 = vmatpush1.msra.mxu0 0.0
    %206 = vmatprep.subr.mxu0 0.0
    %207 = vmatpush1.msra.mxu0 0.0
    %208 = vmatprep.subr.mxu0 0.0
    %209 = vmatpush1.msra.mxu0 0.0
    %210 = vmatprep.subr.mxu0 0.0
    %211 = vmatpush1.msra.mxu0 0.0
    %212 = vmatprep.subr.mxu0 0.0
    %213 = vmatpush1.msra.mxu0 0.0
    %214 = vmatprep.subr.mxu0 0.0
    %215 = vmatpush1.msra.mxu0 0.0
    %216 = vmatprep.subr.mxu0 0.0
    %217 = vmatpush1.msra.mxu0 0.0
    %218 = vmatprep.mubr.f32.mxu0 0.0
    %219 = vmatmul.mubr.f32.gmra.mrb[0].mxu0 %v127
    %v220 = vpop.f32.mrb[0].mxu0
    %v221 = vadd.f32 %v152, %v220
    %v222 = vpop.f32.mrb[0].mxu0
    %223 = vmatprep.mubr.f32.mxu0 0.0
    %224 = vmatmul.mubr.f32.gmra.mrb[0].mxu0 %v128
    %v225 = vpop.f32.mrb[0].mxu0
    %v226 = vadd.f32 %v152, %v225
    %v227 = vpop.f32.mrb[0].mxu0
    %228 = vmatprep.mubr.f32.mxu0 0.0
    %229 = vmatmul.mubr.f32.gmra.mrb[0].mxu0 %v129
    %v230 = vpop.f32.mrb[0].mxu0
    %v231 = vadd.f32 %v152, %v230
    %v232 = vpop.f32.mrb[0].mxu0
    %233 = vmatprep.mubr.f32.mxu0 0.0
    %234 = vmatmul.mubr.f32.gmra.mrb[0].mxu0 %v130
    %v235 = vpop.f32.mrb[0].mxu0
    %v236 = vadd.f32 %v152, %v235
    %v237 = vpop.f32.mrb[0].mxu0
    %238 = vdwg.mxu0
    %239 = vst [vmem:[%s10] sm:$0xff] %v221
    %240 = vst [vmem:[%s10 + $0x8] sm:$0xff] %v226
    %241 = vst [vmem:[%s10 + $0x10] sm:$0xff] %v231
    %242 = vst [vmem:[%s10 + $0x18] sm:$0xff] %v236
    %v243 = vld [vmem:[%s6] sm:$0xff]
    %v244 = vld [vmem:[%s6 + $0x8] sm:$0xff]
    %v245 = vld [vmem:[%s6 + $0x10] sm:$0xff]
    %v246 = vld [vmem:[%s6 + $0x18] sm:$0xff]
    %v247 = vld [vmem:[%s6 + $0x20] sm:$0xff]
    %v248 = vld [vmem:[%s6 + $0x28] sm:$0xff]
    %v249 = vld [vmem:[%s6 + $0x30] sm:$0xff]
    %v250 = vld [vmem:[%s6 + $0x38] sm:$0xff]
    %v251 = vld [vmem:[%s6 + $0x40] sm:$0xff]
    %v252 = vld [vmem:[%s6 + $0x48] sm:$0xff]
    %v253 = vld [vmem:[%s6 + $0x50] sm:$0xff]
    %v254 = vld [vmem:[%s6 + $0x58] sm:$0xff]
    %v255 = vld [vmem:[%s6 + $0x60] sm:$0xff]
    %v256 = vld [vmem:[%s6 + $0x68] sm:$0xff]
    %v257 = vld [vmem:[%s6 + $0x70] sm:$0xff]
    %v258 = vld [vmem:[%s6 + $0x78] sm:$0xff]
    %v259 = vld [vmem:[%s7] sm:$0x1]
    %v261 = vlaneseq
    %v262 = vshrl.u32 %v261, 7
    %v263 = vsub.s32 0, %v262
    %v264 = vrot.slane %v259, %v263
    %266 = vmatprep.subr.mxu0 0.0
    %267 = vmatpush1.msra.mxu0 %v243
    %268 = vmatprep.subr.mxu0 0.0
    %269 = vmatpush1.msra.mxu0 %v244
    %270 = vmatprep.subr.mxu0 0.0
    %271 = vmatpush1.msra.mxu0 %v245
    %272 = vmatprep.subr.mxu0 0.0
    %273 = vmatpush1.msra.mxu0 %v246
    %274 = vmatprep.subr.mxu0 0.0
    %275 = vmatpush1.msra.mxu0 %v247
    %276 = vmatprep.subr.mxu0 0.0
    %277 = vmatpush1.msra.mxu0 %v248
    %278 = vmatprep.subr.mxu0 0.0
    %279 = vmatpush1.msra.mxu0 %v249
    %280 = vmatprep.subr.mxu0 0.0
    %281 = vmatpush1.msra.mxu0 %v250
    %282 = vmatprep.subr.mxu0 0.0
    %283 = vmatpush1.msra.mxu0 %v251
    %284 = vmatprep.subr.mxu0 0.0
    %285 = vmatpush1.msra.mxu0 %v252
    %286 = vmatprep.subr.mxu0 0.0
    %287 = vmatpush1.msra.mxu0 %v253
    %288 = vmatprep.subr.mxu0 0.0
    %289 = vmatpush1.msra.mxu0 %v254
    %290 = vmatprep.subr.mxu0 0.0
    %291 = vmatpush1.msra.mxu0 %v255
    %292 = vmatprep.subr.mxu0 0.0
    %293 = vmatpush1.msra.mxu0 %v256
    %294 = vmatprep.subr.mxu0 0.0
    %295 = vmatpush1.msra.mxu0 %v257
    %296 = vmatprep.subr.mxu0 0.0
    %297 = vmatpush1.msra.mxu0 %v258
    %298 = vmatprep.subr.mxu0 0.0
    %299 = vmatpush1.msra.mxu0 0.0
    %300 = vmatprep.subr.mxu0 0.0
    %301 = vmatpush1.msra.mxu0 0.0
    %302 = vmatprep.subr.mxu0 0.0
    %303 = vmatpush1.msra.mxu0 0.0
    %304 = vmatprep.subr.mxu0 0.0
    %305 = vmatpush1.msra.mxu0 0.0
    %306 = vmatprep.subr.mxu0 0.0
    %307 = vmatpush1.msra.mxu0 0.0
    %308 = vmatprep.subr.mxu0 0.0
    %309 = vmatpush1.msra.mxu0 0.0
    %310 = vmatprep.subr.mxu0 0.0
    %311 = vmatpush1.msra.mxu0 0.0
    %312 = vmatprep.subr.mxu0 0.0
    %313 = vmatpush1.msra.mxu0 0.0
    %314 = vmatprep.subr.mxu0 0.0
    %315 = vmatpush1.msra.mxu0 0.0
    %316 = vmatprep.subr.mxu0 0.0
    %317 = vmatpush1.msra.mxu0 0.0
    %318 = vmatprep.subr.mxu0 0.0
    %319 = vmatpush1.msra.mxu0 0.0
    %320 = vmatprep.subr.mxu0 0.0
    %321 = vmatpush1.msra.mxu0 0.0
    %322 = vmatprep.subr.mxu0 0.0
    %323 = vmatpush1.msra.mxu0 0.0
    %324 = vmatprep.subr.mxu0 0.0
    %325 = vmatpush1.msra.mxu0 0.0
    %326 = vmatprep.subr.mxu0 0.0
    %327 = vmatpush1.msra.mxu0 0.0
    %328 = vmatprep.subr.mxu0 0.0
    %329 = vmatpush1.msra.mxu0 0.0
    %330 = vmatprep.mubr.f32.mxu0 0.0
    %331 = vmatmul.mubr.f32.gmra.mrb[0].mxu0 %v127
    %v332 = vpop.f32.mrb[0].mxu0
    %v333 = vadd.f32 %v264, %v332
    %v334 = vpop.f32.mrb[0].mxu0
    %335 = vmatprep.mubr.f32.mxu0 0.0
    %336 = vmatmul.mubr.f32.gmra.mrb[0].mxu0 %v128
    %v337 = vpop.f32.mrb[0].mxu0
    %v338 = vadd.f32 %v264, %v337
    %v339 = vpop.f32.mrb[0].mxu0
    %340 = vmatprep.mubr.f32.mxu0 0.0
    %341 = vmatmul.mubr.f32.gmra.mrb[0].mxu0 %v129
    %v342 = vpop.f32.mrb[0].mxu0
    %v343 = vadd.f32 %v264, %v342
    %v344 = vpop.f32.mrb[0].mxu0
    %345 = vmatprep.mubr.f32.mxu0 0.0
    %346 = vmatmul.mubr.f32.gmra.mrb[0].mxu0 %v130
    %v347 = vpop.f32.mrb[0].mxu0
    %v348 = vadd.f32 %v264, %v347
    %v349 = vpop.f32.mrb[0].mxu0
    %350 = vdwg.mxu0
    %351 = vst [vmem:[%s11] sm:$0xff] %v333
    %352 = vst [vmem:[%s11 + $0x8] sm:$0xff] %v338
    %353 = vst [vmem:[%s11 + $0x10] sm:$0xff] %v343
    %354 = vst [vmem:[%s11 + $0x18] sm:$0xff] %v348
    %v355 = vld [vmem:[#allocation2] sm:$0xff]
    %v356 = vld [vmem:[#allocation2 + $0x8] sm:$0xff]
    %v357 = vld [vmem:[#allocation2 + $0x10] sm:$0xff]
    %v358 = vld [vmem:[#allocation2 + $0x18] sm:$0xff]
    %v359 = vld [vmem:[#allocation2 + $0x20] sm:$0xff]
    %v360 = vld [vmem:[#allocation2 + $0x28] sm:$0xff]
    %v361 = vld [vmem:[#allocation2 + $0x30] sm:$0xff]
    %v362 = vld [vmem:[#allocation2 + $0x38] sm:$0xff]
    %v363 = vld [vmem:[#allocation2 + $0x40] sm:$0xff]
    %v364 = vld [vmem:[#allocation2 + $0x48] sm:$0xff]
    %v365 = vld [vmem:[#allocation2 + $0x50] sm:$0xff]
    %v366 = vld [vmem:[#allocation2 + $0x58] sm:$0xff]
    %v367 = vld [vmem:[#allocation2 + $0x60] sm:$0xff]
    %v368 = vld [vmem:[#allocation2 + $0x68] sm:$0xff]
    %v369 = vld [vmem:[#allocation2 + $0x70] sm:$0xff]
    %v370 = vld [vmem:[#allocation2 + $0x78] sm:$0xff]
    %v371 = vld [vmem:[%s9] sm:$0x1]
    %v373 = vlaneseq
    %v374 = vshrl.u32 %v373, 7
    %v375 = vsub.s32 0, %v374
    %v376 = vrot.slane %v371, %v375
    %378 = vmatprep.subr.mxu0 0.0
    %379 = vmatpush1.msra.mxu0 %v355
    %380 = vmatprep.subr.mxu0 0.0
    %381 = vmatpush1.msra.mxu0 %v356
    %382 = vmatprep.subr.mxu0 0.0
    %383 = vmatpush1.msra.mxu0 %v357
    %384 = vmatprep.subr.mxu0 0.0
    %385 = vmatpush1.msra.mxu0 %v358
    %386 = vmatprep.subr.mxu0 0.0
    %387 = vmatpush1.msra.mxu0 %v359
    %388 = vmatprep.subr.mxu0 0.0
    %389 = vmatpush1.msra.mxu0 %v360
    %390 = vmatprep.subr.mxu0 0.0
    %391 = vmatpush1.msra.mxu0 %v361
    %392 = vmatprep.subr.mxu0 0.0
    %393 = vmatpush1.msra.mxu0 %v362
    %394 = vmatprep.subr.mxu0 0.0
    %395 = vmatpush1.msra.mxu0 %v363
    %396 = vmatprep.subr.mxu0 0.0
    %397 = vmatpush1.msra.mxu0 %v364
    %398 = vmatprep.subr.mxu0 0.0
    %399 = vmatpush1.msra.mxu0 %v365
    %400 = vmatprep.subr.mxu0 0.0
    %401 = vmatpush1.msra.mxu0 %v366
    %402 = vmatprep.subr.mxu0 0.0
    %403 = vmatpush1.msra.mxu0 %v367
    %404 = vmatprep.subr.mxu0 0.0
    %405 = vmatpush1.msra.mxu0 %v368
    %406 = vmatprep.subr.mxu0 0.0
    %407 = vmatpush1.msra.mxu0 %v369
    %408 = vmatprep.subr.mxu0 0.0
    %409 = vmatpush1.msra.mxu0 %v370
    %410 = vmatprep.subr.mxu0 0.0
    %411 = vmatpush1.msra.mxu0 0.0
    %412 = vmatprep.subr.mxu0 0.0
    %413 = vmatpush1.msra.mxu0 0.0
    %414 = vmatprep.subr.mxu0 0.0
    %415 = vmatpush1.msra.mxu0 0.0
    %416 = vmatprep.subr.mxu0 0.0
    %417 = vmatpush1.msra.mxu0 0.0
    %418 = vmatprep.subr.mxu0 0.0
    %419 = vmatpush1.msra.mxu0 0.0
    %420 = vmatprep.subr.mxu0 0.0
    %421 = vmatpush1.msra.mxu0 0.0
    %422 = vmatprep.subr.mxu0 0.0
    %423 = vmatpush1.msra.mxu0 0.0
    %424 = vmatprep.subr.mxu0 0.0
    %425 = vmatpush1.msra.mxu0 0.0
    %426 = vmatprep.subr.mxu0 0.0
    %427 = vmatpush1.msra.mxu0 0.0
    %428 = vmatprep.subr.mxu0 0.0
    %429 = vmatpush1.msra.mxu0 0.0
    %430 = vmatprep.subr.mxu0 0.0
    %431 = vmatpush1.msra.mxu0 0.0
    %432 = vmatprep.subr.mxu0 0.0
    %433 = vmatpush1.msra.mxu0 0.0
    %434 = vmatprep.subr.mxu0 0.0
    %435 = vmatpush1.msra.mxu0 0.0
    %436 = vmatprep.subr.mxu0 0.0
    %437 = vmatpush1.msra.mxu0 0.0
    %438 = vmatprep.subr.mxu0 0.0
    %439 = vmatpush1.msra.mxu0 0.0
    %440 = vmatprep.subr.mxu0 0.0
    %441 = vmatpush1.msra.mxu0 0.0
    %442 = vmatprep.mubr.f32.mxu0 0.0
    %443 = vmatmul.mubr.f32.gmra.mrb[0].mxu0 %v119
    %v444 = vpop.f32.mrb[0].mxu0
    %v445 = vadd.f32 %v376, %v444
    %v446 = vpop.f32.mrb[0].mxu0
    %447 = vmatprep.mubr.f32.mxu0 0.0
    %448 = vmatmul.mubr.f32.gmra.mrb[0].mxu0 %v120
    %v449 = vpop.f32.mrb[0].mxu0
    %v450 = vadd.f32 %v376, %v449
    %v451 = vpop.f32.mrb[0].mxu0
    %452 = vmatprep.mubr.f32.mxu0 0.0
    %453 = vmatmul.mubr.f32.gmra.mrb[0].mxu0 %v121
    %v454 = vpop.f32.mrb[0].mxu0
    %v455 = vadd.f32 %v376, %v454
    %v456 = vpop.f32.mrb[0].mxu0
    %457 = vmatprep.mubr.f32.mxu0 0.0
    %458 = vmatmul.mubr.f32.gmra.mrb[0].mxu0 %v122
    %v459 = vpop.f32.mrb[0].mxu0
    %v460 = vadd.f32 %v376, %v459
    %v461 = vpop.f32.mrb[0].mxu0
    %462 = vdwg.mxu0
    %463 = vst [vmem:[%s12] sm:$0xff] %v445
    %464 = vst [vmem:[%s12 + $0x8] sm:$0xff] %v450
    %465 = vst [vmem:[%s12 + $0x10] sm:$0xff] %v455
    %466 = vst [vmem:[%s12 + $0x18] sm:$0xff] %v460
    // Predicated region
    $region46: #{transformer_forward.18} parent=1 // pred_check
      _
    $region47: #{transformer_forward.18} parent=1 // pred_check_branch
      %468 = sbr.rel (0) target = $region49
    $region48: #{transformer_forward.18} parent=1 // pred_region
      _
    $region49: #{transformer_forward.18} parent=1 // pred_fallthru
      _
    // Predicated region
    $region50: #{transformer_forward.18} parent=1 // pred_check
      _
    $region51: #{transformer_forward.18} parent=1 // pred_check_branch
      %470 = sbr.rel (0) target = $region53
    $region52: #{transformer_forward.18} parent=1 // pred_region
      _
    $region53: #{transformer_forward.18} parent=1 // pred_fallthru
      _
    // Predicated region
    $region54: #{transformer_forward.18} parent=1 // pred_check
      _
    $region55: #{transformer_forward.18} parent=1 // pred_check_branch
      %472 = sbr.rel (0) target = $region57
    $region56: #{transformer_forward.18} parent=1 // pred_region
      _
    $region57: #{transformer_forward.18} parent=1 // pred_fallthru
      _
    // Predicated region
    $region58: #{transformer_forward.18} parent=1 // pred_check
      _
    $region59: #{transformer_forward.18} parent=1 // pred_check_branch
      %474 = sbr.rel (0) target = $region61
    $region60: #{transformer_forward.18} parent=1 // pred_region
      _
    $region61: #{transformer_forward.18} parent=1 // pred_fallthru
      _
    // Predicated region
    $region62: #{transformer_forward.18} parent=1 // pred_check
      _
    $region63: #{transformer_forward.18} parent=1 // pred_check_branch
      %476 = sbr.rel (0) target = $region65
    $region64: #{transformer_forward.18} parent=1 // pred_region
      _
    $region65: #{transformer_forward.18} parent=1 // pred_fallthru
      _
    // Predicated region
    $region66: #{transformer_forward.18} parent=1 // pred_check
      _
    $region67: #{transformer_forward.18} parent=1 // pred_check_branch
      %478 = sbr.rel (0) target = $region69
    $region68: #{transformer_forward.18} parent=1 // pred_region
      _
    $region69: #{transformer_forward.18} parent=1 // pred_fallthru
      _
    %479 = vsyncpa [#allocation3], 1

// kernel: transformer_forward.27
$region0: #{transformer_forward.27}
  #allocation0 [shape = 'u32[]', space=smem, size = 0x4, offset = 0x4, fixed_abs, tag = 'smem constant byte address 0x4 - core index']
  #allocation1 [shape = 'u32[144,128]{1,0:T(1,128)}', space=vmem, size = 0x12000, scoped, tag = 'internal scratch']
  %s0 = inlined_call_operand.vmem [shape: f32[32,128], index: 0, kind: input, shape index: {}]
  %s1 = inlined_call_operand.vmem [shape: f32[32,128], index: 1, kind: input, shape index: {}]
  %s2 = inlined_call_operand.vmem [shape: f32[128,128], index: 2, kind: input, shape index: {}]
  %s3 = inlined_call_operand.vmem [shape: f32[1,128], index: 3, kind: input, shape index: {}]
  %s4 = inlined_call_operand.vmem [shape: f32[128,128], index: 4, kind: input, shape index: {}]
  %s5 = inlined_call_operand.vmem [shape: f32[1,128], index: 5, kind: input, shape index: {}]
  %s6 = inlined_call_operand.vmem [shape: f32[32,128], index: 6, kind: output, shape index: {0}]
  %s7 = inlined_call_operand.vmem [shape: f32[32,128], index: 7, kind: output, shape index: {1}]
  %8 = xla_tuple %s6, %s7
  %s9 = sld [smem:[#allocation0]]
  $region42: #{transformer_forward.27} parent=0
    _
  %s11 = ssub.s32 1, %s9
  %s12 = scalar_select 0, %s11, %s9
  // Predicated region
  $region2: #{transformer_forward.27} parent=0 // pred_check
    _
  $region3: #{transformer_forward.27} parent=0 // pred_check_branch
    %14 = sbr.rel (0) target = $region5
  $region4: #{transformer_forward.27} parent=0 // pred_region
    _
  $region5: #{transformer_forward.27} parent=0 // pred_fallthru
    _
  // Predicated region
  $region6: #{transformer_forward.27} parent=0 // pred_check
    _
  $region7: #{transformer_forward.27} parent=0 // pred_check_branch
    %16 = sbr.rel (0) target = $region9
  $region8: #{transformer_forward.27} parent=0 // pred_region
    _
  $region9: #{transformer_forward.27} parent=0 // pred_fallthru
    _
  // Predicated region
  $region10: #{transformer_forward.27} parent=0 // pred_check
    _
  $region11: #{transformer_forward.27} parent=0 // pred_check_branch
    %18 = sbr.rel (0) target = $region13
  $region12: #{transformer_forward.27} parent=0 // pred_region
    _
  $region13: #{transformer_forward.27} parent=0 // pred_fallthru
    _
  // Predicated region
  $region14: #{transformer_forward.27} parent=0 // pred_check
    _
  $region15: #{transformer_forward.27} parent=0 // pred_check_branch
    %20 = sbr.rel (0) target = $region17
  $region16: #{transformer_forward.27} parent=0 // pred_region
    _
  $region17: #{transformer_forward.27} parent=0 // pred_fallthru
    _
  // Predicated region
  $region18: #{transformer_forward.27} parent=0 // pred_check
    _
  $region19: #{transformer_forward.27} parent=0 // pred_check_branch
    %22 = sbr.rel (0) target = $region21
  $region20: #{transformer_forward.27} parent=0 // pred_region
    _
  $region21: #{transformer_forward.27} parent=0 // pred_fallthru
    _
  // Predicated region
  $region22: #{transformer_forward.27} parent=0 // pred_check
    _
  $region23: #{transformer_forward.27} parent=0 // pred_check_branch
    %24 = sbr.rel (0) target = $region25
  $region24: #{transformer_forward.27} parent=0 // pred_region
    _
  $region25: #{transformer_forward.27} parent=0 // pred_fallthru
    _
  %v25 = vld [vmem:[%s0] sm:$0xff]
  %v26 = vld [vmem:[%s0 + $0x8] sm:$0xff]
  %v27 = vld [vmem:[%s0 + $0x10] sm:$0xff]
  %v28 = vld [vmem:[%s0 + $0x18] sm:$0xff]
  %v29 = vld [vmem:[%s1] sm:$0xff]
  %v30 = vld [vmem:[%s1 + $0x8] sm:$0xff]
  %v31 = vld [vmem:[%s1 + $0x10] sm:$0xff]
  %v32 = vld [vmem:[%s1 + $0x18] sm:$0xff]
  %v33 = vadd.f32 %v25, %v29
  %v34 = vadd.f32 %v26, %v30
  %v35 = vadd.f32 %v27, %v31
  %v36 = vadd.f32 %v28, %v32
  %v37 = vld [vmem:[%s2] sm:$0xff]
  %v38 = vld [vmem:[%s2 + $0x8] sm:$0xff]
  %v39 = vld [vmem:[%s2 + $0x10] sm:$0xff]
  %v40 = vld [vmem:[%s2 + $0x18] sm:$0xff]
  %v41 = vld [vmem:[%s2 + $0x20] sm:$0xff]
  %v42 = vld [vmem:[%s2 + $0x28] sm:$0xff]
  %v43 = vld [vmem:[%s2 + $0x30] sm:$0xff]
  %v44 = vld [vmem:[%s2 + $0x38] sm:$0xff]
  %v45 = vld [vmem:[%s2 + $0x40] sm:$0xff]
  %v46 = vld [vmem:[%s2 + $0x48] sm:$0xff]
  %v47 = vld [vmem:[%s2 + $0x50] sm:$0xff]
  %v48 = vld [vmem:[%s2 + $0x58] sm:$0xff]
  %v49 = vld [vmem:[%s2 + $0x60] sm:$0xff]
  %v50 = vld [vmem:[%s2 + $0x68] sm:$0xff]
  %v51 = vld [vmem:[%s2 + $0x70] sm:$0xff]
  %v52 = vld [vmem:[%s2 + $0x78] sm:$0xff]
  %v53 = vld [vmem:[%s3] sm:$0x1]
  %v55 = vlaneseq
  %v56 = vshrl.u32 %v55, 7
  %v57 = vsub.s32 0, %v56
  %v58 = vrot.slane %v53, %v57
  %60 = vmatprep.subr.mxu0 0.0
  %61 = vmatpush1.msra.mxu0 %v37
  %62 = vmatprep.subr.mxu0 0.0
  %63 = vmatpush1.msra.mxu0 %v38
  %64 = vmatprep.subr.mxu0 0.0
  %65 = vmatpush1.msra.mxu0 %v39
  %66 = vmatprep.subr.mxu0 0.0
  %67 = vmatpush1.msra.mxu0 %v40
  %68 = vmatprep.subr.mxu0 0.0
  %69 = vmatpush1.msra.mxu0 %v41
  %70 = vmatprep.subr.mxu0 0.0
  %71 = vmatpush1.msra.mxu0 %v42
  %72 = vmatprep.subr.mxu0 0.0
  %73 = vmatpush1.msra.mxu0 %v43
  %74 = vmatprep.subr.mxu0 0.0
  %75 = vmatpush1.msra.mxu0 %v44
  %76 = vmatprep.subr.mxu0 0.0
  %77 = vmatpush1.msra.mxu0 %v45
  %78 = vmatprep.subr.mxu0 0.0
  %79 = vmatpush1.msra.mxu0 %v46
  %80 = vmatprep.subr.mxu0 0.0
  %81 = vmatpush1.msra.mxu0 %v47
  %82 = vmatprep.subr.mxu0 0.0
  %83 = vmatpush1.msra.mxu0 %v48
  %84 = vmatprep.subr.mxu0 0.0
  %85 = vmatpush1.msra.mxu0 %v49
  %86 = vmatprep.subr.mxu0 0.0
  %87 = vmatpush1.msra.mxu0 %v50
  %88 = vmatprep.subr.mxu0 0.0
  %89 = vmatpush1.msra.mxu0 %v51
  %90 = vmatprep.subr.mxu0 0.0
  %91 = vmatpush1.msra.mxu0 %v52
  %92 = vmatprep.subr.mxu0 0.0
  %93 = vmatpush1.msra.mxu0 0.0
  %94 = vmatprep.subr.mxu0 0.0
  %95 = vmatpush1.msra.mxu0 0.0
  %96 = vmatprep.subr.mxu0 0.0
  %97 = vmatpush1.msra.mxu0 0.0
  %98 = vmatprep.subr.mxu0 0.0
  %99 = vmatpush1.msra.mxu0 0.0
  %100 = vmatprep.subr.mxu0 0.0
  %101 = vmatpush1.msra.mxu0 0.0
  %102 = vmatprep.subr.mxu0 0.0
  %103 = vmatpush1.msra.mxu0 0.0
  %104 = vmatprep.subr.mxu0 0.0
  %105 = vmatpush1.msra.mxu0 0.0
  %106 = vmatprep.subr.mxu0 0.0
  %107 = vmatpush1.msra.mxu0 0.0
  %108 = vmatprep.subr.mxu0 0.0
  %109 = vmatpush1.msra.mxu0 0.0
  %110 = vmatprep.subr.mxu0 0.0
  %111 = vmatpush1.msra.mxu0 0.0
  %112 = vmatprep.subr.mxu0 0.0
  %113 = vmatpush1.msra.mxu0 0.0
  %114 = vmatprep.subr.mxu0 0.0
  %115 = vmatpush1.msra.mxu0 0.0
  %116 = vmatprep.subr.mxu0 0.0
  %117 = vmatpush1.msra.mxu0 0.0
  %118 = vmatprep.subr.mxu0 0.0
  %119 = vmatpush1.msra.mxu0 0.0
  %120 = vmatprep.subr.mxu0 0.0
  %121 = vmatpush1.msra.mxu0 0.0
  %122 = vmatprep.subr.mxu0 0.0
  %123 = vmatpush1.msra.mxu0 0.0
  %124 = vmatprep.mubr.f32.mxu0 0.0
  %125 = vmatmul.mubr.f32.gmra.mrb[0].mxu0 %v33
  %v126 = vpop.f32.mrb[0].mxu0
  %v127 = vadd.f32 %v58, %v126
  %v128 = vpop.f32.mrb[0].mxu0
  %129 = vmatprep.mubr.f32.mxu0 0.0
  %130 = vmatmul.mubr.f32.gmra.mrb[0].mxu0 %v34
  %v131 = vpop.f32.mrb[0].mxu0
  %v132 = vadd.f32 %v58, %v131
  %v133 = vpop.f32.mrb[0].mxu0
  %134 = vmatprep.mubr.f32.mxu0 0.0
  %135 = vmatmul.mubr.f32.gmra.mrb[0].mxu0 %v35
  %v136 = vpop.f32.mrb[0].mxu0
  %v137 = vadd.f32 %v58, %v136
  %v138 = vpop.f32.mrb[0].mxu0
  %139 = vmatprep.mubr.f32.mxu0 0.0
  %140 = vmatmul.mubr.f32.gmra.mrb[0].mxu0 %v36
  %v141 = vpop.f32.mrb[0].mxu0
  %v142 = vadd.f32 %v58, %v141
  %v143 = vpop.f32.mrb[0].mxu0
  %144 = vdwg.mxu0
  %145 = vst [vmem:[%s6] sm:$0xff] %v127
  %146 = vst [vmem:[%s6 + $0x8] sm:$0xff] %v132
  %147 = vst [vmem:[%s6 + $0x10] sm:$0xff] %v137
  %148 = vst [vmem:[%s6 + $0x18] sm:$0xff] %v142
  %v149 = vld [vmem:[%s4] sm:$0xff]
  %v150 = vld [vmem:[%s4 + $0x8] sm:$0xff]
  %v151 = vld [vmem:[%s4 + $0x10] sm:$0xff]
  %v152 = vld [vmem:[%s4 + $0x18] sm:$0xff]
  %v153 = vld [vmem:[%s4 + $0x20] sm:$0xff]
  %v154 = vld [vmem:[%s4 + $0x28] sm:$0xff]
  %v155 = vld [vmem:[%s4 + $0x30] sm:$0xff]
  %v156 = vld [vmem:[%s4 + $0x38] sm:$0xff]
  %v157 = vld [vmem:[%s4 + $0x40] sm:$0xff]
  %v158 = vld [vmem:[%s4 + $0x48] sm:$0xff]
  %v159 = vld [vmem:[%s4 + $0x50] sm:$0xff]
  %v160 = vld [vmem:[%s4 + $0x58] sm:$0xff]
  %v161 = vld [vmem:[%s4 + $0x60] sm:$0xff]
  %v162 = vld [vmem:[%s4 + $0x68] sm:$0xff]
  %v163 = vld [vmem:[%s4 + $0x70] sm:$0xff]
  %v164 = vld [vmem:[%s4 + $0x78] sm:$0xff]
  %v165 = vld [vmem:[%s5] sm:$0x1]
  %v167 = vlaneseq
  %v168 = vshrl.u32 %v167, 7
  %v169 = vsub.s32 0, %v168
  %v170 = vrot.slane %v165, %v169
  %172 = vmatprep.subr.mxu0 0.0
  %173 = vmatpush1.msra.mxu0 %v149
  %174 = vmatprep.subr.mxu0 0.0
  %175 = vmatpush1.msra.mxu0 %v150
  %176 = vmatprep.subr.mxu0 0.0
  %177 = vmatpush1.msra.mxu0 %v151
  %178 = vmatprep.subr.mxu0 0.0
  %179 = vmatpush1.msra.mxu0 %v152
  %180 = vmatprep.subr.mxu0 0.0
  %181 = vmatpush1.msra.mxu0 %v153
  %182 = vmatprep.subr.mxu0 0.0
  %183 = vmatpush1.msra.mxu0 %v154
  %184 = vmatprep.subr.mxu0 0.0
  %185 = vmatpush1.msra.mxu0 %v155
  %186 = vmatprep.subr.mxu0 0.0
  %187 = vmatpush1.msra.mxu0 %v156
  %188 = vmatprep.subr.mxu0 0.0
  %189 = vmatpush1.msra.mxu0 %v157
  %190 = vmatprep.subr.mxu0 0.0
  %191 = vmatpush1.msra.mxu0 %v158
  %192 = vmatprep.subr.mxu0 0.0
  %193 = vmatpush1.msra.mxu0 %v159
  %194 = vmatprep.subr.mxu0 0.0
  %195 = vmatpush1.msra.mxu0 %v160
  %196 = vmatprep.subr.mxu0 0.0
  %197 = vmatpush1.msra.mxu0 %v161
  %198 = vmatprep.subr.mxu0 0.0
  %199 = vmatpush1.msra.mxu0 %v162
  %200 = vmatprep.subr.mxu0 0.0
  %201 = vmatpush1.msra.mxu0 %v163
  %202 = vmatprep.subr.mxu0 0.0
  %203 = vmatpush1.msra.mxu0 %v164
  %204 = vmatprep.subr.mxu0 0.0
  %205 = vmatpush1.msra.mxu0 0.0
  %206 = vmatprep.subr.mxu0 0.0
  %207 = vmatpush1.msra.mxu0 0.0
  %208 = vmatprep.subr.mxu0 0.0
  %209 = vmatpush1.msra.mxu0 0.0
  %210 = vmatprep.subr.mxu0 0.0
  %211 = vmatpush1.msra.mxu0 0.0
  %212 = vmatprep.subr.mxu0 0.0
  %213 = vmatpush1.msra.mxu0 0.0
  %214 = vmatprep.subr.mxu0 0.0
  %215 = vmatpush1.msra.mxu0 0.0
  %216 = vmatprep.subr.mxu0 0.0
  %217 = vmatpush1.msra.mxu0 0.0
  %218 = vmatprep.subr.mxu0 0.0
  %219 = vmatpush1.msra.mxu0 0.0
  %220 = vmatprep.subr.mxu0 0.0
  %221 = vmatpush1.msra.mxu0 0.0
  %222 = vmatprep.subr.mxu0 0.0
  %223 = vmatpush1.msra.mxu0 0.0
  %224 = vmatprep.subr.mxu0 0.0
  %225 = vmatpush1.msra.mxu0 0.0
  %226 = vmatprep.subr.mxu0 0.0
  %227 = vmatpush1.msra.mxu0 0.0
  %228 = vmatprep.subr.mxu0 0.0
  %229 = vmatpush1.msra.mxu0 0.0
  %230 = vmatprep.subr.mxu0 0.0
  %231 = vmatpush1.msra.mxu0 0.0
  %232 = vmatprep.subr.mxu0 0.0
  %233 = vmatpush1.msra.mxu0 0.0
  %234 = vmatprep.subr.mxu0 0.0
  %235 = vmatpush1.msra.mxu0 0.0
  %236 = vmatprep.mubr.f32.mxu0 0.0
  %237 = vmatmul.mubr.f32.gmra.mrb[0].mxu0 %v25
  %v238 = vpop.f32.mrb[0].mxu0
  %v239 = vadd.f32 %v170, %v238
  %v240 = vpop.f32.mrb[0].mxu0
  %241 = vmatprep.mubr.f32.mxu0 0.0
  %242 = vmatmul.mubr.f32.gmra.mrb[0].mxu0 %v26
  %v243 = vpop.f32.mrb[0].mxu0
  %v244 = vadd.f32 %v170, %v243
  %v245 = vpop.f32.mrb[0].mxu0
  %246 = vmatprep.mubr.f32.mxu0 0.0
  %247 = vmatmul.mubr.f32.gmra.mrb[0].mxu0 %v27
  %v248 = vpop.f32.mrb[0].mxu0
  %v249 = vadd.f32 %v170, %v248
  %v250 = vpop.f32.mrb[0].mxu0
  %251 = vmatprep.mubr.f32.mxu0 0.0
  %252 = vmatmul.mubr.f32.gmra.mrb[0].mxu0 %v28
  %v253 = vpop.f32.mrb[0].mxu0
  %v254 = vadd.f32 %v170, %v253
  %v255 = vpop.f32.mrb[0].mxu0
  %256 = vdwg.mxu0
  %257 = vst [vmem:[%s7] sm:$0xff] %v239
  %258 = vst [vmem:[%s7 + $0x8] sm:$0xff] %v244
  %259 = vst [vmem:[%s7 + $0x10] sm:$0xff] %v249
  %260 = vst [vmem:[%s7 + $0x18] sm:$0xff] %v254
  // Predicated region
  $region26: #{transformer_forward.27} parent=0 // pred_check
    _
  $region27: #{transformer_forward.27} parent=0 // pred_check_branch
    %262 = sbr.rel (0) target = $region29
  $region28: #{transformer_forward.27} parent=0 // pred_region
    _
  $region29: #{transformer_forward.27} parent=0 // pred_fallthru
    _
  // Predicated region
  $region30: #{transformer_forward.27} parent=0 // pred_check
    _
  $region31: #{transformer_forward.27} parent=0 // pred_check_branch
    %264 = sbr.rel (0) target = $region33
  $region32: #{transformer_forward.27} parent=0 // pred_region
    _
  $region33: #{transformer_forward.27} parent=0 // pred_fallthru
    _
  // Predicated region
  $region34: #{transformer_forward.27} parent=0 // pred_check
    _
  $region35: #{transformer_forward.27} parent=0 // pred_check_branch
    %266 = sbr.rel (0) target = $region37
  $region36: #{transformer_forward.27} parent=0 // pred_region
    _
  $region37: #{transformer_forward.27} parent=0 // pred_fallthru
    _
  // Predicated region
  $region38: #{transformer_forward.27} parent=0 // pred_check
    _
  $region39: #{transformer_forward.27} parent=0 // pred_check_branch
    %268 = sbr.rel (0) target = $region41
  $region40: #{transformer_forward.27} parent=0 // pred_region
    _
  $region41: #{transformer_forward.27} parent=0 // pred_fallthru
    _

// kernel: transformer_forward.24
$region0: #{transformer_forward.24}
  #allocation0 [shape = 'u32[]', space=smem, size = 0x4, offset = 0x4, fixed_abs, tag = 'smem constant byte address 0x4 - core index']
  #allocation1 [shape = 'u32[144,128]{1,0:T(1,128)}', space=vmem, size = 0x12000, scoped, tag = 'internal scratch']
  %s0 = inlined_call_operand.vmem [shape: f32[16,128], index: 0, kind: input, shape index: {}]
  %s1 = inlined_call_operand.vmem [shape: f32[16,128], index: 1, kind: input, shape index: {}]
  %s2 = inlined_call_operand.vmem [shape: f32[1,128], index: 2, kind: input, shape index: {}]
  %s3 = inlined_call_operand.vmem [shape: f32[1,128], index: 3, kind: input, shape index: {}]
  %s4 = inlined_call_operand.vmem [shape: f32[128,128], index: 4, kind: input, shape index: {}]
  %s5 = inlined_call_operand.vmem [shape: f32[1,128], index: 5, kind: input, shape index: {}]
  %s6 = inlined_call_operand.vmem [shape: f32[128,128], index: 6, kind: input, shape index: {}]
  %s7 = inlined_call_operand.vmem [shape: f32[1,128], index: 7, kind: input, shape index: {}]
  %s8 = inlined_call_operand.vmem [shape: f32[128,128], index: 8, kind: input, shape index: {}]
  %s9 = inlined_call_operand.vmem [shape: f32[1,128], index: 9, kind: input, shape index: {}]
  %s10 = inlined_call_operand.vmem [shape: f32[16,128], index: 10, kind: output, shape index: {0}]
  %s11 = inlined_call_operand.vmem [shape: f32[16,128], index: 11, kind: output, shape index: {1}]
  %s12 = inlined_call_operand.vmem [shape: f32[16,128], index: 12, kind: output, shape index: {2}]
  %13 = xla_tuple %s10, %s11, %s12
  %s14 = sld [smem:[#allocation0]]
  $region66: #{transformer_forward.24} parent=0
    _
  %s16 = ssub.s32 1, %s14
  %s17 = scalar_select 0, %s16, %s14
  // Predicated region
  $region2: #{transformer_forward.24} parent=0 // pred_check
    _
  $region3: #{transformer_forward.24} parent=0 // pred_check_branch
    %19 = sbr.rel (0) target = $region5
  $region4: #{transformer_forward.24} parent=0 // pred_region
    _
  $region5: #{transformer_forward.24} parent=0 // pred_fallthru
    _
  // Predicated region
  $region6: #{transformer_forward.24} parent=0 // pred_check
    _
  $region7: #{transformer_forward.24} parent=0 // pred_check_branch
    %21 = sbr.rel (0) target = $region9
  $region8: #{transformer_forward.24} parent=0 // pred_region
    _
  $region9: #{transformer_forward.24} parent=0 // pred_fallthru
    _
  // Predicated region
  $region10: #{transformer_forward.24} parent=0 // pred_check
    _
  $region11: #{transformer_forward.24} parent=0 // pred_check_branch
    %23 = sbr.rel (0) target = $region13
  $region12: #{transformer_forward.24} parent=0 // pred_region
    _
  $region13: #{transformer_forward.24} parent=0 // pred_fallthru
    _
  // Predicated region
  $region14: #{transformer_forward.24} parent=0 // pred_check
    _
  $region15: #{transformer_forward.24} parent=0 // pred_check_branch
    %25 = sbr.rel (0) target = $region17
  $region16: #{transformer_forward.24} parent=0 // pred_region
    _
  $region17: #{transformer_forward.24} parent=0 // pred_fallthru
    _
  // Predicated region
  $region18: #{transformer_forward.24} parent=0 // pred_check
    _
  $region19: #{transformer_forward.24} parent=0 // pred_check_branch
    %27 = sbr.rel (0) target = $region21
  $region20: #{transformer_forward.24} parent=0 // pred_region
    _
  $region21: #{transformer_forward.24} parent=0 // pred_fallthru
    _
  // Predicated region
  $region22: #{transformer_forward.24} parent=0 // pred_check
    _
  $region23: #{transformer_forward.24} parent=0 // pred_check_branch
    %29 = sbr.rel (0) target = $region25
  $region24: #{transformer_forward.24} parent=0 // pred_region
    _
  $region25: #{transformer_forward.24} parent=0 // pred_fallthru
    _
  // Predicated region
  $region26: #{transformer_forward.24} parent=0 // pred_check
    _
  $region27: #{transformer_forward.24} parent=0 // pred_check_branch
    %31 = sbr.rel (0) target = $region29
  $region28: #{transformer_forward.24} parent=0 // pred_region
    _
  $region29: #{transformer_forward.24} parent=0 // pred_fallthru
    _
  // Predicated region
  $region30: #{transformer_forward.24} parent=0 // pred_check
    _
  $region31: #{transformer_forward.24} parent=0 // pred_check_branch
    %33 = sbr.rel (0) target = $region33
  $region32: #{transformer_forward.24} parent=0 // pred_region
    _
  $region33: #{transformer_forward.24} parent=0 // pred_fallthru
    _
  // Predicated region
  $region34: #{transformer_forward.24} parent=0 // pred_check
    _
  $region35: #{transformer_forward.24} parent=0 // pred_check_branch
    %35 = sbr.rel (0) target = $region37
  $region36: #{transformer_forward.24} parent=0 // pred_region
    _
  $region37: #{transformer_forward.24} parent=0 // pred_fallthru
    _
  // Predicated region
  $region38: #{transformer_forward.24} parent=0 // pred_check
    _
  $region39: #{transformer_forward.24} parent=0 // pred_check_branch
    %37 = sbr.rel (0) target = $region41
  $region40: #{transformer_forward.24} parent=0 // pred_region
    _
  $region41: #{transformer_forward.24} parent=0 // pred_fallthru
    _
  %v38 = vld [vmem:[%s0] sm:$0xff]
  %v39 = vld [vmem:[%s0 + $0x8] sm:$0xff]
  %v40 = vld [vmem:[%s1] sm:$0xff]
  %v41 = vld [vmem:[%s1 + $0x8] sm:$0xff]
  %v42 = vadd.f32 %v38, %v40
  %v43 = vadd.f32 %v39, %v41
  %v44 = vld [vmem:[%s4] sm:$0xff]
  %v45 = vld [vmem:[%s4 + $0x8] sm:$0xff]
  %v46 = vld [vmem:[%s4 + $0x10] sm:$0xff]
  %v47 = vld [vmem:[%s4 + $0x18] sm:$0xff]
  %v48 = vld [vmem:[%s4 + $0x20] sm:$0xff]
  %v49 = vld [vmem:[%s4 + $0x28] sm:$0xff]
  %v50 = vld [vmem:[%s4 + $0x30] sm:$0xff]
  %v51 = vld [vmem:[%s4 + $0x38] sm:$0xff]
  %v52 = vld [vmem:[%s4 + $0x40] sm:$0xff]
  %v53 = vld [vmem:[%s4 + $0x48] sm:$0xff]
  %v54 = vld [vmem:[%s4 + $0x50] sm:$0xff]
  %v55 = vld [vmem:[%s4 + $0x58] sm:$0xff]
  %v56 = vld [vmem:[%s4 + $0x60] sm:$0xff]
  %v57 = vld [vmem:[%s4 + $0x68] sm:$0xff]
  %v58 = vld [vmem:[%s4 + $0x70] sm:$0xff]
  %v59 = vld [vmem:[%s4 + $0x78] sm:$0xff]
  %v60 = vld [vmem:[%s5] sm:$0x1]
  %v62 = vlaneseq
  %v63 = vshrl.u32 %v62, 7
  %v64 = vsub.s32 0, %v63
  %v65 = vrot.slane %v60, %v64
  %67 = vmatprep.subr.mxu0 0.0
  %68 = vmatpush1.msra.mxu0 %v44
  %69 = vmatprep.subr.mxu0 0.0
  %70 = vmatpush1.msra.mxu0 %v45
  %71 = vmatprep.subr.mxu0 0.0
  %72 = vmatpush1.msra.mxu0 %v46
  %73 = vmatprep.subr.mxu0 0.0
  %74 = vmatpush1.msra.mxu0 %v47
  %75 = vmatprep.subr.mxu0 0.0
  %76 = vmatpush1.msra.mxu0 %v48
  %77 = vmatprep.subr.mxu0 0.0
  %78 = vmatpush1.msra.mxu0 %v49
  %79 = vmatprep.subr.mxu0 0.0
  %80 = vmatpush1.msra.mxu0 %v50
  %81 = vmatprep.subr.mxu0 0.0
  %82 = vmatpush1.msra.mxu0 %v51
  %83 = vmatprep.subr.mxu0 0.0
  %84 = vmatpush1.msra.mxu0 %v52
  %85 = vmatprep.subr.mxu0 0.0
  %86 = vmatpush1.msra.mxu0 %v53
  %87 = vmatprep.subr.mxu0 0.0
  %88 = vmatpush1.msra.mxu0 %v54
  %89 = vmatprep.subr.mxu0 0.0
  %90 = vmatpush1.msra.mxu0 %v55
  %91 = vmatprep.subr.mxu0 0.0
  %92 = vmatpush1.msra.mxu0 %v56
  %93 = vmatprep.subr.mxu0 0.0
  %94 = vmatpush1.msra.mxu0 %v57
  %95 = vmatprep.subr.mxu0 0.0
  %96 = vmatpush1.msra.mxu0 %v58
  %97 = vmatprep.subr.mxu0 0.0
  %98 = vmatpush1.msra.mxu0 %v59
  %99 = vmatprep.subr.mxu0 0.0
  %100 = vmatpush1.msra.mxu0 0.0
  %101 = vmatprep.subr.mxu0 0.0
  %102 = vmatpush1.msra.mxu0 0.0
  %103 = vmatprep.subr.mxu0 0.0
  %104 = vmatpush1.msra.mxu0 0.0
  %105 = vmatprep.subr.mxu0 0.0
  %106 = vmatpush1.msra.mxu0 0.0
  %107 = vmatprep.subr.mxu0 0.0
  %108 = vmatpush1.msra.mxu0 0.0
  %109 = vmatprep.subr.mxu0 0.0
  %110 = vmatpush1.msra.mxu0 0.0
  %111 = vmatprep.subr.mxu0 0.0
  %112 = vmatpush1.msra.mxu0 0.0
  %113 = vmatprep.subr.mxu0 0.0
  %114 = vmatpush1.msra.mxu0 0.0
  %115 = vmatprep.subr.mxu0 0.0
  %116 = vmatpush1.msra.mxu0 0.0
  %117 = vmatprep.subr.mxu0 0.0
  %118 = vmatpush1.msra.mxu0 0.0
  %119 = vmatprep.subr.mxu0 0.0
  %120 = vmatpush1.msra.mxu0 0.0
  %121 = vmatprep.subr.mxu0 0.0
  %122 = vmatpush1.msra.mxu0 0.0
  %123 = vmatprep.subr.mxu0 0.0
  %124 = vmatpush1.msra.mxu0 0.0
  %125 = vmatprep.subr.mxu0 0.0
  %126 = vmatpush1.msra.mxu0 0.0
  %127 = vmatprep.subr.mxu0 0.0
  %128 = vmatpush1.msra.mxu0 0.0
  %129 = vmatprep.subr.mxu0 0.0
  %130 = vmatpush1.msra.mxu0 0.0
  %131 = vmatprep.mubr.f32.mxu0 0.0
  %132 = vmatmul.mubr.f32.gmra.mrb[0].mxu0 %v42
  %v133 = vpop.f32.mrb[0].mxu0
  %v134 = vadd.f32 %v65, %v133
  %v135 = vpop.f32.mrb[0].mxu0
  %136 = vmatprep.mubr.f32.mxu0 0.0
  %137 = vmatmul.mubr.f32.gmra.mrb[0].mxu0 %v43
  %v138 = vpop.f32.mrb[0].mxu0
  %v139 = vadd.f32 %v65, %v138
  %v140 = vpop.f32.mrb[0].mxu0
  %141 = vdwg.mxu0
  %142 = vst [vmem:[%s10] sm:$0xff] %v134
  %143 = vst [vmem:[%s10 + $0x8] sm:$0xff] %v139
  %v144 = vld [vmem:[%s6] sm:$0xff]
  %v145 = vld [vmem:[%s6 + $0x8] sm:$0xff]
  %v146 = vld [vmem:[%s6 + $0x10] sm:$0xff]
  %v147 = vld [vmem:[%s6 + $0x18] sm:$0xff]
  %v148 = vld [vmem:[%s6 + $0x20] sm:$0xff]
  %v149 = vld [vmem:[%s6 + $0x28] sm:$0xff]
  %v150 = vld [vmem:[%s6 + $0x30] sm:$0xff]
  %v151 = vld [vmem:[%s6 + $0x38] sm:$0xff]
  %v152 = vld [vmem:[%s6 + $0x40] sm:$0xff]
  %v153 = vld [vmem:[%s6 + $0x48] sm:$0xff]
  %v154 = vld [vmem:[%s6 + $0x50] sm:$0xff]
  %v155 = vld [vmem:[%s6 + $0x58] sm:$0xff]
  %v156 = vld [vmem:[%s6 + $0x60] sm:$0xff]
  %v157 = vld [vmem:[%s6 + $0x68] sm:$0xff]
  %v158 = vld [vmem:[%s6 + $0x70] sm:$0xff]
  %v159 = vld [vmem:[%s6 + $0x78] sm:$0xff]
  %v160 = vld [vmem:[%s7] sm:$0x1]
  %v162 = vlaneseq
  %v163 = vshrl.u32 %v162, 7
  %v164 = vsub.s32 0, %v163
  %v165 = vrot.slane %v160, %v164
  %167 = vmatprep.subr.mxu0 0.0
  %168 = vmatpush1.msra.mxu0 %v144
  %169 = vmatprep.subr.mxu0 0.0
  %170 = vmatpush1.msra.mxu0 %v145
  %171 = vmatprep.subr.mxu0 0.0
  %172 = vmatpush1.msra.mxu0 %v146
  %173 = vmatprep.subr.mxu0 0.0
  %174 = vmatpush1.msra.mxu0 %v147
  %175 = vmatprep.subr.mxu0 0.0
  %176 = vmatpush1.msra.mxu0 %v148
  %177 = vmatprep.subr.mxu0 0.0
  %178 = vmatpush1.msra.mxu0 %v149
  %179 = vmatprep.subr.mxu0 0.0
  %180 = vmatpush1.msra.mxu0 %v150
  %181 = vmatprep.subr.mxu0 0.0
  %182 = vmatpush1.msra.mxu0 %v151
  %183 = vmatprep.subr.mxu0 0.0
  %184 = vmatpush1.msra.mxu0 %v152
  %185 = vmatprep.subr.mxu0 0.0
  %186 = vmatpush1.msra.mxu0 %v153
  %187 = vmatprep.subr.mxu0 0.0
  %188 = vmatpush1.msra.mxu0 %v154
  %189 = vmatprep.subr.mxu0 0.0
  %190 = vmatpush1.msra.mxu0 %v155
  %191 = vmatprep.subr.mxu0 0.0
  %192 = vmatpush1.msra.mxu0 %v156
  %193 = vmatprep.subr.mxu0 0.0
  %194 = vmatpush1.msra.mxu0 %v157
  %195 = vmatprep.subr.mxu0 0.0
  %196 = vmatpush1.msra.mxu0 %v158
  %197 = vmatprep.subr.mxu0 0.0
  %198 = vmatpush1.msra.mxu0 %v159
  %199 = vmatprep.subr.mxu0 0.0
  %200 = vmatpush1.msra.mxu0 0.0
  %201 = vmatprep.subr.mxu0 0.0
  %202 = vmatpush1.msra.mxu0 0.0
  %203 = vmatprep.subr.mxu0 0.0
  %204 = vmatpush1.msra.mxu0 0.0
  %205 = vmatprep.subr.mxu0 0.0
  %206 = vmatpush1.msra.mxu0 0.0
  %207 = vmatprep.subr.mxu0 0.0
  %208 = vmatpush1.msra.mxu0 0.0
  %209 = vmatprep.subr.mxu0 0.0
  %210 = vmatpush1.msra.mxu0 0.0
  %211 = vmatprep.subr.mxu0 0.0
  %212 = vmatpush1.msra.mxu0 0.0
  %213 = vmatprep.subr.mxu0 0.0
  %214 = vmatpush1.msra.mxu0 0.0
  %215 = vmatprep.subr.mxu0 0.0
  %216 = vmatpush1.msra.mxu0 0.0
  %217 = vmatprep.subr.mxu0 0.0
  %218 = vmatpush1.msra.mxu0 0.0
  %219 = vmatprep.subr.mxu0 0.0
  %220 = vmatpush1.msra.mxu0 0.0
  %221 = vmatprep.subr.mxu0 0.0
  %222 = vmatpush1.msra.mxu0 0.0
  %223 = vmatprep.subr.mxu0 0.0
  %224 = vmatpush1.msra.mxu0 0.0
  %225 = vmatprep.subr.mxu0 0.0
  %226 = vmatpush1.msra.mxu0 0.0
  %227 = vmatprep.subr.mxu0 0.0
  %228 = vmatpush1.msra.mxu0 0.0
  %229 = vmatprep.subr.mxu0 0.0
  %230 = vmatpush1.msra.mxu0 0.0
  %231 = vmatprep.mubr.f32.mxu0 0.0
  %232 = vmatmul.mubr.f32.gmra.mrb[0].mxu0 %v42
  %v233 = vpop.f32.mrb[0].mxu0
  %v234 = vadd.f32 %v165, %v233
  %v235 = vpop.f32.mrb[0].mxu0
  %236 = vmatprep.mubr.f32.mxu0 0.0
  %237 = vmatmul.mubr.f32.gmra.mrb[0].mxu0 %v43
  %v238 = vpop.f32.mrb[0].mxu0
  %v239 = vadd.f32 %v165, %v238
  %v240 = vpop.f32.mrb[0].mxu0
  %241 = vdwg.mxu0
  %242 = vst [vmem:[%s11] sm:$0xff] %v234
  %243 = vst [vmem:[%s11 + $0x8] sm:$0xff] %v239
  %v244 = vld [vmem:[%s8] sm:$0xff]
  %v245 = vld [vmem:[%s8 + $0x8] sm:$0xff]
  %v246 = vld [vmem:[%s8 + $0x10] sm:$0xff]
  %v247 = vld [vmem:[%s8 + $0x18] sm:$0xff]
  %v248 = vld [vmem:[%s8 + $0x20] sm:$0xff]
  %v249 = vld [vmem:[%s8 + $0x28] sm:$0xff]
  %v250 = vld [vmem:[%s8 + $0x30] sm:$0xff]
  %v251 = vld [vmem:[%s8 + $0x38] sm:$0xff]
  %v252 = vld [vmem:[%s8 + $0x40] sm:$0xff]
  %v253 = vld [vmem:[%s8 + $0x48] sm:$0xff]
  %v254 = vld [vmem:[%s8 + $0x50] sm:$0xff]
  %v255 = vld [vmem:[%s8 + $0x58] sm:$0xff]
  %v256 = vld [vmem:[%s8 + $0x60] sm:$0xff]
  %v257 = vld [vmem:[%s8 + $0x68] sm:$0xff]
  %v258 = vld [vmem:[%s8 + $0x70] sm:$0xff]
  %v259 = vld [vmem:[%s8 + $0x78] sm:$0xff]
  %v260 = vld [vmem:[%s9] sm:$0x1]
  %v262 = vlaneseq
  %v263 = vshrl.u32 %v262, 7
  %v264 = vsub.s32 0, %v263
  %v265 = vrot.slane %v260, %v264
  %267 = vmatprep.subr.mxu0 0.0
  %268 = vmatpush1.msra.mxu0 %v244
  %269 = vmatprep.subr.mxu0 0.0
  %270 = vmatpush1.msra.mxu0 %v245
  %271 = vmatprep.subr.mxu0 0.0
  %272 = vmatpush1.msra.mxu0 %v246
  %273 = vmatprep.subr.mxu0 0.0
  %274 = vmatpush1.msra.mxu0 %v247
  %275 = vmatprep.subr.mxu0 0.0
  %276 = vmatpush1.msra.mxu0 %v248
  %277 = vmatprep.subr.mxu0 0.0
  %278 = vmatpush1.msra.mxu0 %v249
  %279 = vmatprep.subr.mxu0 0.0
  %280 = vmatpush1.msra.mxu0 %v250
  %281 = vmatprep.subr.mxu0 0.0
  %282 = vmatpush1.msra.mxu0 %v251
  %283 = vmatprep.subr.mxu0 0.0
  %284 = vmatpush1.msra.mxu0 %v252
  %285 = vmatprep.subr.mxu0 0.0
  %286 = vmatpush1.msra.mxu0 %v253
  %287 = vmatprep.subr.mxu0 0.0
  %288 = vmatpush1.msra.mxu0 %v254
  %289 = vmatprep.subr.mxu0 0.0
  %290 = vmatpush1.msra.mxu0 %v255
  %291 = vmatprep.subr.mxu0 0.0
  %292 = vmatpush1.msra.mxu0 %v256
  %293 = vmatprep.subr.mxu0 0.0
  %294 = vmatpush1.msra.mxu0 %v257
  %295 = vmatprep.subr.mxu0 0.0
  %296 = vmatpush1.msra.mxu0 %v258
  %297 = vmatprep.subr.mxu0 0.0
  %298 = vmatpush1.msra.mxu0 %v259
  %299 = vmatprep.subr.mxu0 0.0
  %300 = vmatpush1.msra.mxu0 0.0
  %301 = vmatprep.subr.mxu0 0.0
  %302 = vmatpush1.msra.mxu0 0.0
  %303 = vmatprep.subr.mxu0 0.0
  %304 = vmatpush1.msra.mxu0 0.0
  %305 = vmatprep.subr.mxu0 0.0
  %306 = vmatpush1.msra.mxu0 0.0
  %307 = vmatprep.subr.mxu0 0.0
  %308 = vmatpush1.msra.mxu0 0.0
  %309 = vmatprep.subr.mxu0 0.0
  %310 = vmatpush1.msra.mxu0 0.0
  %311 = vmatprep.subr.mxu0 0.0
  %312 = vmatpush1.msra.mxu0 0.0
  %313 = vmatprep.subr.mxu0 0.0
  %314 = vmatpush1.msra.mxu0 0.0
  %315 = vmatprep.subr.mxu0 0.0
  %316 = vmatpush1.msra.mxu0 0.0
  %317 = vmatprep.subr.mxu0 0.0
  %318 = vmatpush1.msra.mxu0 0.0
  %319 = vmatprep.subr.mxu0 0.0
  %320 = vmatpush1.msra.mxu0 0.0
  %321 = vmatprep.subr.mxu0 0.0
  %322 = vmatpush1.msra.mxu0 0.0
  %323 = vmatprep.subr.mxu0 0.0
  %324 = vmatpush1.msra.mxu0 0.0
  %325 = vmatprep.subr.mxu0 0.0
  %326 = vmatpush1.msra.mxu0 0.0
  %327 = vmatprep.subr.mxu0 0.0
  %328 = vmatpush1.msra.mxu0 0.0
  %329 = vmatprep.subr.mxu0 0.0
  %330 = vmatpush1.msra.mxu0 0.0
  %331 = vmatprep.mubr.f32.mxu0 0.0
  %332 = vmatmul.mubr.f32.gmra.mrb[0].mxu0 %v38
  %v333 = vpop.f32.mrb[0].mxu0
  %v334 = vadd.f32 %v265, %v333
  %v335 = vpop.f32.mrb[0].mxu0
  %336 = vmatprep.mubr.f32.mxu0 0.0
  %337 = vmatmul.mubr.f32.gmra.mrb[0].mxu0 %v39
  %v338 = vpop.f32.mrb[0].mxu0
  %v339 = vadd.f32 %v265, %v338
  %v340 = vpop.f32.mrb[0].mxu0
  %341 = vdwg.mxu0
  %342 = vst [vmem:[%s12] sm:$0xff] %v334
  %343 = vst [vmem:[%s12 + $0x8] sm:$0xff] %v339
  // Predicated region
  $region42: #{transformer_forward.24} parent=0 // pred_check
    _
  $region43: #{transformer_forward.24} parent=0 // pred_check_branch
    %345 = sbr.rel (0) target = $region45
  $region44: #{transformer_forward.24} parent=0 // pred_region
    _
  $region45: #{transformer_forward.24} parent=0 // pred_fallthru
    _
  // Predicated region
  $region46: #{transformer_forward.24} parent=0 // pred_check
    _
  $region47: #{transformer_forward.24} parent=0 // pred_check_branch
    %347 = sbr.rel (0) target = $region49
  $region48: #{transformer_forward.24} parent=0 // pred_region
    _
  $region49: #{transformer_forward.24} parent=0 // pred_fallthru
    _
  // Predicated region
  $region50: #{transformer_forward.24} parent=0 // pred_check
    _
  $region51: #{transformer_forward.24} parent=0 // pred_check_branch
    %349 = sbr.rel (0) target = $region53
  $region52: #{transformer_forward.24} parent=0 // pred_region
    _
  $region53: #{transformer_forward.24} parent=0 // pred_fallthru
    _
  // Predicated region
  $region54: #{transformer_forward.24} parent=0 // pred_check
    _
  $region55: #{transformer_forward.24} parent=0 // pred_check_branch
    %351 = sbr.rel (0) target = $region57
  $region56: #{transformer_forward.24} parent=0 // pred_region
    _
  $region57: #{transformer_forward.24} parent=0 // pred_fallthru
    _
  // Predicated region
  $region58: #{transformer_forward.24} parent=0 // pred_check
    _
  $region59: #{transformer_forward.24} parent=0 // pred_check_branch
    %353 = sbr.rel (0) target = $region61
  $region60: #{transformer_forward.24} parent=0 // pred_region
    _
  $region61: #{transformer_forward.24} parent=0 // pred_fallthru
    _
  // Predicated region
  $region62: #{transformer_forward.24} parent=0 // pred_check
    _
  $region63: #{transformer_forward.24} parent=0 // pred_check_branch
    %355 = sbr.rel (0) target = $region65
  $region64: #{transformer_forward.24} parent=0 // pred_region
    _
  $region65: #{transformer_forward.24} parent=0 // pred_fallthru
    _

// kernel: transformer_forward.26
$region0: #{transformer_forward.26}
  #allocation0 [shape = 'u32[]', space=smem, size = 0x4, offset = 0x4, fixed_abs, tag = 'smem constant byte address 0x4 - core index']
  #allocation1 [shape = 'u32[144,128]{1,0:T(1,128)}', space=vmem, size = 0x12000, scoped, tag = 'internal scratch']
  %s0 = inlined_call_operand.vmem [shape: f32[16,128], index: 0, kind: input, shape index: {}]
  %s1 = inlined_call_operand.vmem [shape: f32[16,128], index: 1, kind: input, shape index: {}]
  %s2 = inlined_call_operand.vmem [shape: f32[128,128], index: 2, kind: input, shape index: {}]
  %s3 = inlined_call_operand.vmem [shape: f32[1,128], index: 3, kind: input, shape index: {}]
  %s4 = inlined_call_operand.vmem [shape: f32[16,128], index: 4, kind: output, shape index: {}]
  %s5 = sld [smem:[#allocation0]]
  $region26: #{transformer_forward.26} parent=0
    _
  %s7 = ssub.s32 1, %s5
  %s8 = scalar_select 0, %s7, %s5
  // Predicated region
  $region2: #{transformer_forward.26} parent=0 // pred_check
    _
  $region3: #{transformer_forward.26} parent=0 // pred_check_branch
    %10 = sbr.rel (0) target = $region5
  $region4: #{transformer_forward.26} parent=0 // pred_region
    _
  $region5: #{transformer_forward.26} parent=0 // pred_fallthru
    _
  // Predicated region
  $region6: #{transformer_forward.26} parent=0 // pred_check
    _
  $region7: #{transformer_forward.26} parent=0 // pred_check_branch
    %12 = sbr.rel (0) target = $region9
  $region8: #{transformer_forward.26} parent=0 // pred_region
    _
  $region9: #{transformer_forward.26} parent=0 // pred_fallthru
    _
  // Predicated region
  $region10: #{transformer_forward.26} parent=0 // pred_check
    _
  $region11: #{transformer_forward.26} parent=0 // pred_check_branch
    %14 = sbr.rel (0) target = $region13
  $region12: #{transformer_forward.26} parent=0 // pred_region
    _
  $region13: #{transformer_forward.26} parent=0 // pred_fallthru
    _
  // Predicated region
  $region14: #{transformer_forward.26} parent=0 // pred_check
    _
  $region15: #{transformer_forward.26} parent=0 // pred_check_branch
    %16 = sbr.rel (0) target = $region17
  $region16: #{transformer_forward.26} parent=0 // pred_region
    _
  $region17: #{transformer_forward.26} parent=0 // pred_fallthru
    _
  %v17 = vld [vmem:[%s0] sm:$0xff]
  %v18 = vld [vmem:[%s0 + $0x8] sm:$0xff]
  %v19 = vld [vmem:[%s1] sm:$0xff]
  %v20 = vld [vmem:[%s1 + $0x8] sm:$0xff]
  %v21 = vadd.f32 %v17, %v19
  %v22 = vadd.f32 %v18, %v20
  %v23 = vld [vmem:[%s2] sm:$0xff]
  %v24 = vld [vmem:[%s2 + $0x8] sm:$0xff]
  %v25 = vld [vmem:[%s2 + $0x10] sm:$0xff]
  %v26 = vld [vmem:[%s2 + $0x18] sm:$0xff]
  %v27 = vld [vmem:[%s2 + $0x20] sm:$0xff]
  %v28 = vld [vmem:[%s2 + $0x28] sm:$0xff]
  %v29 = vld [vmem:[%s2 + $0x30] sm:$0xff]
  %v30 = vld [vmem:[%s2 + $0x38] sm:$0xff]
  %v31 = vld [vmem:[%s2 + $0x40] sm:$0xff]
  %v32 = vld [vmem:[%s2 + $0x48] sm:$0xff]
  %v33 = vld [vmem:[%s2 + $0x50] sm:$0xff]
  %v34 = vld [vmem:[%s2 + $0x58] sm:$0xff]
  %v35 = vld [vmem:[%s2 + $0x60] sm:$0xff]
  %v36 = vld [vmem:[%s2 + $0x68] sm:$0xff]
  %v37 = vld [vmem:[%s2 + $0x70] sm:$0xff]
  %v38 = vld [vmem:[%s2 + $0x78] sm:$0xff]
  %v39 = vld [vmem:[%s3] sm:$0x1]
  %v41 = vlaneseq
  %v42 = vshrl.u32 %v41, 7
  %v43 = vsub.s32 0, %v42
  %v44 = vrot.slane %v39, %v43
  %46 = vmatprep.subr.mxu0 0.0
  %47 = vmatpush1.msra.mxu0 %v23
  %48 = vmatprep.subr.mxu0 0.0
  %49 = vmatpush1.msra.mxu0 %v24
  %50 = vmatprep.subr.mxu0 0.0
  %51 = vmatpush1.msra.mxu0 %v25
  %52 = vmatprep.subr.mxu0 0.0
  %53 = vmatpush1.msra.mxu0 %v26
  %54 = vmatprep.subr.mxu0 0.0
  %55 = vmatpush1.msra.mxu0 %v27
  %56 = vmatprep.subr.mxu0 0.0
  %57 = vmatpush1.msra.mxu0 %v28
  %58 = vmatprep.subr.mxu0 0.0
  %59 = vmatpush1.msra.mxu0 %v29
  %60 = vmatprep.subr.mxu0 0.0
  %61 = vmatpush1.msra.mxu0 %v30
  %62 = vmatprep.subr.mxu0 0.0
  %63 = vmatpush1.msra.mxu0 %v31
  %64 = vmatprep.subr.mxu0 0.0
  %65 = vmatpush1.msra.mxu0 %v32
  %66 = vmatprep.subr.mxu0 0.0
  %67 = vmatpush1.msra.mxu0 %v33
  %68 = vmatprep.subr.mxu0 0.0
  %69 = vmatpush1.msra.mxu0 %v34
  %70 = vmatprep.subr.mxu0 0.0
  %71 = vmatpush1.msra.mxu0 %v35
  %72 = vmatprep.subr.mxu0 0.0
  %73 = vmatpush1.msra.mxu0 %v36
  %74 = vmatprep.subr.mxu0 0.0
  %75 = vmatpush1.msra.mxu0 %v37
  %76 = vmatprep.subr.mxu0 0.0
  %77 = vmatpush1.msra.mxu0 %v38
  %78 = vmatprep.subr.mxu0 0.0
  %79 = vmatpush1.msra.mxu0 0.0
  %80 = vmatprep.subr.mxu0 0.0
  %81 = vmatpush1.msra.mxu0 0.0
  %82 = vmatprep.subr.mxu0 0.0
  %83 = vmatpush1.msra.mxu0 0.0
  %84 = vmatprep.subr.mxu0 0.0
  %85 = vmatpush1.msra.mxu0 0.0
  %86 = vmatprep.subr.mxu0 0.0
  %87 = vmatpush1.msra.mxu0 0.0
  %88 = vmatprep.subr.mxu0 0.0
  %89 = vmatpush1.msra.mxu0 0.0
  %90 = vmatprep.subr.mxu0 0.0
  %91 = vmatpush1.msra.mxu0 0.0
  %92 = vmatprep.subr.mxu0 0.0
  %93 = vmatpush1.msra.mxu0 0.0
  %94 = vmatprep.subr.mxu0 0.0
  %95 = vmatpush1.msra.mxu0 0.0
  %96 = vmatprep.subr.mxu0 0.0
  %97 = vmatpush1.msra.mxu0 0.0
  %98 = vmatprep.subr.mxu0 0.0
  %99 = vmatpush1.msra.mxu0 0.0
  %100 = vmatprep.subr.mxu0 0.0
  %101 = vmatpush1.msra.mxu0 0.0
  %102 = vmatprep.subr.mxu0 0.0
  %103 = vmatpush1.msra.mxu0 0.0
  %104 = vmatprep.subr.mxu0 0.0
  %105 = vmatpush1.msra.mxu0 0.0
  %106 = vmatprep.subr.mxu0 0.0
  %107 = vmatpush1.msra.mxu0 0.0
  %108 = vmatprep.subr.mxu0 0.0
  %109 = vmatpush1.msra.mxu0 0.0
  %110 = vmatprep.mubr.f32.mxu0 0.0
  %111 = vmatmul.mubr.f32.gmra.mrb[0].mxu0 %v21
  %v112 = vpop.f32.mrb[0].mxu0
  %v113 = vadd.f32 %v44, %v112
  %v114 = vpop.f32.mrb[0].mxu0
  %115 = vmatprep.mubr.f32.mxu0 0.0
  %116 = vmatmul.mubr.f32.gmra.mrb[0].mxu0 %v22
  %v117 = vpop.f32.mrb[0].mxu0
  %v118 = vadd.f32 %v44, %v117
  %v119 = vpop.f32.mrb[0].mxu0
  %120 = vdwg.mxu0
  %121 = vst [vmem:[%s4] sm:$0xff] %v113
  %122 = vst [vmem:[%s4 + $0x8] sm:$0xff] %v118
  // Predicated region
  $region18: #{transformer_forward.26} parent=0 // pred_check
    _
  $region19: #{transformer_forward.26} parent=0 // pred_check_branch
    %124 = sbr.rel (0) target = $region21
  $region20: #{transformer_forward.26} parent=0 // pred_region
    _
  $region21: #{transformer_forward.26} parent=0 // pred_fallthru
    _
  // Predicated region
  $region22: #{transformer_forward.26} parent=0 // pred_check
    _
  $region23: #{transformer_forward.26} parent=0 // pred_check_branch
    %126 = sbr.rel (0) target = $region25
  $region24: #{transformer_forward.26} parent=0 // pred_region
    _
  $region25: #{transformer_forward.26} parent=0 // pred_fallthru
    _

// kernel: transformer_forward.25
$region0: #{transformer_forward.25}
  #allocation0 [shape = 'u32[]', space=smem, size = 0x4, offset = 0x4, fixed_abs, tag = 'smem constant byte address 0x4 - core index']
  #allocation1 [shape = 'u32[144,128]{1,0:T(1,128)}', space=vmem, size = 0x12000, scoped, tag = 'internal scratch']
  %s0 = inlined_call_operand.vmem [shape: f32[2,8,128], index: 0, kind: input, shape index: {}]
  %s1 = inlined_call_operand.vmem [shape: f32[2,8,128], index: 1, kind: input, shape index: {}]
  %s2 = inlined_call_operand.vmem [shape: f32[2,8,128], index: 2, kind: input, shape index: {}]
  %s3 = inlined_call_operand.vmem [shape: f32[2,1,8], index: 3, kind: input, shape index: {}]
  %s4 = inlined_call_operand.vmem [shape: f32[128,128], index: 4, kind: input, shape index: {}]
  %s5 = inlined_call_operand.vmem [shape: f32[1,128], index: 5, kind: input, shape index: {}]
  %s6 = inlined_call_operand.vmem [shape: f32[2,8,128], index: 6, kind: input, shape index: {}]
  %s7 = inlined_call_operand.vmem [shape: f32[1,128], index: 7, kind: input, shape index: {}]
  %s8 = inlined_call_operand.vmem [shape: f32[1,128], index: 8, kind: input, shape index: {}]
  %s9 = inlined_call_operand.vmem [shape: f32[2,8,128], index: 9, kind: output, shape index: {}]
  %s10 = sld [smem:[#allocation0]]
  $region69: #{transformer_forward.25} parent=0
    _
  %s12 = ssub.s32 1, %s10
  %s13 = scalar_select 0, %s12, %s10
  loop: start=0, step=1, limit=4
  $region2: #{transformer_forward.25} parent=0 // loop_pre_header
    _
  $region3: #{transformer_forward.25} parent=0 // loop_header
    %s15 = sphi 0, %s19
    %p16 = scmp.ge.s32.totalorder %s15, 4
    %s25 = sphi 0, %s27
    %s28 = sphi 0, %s25
    %s29 = sphi 0, %s28
    %s45 = sphi 0, %s29
    %s51 = sphi 0, %s53
    %s54 = sphi 0, %s51
    %s55 = sphi 0, %s54
    %s71 = sphi 0, %s55
    %s77 = sphi 0, %s79
    %s80 = sphi 0, %s77
    %s81 = sphi 0, %s80
    %s97 = sphi 0, %s81
    %s103 = sphi 0, %s105
    %s106 = sphi 0, %s103
    %s107 = sphi 0, %s106
    %s123 = sphi 0, %s107
    %s127 = sphi 0, %s127
    %s129 = sphi 0, %s127
    %s130 = sphi 0, %s129
    %s144 = sphi 0, %s130
    %s148 = sphi 0, %s148
    %s150 = sphi 0, %s148
    %s151 = sphi 0, %s150
    %s165 = sphi 0, %s151
    %s171 = sphi 0, %s173
    %s174 = sphi 0, %s171
    %s175 = sphi 0, %s174
    %s191 = sphi 0, %s175
    %s195 = sphi 0, %s195
    %s197 = sphi 0, %s195
    %s198 = sphi 0, %s197
    %s212 = sphi 0, %s198
    %s216 = sphi 0, %s216
    %s218 = sphi 0, %s216
    %s219 = sphi 0, %s218
    %s233 = sphi 0, %s219
    %s239 = sphi 0, %s241
    %s242 = sphi 0, %s239
    %s243 = sphi 0, %s242
    %s259 = sphi 0, %s243
  $region4: #{transformer_forward.25} parent=0 // loop_header_branch
    %18 = sbr.rel (%p16) target = $region8
  $region5: #{transformer_forward.25} parent=0 // loop_body
    %s20 = ssub.s32 %s15, 1
    %s21 = ssub.s32 %s15, 2
    %s22 = sadd.s32 %s15, 1
    %s23 = ssub.s32 %s15, %s22
    %p24 = scmp.eq.s32.totalorder %s23, 0
    %s26 = sadd.s32 %s25, 1
    %s27 = scalar_select %p24, %s25, %s26
    %p30 = pneg %p24
    %p31 = scmp.eq.s32.totalorder %s15, 1
    %p32 = por %p30, %p31
    %p33 = scmp.ne.s32.totalorder %s25, %s28
    %p34 = scmp.eq.s32.totalorder %s15, 0
    %p35 = por %p33, %p34
    %p36 = scmp.ne.s32.totalorder %s25, %s28
    %p37 = scmp.eq.s32.totalorder %s20, 1
    %p38 = por %p36, %p37
    %p39 = scmp.ne.s32.totalorder %s28, %s29
    %p40 = scmp.eq.s32.totalorder %s20, 0
    %p41 = por %p39, %p40
    %p42 = scmp.ne.s32.totalorder %s28, %s29
    %p43 = scmp.eq.s32.totalorder %s21, 1
    %p44 = por %p42, %p43
    %p46 = scmp.ne.s32.totalorder %s29, %s45
    %p47 = scmp.eq.s32.totalorder %s21, 0
    %p48 = por %p46, %p47
    %s49 = ssub.s32 %s15, %s22
    %p50 = scmp.eq.s32.totalorder %s49, 0
    %s52 = sadd.s32 %s51, 1
    %s53 = scalar_select %p50, %s51, %s52
    %p56 = pneg %p50
    %p57 = scmp.eq.s32.totalorder %s15, 1
    %p58 = por %p56, %p57
    %p59 = scmp.ne.s32.totalorder %s51, %s54
    %p60 = scmp.eq.s32.totalorder %s15, 0
    %p61 = por %p59, %p60
    %p62 = scmp.ne.s32.totalorder %s51, %s54
    %p63 = scmp.eq.s32.totalorder %s20, 1
    %p64 = por %p62, %p63
    %p65 = scmp.ne.s32.totalorder %s54, %s55
    %p66 = scmp.eq.s32.totalorder %s20, 0
    %p67 = por %p65, %p66
    %p68 = scmp.ne.s32.totalorder %s54, %s55
    %p69 = scmp.eq.s32.totalorder %s21, 1
    %p70 = por %p68, %p69
    %p72 = scmp.ne.s32.totalorder %s55, %s71
    %p73 = scmp.eq.s32.totalorder %s21, 0
    %p74 = por %p72, %p73
    %s75 = ssub.s32 %s15, %s22
    %p76 = scmp.eq.s32.totalorder %s75, 0
    %s78 = sadd.s32 %s77, 1
    %s79 = scalar_select %p76, %s77, %s78
    %p82 = pneg %p76
    %p83 = scmp.eq.s32.totalorder %s15, 1
    %p84 = por %p82, %p83
    %p85 = scmp.ne.s32.totalorder %s77, %s80
    %p86 = scmp.eq.s32.totalorder %s15, 0
    %p87 = por %p85, %p86
    %p88 = scmp.ne.s32.totalorder %s77, %s80
    %p89 = scmp.eq.s32.totalorder %s20, 1
    %p90 = por %p88, %p89
    %p91 = scmp.ne.s32.totalorder %s80, %s81
    %p92 = scmp.eq.s32.totalorder %s20, 0
    %p93 = por %p91, %p92
    %p94 = scmp.ne.s32.totalorder %s80, %s81
    %p95 = scmp.eq.s32.totalorder %s21, 1
    %p96 = por %p94, %p95
    %p98 = scmp.ne.s32.totalorder %s81, %s97
    %p99 = scmp.eq.s32.totalorder %s21, 0
    %p100 = por %p98, %p99
    %s101 = ssub.s32 %s15, %s22
    %p102 = scmp.eq.s32.totalorder %s101, 0
    %s104 = sadd.s32 %s103, 1
    %s105 = scalar_select %p102, %s103, %s104
    %p108 = pneg %p102
    %p109 = scmp.eq.s32.totalorder %s15, 1
    %p110 = por %p108, %p109
    %p111 = scmp.ne.s32.totalorder %s103, %s106
    %p112 = scmp.eq.s32.totalorder %s15, 0
    %p113 = por %p111, %p112
    %p114 = scmp.ne.s32.totalorder %s103, %s106
    %p115 = scmp.eq.s32.totalorder %s20, 1
    %p116 = por %p114, %p115
    %p117 = scmp.ne.s32.totalorder %s106, %s107
    %p118 = scmp.eq.s32.totalorder %s20, 0
    %p119 = por %p117, %p118
    %p120 = scmp.ne.s32.totalorder %s106, %s107
    %p121 = scmp.eq.s32.totalorder %s21, 1
    %p122 = por %p120, %p121
    %p124 = scmp.ne.s32.totalorder %s107, %s123
    %p125 = scmp.eq.s32.totalorder %s21, 0
    %p126 = por %p124, %p125
    %s128 = sadd.s32 %s127, 1
    %p131 = scmp.eq.s32.totalorder %s15, 1
    %p132 = scmp.ne.s32.totalorder %s127, %s129
    %p133 = scmp.eq.s32.totalorder %s15, 0
    %p134 = por %p132, %p133
    %p135 = scmp.ne.s32.totalorder %s127, %s129
    %p136 = scmp.eq.s32.totalorder %s20, 1
    %p137 = por %p135, %p136
    %p138 = scmp.ne.s32.totalorder %s129, %s130
    %p139 = scmp.eq.s32.totalorder %s20, 0
    %p140 = por %p138, %p139
    %p141 = scmp.ne.s32.totalorder %s129, %s130
    %p142 = scmp.eq.s32.totalorder %s21, 1
    %p143 = por %p141, %p142
    %p145 = scmp.ne.s32.totalorder %s130, %s144
    %p146 = scmp.eq.s32.totalorder %s21, 0
    %p147 = por %p145, %p146
    %s149 = sadd.s32 %s148, 1
    %p152 = scmp.eq.s32.totalorder %s15, 1
    %p153 = scmp.ne.s32.totalorder %s148, %s150
    %p154 = scmp.eq.s32.totalorder %s15, 0
    %p155 = por %p153, %p154
    %p156 = scmp.ne.s32.totalorder %s148, %s150
    %p157 = scmp.eq.s32.totalorder %s20, 1
    %p158 = por %p156, %p157
    %p159 = scmp.ne.s32.totalorder %s150, %s151
    %p160 = scmp.eq.s32.totalorder %s20, 0
    %p161 = por %p159, %p160
    %p162 = scmp.ne.s32.totalorder %s150, %s151
    %p163 = scmp.eq.s32.totalorder %s21, 1
    %p164 = por %p162, %p163
    %p166 = scmp.ne.s32.totalorder %s151, %s165
    %p167 = scmp.eq.s32.totalorder %s21, 0
    %p168 = por %p166, %p167
    %s169 = ssub.s32 %s15, %s22
    %p170 = scmp.eq.s32.totalorder %s169, 0
    %s172 = sadd.s32 %s171, 1
    %s173 = scalar_select %p170, %s171, %s172
    %p176 = pneg %p170
    %p177 = scmp.eq.s32.totalorder %s15, 1
    %p178 = por %p176, %p177
    %p179 = scmp.ne.s32.totalorder %s171, %s174
    %p180 = scmp.eq.s32.totalorder %s15, 0
    %p181 = por %p179, %p180
    %p182 = scmp.ne.s32.totalorder %s171, %s174
    %p183 = scmp.eq.s32.totalorder %s20, 1
    %p184 = por %p182, %p183
    %p185 = scmp.ne.s32.totalorder %s174, %s175
    %p186 = scmp.eq.s32.totalorder %s20, 0
    %p187 = por %p185, %p186
    %p188 = scmp.ne.s32.totalorder %s174, %s175
    %p189 = scmp.eq.s32.totalorder %s21, 1
    %p190 = por %p188, %p189
    %p192 = scmp.ne.s32.totalorder %s175, %s191
    %p193 = scmp.eq.s32.totalorder %s21, 0
    %p194 = por %p192, %p193
    %s196 = sadd.s32 %s195, 1
    %p199 = scmp.eq.s32.totalorder %s15, 1
    %p200 = scmp.ne.s32.totalorder %s195, %s197
    %p201 = scmp.eq.s32.totalorder %s15, 0
    %p202 = por %p200, %p201
    %p203 = scmp.ne.s32.totalorder %s195, %s197
    %p204 = scmp.eq.s32.totalorder %s20, 1
    %p205 = por %p203, %p204
    %p206 = scmp.ne.s32.totalorder %s197, %s198
    %p207 = scmp.eq.s32.totalorder %s20, 0
    %p208 = por %p206, %p207
    %p209 = scmp.ne.s32.totalorder %s197, %s198
    %p210 = scmp.eq.s32.totalorder %s21, 1
    %p211 = por %p209, %p210
    %p213 = scmp.ne.s32.totalorder %s198, %s212
    %p214 = scmp.eq.s32.totalorder %s21, 0
    %p215 = por %p213, %p214
    %s217 = sadd.s32 %s216, 1
    %p220 = scmp.eq.s32.totalorder %s15, 1
    %p221 = scmp.ne.s32.totalorder %s216, %s218
    %p222 = scmp.eq.s32.totalorder %s15, 0
    %p223 = por %p221, %p222
    %p224 = scmp.ne.s32.totalorder %s216, %s218
    %p225 = scmp.eq.s32.totalorder %s20, 1
    %p226 = por %p224, %p225
    %p227 = scmp.ne.s32.totalorder %s218, %s219
    %p228 = scmp.eq.s32.totalorder %s20, 0
    %p229 = por %p227, %p228
    %p230 = scmp.ne.s32.totalorder %s218, %s219
    %p231 = scmp.eq.s32.totalorder %s21, 1
    %p232 = por %p230, %p231
    %p234 = scmp.ne.s32.totalorder %s219, %s233
    %p235 = scmp.eq.s32.totalorder %s21, 0
    %p236 = por %p234, %p235
    %s237 = ssub.s32 %s15, %s22
    %p238 = scmp.eq.s32.totalorder %s237, 0
    %s240 = sadd.s32 %s239, 1
    %s241 = scalar_select %p238, %s239, %s240
    %p244 = pneg %p238
    %p245 = scmp.eq.s32.totalorder %s15, 1
    %p246 = por %p244, %p245
    %p247 = scmp.ne.s32.totalorder %s239, %s242
    %p248 = scmp.eq.s32.totalorder %s15, 0
    %p249 = por %p247, %p248
    %p250 = scmp.ne.s32.totalorder %s239, %s242
    %p251 = scmp.eq.s32.totalorder %s20, 1
    %p252 = por %p250, %p251
    %p253 = scmp.ne.s32.totalorder %s242, %s243
    %p254 = scmp.eq.s32.totalorder %s20, 0
    %p255 = por %p253, %p254
    %p256 = scmp.ne.s32.totalorder %s242, %s243
    %p257 = scmp.eq.s32.totalorder %s21, 1
    %p258 = por %p256, %p257
    %p260 = scmp.ne.s32.totalorder %s243, %s259
    %p261 = scmp.eq.s32.totalorder %s21, 0
    %p262 = por %p260, %p261
    %p263 = scmp.le.s32.totalorder 1, %s15
    %p264 = scmp.lt.s32.totalorder %s15, 3
    %p265 = pnand %p263, %p264
    %p266 = pneg %p265
    // Predicated region
    $region9: #{transformer_forward.25} parent=5 // pred_check
      _
    $region10: #{transformer_forward.25} parent=5 // pred_check_branch
      %268 = sbr.rel (%p265) target = $region12
    $region11: #{transformer_forward.25} parent=5 // pred_region
      %s269 = ssub.s32 %s15, 1
      // Predicated region
      $region13: #{transformer_forward.25} parent=11 // pred_check
        %p270 = pneg %p140
      $region14: #{transformer_forward.25} parent=11 // pred_check_branch
        %272 = sbr.rel (%p270) target = $region16
      $region15: #{transformer_forward.25} parent=11 // pred_region
        _
      $region16: #{transformer_forward.25} parent=11 // pred_fallthru
        _
      // Predicated region
      $region17: #{transformer_forward.25} parent=11 // pred_check
        %p273 = pneg %p161
      $region18: #{transformer_forward.25} parent=11 // pred_check_branch
        %275 = sbr.rel (%p273) target = $region20
      $region19: #{transformer_forward.25} parent=11 // pred_region
        _
      $region20: #{transformer_forward.25} parent=11 // pred_fallthru
        _
      // Predicated region
      $region21: #{transformer_forward.25} parent=11 // pred_check
        %p276 = pneg %p208
      $region22: #{transformer_forward.25} parent=11 // pred_check_branch
        %278 = sbr.rel (%p276) target = $region24
      $region23: #{transformer_forward.25} parent=11 // pred_region
        _
      $region24: #{transformer_forward.25} parent=11 // pred_fallthru
        _
      // Predicated region
      $region25: #{transformer_forward.25} parent=11 // pred_check
        %p279 = pneg %p229
      $region26: #{transformer_forward.25} parent=11 // pred_check_branch
        %281 = sbr.rel (%p279) target = $region28
      $region27: #{transformer_forward.25} parent=11 // pred_region
        _
      $region28: #{transformer_forward.25} parent=11 // pred_fallthru
        _
    $region12: #{transformer_forward.25} parent=5 // pred_fallthru
      _
    %p282 = scmp.lt.s32.totalorder %s15, 2
    // Predicated region
    $region29: #{transformer_forward.25} parent=5 // pred_check
      %p283 = pneg %p282
    $region30: #{transformer_forward.25} parent=5 // pred_check_branch
      %285 = sbr.rel (%p283) target = $region32
    $region31: #{transformer_forward.25} parent=5 // pred_region
      // Predicated region
      $region33: #{transformer_forward.25} parent=31 // pred_check
        %p286 = pneg %p35
      $region34: #{transformer_forward.25} parent=31 // pred_check_branch
        %288 = sbr.rel (%p286) target = $region36
      $region35: #{transformer_forward.25} parent=31 // pred_region
        %p289 = scmp.lt.s32.totalorder %s15, 1
        %s290 = scalar_select %p289, %s15, 1
        %s291 = smul.addr %s290, 8
        %s292 = scalar_lea.vmem %s0, %s291
      $region36: #{transformer_forward.25} parent=31 // pred_fallthru
        _
      // Predicated region
      $region37: #{transformer_forward.25} parent=31 // pred_check
        %p293 = pneg %p61
      $region38: #{transformer_forward.25} parent=31 // pred_check_branch
        %295 = sbr.rel (%p293) target = $region40
      $region39: #{transformer_forward.25} parent=31 // pred_region
        %p296 = scmp.lt.s32.totalorder %s15, 1
        %s297 = scalar_select %p296, %s15, 1
        %s298 = smul.addr %s297, 8
        %s299 = scalar_lea.vmem %s1, %s298
      $region40: #{transformer_forward.25} parent=31 // pred_fallthru
        _
      // Predicated region
      $region41: #{transformer_forward.25} parent=31 // pred_check
        %p300 = pneg %p87
      $region42: #{transformer_forward.25} parent=31 // pred_check_branch
        %302 = sbr.rel (%p300) target = $region44
      $region43: #{transformer_forward.25} parent=31 // pred_region
        %p303 = scmp.lt.s32.totalorder %s15, 1
        %s304 = scalar_select %p303, %s15, 1
        %s305 = smul.addr %s304, 8
        %s306 = scalar_lea.vmem %s2, %s305
      $region44: #{transformer_forward.25} parent=31 // pred_fallthru
        _
      // Predicated region
      $region45: #{transformer_forward.25} parent=31 // pred_check
        %p307 = pneg %p113
      $region46: #{transformer_forward.25} parent=31 // pred_check_branch
        %309 = sbr.rel (%p307) target = $region48
      $region47: #{transformer_forward.25} parent=31 // pred_region
        %p310 = scmp.lt.s32.totalorder %s15, 1
        %s311 = scalar_select %p310, %s15, 1
        %s312 = scalar_lea.vmem %s3, %s311
      $region48: #{transformer_forward.25} parent=31 // pred_fallthru
        _
      // Predicated region
      $region49: #{transformer_forward.25} parent=31 // pred_check
        %p313 = pneg %p181
      $region50: #{transformer_forward.25} parent=31 // pred_check_branch
        %315 = sbr.rel (%p313) target = $region52
      $region51: #{transformer_forward.25} parent=31 // pred_region
        %p316 = scmp.lt.s32.totalorder %s15, 1
        %s317 = scalar_select %p316, %s15, 1
        %s318 = smul.addr %s317, 8
        %s319 = scalar_lea.vmem %s6, %s318
      $region52: #{transformer_forward.25} parent=31 // pred_fallthru
        _
    $region32: #{transformer_forward.25} parent=5 // pred_fallthru
      _
    %p320 = scmp.le.s32.totalorder 1, %s15
    %p321 = scmp.lt.s32.totalorder %s15, 3
    %p322 = pnand %p320, %p321
    %p323 = pneg %p322
    // Predicated region
    $region53: #{transformer_forward.25} parent=5 // pred_check
      _
    $region54: #{transformer_forward.25} parent=5 // pred_check_branch
      %325 = sbr.rel (%p322) target = $region56
    $region55: #{transformer_forward.25} parent=5 // pred_region
      %s326 = ssub.s32 %s15, 1
      %p327 = scmp.lt.s32.totalorder %s20, 1
      %s328 = scalar_select %p327, %s20, 1
      %s329 = smul.addr %s328, 8
      %s330 = scalar_lea.vmem %s0, %s329
      %p331 = pneg %p41
      %p332 = pneg %p38
      %p333 = scmp.lt.s32.totalorder %s20, 1
      %s334 = scalar_select %p333, %s20, 1
      %s335 = smul.addr %s334, 8
      %s336 = scalar_lea.vmem %s1, %s335
      %p337 = pneg %p67
      %p338 = pneg %p64
      %p339 = scmp.lt.s32.totalorder %s20, 1
      %s340 = scalar_select %p339, %s20, 1
      %s341 = smul.addr %s340, 8
      %s342 = scalar_lea.vmem %s2, %s341
      %p343 = pneg %p93
      %p344 = pneg %p90
      %p345 = scmp.lt.s32.totalorder %s20, 1
      %s346 = scalar_select %p345, %s20, 1
      %s347 = scalar_lea.vmem %s3, %s346
      %p348 = pneg %p119
      %p349 = pneg %p116
      %p350 = pneg %p140
      %p351 = pneg %p137
      %p352 = pneg %p161
      %p353 = pneg %p158
      %p354 = scmp.lt.s32.totalorder %s20, 1
      %s355 = scalar_select %p354, %s20, 1
      %s356 = smul.addr %s355, 8
      %s357 = scalar_lea.vmem %s6, %s356
      %p358 = pneg %p187
      %p359 = pneg %p184
      %p360 = pneg %p208
      %p361 = pneg %p205
      %p362 = pneg %p229
      %p363 = pneg %p226
      %p364 = pneg %p255
      %p365 = pneg %p252
      %p366 = scmp.lt.s32.totalorder %s20, 1
      %s367 = scalar_select %p366, %s20, 1
      %s368 = smul.addr %s367, 8
      %s369 = scalar_lea.vmem %s9, %s368
      %p370 = scmp.lt.s32.totalorder %s20, 1
      %s371 = scalar_select %p370, %s20, 1
      %s372 = smul.addr %s371, 8
      %s373 = scalar_lea.vmem %s0, %s372
      %p374 = scmp.lt.s32.totalorder %s20, 1
      %s375 = scalar_select %p374, %s20, 1
      %s376 = smul.addr %s375, 8
      %s377 = scalar_lea.vmem %s1, %s376
      %p378 = scmp.lt.s32.totalorder %s20, 1
      %s379 = scalar_select %p378, %s20, 1
      %s380 = smul.addr %s379, 8
      %s381 = scalar_lea.vmem %s2, %s380
      %p382 = scmp.lt.s32.totalorder %s20, 1
      %s383 = scalar_select %p382, %s20, 1
      %s384 = scalar_lea.vmem %s3, %s383
      %p385 = scmp.lt.s32.totalorder %s20, 1
      %s386 = scalar_select %p385, %s20, 1
      %s387 = smul.addr %s386, 8
      %s388 = scalar_lea.vmem %s6, %s387
      %p389 = scmp.lt.s32.totalorder %s20, 1
      %s390 = scalar_select %p389, %s20, 1
      %s391 = smul.addr %s390, 8
      %s392 = scalar_lea.vmem %s9, %s391
      %v393 = vld [vmem:[%s373] sm:$0xff]
      %v394 = vmul.f32 %v393, 0.125
      %v395 = vld [vmem:[%s377] sm:$0xff]
      %v396 = vld [vmem:[%s381] sm:$0xff]
      %v397 = vld [vmem:[%s384] sm:$0x1]
      %v398 = vld [vmem:[%s4] sm:$0xff]
      %v399 = vld [vmem:[%s4 + $0x8] sm:$0xff]
      %v400 = vld [vmem:[%s4 + $0x10] sm:$0xff]
      %v401 = vld [vmem:[%s4 + $0x18] sm:$0xff]
      %v402 = vld [vmem:[%s4 + $0x20] sm:$0xff]
      %v403 = vld [vmem:[%s4 + $0x28] sm:$0xff]
      %v404 = vld [vmem:[%s4 + $0x30] sm:$0xff]
      %v405 = vld [vmem:[%s4 + $0x38] sm:$0xff]
      %v406 = vld [vmem:[%s4 + $0x40] sm:$0xff]
      %v407 = vld [vmem:[%s4 + $0x48] sm:$0xff]
      %v408 = vld [vmem:[%s4 + $0x50] sm:$0xff]
      %v409 = vld [vmem:[%s4 + $0x58] sm:$0xff]
      %v410 = vld [vmem:[%s4 + $0x60] sm:$0xff]
      %v411 = vld [vmem:[%s4 + $0x68] sm:$0xff]
      %v412 = vld [vmem:[%s4 + $0x70] sm:$0xff]
      %v413 = vld [vmem:[%s4 + $0x78] sm:$0xff]
      %v415 = vlaneseq
      %v416 = vshrl.u32 %v415, 7
      %v417 = vsub.s32 0, %v416
      %v418 = vrot.slane %v397, %v417
      %vm420 = vcmask 523264
      %v422 = vsel %vm420, %v394, 0
      %v425 = vsel %vm420, %v395, 0
      %427 = vmatprep.subr.mxu0 0.0
      %428 = vmatpush1.xpose.msra.mxu0 %v425
      %429 = vmatprep.subr.mxu0 0.0
      %430 = vmatpush1.xpose.msra.mxu0 0.0
      %431 = vmatprep.subr.mxu0 0.0
      %432 = vmatpush1.xpose.msra.mxu0 0.0
      %433 = vmatprep.subr.mxu0 0.0
      %434 = vmatpush1.xpose.msra.mxu0 0.0
      %435 = vmatprep.subr.mxu0 0.0
      %436 = vmatpush1.xpose.msra.mxu0 0.0
      %437 = vmatprep.subr.mxu0 0.0
      %438 = vmatpush1.xpose.msra.mxu0 0.0
      %439 = vmatprep.subr.mxu0 0.0
      %440 = vmatpush1.xpose.msra.mxu0 0.0
      %441 = vmatprep.subr.mxu0 0.0
      %442 = vmatpush1.xpose.msra.mxu0 0.0
      %443 = vmatprep.subr.mxu0 0.0
      %444 = vmatpush1.xpose.msra.mxu0 0.0
      %445 = vmatprep.subr.mxu0 0.0
      %446 = vmatpush1.xpose.msra.mxu0 0.0
      %447 = vmatprep.subr.mxu0 0.0
      %448 = vmatpush1.xpose.msra.mxu0 0.0
      %449 = vmatprep.subr.mxu0 0.0
      %450 = vmatpush1.xpose.msra.mxu0 0.0
      %451 = vmatprep.subr.mxu0 0.0
      %452 = vmatpush1.xpose.msra.mxu0 0.0
      %453 = vmatprep.subr.mxu0 0.0
      %454 = vmatpush1.xpose.msra.mxu0 0.0
      %455 = vmatprep.subr.mxu0 0.0
      %456 = vmatpush1.xpose.msra.mxu0 0.0
      %457 = vmatprep.subr.mxu0 0.0
      %458 = vmatpush1.xpose.msra.mxu0 0.0
      %459 = vmatprep.subr.mxu0 0.0
      %460 = vmatpush1.xpose.msra.mxu0 0.0
      %461 = vmatprep.subr.mxu0 0.0
      %462 = vmatpush1.xpose.msra.mxu0 0.0
      %463 = vmatprep.subr.mxu0 0.0
      %464 = vmatpush1.xpose.msra.mxu0 0.0
      %465 = vmatprep.subr.mxu0 0.0
      %466 = vmatpush1.xpose.msra.mxu0 0.0
      %467 = vmatprep.subr.mxu0 0.0
      %468 = vmatpush1.xpose.msra.mxu0 0.0
      %469 = vmatprep.subr.mxu0 0.0
      %470 = vmatpush1.xpose.msra.mxu0 0.0
      %471 = vmatprep.subr.mxu0 0.0
      %472 = vmatpush1.xpose.msra.mxu0 0.0
      %473 = vmatprep.subr.mxu0 0.0
      %474 = vmatpush1.xpose.msra.mxu0 0.0
      %475 = vmatprep.subr.mxu0 0.0
      %476 = vmatpush1.xpose.msra.mxu0 0.0
      %477 = vmatprep.subr.mxu0 0.0
      %478 = vmatpush1.xpose.msra.mxu0 0.0
      %479 = vmatprep.subr.mxu0 0.0
      %480 = vmatpush1.xpose.msra.mxu0 0.0
      %481 = vmatprep.subr.mxu0 0.0
      %482 = vmatpush1.xpose.msra.mxu0 0.0
      %483 = vmatprep.subr.mxu0 0.0
      %484 = vmatpush1.xpose.msra.mxu0 0.0
      %485 = vmatprep.subr.mxu0 0.0
      %486 = vmatpush1.xpose.msra.mxu0 0.0
      %487 = vmatprep.subr.mxu0 0.0
      %488 = vmatpush1.xpose.msra.mxu0 0.0
      %489 = vmatprep.subr.mxu0 0.0
      %490 = vmatpush1.xpose.msra.mxu0 0.0
      %491 = vmatprep.mubr.f32.mxu0 0.0
      %492 = vmatmul.mubr.f32.gmra.mrb[0].mxu0 %v422
      %v493 = vpop.f32.mrb[0].mxu0
      %v494 = vadd.f32 %v418, %v493
      %v495 = vpop.f32.mrb[0].mxu0
      %496 = vdwg.mxu0
      %vm497 = vcmask 64512
      %v498 = vsel %vm497, %v494, -inf
      %499 = vmax.xlane.f32.xlu0 %v498
      %v500 = vpop.xlane.xlu0 %499
      %v501 = vsub.f32 %v494, %v500
      %v502 = vmul.f32 %v501, 1.442695
      %v503 = vpow.pop %v502
      %v504 = vsel %vm497, %v503, 0.0
      %505 = vadd.xlane.f32.xlu0 %v504
      %v506 = vpop.xlane.xlu0 %505
      %v507 = vrcp.pop %v506
      %v508 = vmul.f32 %v503, %v507
      %v510 = vsel %vm497, %v508, 0
      %512 = vmatprep.subr.mxu0 0.0
      %513 = vmatpush1.msra.mxu0 %v396
      %514 = vmatprep.subr.mxu0 0.0
      %515 = vmatpush1.msra.mxu0 0.0
      %516 = vmatprep.subr.mxu0 0.0
      %517 = vmatpush1.msra.mxu0 0.0
      %518 = vmatprep.subr.mxu0 0.0
      %519 = vmatpush1.msra.mxu0 0.0
      %520 = vmatprep.subr.mxu0 0.0
      %521 = vmatpush1.msra.mxu0 0.0
      %522 = vmatprep.subr.mxu0 0.0
      %523 = vmatpush1.msra.mxu0 0.0
      %524 = vmatprep.subr.mxu0 0.0
      %525 = vmatpush1.msra.mxu0 0.0
      %526 = vmatprep.subr.mxu0 0.0
      %527 = vmatpush1.msra.mxu0 0.0
      %528 = vmatprep.subr.mxu0 0.0
      %529 = vmatpush1.msra.mxu0 0.0
      %530 = vmatprep.subr.mxu0 0.0
      %531 = vmatpush1.msra.mxu0 0.0
      %532 = vmatprep.subr.mxu0 0.0
      %533 = vmatpush1.msra.mxu0 0.0
      %534 = vmatprep.subr.mxu0 0.0
      %535 = vmatpush1.msra.mxu0 0.0
      %536 = vmatprep.subr.mxu0 0.0
      %537 = vmatpush1.msra.mxu0 0.0
      %538 = vmatprep.subr.mxu0 0.0
      %539 = vmatpush1.msra.mxu0 0.0
      %540 = vmatprep.subr.mxu0 0.0
      %541 = vmatpush1.msra.mxu0 0.0
      %542 = vmatprep.subr.mxu0 0.0
      %543 = vmatpush1.msra.mxu0 0.0
      %544 = vmatprep.subr.mxu0 0.0
      %545 = vmatpush1.msra.mxu0 0.0
      %546 = vmatprep.subr.mxu0 0.0
      %547 = vmatpush1.msra.mxu0 0.0
      %548 = vmatprep.subr.mxu0 0.0
      %549 = vmatpush1.msra.mxu0 0.0
      %550 = vmatprep.subr.mxu0 0.0
      %551 = vmatpush1.msra.mxu0 0.0
      %552 = vmatprep.subr.mxu0 0.0
      %553 = vmatpush1.msra.mxu0 0.0
      %554 = vmatprep.subr.mxu0 0.0
      %555 = vmatpush1.msra.mxu0 0.0
      %556 = vmatprep.subr.mxu0 0.0
      %557 = vmatpush1.msra.mxu0 0.0
      %558 = vmatprep.subr.mxu0 0.0
      %559 = vmatpush1.msra.mxu0 0.0
      %560 = vmatprep.subr.mxu0 0.0
      %561 = vmatpush1.msra.mxu0 0.0
      %562 = vmatprep.subr.mxu0 0.0
      %563 = vmatpush1.msra.mxu0 0.0
      %564 = vmatprep.subr.mxu0 0.0
      %565 = vmatpush1.msra.mxu0 0.0
      %566 = vmatprep.subr.mxu0 0.0
      %567 = vmatpush1.msra.mxu0 0.0
      %568 = vmatprep.subr.mxu0 0.0
      %569 = vmatpush1.msra.mxu0 0.0
      %570 = vmatprep.subr.mxu0 0.0
      %571 = vmatpush1.msra.mxu0 0.0
      %572 = vmatprep.subr.mxu0 0.0
      %573 = vmatpush1.msra.mxu0 0.0
      %574 = vmatprep.subr.mxu0 0.0
      %575 = vmatpush1.msra.mxu0 0.0
      %576 = vmatprep.mubr.f32.mxu0 0.0
      %577 = vmatmul.mubr.f32.gmra.mrb[0].mxu0 %v510
      %v578 = vpop.f32.mrb[0].mxu0
      %v579 = vadd.f32 0.0, %v578
      %v580 = vpop.f32.mrb[0].mxu0
      %581 = vdwg.mxu0
      %582 = vrot.lane.b32.xlu0 %v394, 64
      %v583 = vpop.permute.xlu0 %582
      %584 = vrot.lane.b32.xlu0 %v395, 64
      %v585 = vpop.permute.xlu0 %584
      %v586 = vsel %vm420, %v583, 0
      %v588 = vsel %vm420, %v585, 0
      %590 = vmatprep.subr.mxu0 0.0
      %591 = vmatpush1.xpose.msra.mxu0 %v588
      %592 = vmatprep.subr.mxu0 0.0
      %593 = vmatpush1.xpose.msra.mxu0 0.0
      %594 = vmatprep.subr.mxu0 0.0
      %595 = vmatpush1.xpose.msra.mxu0 0.0
      %596 = vmatprep.subr.mxu0 0.0
      %597 = vmatpush1.xpose.msra.mxu0 0.0
      %598 = vmatprep.subr.mxu0 0.0
      %599 = vmatpush1.xpose.msra.mxu0 0.0
      %600 = vmatprep.subr.mxu0 0.0
      %601 = vmatpush1.xpose.msra.mxu0 0.0
      %602 = vmatprep.subr.mxu0 0.0
      %603 = vmatpush1.xpose.msra.mxu0 0.0
      %604 = vmatprep.subr.mxu0 0.0
      %605 = vmatpush1.xpose.msra.mxu0 0.0
      %606 = vmatprep.subr.mxu0 0.0
      %607 = vmatpush1.xpose.msra.mxu0 0.0
      %608 = vmatprep.subr.mxu0 0.0
      %609 = vmatpush1.xpose.msra.mxu0 0.0
      %610 = vmatprep.subr.mxu0 0.0
      %611 = vmatpush1.xpose.msra.mxu0 0.0
      %612 = vmatprep.subr.mxu0 0.0
      %613 = vmatpush1.xpose.msra.mxu0 0.0
      %614 = vmatprep.subr.mxu0 0.0
      %615 = vmatpush1.xpose.msra.mxu0 0.0
      %616 = vmatprep.subr.mxu0 0.0
      %617 = vmatpush1.xpose.msra.mxu0 0.0
      %618 = vmatprep.subr.mxu0 0.0
      %619 = vmatpush1.xpose.msra.mxu0 0.0
      %620 = vmatprep.subr.mxu0 0.0
      %621 = vmatpush1.xpose.msra.mxu0 0.0
      %622 = vmatprep.subr.mxu0 0.0
      %623 = vmatpush1.xpose.msra.mxu0 0.0
      %624 = vmatprep.subr.mxu0 0.0
      %625 = vmatpush1.xpose.msra.mxu0 0.0
      %626 = vmatprep.subr.mxu0 0.0
      %627 = vmatpush1.xpose.msra.mxu0 0.0
      %628 = vmatprep.subr.mxu0 0.0
      %629 = vmatpush1.xpose.msra.mxu0 0.0
      %630 = vmatprep.subr.mxu0 0.0
      %631 = vmatpush1.xpose.msra.mxu0 0.0
      %632 = vmatprep.subr.mxu0 0.0
      %633 = vmatpush1.xpose.msra.mxu0 0.0
      %634 = vmatprep.subr.mxu0 0.0
      %635 = vmatpush1.xpose.msra.mxu0 0.0
      %636 = vmatprep.subr.mxu0 0.0
      %637 = vmatpush1.xpose.msra.mxu0 0.0
      %638 = vmatprep.subr.mxu0 0.0
      %639 = vmatpush1.xpose.msra.mxu0 0.0
      %640 = vmatprep.subr.mxu0 0.0
      %641 = vmatpush1.xpose.msra.mxu0 0.0
      %642 = vmatprep.subr.mxu0 0.0
      %643 = vmatpush1.xpose.msra.mxu0 0.0
      %644 = vmatprep.subr.mxu0 0.0
      %645 = vmatpush1.xpose.msra.mxu0 0.0
      %646 = vmatprep.subr.mxu0 0.0
      %647 = vmatpush1.xpose.msra.mxu0 0.0
      %648 = vmatprep.subr.mxu0 0.0
      %649 = vmatpush1.xpose.msra.mxu0 0.0
      %650 = vmatprep.subr.mxu0 0.0
      %651 = vmatpush1.xpose.msra.mxu0 0.0
      %652 = vmatprep.subr.mxu0 0.0
      %653 = vmatpush1.xpose.msra.mxu0 0.0
      %654 = vmatprep.mubr.f32.mxu0 0.0
      %655 = vmatmul.mubr.f32.gmra.mrb[0].mxu0 %v586
      %v656 = vpop.f32.mrb[0].mxu0
      %v657 = vadd.f32 %v418, %v656
      %v658 = vpop.f32.mrb[0].mxu0
      %659 = vdwg.mxu0
      %v660 = vsel %vm497, %v657, -inf
      %661 = vmax.xlane.f32.xlu0 %v660
      %v662 = vpop.xlane.xlu0 %661
      %v663 = vsub.f32 %v657, %v662
      %v664 = vmul.f32 %v663, 1.442695
      %v665 = vpow.pop %v664
      %v666 = vsel %vm497, %v665, 0.0
      %667 = vadd.xlane.f32.xlu0 %v666
      %v668 = vpop.xlane.xlu0 %667
      %v669 = vrcp.pop %v668
      %v670 = vmul.f32 %v665, %v669
      %672 = vrot.lane.b32.xlu0 %v396, 64
      %v673 = vpop.permute.xlu0 %672
      %v676 = vsel %vm497, %v670, 0
      %678 = vmatprep.subr.mxu0 0.0
      %679 = vmatpush1.msra.mxu0 %v673
      %680 = vmatprep.subr.mxu0 0.0
      %681 = vmatpush1.msra.mxu0 0.0
      %682 = vmatprep.subr.mxu0 0.0
      %683 = vmatpush1.msra.mxu0 0.0
      %684 = vmatprep.subr.mxu0 0.0
      %685 = vmatpush1.msra.mxu0 0.0
      %686 = vmatprep.subr.mxu0 0.0
      %687 = vmatpush1.msra.mxu0 0.0
      %688 = vmatprep.subr.mxu0 0.0
      %689 = vmatpush1.msra.mxu0 0.0
      %690 = vmatprep.subr.mxu0 0.0
      %691 = vmatpush1.msra.mxu0 0.0
      %692 = vmatprep.subr.mxu0 0.0
      %693 = vmatpush1.msra.mxu0 0.0
      %694 = vmatprep.subr.mxu0 0.0
      %695 = vmatpush1.msra.mxu0 0.0
      %696 = vmatprep.subr.mxu0 0.0
      %697 = vmatpush1.msra.mxu0 0.0
      %698 = vmatprep.subr.mxu0 0.0
      %699 = vmatpush1.msra.mxu0 0.0
      %700 = vmatprep.subr.mxu0 0.0
      %701 = vmatpush1.msra.mxu0 0.0
      %702 = vmatprep.subr.mxu0 0.0
      %703 = vmatpush1.msra.mxu0 0.0
      %704 = vmatprep.subr.mxu0 0.0
      %705 = vmatpush1.msra.mxu0 0.0
      %706 = vmatprep.subr.mxu0 0.0
      %707 = vmatpush1.msra.mxu0 0.0
      %708 = vmatprep.subr.mxu0 0.0
      %709 = vmatpush1.msra.mxu0 0.0
      %710 = vmatprep.subr.mxu0 0.0
      %711 = vmatpush1.msra.mxu0 0.0
      %712 = vmatprep.subr.mxu0 0.0
      %713 = vmatpush1.msra.mxu0 0.0
      %714 = vmatprep.subr.mxu0 0.0
      %715 = vmatpush1.msra.mxu0 0.0
      %716 = vmatprep.subr.mxu0 0.0
      %717 = vmatpush1.msra.mxu0 0.0
      %718 = vmatprep.subr.mxu0 0.0
      %719 = vmatpush1.msra.mxu0 0.0
      %720 = vmatprep.subr.mxu0 0.0
      %721 = vmatpush1.msra.mxu0 0.0
      %722 = vmatprep.subr.mxu0 0.0
      %723 = vmatpush1.msra.mxu0 0.0
      %724 = vmatprep.subr.mxu0 0.0
      %725 = vmatpush1.msra.mxu0 0.0
      %726 = vmatprep.subr.mxu0 0.0
      %727 = vmatpush1.msra.mxu0 0.0
      %728 = vmatprep.subr.mxu0 0.0
      %729 = vmatpush1.msra.mxu0 0.0
      %730 = vmatprep.subr.mxu0 0.0
      %731 = vmatpush1.msra.mxu0 0.0
      %732 = vmatprep.subr.mxu0 0.0
      %733 = vmatpush1.msra.mxu0 0.0
      %734 = vmatprep.subr.mxu0 0.0
      %735 = vmatpush1.msra.mxu0 0.0
      %736 = vmatprep.subr.mxu0 0.0
      %737 = vmatpush1.msra.mxu0 0.0
      %738 = vmatprep.subr.mxu0 0.0
      %739 = vmatpush1.msra.mxu0 0.0
      %740 = vmatprep.subr.mxu0 0.0
      %741 = vmatpush1.msra.mxu0 0.0
      %742 = vmatprep.mubr.f32.mxu0 0.0
      %743 = vmatmul.mubr.f32.gmra.mrb[0].mxu0 %v676
      %v744 = vpop.f32.mrb[0].mxu0
      %v745 = vadd.f32 0.0, %v744
      %v746 = vpop.f32.mrb[0].mxu0
      %747 = vdwg.mxu0
      %v749 = vsel %vm420, %v745, 0
      %751 = vmatprep.subr.mxu0 0.0
      %752 = vmatpush1.msra.mxu0 %v406
      %753 = vmatprep.subr.mxu0 0.0
      %754 = vmatpush1.msra.mxu0 %v407
      %755 = vmatprep.subr.mxu0 0.0
      %756 = vmatpush1.msra.mxu0 %v408
      %757 = vmatprep.subr.mxu0 0.0
      %758 = vmatpush1.msra.mxu0 %v409
      %759 = vmatprep.subr.mxu0 0.0
      %760 = vmatpush1.msra.mxu0 %v410
      %761 = vmatprep.subr.mxu0 0.0
      %762 = vmatpush1.msra.mxu0 %v411
      %763 = vmatprep.subr.mxu0 0.0
      %764 = vmatpush1.msra.mxu0 %v412
      %765 = vmatprep.subr.mxu0 0.0
      %766 = vmatpush1.msra.mxu0 %v413
      %767 = vmatprep.subr.mxu0 0.0
      %768 = vmatpush1.msra.mxu0 0.0
      %769 = vmatprep.subr.mxu0 0.0
      %770 = vmatpush1.msra.mxu0 0.0
      %771 = vmatprep.subr.mxu0 0.0
      %772 = vmatpush1.msra.mxu0 0.0
      %773 = vmatprep.subr.mxu0 0.0
      %774 = vmatpush1.msra.mxu0 0.0
      %775 = vmatprep.subr.mxu0 0.0
      %776 = vmatpush1.msra.mxu0 0.0
      %777 = vmatprep.subr.mxu0 0.0
      %778 = vmatpush1.msra.mxu0 0.0
      %779 = vmatprep.subr.mxu0 0.0
      %780 = vmatpush1.msra.mxu0 0.0
      %781 = vmatprep.subr.mxu0 0.0
      %782 = vmatpush1.msra.mxu0 0.0
      %783 = vmatprep.subr.mxu0 0.0
      %784 = vmatpush1.msra.mxu0 0.0
      %785 = vmatprep.subr.mxu0 0.0
      %786 = vmatpush1.msra.mxu0 0.0
      %787 = vmatprep.subr.mxu0 0.0
      %788 = vmatpush1.msra.mxu0 0.0
      %789 = vmatprep.subr.mxu0 0.0
      %790 = vmatpush1.msra.mxu0 0.0
      %791 = vmatprep.subr.mxu0 0.0
      %792 = vmatpush1.msra.mxu0 0.0
      %793 = vmatprep.subr.mxu0 0.0
      %794 = vmatpush1.msra.mxu0 0.0
      %795 = vmatprep.subr.mxu0 0.0
      %796 = vmatpush1.msra.mxu0 0.0
      %797 = vmatprep.subr.mxu0 0.0
      %798 = vmatpush1.msra.mxu0 0.0
      %799 = vmatprep.subr.mxu0 0.0
      %800 = vmatpush1.msra.mxu0 0.0
      %801 = vmatprep.subr.mxu0 0.0
      %802 = vmatpush1.msra.mxu0 0.0
      %803 = vmatprep.subr.mxu0 0.0
      %804 = vmatpush1.msra.mxu0 0.0
      %805 = vmatprep.subr.mxu0 0.0
      %806 = vmatpush1.msra.mxu0 0.0
      %807 = vmatprep.subr.mxu0 0.0
      %808 = vmatpush1.msra.mxu0 0.0
      %809 = vmatprep.subr.mxu0 0.0
      %810 = vmatpush1.msra.mxu0 0.0
      %811 = vmatprep.subr.mxu0 0.0
      %812 = vmatpush1.msra.mxu0 0.0
      %813 = vmatprep.subr.mxu0 0.0
      %814 = vmatpush1.msra.mxu0 0.0
      %815 = vmatprep.mubr.f32.mxu0 0.0
      %816 = vmatmul.mubr.f32.gmra.mrb[0].mxu0 %v749
      %v817 = vpop.f32.mrb[0].mxu0
      %v818 = vadd.f32 0.0, %v817
      %v819 = vpop.f32.mrb[0].mxu0
      %820 = vdwg.mxu0
      %v822 = vsel %vm420, %v579, 0
      %824 = vmatprep.subr.mxu0 0.0
      %825 = vmatpush1.msra.mxu0 %v398
      %826 = vmatprep.subr.mxu0 0.0
      %827 = vmatpush1.msra.mxu0 %v399
      %828 = vmatprep.subr.mxu0 0.0
      %829 = vmatpush1.msra.mxu0 %v400
      %830 = vmatprep.subr.mxu0 0.0
      %831 = vmatpush1.msra.mxu0 %v401
      %832 = vmatprep.subr.mxu0 0.0
      %833 = vmatpush1.msra.mxu0 %v402
      %834 = vmatprep.subr.mxu0 0.0
      %835 = vmatpush1.msra.mxu0 %v403
      %836 = vmatprep.subr.mxu0 0.0
      %837 = vmatpush1.msra.mxu0 %v404
      %838 = vmatprep.subr.mxu0 0.0
      %839 = vmatpush1.msra.mxu0 %v405
      %840 = vmatprep.subr.mxu0 0.0
      %841 = vmatpush1.msra.mxu0 0.0
      %842 = vmatprep.subr.mxu0 0.0
      %843 = vmatpush1.msra.mxu0 0.0
      %844 = vmatprep.subr.mxu0 0.0
      %845 = vmatpush1.msra.mxu0 0.0
      %846 = vmatprep.subr.mxu0 0.0
      %847 = vmatpush1.msra.mxu0 0.0
      %848 = vmatprep.subr.mxu0 0.0
      %849 = vmatpush1.msra.mxu0 0.0
      %850 = vmatprep.subr.mxu0 0.0
      %851 = vmatpush1.msra.mxu0 0.0
      %852 = vmatprep.subr.mxu0 0.0
      %853 = vmatpush1.msra.mxu0 0.0
      %854 = vmatprep.subr.mxu0 0.0
      %855 = vmatpush1.msra.mxu0 0.0
      %856 = vmatprep.subr.mxu0 0.0
      %857 = vmatpush1.msra.mxu0 0.0
      %858 = vmatprep.subr.mxu0 0.0
      %859 = vmatpush1.msra.mxu0 0.0
      %860 = vmatprep.subr.mxu0 0.0
      %861 = vmatpush1.msra.mxu0 0.0
      %862 = vmatprep.subr.mxu0 0.0
      %863 = vmatpush1.msra.mxu0 0.0
      %864 = vmatprep.subr.mxu0 0.0
      %865 = vmatpush1.msra.mxu0 0.0
      %866 = vmatprep.subr.mxu0 0.0
      %867 = vmatpush1.msra.mxu0 0.0
      %868 = vmatprep.subr.mxu0 0.0
      %869 = vmatpush1.msra.mxu0 0.0
      %870 = vmatprep.subr.mxu0 0.0
      %871 = vmatpush1.msra.mxu0 0.0
      %872 = vmatprep.subr.mxu0 0.0
      %873 = vmatpush1.msra.mxu0 0.0
      %874 = vmatprep.subr.mxu0 0.0
      %875 = vmatpush1.msra.mxu0 0.0
      %876 = vmatprep.subr.mxu0 0.0
      %877 = vmatpush1.msra.mxu0 0.0
      %878 = vmatprep.subr.mxu0 0.0
      %879 = vmatpush1.msra.mxu0 0.0
      %880 = vmatprep.subr.mxu0 0.0
      %881 = vmatpush1.msra.mxu0 0.0
      %882 = vmatprep.subr.mxu0 0.0
      %883 = vmatpush1.msra.mxu0 0.0
      %884 = vmatprep.subr.mxu0 0.0
      %885 = vmatpush1.msra.mxu0 0.0
      %886 = vmatprep.subr.mxu0 0.0
      %887 = vmatpush1.msra.mxu0 0.0
      %888 = vmatprep.mubr.f32.mxu0 0.0
      %889 = vmatmul.mubr.f32.gmra.mrb[0].mxu0 %v822
      %v890 = vpop.f32.mrb[0].mxu0
      %v891 = vadd.f32 %v818, %v890
      %v892 = vpop.f32.mrb[0].mxu0
      %893 = vdwg.mxu0
      %v894 = vld [vmem:[%s388] sm:$0xff]
      %v895 = vadd.f32 %v894, %v891
      %v896 = vld [vmem:[%s5] sm:$0x1]
      %v898 = vlaneseq
      %v899 = vshrl.u32 %v898, 7
      %v900 = vsub.s32 0, %v899
      %v901 = vrot.slane %v896, %v900
      %v903 = vadd.f32 %v895, %v901
      %v904 = vld [vmem:[%s7] sm:$0x1]
      %v905 = vld [vmem:[%s8] sm:$0x1]
      %906 = vadd.xlane.f32.xlu0 %v903
      %v907 = vpop.xlane.xlu0 %906
      %v908 = vrcp.pop 128.0
      %v909 = vmul.f32 %v907, %v908
      %v910 = vsub.f32 %v903, %v909
      %v911 = vmul.f32 %v910, %v910
      %912 = vadd.xlane.f32.xlu0 %v911
      %v913 = vpop.xlane.xlu0 %912
      %v914 = vmul.f32 %v913, %v908
      %v915 = vadd.f32 %v914, 1e-05
      %v916 = vrsqrt.pop %v915
      %v917 = vmul.f32 %v910, %v916
      %v919 = vlaneseq
      %v920 = vshrl.u32 %v919, 7
      %v921 = vsub.s32 0, %v920
      %v922 = vrot.slane %v904, %v921
      %v924 = vmul.f32 %v917, %v922
      %v926 = vlaneseq
      %v927 = vshrl.u32 %v926, 7
      %v928 = vsub.s32 0, %v927
      %v929 = vrot.slane %v905, %v928
      %v931 = vadd.f32 %v924, %v929
      %932 = vst [vmem:[%s392] sm:$0xff] %v931
      %p933 = scmp.lt.s32.totalorder %s20, 1
      %s934 = scalar_select %p933, %s20, 1
      %s935 = smul.addr %s934, 8
      %s936 = scalar_lea.vmem %s9, %s935
      // Predicated region
      $region57: #{transformer_forward.25} parent=55 // pred_check
        %p937 = pneg %p252
      $region58: #{transformer_forward.25} parent=55 // pred_check_branch
        %939 = sbr.rel (%p937) target = $region60
      $region59: #{transformer_forward.25} parent=55 // pred_region
        _
      $region60: #{transformer_forward.25} parent=55 // pred_fallthru
        _
    $region56: #{transformer_forward.25} parent=5 // pred_fallthru
      _
    %p940 = scmp.le.s32.totalorder 2, %s15
    // Predicated region
    $region61: #{transformer_forward.25} parent=5 // pred_check
      %p941 = pneg %p940
    $region62: #{transformer_forward.25} parent=5 // pred_check_branch
      %943 = sbr.rel (%p941) target = $region64
    $region63: #{transformer_forward.25} parent=5 // pred_region
      %s944 = ssub.s32 %s15, 2
      // Predicated region
      $region65: #{transformer_forward.25} parent=63 // pred_check
        %p945 = pneg %p258
      $region66: #{transformer_forward.25} parent=63 // pred_check_branch
        %947 = sbr.rel (%p945) target = $region68
      $region67: #{transformer_forward.25} parent=63 // pred_region
        %p948 = scmp.lt.s32.totalorder %s21, 1
        %s949 = scalar_select %p948, %s21, 1
        %s950 = smul.addr %s949, 8
        %s951 = scalar_lea.vmem %s9, %s950
      $region68: #{transformer_forward.25} parent=63 // pred_fallthru
        _
    $region64: #{transformer_forward.25} parent=5 // pred_fallthru
      _
  $region6: #{transformer_forward.25} parent=0 // loop_footer
    %s19 = sadd.s32 1, %s15
  $region7: #{transformer_forward.25} parent=0 // loop_footer_branch
    %14 = sbr.rel target = $region3
  $region8: #{transformer_forward.25} parent=0 // loop_exit
    _

// kernel: transformer_forward.28
$region0: #{transformer_forward.28}
  #allocation0 [shape = 'u32[]', space=smem, size = 0x4, offset = 0x4, fixed_abs, tag = 'smem constant byte address 0x4 - core index']
  #allocation1 [shape = 'u32[144,128]{1,0:T(1,128)}', space=vmem, size = 0x12000, scoped, tag = 'internal scratch']
  %s0 = inlined_call_operand.vmem [shape: f32[2,8,128], index: 0, kind: input, shape index: {}]
  %s1 = inlined_call_operand.vmem [shape: f32[2,16,128], index: 1, kind: input, shape index: {}]
  %s2 = inlined_call_operand.vmem [shape: f32[2,16,128], index: 2, kind: input, shape index: {}]
  %s3 = inlined_call_operand.vmem [shape: f32[2,1,16], index: 3, kind: input, shape index: {}]
  %s4 = inlined_call_operand.vmem [shape: f32[128,128], index: 4, kind: input, shape index: {}]
  %s5 = inlined_call_operand.vmem [shape: f32[1,128], index: 5, kind: input, shape index: {}]
  %s6 = inlined_call_operand.vmem [shape: f32[2,8,128], index: 6, kind: input, shape index: {}]
  %s7 = inlined_call_operand.vmem [shape: f32[1,128], index: 7, kind: input, shape index: {}]
  %s8 = inlined_call_operand.vmem [shape: f32[1,128], index: 8, kind: input, shape index: {}]
  %s9 = inlined_call_operand.vmem [shape: f32[2,8,128], index: 9, kind: output, shape index: {}]
  %s10 = sld [smem:[#allocation0]]
  $region69: #{transformer_forward.28} parent=0
    _
  %s12 = ssub.s32 1, %s10
  %s13 = scalar_select 0, %s12, %s10
  loop: start=0, step=1, limit=4
  $region2: #{transformer_forward.28} parent=0 // loop_pre_header
    _
  $region3: #{transformer_forward.28} parent=0 // loop_header
    %s15 = sphi 0, %s19
    %p16 = scmp.ge.s32.totalorder %s15, 4
    %s25 = sphi 0, %s27
    %s28 = sphi 0, %s25
    %s29 = sphi 0, %s28
    %s45 = sphi 0, %s29
    %s51 = sphi 0, %s53
    %s54 = sphi 0, %s51
    %s55 = sphi 0, %s54
    %s71 = sphi 0, %s55
    %s77 = sphi 0, %s79
    %s80 = sphi 0, %s77
    %s81 = sphi 0, %s80
    %s97 = sphi 0, %s81
    %s103 = sphi 0, %s105
    %s106 = sphi 0, %s103
    %s107 = sphi 0, %s106
    %s123 = sphi 0, %s107
    %s127 = sphi 0, %s127
    %s129 = sphi 0, %s127
    %s130 = sphi 0, %s129
    %s144 = sphi 0, %s130
    %s148 = sphi 0, %s148
    %s150 = sphi 0, %s148
    %s151 = sphi 0, %s150
    %s165 = sphi 0, %s151
    %s171 = sphi 0, %s173
    %s174 = sphi 0, %s171
    %s175 = sphi 0, %s174
    %s191 = sphi 0, %s175
    %s195 = sphi 0, %s195
    %s197 = sphi 0, %s195
    %s198 = sphi 0, %s197
    %s212 = sphi 0, %s198
    %s216 = sphi 0, %s216
    %s218 = sphi 0, %s216
    %s219 = sphi 0, %s218
    %s233 = sphi 0, %s219
    %s239 = sphi 0, %s241
    %s242 = sphi 0, %s239
    %s243 = sphi 0, %s242
    %s259 = sphi 0, %s243
  $region4: #{transformer_forward.28} parent=0 // loop_header_branch
    %18 = sbr.rel (%p16) target = $region8
  $region5: #{transformer_forward.28} parent=0 // loop_body
    %s20 = ssub.s32 %s15, 1
    %s21 = ssub.s32 %s15, 2
    %s22 = sadd.s32 %s15, 1
    %s23 = ssub.s32 %s15, %s22
    %p24 = scmp.eq.s32.totalorder %s23, 0
    %s26 = sadd.s32 %s25, 1
    %s27 = scalar_select %p24, %s25, %s26
    %p30 = pneg %p24
    %p31 = scmp.eq.s32.totalorder %s15, 1
    %p32 = por %p30, %p31
    %p33 = scmp.ne.s32.totalorder %s25, %s28
    %p34 = scmp.eq.s32.totalorder %s15, 0
    %p35 = por %p33, %p34
    %p36 = scmp.ne.s32.totalorder %s25, %s28
    %p37 = scmp.eq.s32.totalorder %s20, 1
    %p38 = por %p36, %p37
    %p39 = scmp.ne.s32.totalorder %s28, %s29
    %p40 = scmp.eq.s32.totalorder %s20, 0
    %p41 = por %p39, %p40
    %p42 = scmp.ne.s32.totalorder %s28, %s29
    %p43 = scmp.eq.s32.totalorder %s21, 1
    %p44 = por %p42, %p43
    %p46 = scmp.ne.s32.totalorder %s29, %s45
    %p47 = scmp.eq.s32.totalorder %s21, 0
    %p48 = por %p46, %p47
    %s49 = ssub.s32 %s15, %s22
    %p50 = scmp.eq.s32.totalorder %s49, 0
    %s52 = sadd.s32 %s51, 1
    %s53 = scalar_select %p50, %s51, %s52
    %p56 = pneg %p50
    %p57 = scmp.eq.s32.totalorder %s15, 1
    %p58 = por %p56, %p57
    %p59 = scmp.ne.s32.totalorder %s51, %s54
    %p60 = scmp.eq.s32.totalorder %s15, 0
    %p61 = por %p59, %p60
    %p62 = scmp.ne.s32.totalorder %s51, %s54
    %p63 = scmp.eq.s32.totalorder %s20, 1
    %p64 = por %p62, %p63
    %p65 = scmp.ne.s32.totalorder %s54, %s55
    %p66 = scmp.eq.s32.totalorder %s20, 0
    %p67 = por %p65, %p66
    %p68 = scmp.ne.s32.totalorder %s54, %s55
    %p69 = scmp.eq.s32.totalorder %s21, 1
    %p70 = por %p68, %p69
    %p72 = scmp.ne.s32.totalorder %s55, %s71
    %p73 = scmp.eq.s32.totalorder %s21, 0
    %p74 = por %p72, %p73
    %s75 = ssub.s32 %s15, %s22
    %p76 = scmp.eq.s32.totalorder %s75, 0
    %s78 = sadd.s32 %s77, 1
    %s79 = scalar_select %p76, %s77, %s78
    %p82 = pneg %p76
    %p83 = scmp.eq.s32.totalorder %s15, 1
    %p84 = por %p82, %p83
    %p85 = scmp.ne.s32.totalorder %s77, %s80
    %p86 = scmp.eq.s32.totalorder %s15, 0
    %p87 = por %p85, %p86
    %p88 = scmp.ne.s32.totalorder %s77, %s80
    %p89 = scmp.eq.s32.totalorder %s20, 1
    %p90 = por %p88, %p89
    %p91 = scmp.ne.s32.totalorder %s80, %s81
    %p92 = scmp.eq.s32.totalorder %s20, 0
    %p93 = por %p91, %p92
    %p94 = scmp.ne.s32.totalorder %s80, %s81
    %p95 = scmp.eq.s32.totalorder %s21, 1
    %p96 = por %p94, %p95
    %p98 = scmp.ne.s32.totalorder %s81, %s97
    %p99 = scmp.eq.s32.totalorder %s21, 0
    %p100 = por %p98, %p99
    %s101 = ssub.s32 %s15, %s22
    %p102 = scmp.eq.s32.totalorder %s101, 0
    %s104 = sadd.s32 %s103, 1
    %s105 = scalar_select %p102, %s103, %s104
    %p108 = pneg %p102
    %p109 = scmp.eq.s32.totalorder %s15, 1
    %p110 = por %p108, %p109
    %p111 = scmp.ne.s32.totalorder %s103, %s106
    %p112 = scmp.eq.s32.totalorder %s15, 0
    %p113 = por %p111, %p112
    %p114 = scmp.ne.s32.totalorder %s103, %s106
    %p115 = scmp.eq.s32.totalorder %s20, 1
    %p116 = por %p114, %p115
    %p117 = scmp.ne.s32.totalorder %s106, %s107
    %p118 = scmp.eq.s32.totalorder %s20, 0
    %p119 = por %p117, %p118
    %p120 = scmp.ne.s32.totalorder %s106, %s107
    %p121 = scmp.eq.s32.totalorder %s21, 1
    %p122 = por %p120, %p121
    %p124 = scmp.ne.s32.totalorder %s107, %s123
    %p125 = scmp.eq.s32.totalorder %s21, 0
    %p126 = por %p124, %p125
    %s128 = sadd.s32 %s127, 1
    %p131 = scmp.eq.s32.totalorder %s15, 1
    %p132 = scmp.ne.s32.totalorder %s127, %s129
    %p133 = scmp.eq.s32.totalorder %s15, 0
    %p134 = por %p132, %p133
    %p135 = scmp.ne.s32.totalorder %s127, %s129
    %p136 = scmp.eq.s32.totalorder %s20, 1
    %p137 = por %p135, %p136
    %p138 = scmp.ne.s32.totalorder %s129, %s130
    %p139 = scmp.eq.s32.totalorder %s20, 0
    %p140 = por %p138, %p139
    %p141 = scmp.ne.s32.totalorder %s129, %s130
    %p142 = scmp.eq.s32.totalorder %s21, 1
    %p143 = por %p141, %p142
    %p145 = scmp.ne.s32.totalorder %s130, %s144
    %p146 = scmp.eq.s32.totalorder %s21, 0
    %p147 = por %p145, %p146
    %s149 = sadd.s32 %s148, 1
    %p152 = scmp.eq.s32.totalorder %s15, 1
    %p153 = scmp.ne.s32.totalorder %s148, %s150
    %p154 = scmp.eq.s32.totalorder %s15, 0
    %p155 = por %p153, %p154
    %p156 = scmp.ne.s32.totalorder %s148, %s150
    %p157 = scmp.eq.s32.totalorder %s20, 1
    %p158 = por %p156, %p157
    %p159 = scmp.ne.s32.totalorder %s150, %s151
    %p160 = scmp.eq.s32.totalorder %s20, 0
    %p161 = por %p159, %p160
    %p162 = scmp.ne.s32.totalorder %s150, %s151
    %p163 = scmp.eq.s32.totalorder %s21, 1
    %p164 = por %p162, %p163
    %p166 = scmp.ne.s32.totalorder %s151, %s165
    %p167 = scmp.eq.s32.totalorder %s21, 0
    %p168 = por %p166, %p167
    %s169 = ssub.s32 %s15, %s22
    %p170 = scmp.eq.s32.totalorder %s169, 0
    %s172 = sadd.s32 %s171, 1
    %s173 = scalar_select %p170, %s171, %s172
    %p176 = pneg %p170
    %p177 = scmp.eq.s32.totalorder %s15, 1
    %p178 = por %p176, %p177
    %p179 = scmp.ne.s32.totalorder %s171, %s174
    %p180 = scmp.eq.s32.totalorder %s15, 0
    %p181 = por %p179, %p180
    %p182 = scmp.ne.s32.totalorder %s171, %s174
    %p183 = scmp.eq.s32.totalorder %s20, 1
    %p184 = por %p182, %p183
    %p185 = scmp.ne.s32.totalorder %s174, %s175
    %p186 = scmp.eq.s32.totalorder %s20, 0
    %p187 = por %p185, %p186
    %p188 = scmp.ne.s32.totalorder %s174, %s175
    %p189 = scmp.eq.s32.totalorder %s21, 1
    %p190 = por %p188, %p189
    %p192 = scmp.ne.s32.totalorder %s175, %s191
    %p193 = scmp.eq.s32.totalorder %s21, 0
    %p194 = por %p192, %p193
    %s196 = sadd.s32 %s195, 1
    %p199 = scmp.eq.s32.totalorder %s15, 1
    %p200 = scmp.ne.s32.totalorder %s195, %s197
    %p201 = scmp.eq.s32.totalorder %s15, 0
    %p202 = por %p200, %p201
    %p203 = scmp.ne.s32.totalorder %s195, %s197
    %p204 = scmp.eq.s32.totalorder %s20, 1
    %p205 = por %p203, %p204
    %p206 = scmp.ne.s32.totalorder %s197, %s198
    %p207 = scmp.eq.s32.totalorder %s20, 0
    %p208 = por %p206, %p207
    %p209 = scmp.ne.s32.totalorder %s197, %s198
    %p210 = scmp.eq.s32.totalorder %s21, 1
    %p211 = por %p209, %p210
    %p213 = scmp.ne.s32.totalorder %s198, %s212
    %p214 = scmp.eq.s32.totalorder %s21, 0
    %p215 = por %p213, %p214
    %s217 = sadd.s32 %s216, 1
    %p220 = scmp.eq.s32.totalorder %s15, 1
    %p221 = scmp.ne.s32.totalorder %s216, %s218
    %p222 = scmp.eq.s32.totalorder %s15, 0
    %p223 = por %p221, %p222
    %p224 = scmp.ne.s32.totalorder %s216, %s218
    %p225 = scmp.eq.s32.totalorder %s20, 1
    %p226 = por %p224, %p225
    %p227 = scmp.ne.s32.totalorder %s218, %s219
    %p228 = scmp.eq.s32.totalorder %s20, 0
    %p229 = por %p227, %p228
    %p230 = scmp.ne.s32.totalorder %s218, %s219
    %p231 = scmp.eq.s32.totalorder %s21, 1
    %p232 = por %p230, %p231
    %p234 = scmp.ne.s32.totalorder %s219, %s233
    %p235 = scmp.eq.s32.totalorder %s21, 0
    %p236 = por %p234, %p235
    %s237 = ssub.s32 %s15, %s22
    %p238 = scmp.eq.s32.totalorder %s237, 0
    %s240 = sadd.s32 %s239, 1
    %s241 = scalar_select %p238, %s239, %s240
    %p244 = pneg %p238
    %p245 = scmp.eq.s32.totalorder %s15, 1
    %p246 = por %p244, %p245
    %p247 = scmp.ne.s32.totalorder %s239, %s242
    %p248 = scmp.eq.s32.totalorder %s15, 0
    %p249 = por %p247, %p248
    %p250 = scmp.ne.s32.totalorder %s239, %s242
    %p251 = scmp.eq.s32.totalorder %s20, 1
    %p252 = por %p250, %p251
    %p253 = scmp.ne.s32.totalorder %s242, %s243
    %p254 = scmp.eq.s32.totalorder %s20, 0
    %p255 = por %p253, %p254
    %p256 = scmp.ne.s32.totalorder %s242, %s243
    %p257 = scmp.eq.s32.totalorder %s21, 1
    %p258 = por %p256, %p257
    %p260 = scmp.ne.s32.totalorder %s243, %s259
    %p261 = scmp.eq.s32.totalorder %s21, 0
    %p262 = por %p260, %p261
    %p263 = scmp.le.s32.totalorder 1, %s15
    %p264 = scmp.lt.s32.totalorder %s15, 3
    %p265 = pnand %p263, %p264
    %p266 = pneg %p265
    // Predicated region
    $region9: #{transformer_forward.28} parent=5 // pred_check
      _
    $region10: #{transformer_forward.28} parent=5 // pred_check_branch
      %268 = sbr.rel (%p265) target = $region12
    $region11: #{transformer_forward.28} parent=5 // pred_region
      %s269 = ssub.s32 %s15, 1
      // Predicated region
      $region13: #{transformer_forward.28} parent=11 // pred_check
        %p270 = pneg %p140
      $region14: #{transformer_forward.28} parent=11 // pred_check_branch
        %272 = sbr.rel (%p270) target = $region16
      $region15: #{transformer_forward.28} parent=11 // pred_region
        _
      $region16: #{transformer_forward.28} parent=11 // pred_fallthru
        _
      // Predicated region
      $region17: #{transformer_forward.28} parent=11 // pred_check
        %p273 = pneg %p161
      $region18: #{transformer_forward.28} parent=11 // pred_check_branch
        %275 = sbr.rel (%p273) target = $region20
      $region19: #{transformer_forward.28} parent=11 // pred_region
        _
      $region20: #{transformer_forward.28} parent=11 // pred_fallthru
        _
      // Predicated region
      $region21: #{transformer_forward.28} parent=11 // pred_check
        %p276 = pneg %p208
      $region22: #{transformer_forward.28} parent=11 // pred_check_branch
        %278 = sbr.rel (%p276) target = $region24
      $region23: #{transformer_forward.28} parent=11 // pred_region
        _
      $region24: #{transformer_forward.28} parent=11 // pred_fallthru
        _
      // Predicated region
      $region25: #{transformer_forward.28} parent=11 // pred_check
        %p279 = pneg %p229
      $region26: #{transformer_forward.28} parent=11 // pred_check_branch
        %281 = sbr.rel (%p279) target = $region28
      $region27: #{transformer_forward.28} parent=11 // pred_region
        _
      $region28: #{transformer_forward.28} parent=11 // pred_fallthru
        _
    $region12: #{transformer_forward.28} parent=5 // pred_fallthru
      _
    %p282 = scmp.lt.s32.totalorder %s15, 2
    // Predicated region
    $region29: #{transformer_forward.28} parent=5 // pred_check
      %p283 = pneg %p282
    $region30: #{transformer_forward.28} parent=5 // pred_check_branch
      %285 = sbr.rel (%p283) target = $region32
    $region31: #{transformer_forward.28} parent=5 // pred_region
      // Predicated region
      $region33: #{transformer_forward.28} parent=31 // pred_check
        %p286 = pneg %p35
      $region34: #{transformer_forward.28} parent=31 // pred_check_branch
        %288 = sbr.rel (%p286) target = $region36
      $region35: #{transformer_forward.28} parent=31 // pred_region
        %p289 = scmp.lt.s32.totalorder %s15, 1
        %s290 = scalar_select %p289, %s15, 1
        %s291 = smul.addr %s290, 8
        %s292 = scalar_lea.vmem %s0, %s291
      $region36: #{transformer_forward.28} parent=31 // pred_fallthru
        _
      // Predicated region
      $region37: #{transformer_forward.28} parent=31 // pred_check
        %p293 = pneg %p61
      $region38: #{transformer_forward.28} parent=31 // pred_check_branch
        %295 = sbr.rel (%p293) target = $region40
      $region39: #{transformer_forward.28} parent=31 // pred_region
        %p296 = scmp.lt.s32.totalorder %s15, 1
        %s297 = scalar_select %p296, %s15, 1
        %s298 = smul.addr %s297, 2
        %s299 = smul.addr %s298, 8
        %s300 = scalar_lea.vmem %s1, %s299
      $region40: #{transformer_forward.28} parent=31 // pred_fallthru
        _
      // Predicated region
      $region41: #{transformer_forward.28} parent=31 // pred_check
        %p301 = pneg %p87
      $region42: #{transformer_forward.28} parent=31 // pred_check_branch
        %303 = sbr.rel (%p301) target = $region44
      $region43: #{transformer_forward.28} parent=31 // pred_region
        %p304 = scmp.lt.s32.totalorder %s15, 1
        %s305 = scalar_select %p304, %s15, 1
        %s306 = smul.addr %s305, 2
        %s307 = smul.addr %s306, 8
        %s308 = scalar_lea.vmem %s2, %s307
      $region44: #{transformer_forward.28} parent=31 // pred_fallthru
        _
      // Predicated region
      $region45: #{transformer_forward.28} parent=31 // pred_check
        %p309 = pneg %p113
      $region46: #{transformer_forward.28} parent=31 // pred_check_branch
        %311 = sbr.rel (%p309) target = $region48
      $region47: #{transformer_forward.28} parent=31 // pred_region
        %p312 = scmp.lt.s32.totalorder %s15, 1
        %s313 = scalar_select %p312, %s15, 1
        %s314 = scalar_lea.vmem %s3, %s313
      $region48: #{transformer_forward.28} parent=31 // pred_fallthru
        _
      // Predicated region
      $region49: #{transformer_forward.28} parent=31 // pred_check
        %p315 = pneg %p181
      $region50: #{transformer_forward.28} parent=31 // pred_check_branch
        %317 = sbr.rel (%p315) target = $region52
      $region51: #{transformer_forward.28} parent=31 // pred_region
        %p318 = scmp.lt.s32.totalorder %s15, 1
        %s319 = scalar_select %p318, %s15, 1
        %s320 = smul.addr %s319, 8
        %s321 = scalar_lea.vmem %s6, %s320
      $region52: #{transformer_forward.28} parent=31 // pred_fallthru
        _
    $region32: #{transformer_forward.28} parent=5 // pred_fallthru
      _
    %p322 = scmp.le.s32.totalorder 1, %s15
    %p323 = scmp.lt.s32.totalorder %s15, 3
    %p324 = pnand %p322, %p323
    %p325 = pneg %p324
    // Predicated region
    $region53: #{transformer_forward.28} parent=5 // pred_check
      _
    $region54: #{transformer_forward.28} parent=5 // pred_check_branch
      %327 = sbr.rel (%p324) target = $region56
    $region55: #{transformer_forward.28} parent=5 // pred_region
      %s328 = ssub.s32 %s15, 1
      %p329 = scmp.lt.s32.totalorder %s20, 1
      %s330 = scalar_select %p329, %s20, 1
      %s331 = smul.addr %s330, 8
      %s332 = scalar_lea.vmem %s0, %s331
      %p333 = pneg %p41
      %p334 = pneg %p38
      %p335 = scmp.lt.s32.totalorder %s20, 1
      %s336 = scalar_select %p335, %s20, 1
      %s337 = smul.addr %s336, 2
      %s338 = smul.addr %s337, 8
      %s339 = scalar_lea.vmem %s1, %s338
      %p340 = pneg %p67
      %p341 = pneg %p64
      %p342 = scmp.lt.s32.totalorder %s20, 1
      %s343 = scalar_select %p342, %s20, 1
      %s344 = smul.addr %s343, 2
      %s345 = smul.addr %s344, 8
      %s346 = scalar_lea.vmem %s2, %s345
      %p347 = pneg %p93
      %p348 = pneg %p90
      %p349 = scmp.lt.s32.totalorder %s20, 1
      %s350 = scalar_select %p349, %s20, 1
      %s351 = scalar_lea.vmem %s3, %s350
      %p352 = pneg %p119
      %p353 = pneg %p116
      %p354 = pneg %p140
      %p355 = pneg %p137
      %p356 = pneg %p161
      %p357 = pneg %p158
      %p358 = scmp.lt.s32.totalorder %s20, 1
      %s359 = scalar_select %p358, %s20, 1
      %s360 = smul.addr %s359, 8
      %s361 = scalar_lea.vmem %s6, %s360
      %p362 = pneg %p187
      %p363 = pneg %p184
      %p364 = pneg %p208
      %p365 = pneg %p205
      %p366 = pneg %p229
      %p367 = pneg %p226
      %p368 = pneg %p255
      %p369 = pneg %p252
      %p370 = scmp.lt.s32.totalorder %s20, 1
      %s371 = scalar_select %p370, %s20, 1
      %s372 = smul.addr %s371, 8
      %s373 = scalar_lea.vmem %s9, %s372
      %p374 = scmp.lt.s32.totalorder %s20, 1
      %s375 = scalar_select %p374, %s20, 1
      %s376 = smul.addr %s375, 8
      %s377 = scalar_lea.vmem %s0, %s376
      %p378 = scmp.lt.s32.totalorder %s20, 1
      %s379 = scalar_select %p378, %s20, 1
      %s380 = smul.addr %s379, 2
      %s381 = smul.addr %s380, 8
      %s382 = scalar_lea.vmem %s1, %s381
      %p383 = scmp.lt.s32.totalorder %s20, 1
      %s384 = scalar_select %p383, %s20, 1
      %s385 = smul.addr %s384, 2
      %s386 = smul.addr %s385, 8
      %s387 = scalar_lea.vmem %s2, %s386
      %p388 = scmp.lt.s32.totalorder %s20, 1
      %s389 = scalar_select %p388, %s20, 1
      %s390 = scalar_lea.vmem %s3, %s389
      %p391 = scmp.lt.s32.totalorder %s20, 1
      %s392 = scalar_select %p391, %s20, 1
      %s393 = smul.addr %s392, 8
      %s394 = scalar_lea.vmem %s6, %s393
      %p395 = scmp.lt.s32.totalorder %s20, 1
      %s396 = scalar_select %p395, %s20, 1
      %s397 = smul.addr %s396, 8
      %s398 = scalar_lea.vmem %s9, %s397
      %v399 = vld [vmem:[%s377] sm:$0xff]
      %v400 = vmul.f32 %v399, 0.125
      %v401 = vld [vmem:[%s382] sm:$0xff]
      %v402 = vld [vmem:[%s382 + $0x8] sm:$0xff]
      %v403 = vld [vmem:[%s387] sm:$0xff]
      %v404 = vld [vmem:[%s387 + $0x8] sm:$0xff]
      %v405 = vld [vmem:[%s390] sm:$0x1]
      %v406 = vld [vmem:[%s4] sm:$0xff]
      %v407 = vld [vmem:[%s4 + $0x8] sm:$0xff]
      %v408 = vld [vmem:[%s4 + $0x10] sm:$0xff]
      %v409 = vld [vmem:[%s4 + $0x18] sm:$0xff]
      %v410 = vld [vmem:[%s4 + $0x20] sm:$0xff]
      %v411 = vld [vmem:[%s4 + $0x28] sm:$0xff]
      %v412 = vld [vmem:[%s4 + $0x30] sm:$0xff]
      %v413 = vld [vmem:[%s4 + $0x38] sm:$0xff]
      %v414 = vld [vmem:[%s4 + $0x40] sm:$0xff]
      %v415 = vld [vmem:[%s4 + $0x48] sm:$0xff]
      %v416 = vld [vmem:[%s4 + $0x50] sm:$0xff]
      %v417 = vld [vmem:[%s4 + $0x58] sm:$0xff]
      %v418 = vld [vmem:[%s4 + $0x60] sm:$0xff]
      %v419 = vld [vmem:[%s4 + $0x68] sm:$0xff]
      %v420 = vld [vmem:[%s4 + $0x70] sm:$0xff]
      %v421 = vld [vmem:[%s4 + $0x78] sm:$0xff]
      %v423 = vlaneseq
      %v424 = vshrl.u32 %v423, 7
      %v425 = vsub.s32 0, %v424
      %v426 = vrot.slane %v405, %v425
      %vm428 = vcmask 523264
      %v430 = vsel %vm428, %v400, 0
      %v433 = vsel %vm428, %v401, 0
      %v436 = vsel %vm428, %v402, 0
      %438 = vmatprep.subr.mxu0 0.0
      %439 = vmatpush1.xpose.msra.mxu0 %v433
      %440 = vmatprep.subr.mxu0 0.0
      %441 = vmatpush1.xpose.msra.mxu0 %v436
      %442 = vmatprep.subr.mxu0 0.0
      %443 = vmatpush1.xpose.msra.mxu0 0.0
      %444 = vmatprep.subr.mxu0 0.0
      %445 = vmatpush1.xpose.msra.mxu0 0.0
      %446 = vmatprep.subr.mxu0 0.0
      %447 = vmatpush1.xpose.msra.mxu0 0.0
      %448 = vmatprep.subr.mxu0 0.0
      %449 = vmatpush1.xpose.msra.mxu0 0.0
      %450 = vmatprep.subr.mxu0 0.0
      %451 = vmatpush1.xpose.msra.mxu0 0.0
      %452 = vmatprep.subr.mxu0 0.0
      %453 = vmatpush1.xpose.msra.mxu0 0.0
      %454 = vmatprep.subr.mxu0 0.0
      %455 = vmatpush1.xpose.msra.mxu0 0.0
      %456 = vmatprep.subr.mxu0 0.0
      %457 = vmatpush1.xpose.msra.mxu0 0.0
      %458 = vmatprep.subr.mxu0 0.0
      %459 = vmatpush1.xpose.msra.mxu0 0.0
      %460 = vmatprep.subr.mxu0 0.0
      %461 = vmatpush1.xpose.msra.mxu0 0.0
      %462 = vmatprep.subr.mxu0 0.0
      %463 = vmatpush1.xpose.msra.mxu0 0.0
      %464 = vmatprep.subr.mxu0 0.0
      %465 = vmatpush1.xpose.msra.mxu0 0.0
      %466 = vmatprep.subr.mxu0 0.0
      %467 = vmatpush1.xpose.msra.mxu0 0.0
      %468 = vmatprep.subr.mxu0 0.0
      %469 = vmatpush1.xpose.msra.mxu0 0.0
      %470 = vmatprep.subr.mxu0 0.0
      %471 = vmatpush1.xpose.msra.mxu0 0.0
      %472 = vmatprep.subr.mxu0 0.0
      %473 = vmatpush1.xpose.msra.mxu0 0.0
      %474 = vmatprep.subr.mxu0 0.0
      %475 = vmatpush1.xpose.msra.mxu0 0.0
      %476 = vmatprep.subr.mxu0 0.0
      %477 = vmatpush1.xpose.msra.mxu0 0.0
      %478 = vmatprep.subr.mxu0 0.0
      %479 = vmatpush1.xpose.msra.mxu0 0.0
      %480 = vmatprep.subr.mxu0 0.0
      %481 = vmatpush1.xpose.msra.mxu0 0.0
      %482 = vmatprep.subr.mxu0 0.0
      %483 = vmatpush1.xpose.msra.mxu0 0.0
      %484 = vmatprep.subr.mxu0 0.0
      %485 = vmatpush1.xpose.msra.mxu0 0.0
      %486 = vmatprep.subr.mxu0 0.0
      %487 = vmatpush1.xpose.msra.mxu0 0.0
      %488 = vmatprep.subr.mxu0 0.0
      %489 = vmatpush1.xpose.msra.mxu0 0.0
      %490 = vmatprep.subr.mxu0 0.0
      %491 = vmatpush1.xpose.msra.mxu0 0.0
      %492 = vmatprep.subr.mxu0 0.0
      %493 = vmatpush1.xpose.msra.mxu0 0.0
      %494 = vmatprep.subr.mxu0 0.0
      %495 = vmatpush1.xpose.msra.mxu0 0.0
      %496 = vmatprep.subr.mxu0 0.0
      %497 = vmatpush1.xpose.msra.mxu0 0.0
      %498 = vmatprep.subr.mxu0 0.0
      %499 = vmatpush1.xpose.msra.mxu0 0.0
      %500 = vmatprep.subr.mxu0 0.0
      %501 = vmatpush1.xpose.msra.mxu0 0.0
      %502 = vmatprep.mubr.f32.mxu0 0.0
      %503 = vmatmul.mubr.f32.gmra.mrb[0].mxu0 %v430
      %v504 = vpop.f32.mrb[0].mxu0
      %v505 = vadd.f32 %v426, %v504
      %v506 = vpop.f32.mrb[0].mxu0
      %507 = vdwg.mxu0
      %vm508 = vcmask 130048
      %v509 = vsel %vm508, %v505, -inf
      %510 = vmax.xlane.f32.xlu0 %v509
      %v511 = vpop.xlane.xlu0 %510
      %v512 = vsub.f32 %v505, %v511
      %v513 = vmul.f32 %v512, 1.442695
      %v514 = vpow.pop %v513
      %v515 = vsel %vm508, %v514, 0.0
      %516 = vadd.xlane.f32.xlu0 %v515
      %v517 = vpop.xlane.xlu0 %516
      %v518 = vrcp.pop %v517
      %v519 = vmul.f32 %v514, %v518
      %v521 = vsel %vm508, %v519, 0
      %523 = vmatprep.subr.mxu0 0.0
      %524 = vmatpush1.msra.mxu0 %v403
      %525 = vmatprep.subr.mxu0 0.0
      %526 = vmatpush1.msra.mxu0 %v404
      %527 = vmatprep.subr.mxu0 0.0
      %528 = vmatpush1.msra.mxu0 0.0
      %529 = vmatprep.subr.mxu0 0.0
      %530 = vmatpush1.msra.mxu0 0.0
      %531 = vmatprep.subr.mxu0 0.0
      %532 = vmatpush1.msra.mxu0 0.0
      %533 = vmatprep.subr.mxu0 0.0
      %534 = vmatpush1.msra.mxu0 0.0
      %535 = vmatprep.subr.mxu0 0.0
      %536 = vmatpush1.msra.mxu0 0.0
      %537 = vmatprep.subr.mxu0 0.0
      %538 = vmatpush1.msra.mxu0 0.0
      %539 = vmatprep.subr.mxu0 0.0
      %540 = vmatpush1.msra.mxu0 0.0
      %541 = vmatprep.subr.mxu0 0.0
      %542 = vmatpush1.msra.mxu0 0.0
      %543 = vmatprep.subr.mxu0 0.0
      %544 = vmatpush1.msra.mxu0 0.0
      %545 = vmatprep.subr.mxu0 0.0
      %546 = vmatpush1.msra.mxu0 0.0
      %547 = vmatprep.subr.mxu0 0.0
      %548 = vmatpush1.msra.mxu0 0.0
      %549 = vmatprep.subr.mxu0 0.0
      %550 = vmatpush1.msra.mxu0 0.0
      %551 = vmatprep.subr.mxu0 0.0
      %552 = vmatpush1.msra.mxu0 0.0
      %553 = vmatprep.subr.mxu0 0.0
      %554 = vmatpush1.msra.mxu0 0.0
      %555 = vmatprep.subr.mxu0 0.0
      %556 = vmatpush1.msra.mxu0 0.0
      %557 = vmatprep.subr.mxu0 0.0
      %558 = vmatpush1.msra.mxu0 0.0
      %559 = vmatprep.subr.mxu0 0.0
      %560 = vmatpush1.msra.mxu0 0.0
      %561 = vmatprep.subr.mxu0 0.0
      %562 = vmatpush1.msra.mxu0 0.0
      %563 = vmatprep.subr.mxu0 0.0
      %564 = vmatpush1.msra.mxu0 0.0
      %565 = vmatprep.subr.mxu0 0.0
      %566 = vmatpush1.msra.mxu0 0.0
      %567 = vmatprep.subr.mxu0 0.0
      %568 = vmatpush1.msra.mxu0 0.0
      %569 = vmatprep.subr.mxu0 0.0
      %570 = vmatpush1.msra.mxu0 0.0
      %571 = vmatprep.subr.mxu0 0.0
      %572 = vmatpush1.msra.mxu0 0.0
      %573 = vmatprep.subr.mxu0 0.0
      %574 = vmatpush1.msra.mxu0 0.0
      %575 = vmatprep.subr.mxu0 0.0
      %576 = vmatpush1.msra.mxu0 0.0
      %577 = vmatprep.subr.mxu0 0.0
      %578 = vmatpush1.msra.mxu0 0.0
      %579 = vmatprep.subr.mxu0 0.0
      %580 = vmatpush1.msra.mxu0 0.0
      %581 = vmatprep.subr.mxu0 0.0
      %582 = vmatpush1.msra.mxu0 0.0
      %583 = vmatprep.subr.mxu0 0.0
      %584 = vmatpush1.msra.mxu0 0.0
      %585 = vmatprep.subr.mxu0 0.0
      %586 = vmatpush1.msra.mxu0 0.0
      %587 = vmatprep.mubr.f32.mxu0 0.0
      %588 = vmatmul.mubr.f32.gmra.mrb[0].mxu0 %v521
      %v589 = vpop.f32.mrb[0].mxu0
      %v590 = vadd.f32 0.0, %v589
      %v591 = vpop.f32.mrb[0].mxu0
      %592 = vdwg.mxu0
      %593 = vrot.lane.b32.xlu0 %v400, 64
      %v594 = vpop.permute.xlu0 %593
      %595 = vrot.lane.b32.xlu0 %v401, 64
      %v596 = vpop.permute.xlu0 %595
      %597 = vrot.lane.b32.xlu0 %v402, 64
      %v598 = vpop.permute.xlu0 %597
      %v599 = vsel %vm428, %v594, 0
      %v601 = vsel %vm428, %v596, 0
      %v603 = vsel %vm428, %v598, 0
      %605 = vmatprep.subr.mxu0 0.0
      %606 = vmatpush1.xpose.msra.mxu0 %v601
      %607 = vmatprep.subr.mxu0 0.0
      %608 = vmatpush1.xpose.msra.mxu0 %v603
      %609 = vmatprep.subr.mxu0 0.0
      %610 = vmatpush1.xpose.msra.mxu0 0.0
      %611 = vmatprep.subr.mxu0 0.0
      %612 = vmatpush1.xpose.msra.mxu0 0.0
      %613 = vmatprep.subr.mxu0 0.0
      %614 = vmatpush1.xpose.msra.mxu0 0.0
      %615 = vmatprep.subr.mxu0 0.0
      %616 = vmatpush1.xpose.msra.mxu0 0.0
      %617 = vmatprep.subr.mxu0 0.0
      %618 = vmatpush1.xpose.msra.mxu0 0.0
      %619 = vmatprep.subr.mxu0 0.0
      %620 = vmatpush1.xpose.msra.mxu0 0.0
      %621 = vmatprep.subr.mxu0 0.0
      %622 = vmatpush1.xpose.msra.mxu0 0.0
      %623 = vmatprep.subr.mxu0 0.0
      %624 = vmatpush1.xpose.msra.mxu0 0.0
      %625 = vmatprep.subr.mxu0 0.0
      %626 = vmatpush1.xpose.msra.mxu0 0.0
      %627 = vmatprep.subr.mxu0 0.0
      %628 = vmatpush1.xpose.msra.mxu0 0.0
      %629 = vmatprep.subr.mxu0 0.0
      %630 = vmatpush1.xpose.msra.mxu0 0.0
      %631 = vmatprep.subr.mxu0 0.0
      %632 = vmatpush1.xpose.msra.mxu0 0.0
      %633 = vmatprep.subr.mxu0 0.0
      %634 = vmatpush1.xpose.msra.mxu0 0.0
      %635 = vmatprep.subr.mxu0 0.0
      %636 = vmatpush1.xpose.msra.mxu0 0.0
      %637 = vmatprep.subr.mxu0 0.0
      %638 = vmatpush1.xpose.msra.mxu0 0.0
      %639 = vmatprep.subr.mxu0 0.0
      %640 = vmatpush1.xpose.msra.mxu0 0.0
      %641 = vmatprep.subr.mxu0 0.0
      %642 = vmatpush1.xpose.msra.mxu0 0.0
      %643 = vmatprep.subr.mxu0 0.0
      %644 = vmatpush1.xpose.msra.mxu0 0.0
      %645 = vmatprep.subr.mxu0 0.0
      %646 = vmatpush1.xpose.msra.mxu0 0.0
      %647 = vmatprep.subr.mxu0 0.0
      %648 = vmatpush1.xpose.msra.mxu0 0.0
      %649 = vmatprep.subr.mxu0 0.0
      %650 = vmatpush1.xpose.msra.mxu0 0.0
      %651 = vmatprep.subr.mxu0 0.0
      %652 = vmatpush1.xpose.msra.mxu0 0.0
      %653 = vmatprep.subr.mxu0 0.0
      %654 = vmatpush1.xpose.msra.mxu0 0.0
      %655 = vmatprep.subr.mxu0 0.0
      %656 = vmatpush1.xpose.msra.mxu0 0.0
      %657 = vmatprep.subr.mxu0 0.0
      %658 = vmatpush1.xpose.msra.mxu0 0.0
      %659 = vmatprep.subr.mxu0 0.0
      %660 = vmatpush1.xpose.msra.mxu0 0.0
      %661 = vmatprep.subr.mxu0 0.0
      %662 = vmatpush1.xpose.msra.mxu0 0.0
      %663 = vmatprep.subr.mxu0 0.0
      %664 = vmatpush1.xpose.msra.mxu0 0.0
      %665 = vmatprep.subr.mxu0 0.0
      %666 = vmatpush1.xpose.msra.mxu0 0.0
      %667 = vmatprep.subr.mxu0 0.0
      %668 = vmatpush1.xpose.msra.mxu0 0.0
      %669 = vmatprep.mubr.f32.mxu0 0.0
      %670 = vmatmul.mubr.f32.gmra.mrb[0].mxu0 %v599
      %v671 = vpop.f32.mrb[0].mxu0
      %v672 = vadd.f32 %v426, %v671
      %v673 = vpop.f32.mrb[0].mxu0
      %674 = vdwg.mxu0
      %v675 = vsel %vm508, %v672, -inf
      %676 = vmax.xlane.f32.xlu0 %v675
      %v677 = vpop.xlane.xlu0 %676
      %v678 = vsub.f32 %v672, %v677
      %v679 = vmul.f32 %v678, 1.442695
      %v680 = vpow.pop %v679
      %v681 = vsel %vm508, %v680, 0.0
      %682 = vadd.xlane.f32.xlu0 %v681
      %v683 = vpop.xlane.xlu0 %682
      %v684 = vrcp.pop %v683
      %v685 = vmul.f32 %v680, %v684
      %688 = vrot.lane.b32.xlu0 %v403, 64
      %v689 = vpop.permute.xlu0 %688
      %690 = vrot.lane.b32.xlu0 %v404, 64
      %v691 = vpop.permute.xlu0 %690
      %v695 = vsel %vm508, %v685, 0
      %697 = vmatprep.subr.mxu0 0.0
      %698 = vmatpush1.msra.mxu0 %v689
      %699 = vmatprep.subr.mxu0 0.0
      %700 = vmatpush1.msra.mxu0 %v691
      %701 = vmatprep.subr.mxu0 0.0
      %702 = vmatpush1.msra.mxu0 0.0
      %703 = vmatprep.subr.mxu0 0.0
      %704 = vmatpush1.msra.mxu0 0.0
      %705 = vmatprep.subr.mxu0 0.0
      %706 = vmatpush1.msra.mxu0 0.0
      %707 = vmatprep.subr.mxu0 0.0
      %708 = vmatpush1.msra.mxu0 0.0
      %709 = vmatprep.subr.mxu0 0.0
      %710 = vmatpush1.msra.mxu0 0.0
      %711 = vmatprep.subr.mxu0 0.0
      %712 = vmatpush1.msra.mxu0 0.0
      %713 = vmatprep.subr.mxu0 0.0
      %714 = vmatpush1.msra.mxu0 0.0
      %715 = vmatprep.subr.mxu0 0.0
      %716 = vmatpush1.msra.mxu0 0.0
      %717 = vmatprep.subr.mxu0 0.0
      %718 = vmatpush1.msra.mxu0 0.0
      %719 = vmatprep.subr.mxu0 0.0
      %720 = vmatpush1.msra.mxu0 0.0
      %721 = vmatprep.subr.mxu0 0.0
      %722 = vmatpush1.msra.mxu0 0.0
      %723 = vmatprep.subr.mxu0 0.0
      %724 = vmatpush1.msra.mxu0 0.0
      %725 = vmatprep.subr.mxu0 0.0
      %726 = vmatpush1.msra.mxu0 0.0
      %727 = vmatprep.subr.mxu0 0.0
      %728 = vmatpush1.msra.mxu0 0.0
      %729 = vmatprep.subr.mxu0 0.0
      %730 = vmatpush1.msra.mxu0 0.0
      %731 = vmatprep.subr.mxu0 0.0
      %732 = vmatpush1.msra.mxu0 0.0
      %733 = vmatprep.subr.mxu0 0.0
      %734 = vmatpush1.msra.mxu0 0.0
      %735 = vmatprep.subr.mxu0 0.0
      %736 = vmatpush1.msra.mxu0 0.0
      %737 = vmatprep.subr.mxu0 0.0
      %738 = vmatpush1.msra.mxu0 0.0
      %739 = vmatprep.subr.mxu0 0.0
      %740 = vmatpush1.msra.mxu0 0.0
      %741 = vmatprep.subr.mxu0 0.0
      %742 = vmatpush1.msra.mxu0 0.0
      %743 = vmatprep.subr.mxu0 0.0
      %744 = vmatpush1.msra.mxu0 0.0
      %745 = vmatprep.subr.mxu0 0.0
      %746 = vmatpush1.msra.mxu0 0.0
      %747 = vmatprep.subr.mxu0 0.0
      %748 = vmatpush1.msra.mxu0 0.0
      %749 = vmatprep.subr.mxu0 0.0
      %750 = vmatpush1.msra.mxu0 0.0
      %751 = vmatprep.subr.mxu0 0.0
      %752 = vmatpush1.msra.mxu0 0.0
      %753 = vmatprep.subr.mxu0 0.0
      %754 = vmatpush1.msra.mxu0 0.0
      %755 = vmatprep.subr.mxu0 0.0
      %756 = vmatpush1.msra.mxu0 0.0
      %757 = vmatprep.subr.mxu0 0.0
      %758 = vmatpush1.msra.mxu0 0.0
      %759 = vmatprep.subr.mxu0 0.0
      %760 = vmatpush1.msra.mxu0 0.0
      %761 = vmatprep.mubr.f32.mxu0 0.0
      %762 = vmatmul.mubr.f32.gmra.mrb[0].mxu0 %v695
      %v763 = vpop.f32.mrb[0].mxu0
      %v764 = vadd.f32 0.0, %v763
      %v765 = vpop.f32.mrb[0].mxu0
      %766 = vdwg.mxu0
      %v768 = vsel %vm428, %v764, 0
      %770 = vmatprep.subr.mxu0 0.0
      %771 = vmatpush1.msra.mxu0 %v414
      %772 = vmatprep.subr.mxu0 0.0
      %773 = vmatpush1.msra.mxu0 %v415
      %774 = vmatprep.subr.mxu0 0.0
      %775 = vmatpush1.msra.mxu0 %v416
      %776 = vmatprep.subr.mxu0 0.0
      %777 = vmatpush1.msra.mxu0 %v417
      %778 = vmatprep.subr.mxu0 0.0
      %779 = vmatpush1.msra.mxu0 %v418
      %780 = vmatprep.subr.mxu0 0.0
      %781 = vmatpush1.msra.mxu0 %v419
      %782 = vmatprep.subr.mxu0 0.0
      %783 = vmatpush1.msra.mxu0 %v420
      %784 = vmatprep.subr.mxu0 0.0
      %785 = vmatpush1.msra.mxu0 %v421
      %786 = vmatprep.subr.mxu0 0.0
      %787 = vmatpush1.msra.mxu0 0.0
      %788 = vmatprep.subr.mxu0 0.0
      %789 = vmatpush1.msra.mxu0 0.0
      %790 = vmatprep.subr.mxu0 0.0
      %791 = vmatpush1.msra.mxu0 0.0
      %792 = vmatprep.subr.mxu0 0.0
      %793 = vmatpush1.msra.mxu0 0.0
      %794 = vmatprep.subr.mxu0 0.0
      %795 = vmatpush1.msra.mxu0 0.0
      %796 = vmatprep.subr.mxu0 0.0
      %797 = vmatpush1.msra.mxu0 0.0
      %798 = vmatprep.subr.mxu0 0.0
      %799 = vmatpush1.msra.mxu0 0.0
      %800 = vmatprep.subr.mxu0 0.0
      %801 = vmatpush1.msra.mxu0 0.0
      %802 = vmatprep.subr.mxu0 0.0
      %803 = vmatpush1.msra.mxu0 0.0
      %804 = vmatprep.subr.mxu0 0.0
      %805 = vmatpush1.msra.mxu0 0.0
      %806 = vmatprep.subr.mxu0 0.0
      %807 = vmatpush1.msra.mxu0 0.0
      %808 = vmatprep.subr.mxu0 0.0
      %809 = vmatpush1.msra.mxu0 0.0
      %810 = vmatprep.subr.mxu0 0.0
      %811 = vmatpush1.msra.mxu0 0.0
      %812 = vmatprep.subr.mxu0 0.0
      %813 = vmatpush1.msra.mxu0 0.0
      %814 = vmatprep.subr.mxu0 0.0
      %815 = vmatpush1.msra.mxu0 0.0
      %816 = vmatprep.subr.mxu0 0.0
      %817 = vmatpush1.msra.mxu0 0.0
      %818 = vmatprep.subr.mxu0 0.0
      %819 = vmatpush1.msra.mxu0 0.0
      %820 = vmatprep.subr.mxu0 0.0
      %821 = vmatpush1.msra.mxu0 0.0
      %822 = vmatprep.subr.mxu0 0.0
      %823 = vmatpush1.msra.mxu0 0.0
      %824 = vmatprep.subr.mxu0 0.0
      %825 = vmatpush1.msra.mxu0 0.0
      %826 = vmatprep.subr.mxu0 0.0
      %827 = vmatpush1.msra.mxu0 0.0
      %828 = vmatprep.subr.mxu0 0.0
      %829 = vmatpush1.msra.mxu0 0.0
      %830 = vmatprep.subr.mxu0 0.0
      %831 = vmatpush1.msra.mxu0 0.0
      %832 = vmatprep.subr.mxu0 0.0
      %833 = vmatpush1.msra.mxu0 0.0
      %834 = vmatprep.mubr.f32.mxu0 0.0
      %835 = vmatmul.mubr.f32.gmra.mrb[0].mxu0 %v768
      %v836 = vpop.f32.mrb[0].mxu0
      %v837 = vadd.f32 0.0, %v836
      %v838 = vpop.f32.mrb[0].mxu0
      %839 = vdwg.mxu0
      %v841 = vsel %vm428, %v590, 0
      %843 = vmatprep.subr.mxu0 0.0
      %844 = vmatpush1.msra.mxu0 %v406
      %845 = vmatprep.subr.mxu0 0.0
      %846 = vmatpush1.msra.mxu0 %v407
      %847 = vmatprep.subr.mxu0 0.0
      %848 = vmatpush1.msra.mxu0 %v408
      %849 = vmatprep.subr.mxu0 0.0
      %850 = vmatpush1.msra.mxu0 %v409
      %851 = vmatprep.subr.mxu0 0.0
      %852 = vmatpush1.msra.mxu0 %v410
      %853 = vmatprep.subr.mxu0 0.0
      %854 = vmatpush1.msra.mxu0 %v411
      %855 = vmatprep.subr.mxu0 0.0
      %856 = vmatpush1.msra.mxu0 %v412
      %857 = vmatprep.subr.mxu0 0.0
      %858 = vmatpush1.msra.mxu0 %v413
      %859 = vmatprep.subr.mxu0 0.0
      %860 = vmatpush1.msra.mxu0 0.0
      %861 = vmatprep.subr.mxu0 0.0
      %862 = vmatpush1.msra.mxu0 0.0
      %863 = vmatprep.subr.mxu0 0.0
      %864 = vmatpush1.msra.mxu0 0.0
      %865 = vmatprep.subr.mxu0 0.0
      %866 = vmatpush1.msra.mxu0 0.0
      %867 = vmatprep.subr.mxu0 0.0
      %868 = vmatpush1.msra.mxu0 0.0
      %869 = vmatprep.subr.mxu0 0.0
      %870 = vmatpush1.msra.mxu0 0.0
      %871 = vmatprep.subr.mxu0 0.0
      %872 = vmatpush1.msra.mxu0 0.0
      %873 = vmatprep.subr.mxu0 0.0
      %874 = vmatpush1.msra.mxu0 0.0
      %875 = vmatprep.subr.mxu0 0.0
      %876 = vmatpush1.msra.mxu0 0.0
      %877 = vmatprep.subr.mxu0 0.0
      %878 = vmatpush1.msra.mxu0 0.0
      %879 = vmatprep.subr.mxu0 0.0
      %880 = vmatpush1.msra.mxu0 0.0
      %881 = vmatprep.subr.mxu0 0.0
      %882 = vmatpush1.msra.mxu0 0.0
      %883 = vmatprep.subr.mxu0 0.0
      %884 = vmatpush1.msra.mxu0 0.0
      %885 = vmatprep.subr.mxu0 0.0
      %886 = vmatpush1.msra.mxu0 0.0
      %887 = vmatprep.subr.mxu0 0.0
      %888 = vmatpush1.msra.mxu0 0.0
      %889 = vmatprep.subr.mxu0 0.0
      %890 = vmatpush1.msra.mxu0 0.0
      %891 = vmatprep.subr.mxu0 0.0
      %892 = vmatpush1.msra.mxu0 0.0
      %893 = vmatprep.subr.mxu0 0.0
      %894 = vmatpush1.msra.mxu0 0.0
      %895 = vmatprep.subr.mxu0 0.0
      %896 = vmatpush1.msra.mxu0 0.0
      %897 = vmatprep.subr.mxu0 0.0
      %898 = vmatpush1.msra.mxu0 0.0
      %899 = vmatprep.subr.mxu0 0.0
      %900 = vmatpush1.msra.mxu0 0.0
      %901 = vmatprep.subr.mxu0 0.0
      %902 = vmatpush1.msra.mxu0 0.0
      %903 = vmatprep.subr.mxu0 0.0
      %904 = vmatpush1.msra.mxu0 0.0
      %905 = vmatprep.subr.mxu0 0.0
      %906 = vmatpush1.msra.mxu0 0.0
      %907 = vmatprep.mubr.f32.mxu0 0.0
      %908 = vmatmul.mubr.f32.gmra.mrb[0].mxu0 %v841
      %v909 = vpop.f32.mrb[0].mxu0
      %v910 = vadd.f32 %v837, %v909
      %v911 = vpop.f32.mrb[0].mxu0
      %912 = vdwg.mxu0
      %v913 = vld [vmem:[%s394] sm:$0xff]
      %v914 = vadd.f32 %v913, %v910
      %v915 = vld [vmem:[%s5] sm:$0x1]
      %v917 = vlaneseq
      %v918 = vshrl.u32 %v917, 7
      %v919 = vsub.s32 0, %v918
      %v920 = vrot.slane %v915, %v919
      %v922 = vadd.f32 %v914, %v920
      %v923 = vld [vmem:[%s7] sm:$0x1]
      %v924 = vld [vmem:[%s8] sm:$0x1]
      %925 = vadd.xlane.f32.xlu0 %v922
      %v926 = vpop.xlane.xlu0 %925
      %v927 = vrcp.pop 128.0
      %v928 = vmul.f32 %v926, %v927
      %v929 = vsub.f32 %v922, %v928
      %v930 = vmul.f32 %v929, %v929
      %931 = vadd.xlane.f32.xlu0 %v930
      %v932 = vpop.xlane.xlu0 %931
      %v933 = vmul.f32 %v932, %v927
      %v934 = vadd.f32 %v933, 1e-05
      %v935 = vrsqrt.pop %v934
      %v936 = vmul.f32 %v929, %v935
      %v938 = vlaneseq
      %v939 = vshrl.u32 %v938, 7
      %v940 = vsub.s32 0, %v939
      %v941 = vrot.slane %v923, %v940
      %v943 = vmul.f32 %v936, %v941
      %v945 = vlaneseq
      %v946 = vshrl.u32 %v945, 7
      %v947 = vsub.s32 0, %v946
      %v948 = vrot.slane %v924, %v947
      %v950 = vadd.f32 %v943, %v948
      %951 = vst [vmem:[%s398] sm:$0xff] %v950
      %p952 = scmp.lt.s32.totalorder %s20, 1
      %s953 = scalar_select %p952, %s20, 1
      %s954 = smul.addr %s953, 8
      %s955 = scalar_lea.vmem %s9, %s954
      // Predicated region
      $region57: #{transformer_forward.28} parent=55 // pred_check
        %p956 = pneg %p252
      $region58: #{transformer_forward.28} parent=55 // pred_check_branch
        %958 = sbr.rel (%p956) target = $region60
      $region59: #{transformer_forward.28} parent=55 // pred_region
        _
      $region60: #{transformer_forward.28} parent=55 // pred_fallthru
        _
    $region56: #{transformer_forward.28} parent=5 // pred_fallthru
      _
    %p959 = scmp.le.s32.totalorder 2, %s15
    // Predicated region
    $region61: #{transformer_forward.28} parent=5 // pred_check
      %p960 = pneg %p959
    $region62: #{transformer_forward.28} parent=5 // pred_check_branch
      %962 = sbr.rel (%p960) target = $region64
    $region63: #{transformer_forward.28} parent=5 // pred_region
      %s963 = ssub.s32 %s15, 2
      // Predicated region
      $region65: #{transformer_forward.28} parent=63 // pred_check
        %p964 = pneg %p258
      $region66: #{transformer_forward.28} parent=63 // pred_check_branch
        %966 = sbr.rel (%p964) target = $region68
      $region67: #{transformer_forward.28} parent=63 // pred_region
        %p967 = scmp.lt.s32.totalorder %s21, 1
        %s968 = scalar_select %p967, %s21, 1
        %s969 = smul.addr %s968, 8
        %s970 = scalar_lea.vmem %s9, %s969
      $region68: #{transformer_forward.28} parent=63 // pred_fallthru
        _
    $region64: #{transformer_forward.28} parent=5 // pred_fallthru
      _
  $region6: #{transformer_forward.28} parent=0 // loop_footer
    %s19 = sadd.s32 1, %s15
  $region7: #{transformer_forward.28} parent=0 // loop_footer_branch
    %14 = sbr.rel target = $region3
  $region8: #{transformer_forward.28} parent=0 // loop_exit
    _

// kernel: transformer_forward.29
$region0: #{transformer_forward.29}
  #allocation0 [shape = 'u32[]', space=smem, size = 0x4, offset = 0x4, fixed_abs, tag = 'smem constant byte address 0x4 - core index']
  #allocation1 [shape = 'u32[144,128]{1,0:T(1,128)}', space=vmem, size = 0x12000, scoped, tag = 'internal scratch']
  #allocation2 [shape = 'f32[16,128]{1,0:T(8,128)}', space=vmem, size = 0x2000, scoped, tag = 'scratch operand']
  %s0 = inlined_call_operand.vmem [shape: f32[16,128], index: 0, kind: input, shape index: {}, may-alias: {0,5}]
  %s1 = inlined_call_operand.vmem [shape: f32[128,128], index: 1, kind: input, shape index: {}]
  %s2 = inlined_call_operand.vmem [shape: f32[1,128], index: 2, kind: input, shape index: {}]
  %s3 = inlined_call_operand.vmem [shape: f32[128,128], index: 3, kind: input, shape index: {}]
  %s4 = inlined_call_operand.vmem [shape: f32[1,128], index: 4, kind: input, shape index: {}]
  %s5 = inlined_call_operand.vmem [shape: f32[16,128], index: 5, kind: input, shape index: {}, may-alias: {0,5}]
  %s6 = inlined_call_operand.vmem [shape: f32[1,128], index: 6, kind: input, shape index: {}]
  %s7 = inlined_call_operand.vmem [shape: f32[1,128], index: 7, kind: input, shape index: {}]
  %s8 = inlined_call_operand.vmem [shape: f32[16,128], index: 8, kind: output, shape index: {}]
  %s9 = sld [smem:[#allocation0]]
  $region50: #{transformer_forward.29} parent=0
    _
  %s11 = ssub.s32 1, %s9
  %s12 = scalar_select 0, %s11, %s9
  // Predicated region
  $region2: #{transformer_forward.29} parent=0 // pred_check
    _
  $region3: #{transformer_forward.29} parent=0 // pred_check_branch
    %14 = sbr.rel (0) target = $region5
  $region4: #{transformer_forward.29} parent=0 // pred_region
    _
  $region5: #{transformer_forward.29} parent=0 // pred_fallthru
    _
  // Predicated region
  $region6: #{transformer_forward.29} parent=0 // pred_check
    _
  $region7: #{transformer_forward.29} parent=0 // pred_check_branch
    %16 = sbr.rel (0) target = $region9
  $region8: #{transformer_forward.29} parent=0 // pred_region
    _
  $region9: #{transformer_forward.29} parent=0 // pred_fallthru
    _
  // Predicated region
  $region10: #{transformer_forward.29} parent=0 // pred_check
    _
  $region11: #{transformer_forward.29} parent=0 // pred_check_branch
    %18 = sbr.rel (0) target = $region13
  $region12: #{transformer_forward.29} parent=0 // pred_region
    _
  $region13: #{transformer_forward.29} parent=0 // pred_fallthru
    _
  // Predicated region
  $region14: #{transformer_forward.29} parent=0 // pred_check
    _
  $region15: #{transformer_forward.29} parent=0 // pred_check_branch
    %20 = sbr.rel (0) target = $region17
  $region16: #{transformer_forward.29} parent=0 // pred_region
    _
  $region17: #{transformer_forward.29} parent=0 // pred_fallthru
    _
  // Predicated region
  $region18: #{transformer_forward.29} parent=0 // pred_check
    _
  $region19: #{transformer_forward.29} parent=0 // pred_check_branch
    %22 = sbr.rel (0) target = $region21
  $region20: #{transformer_forward.29} parent=0 // pred_region
    _
  $region21: #{transformer_forward.29} parent=0 // pred_fallthru
    _
  // Predicated region
  $region22: #{transformer_forward.29} parent=0 // pred_check
    _
  $region23: #{transformer_forward.29} parent=0 // pred_check_branch
    %24 = sbr.rel (0) target = $region25
  $region24: #{transformer_forward.29} parent=0 // pred_region
    _
  $region25: #{transformer_forward.29} parent=0 // pred_fallthru
    _
  // Predicated region
  $region26: #{transformer_forward.29} parent=0 // pred_check
    _
  $region27: #{transformer_forward.29} parent=0 // pred_check_branch
    %26 = sbr.rel (0) target = $region29
  $region28: #{transformer_forward.29} parent=0 // pred_region
    _
  $region29: #{transformer_forward.29} parent=0 // pred_fallthru
    _
  // Predicated region
  $region30: #{transformer_forward.29} parent=0 // pred_check
    _
  $region31: #{transformer_forward.29} parent=0 // pred_check_branch
    %28 = sbr.rel (0) target = $region33
  $region32: #{transformer_forward.29} parent=0 // pred_region
    _
  $region33: #{transformer_forward.29} parent=0 // pred_fallthru
    _
  %p29 = scmp.eq.s32.totalorder 0, 0
  // Predicated region
  $region34: #{transformer_forward.29} parent=0 // pred_check
    %p30 = pneg %p29
  $region35: #{transformer_forward.29} parent=0 // pred_check_branch
    %32 = sbr.rel (%p30) target = $region37
  $region36: #{transformer_forward.29} parent=0 // pred_region
    %33 = vst [vmem:[#allocation2] sm:$0xff] 0.0
    %34 = vst [vmem:[#allocation2 + $0x8] sm:$0xff] 0.0
  $region37: #{transformer_forward.29} parent=0 // pred_fallthru
    _
  %v35 = vld [vmem:[%s0] sm:$0xff]
  %v36 = vld [vmem:[%s0 + $0x8] sm:$0xff]
  %v37 = vld [vmem:[%s1] sm:$0xff]
  %v38 = vld [vmem:[%s1 + $0x8] sm:$0xff]
  %v39 = vld [vmem:[%s1 + $0x10] sm:$0xff]
  %v40 = vld [vmem:[%s1 + $0x18] sm:$0xff]
  %v41 = vld [vmem:[%s1 + $0x20] sm:$0xff]
  %v42 = vld [vmem:[%s1 + $0x28] sm:$0xff]
  %v43 = vld [vmem:[%s1 + $0x30] sm:$0xff]
  %v44 = vld [vmem:[%s1 + $0x38] sm:$0xff]
  %v45 = vld [vmem:[%s1 + $0x40] sm:$0xff]
  %v46 = vld [vmem:[%s1 + $0x48] sm:$0xff]
  %v47 = vld [vmem:[%s1 + $0x50] sm:$0xff]
  %v48 = vld [vmem:[%s1 + $0x58] sm:$0xff]
  %v49 = vld [vmem:[%s1 + $0x60] sm:$0xff]
  %v50 = vld [vmem:[%s1 + $0x68] sm:$0xff]
  %v51 = vld [vmem:[%s1 + $0x70] sm:$0xff]
  %v52 = vld [vmem:[%s1 + $0x78] sm:$0xff]
  %v53 = vld [vmem:[%s2] sm:$0x1]
  %v55 = vlaneseq
  %v56 = vshrl.u32 %v55, 7
  %v57 = vsub.s32 0, %v56
  %v58 = vrot.slane %v53, %v57
  %60 = vmatprep.subr.mxu0 0.0
  %61 = vmatpush1.msra.mxu0 %v37
  %62 = vmatprep.subr.mxu0 0.0
  %63 = vmatpush1.msra.mxu0 %v38
  %64 = vmatprep.subr.mxu0 0.0
  %65 = vmatpush1.msra.mxu0 %v39
  %66 = vmatprep.subr.mxu0 0.0
  %67 = vmatpush1.msra.mxu0 %v40
  %68 = vmatprep.subr.mxu0 0.0
  %69 = vmatpush1.msra.mxu0 %v41
  %70 = vmatprep.subr.mxu0 0.0
  %71 = vmatpush1.msra.mxu0 %v42
  %72 = vmatprep.subr.mxu0 0.0
  %73 = vmatpush1.msra.mxu0 %v43
  %74 = vmatprep.subr.mxu0 0.0
  %75 = vmatpush1.msra.mxu0 %v44
  %76 = vmatprep.subr.mxu0 0.0
  %77 = vmatpush1.msra.mxu0 %v45
  %78 = vmatprep.subr.mxu0 0.0
  %79 = vmatpush1.msra.mxu0 %v46
  %80 = vmatprep.subr.mxu0 0.0
  %81 = vmatpush1.msra.mxu0 %v47
  %82 = vmatprep.subr.mxu0 0.0
  %83 = vmatpush1.msra.mxu0 %v48
  %84 = vmatprep.subr.mxu0 0.0
  %85 = vmatpush1.msra.mxu0 %v49
  %86 = vmatprep.subr.mxu0 0.0
  %87 = vmatpush1.msra.mxu0 %v50
  %88 = vmatprep.subr.mxu0 0.0
  %89 = vmatpush1.msra.mxu0 %v51
  %90 = vmatprep.subr.mxu0 0.0
  %91 = vmatpush1.msra.mxu0 %v52
  %92 = vmatprep.subr.mxu0 0.0
  %93 = vmatpush1.msra.mxu0 0.0
  %94 = vmatprep.subr.mxu0 0.0
  %95 = vmatpush1.msra.mxu0 0.0
  %96 = vmatprep.subr.mxu0 0.0
  %97 = vmatpush1.msra.mxu0 0.0
  %98 = vmatprep.subr.mxu0 0.0
  %99 = vmatpush1.msra.mxu0 0.0
  %100 = vmatprep.subr.mxu0 0.0
  %101 = vmatpush1.msra.mxu0 0.0
  %102 = vmatprep.subr.mxu0 0.0
  %103 = vmatpush1.msra.mxu0 0.0
  %104 = vmatprep.subr.mxu0 0.0
  %105 = vmatpush1.msra.mxu0 0.0
  %106 = vmatprep.subr.mxu0 0.0
  %107 = vmatpush1.msra.mxu0 0.0
  %108 = vmatprep.subr.mxu0 0.0
  %109 = vmatpush1.msra.mxu0 0.0
  %110 = vmatprep.subr.mxu0 0.0
  %111 = vmatpush1.msra.mxu0 0.0
  %112 = vmatprep.subr.mxu0 0.0
  %113 = vmatpush1.msra.mxu0 0.0
  %114 = vmatprep.subr.mxu0 0.0
  %115 = vmatpush1.msra.mxu0 0.0
  %116 = vmatprep.subr.mxu0 0.0
  %117 = vmatpush1.msra.mxu0 0.0
  %118 = vmatprep.subr.mxu0 0.0
  %119 = vmatpush1.msra.mxu0 0.0
  %120 = vmatprep.subr.mxu0 0.0
  %121 = vmatpush1.msra.mxu0 0.0
  %122 = vmatprep.subr.mxu0 0.0
  %123 = vmatpush1.msra.mxu0 0.0
  %124 = vmatprep.mubr.f32.mxu0 0.0
  %125 = vmatmul.mubr.f32.gmra.mrb[0].mxu0 %v35
  %v126 = vpop.f32.mrb[0].mxu0
  %v127 = vadd.f32 %v58, %v126
  %v128 = vpop.f32.mrb[0].mxu0
  %129 = vmatprep.mubr.f32.mxu0 0.0
  %130 = vmatmul.mubr.f32.gmra.mrb[0].mxu0 %v36
  %v131 = vpop.f32.mrb[0].mxu0
  %v132 = vadd.f32 %v58, %v131
  %v133 = vpop.f32.mrb[0].mxu0
  %134 = vdwg.mxu0
  %v135 = vmax.f32 %v127, 0.0
  %v136 = vmax.f32 %v132, 0.0
  %v137 = vld [vmem:[#allocation2] sm:$0xff]
  %v138 = vld [vmem:[#allocation2 + $0x8] sm:$0xff]
  %v139 = vld [vmem:[%s3] sm:$0xff]
  %v140 = vld [vmem:[%s3 + $0x8] sm:$0xff]
  %v141 = vld [vmem:[%s3 + $0x10] sm:$0xff]
  %v142 = vld [vmem:[%s3 + $0x18] sm:$0xff]
  %v143 = vld [vmem:[%s3 + $0x20] sm:$0xff]
  %v144 = vld [vmem:[%s3 + $0x28] sm:$0xff]
  %v145 = vld [vmem:[%s3 + $0x30] sm:$0xff]
  %v146 = vld [vmem:[%s3 + $0x38] sm:$0xff]
  %v147 = vld [vmem:[%s3 + $0x40] sm:$0xff]
  %v148 = vld [vmem:[%s3 + $0x48] sm:$0xff]
  %v149 = vld [vmem:[%s3 + $0x50] sm:$0xff]
  %v150 = vld [vmem:[%s3 + $0x58] sm:$0xff]
  %v151 = vld [vmem:[%s3 + $0x60] sm:$0xff]
  %v152 = vld [vmem:[%s3 + $0x68] sm:$0xff]
  %v153 = vld [vmem:[%s3 + $0x70] sm:$0xff]
  %v154 = vld [vmem:[%s3 + $0x78] sm:$0xff]
  %155 = vmatprep.subr.mxu0 0.0
  %156 = vmatpush1.msra.mxu0 %v139
  %157 = vmatprep.subr.mxu0 0.0
  %158 = vmatpush1.msra.mxu0 %v140
  %159 = vmatprep.subr.mxu0 0.0
  %160 = vmatpush1.msra.mxu0 %v141
  %161 = vmatprep.subr.mxu0 0.0
  %162 = vmatpush1.msra.mxu0 %v142
  %163 = vmatprep.subr.mxu0 0.0
  %164 = vmatpush1.msra.mxu0 %v143
  %165 = vmatprep.subr.mxu0 0.0
  %166 = vmatpush1.msra.mxu0 %v144
  %167 = vmatprep.subr.mxu0 0.0
  %168 = vmatpush1.msra.mxu0 %v145
  %169 = vmatprep.subr.mxu0 0.0
  %170 = vmatpush1.msra.mxu0 %v146
  %171 = vmatprep.subr.mxu0 0.0
  %172 = vmatpush1.msra.mxu0 %v147
  %173 = vmatprep.subr.mxu0 0.0
  %174 = vmatpush1.msra.mxu0 %v148
  %175 = vmatprep.subr.mxu0 0.0
  %176 = vmatpush1.msra.mxu0 %v149
  %177 = vmatprep.subr.mxu0 0.0
  %178 = vmatpush1.msra.mxu0 %v150
  %179 = vmatprep.subr.mxu0 0.0
  %180 = vmatpush1.msra.mxu0 %v151
  %181 = vmatprep.subr.mxu0 0.0
  %182 = vmatpush1.msra.mxu0 %v152
  %183 = vmatprep.subr.mxu0 0.0
  %184 = vmatpush1.msra.mxu0 %v153
  %185 = vmatprep.subr.mxu0 0.0
  %186 = vmatpush1.msra.mxu0 %v154
  %187 = vmatprep.subr.mxu0 0.0
  %188 = vmatpush1.msra.mxu0 0.0
  %189 = vmatprep.subr.mxu0 0.0
  %190 = vmatpush1.msra.mxu0 0.0
  %191 = vmatprep.subr.mxu0 0.0
  %192 = vmatpush1.msra.mxu0 0.0
  %193 = vmatprep.subr.mxu0 0.0
  %194 = vmatpush1.msra.mxu0 0.0
  %195 = vmatprep.subr.mxu0 0.0
  %196 = vmatpush1.msra.mxu0 0.0
  %197 = vmatprep.subr.mxu0 0.0
  %198 = vmatpush1.msra.mxu0 0.0
  %199 = vmatprep.subr.mxu0 0.0
  %200 = vmatpush1.msra.mxu0 0.0
  %201 = vmatprep.subr.mxu0 0.0
  %202 = vmatpush1.msra.mxu0 0.0
  %203 = vmatprep.subr.mxu0 0.0
  %204 = vmatpush1.msra.mxu0 0.0
  %205 = vmatprep.subr.mxu0 0.0
  %206 = vmatpush1.msra.mxu0 0.0
  %207 = vmatprep.subr.mxu0 0.0
  %208 = vmatpush1.msra.mxu0 0.0
  %209 = vmatprep.subr.mxu0 0.0
  %210 = vmatpush1.msra.mxu0 0.0
  %211 = vmatprep.subr.mxu0 0.0
  %212 = vmatpush1.msra.mxu0 0.0
  %213 = vmatprep.subr.mxu0 0.0
  %214 = vmatpush1.msra.mxu0 0.0
  %215 = vmatprep.subr.mxu0 0.0
  %216 = vmatpush1.msra.mxu0 0.0
  %217 = vmatprep.subr.mxu0 0.0
  %218 = vmatpush1.msra.mxu0 0.0
  %219 = vmatprep.mubr.f32.mxu0 0.0
  %220 = vmatmul.mubr.f32.gmra.mrb[0].mxu0 %v135
  %v221 = vpop.f32.mrb[0].mxu0
  %v222 = vadd.f32 0.0, %v221
  %v223 = vpop.f32.mrb[0].mxu0
  %224 = vmatprep.mubr.f32.mxu0 0.0
  %225 = vmatmul.mubr.f32.gmra.mrb[0].mxu0 %v136
  %v226 = vpop.f32.mrb[0].mxu0
  %v227 = vadd.f32 0.0, %v226
  %v228 = vpop.f32.mrb[0].mxu0
  %229 = vdwg.mxu0
  %v230 = vadd.f32 %v137, %v222
  %v231 = vadd.f32 %v138, %v227
  %232 = vst [vmem:[#allocation2] sm:$0xff] %v230
  %233 = vst [vmem:[#allocation2 + $0x8] sm:$0xff] %v231
  // Predicated region
  $region38: #{transformer_forward.29} parent=0 // pred_check
    %p234 = pneg %p29
  $region39: #{transformer_forward.29} parent=0 // pred_check_branch
    %236 = sbr.rel (%p234) target = $region41
  $region40: #{transformer_forward.29} parent=0 // pred_region
    %v237 = vld [vmem:[%s5] sm:$0xff]
    %v238 = vld [vmem:[%s5 + $0x8] sm:$0xff]
    %v239 = vld [vmem:[#allocation2] sm:$0xff]
    %v240 = vld [vmem:[#allocation2 + $0x8] sm:$0xff]
    %v241 = vadd.f32 %v237, %v239
    %v242 = vadd.f32 %v238, %v240
    %v243 = vld [vmem:[%s4] sm:$0x1]
    %v245 = vlaneseq
    %v246 = vshrl.u32 %v245, 7
    %v247 = vsub.s32 0, %v246
    %v248 = vrot.slane %v243, %v247
    %v250 = vadd.f32 %v241, %v248
    %v251 = vadd.f32 %v242, %v248
    %v252 = vld [vmem:[%s6] sm:$0x1]
    %v253 = vld [vmem:[%s7] sm:$0x1]
    %254 = vadd.xlane.f32.xlu0 %v250
    %v255 = vpop.xlane.xlu0 %254
    %256 = vadd.xlane.f32.xlu0 %v251
    %v257 = vpop.xlane.xlu0 %256
    %v258 = vrcp.pop 128.0
    %v259 = vmul.f32 %v255, %v258
    %v260 = vmul.f32 %v257, %v258
    %v261 = vsub.f32 %v250, %v259
    %v262 = vsub.f32 %v251, %v260
    %v263 = vmul.f32 %v261, %v261
    %v264 = vmul.f32 %v262, %v262
    %265 = vadd.xlane.f32.xlu0 %v263
    %v266 = vpop.xlane.xlu0 %265
    %267 = vadd.xlane.f32.xlu0 %v264
    %v268 = vpop.xlane.xlu0 %267
    %v269 = vmul.f32 %v266, %v258
    %v270 = vmul.f32 %v268, %v258
    %v271 = vadd.f32 %v269, 1e-05
    %v272 = vadd.f32 %v270, 1e-05
    %v273 = vrsqrt.pop %v271
    %v274 = vrsqrt.pop %v272
    %v275 = vmul.f32 %v261, %v273
    %v276 = vmul.f32 %v262, %v274
    %v278 = vlaneseq
    %v279 = vshrl.u32 %v278, 7
    %v280 = vsub.s32 0, %v279
    %v281 = vrot.slane %v252, %v280
    %v283 = vmul.f32 %v275, %v281
    %v284 = vmul.f32 %v276, %v281
    %v286 = vlaneseq
    %v287 = vshrl.u32 %v286, 7
    %v288 = vsub.s32 0, %v287
    %v289 = vrot.slane %v253, %v288
    %v291 = vadd.f32 %v283, %v289
    %v292 = vadd.f32 %v284, %v289
    %293 = vst [vmem:[%s8] sm:$0xff] %v291
    %294 = vst [vmem:[%s8 + $0x8] sm:$0xff] %v292
  $region41: #{transformer_forward.29} parent=0 // pred_fallthru
    _
  // Predicated region
  $region42: #{transformer_forward.29} parent=0 // pred_check
    _
  $region43: #{transformer_forward.29} parent=0 // pred_check_branch
    %296 = sbr.rel (0) target = $region45
  $region44: #{transformer_forward.29} parent=0 // pred_region
    _
  $region45: #{transformer_forward.29} parent=0 // pred_fallthru
    _
  // Predicated region
  $region46: #{transformer_forward.29} parent=0 // pred_check
    _
  $region47: #{transformer_forward.29} parent=0 // pred_check_branch
    %298 = sbr.rel (0) target = $region49
  $region48: #{transformer_forward.29} parent=0 // pred_region
    _
  $region49: #{transformer_forward.29} parent=0 // pred_fallthru
    _

// kernel: transformer_forward.35
$region0: #{transformer_forward.35}
  #allocation0 [shape = 'u32[]', space=smem, size = 0x4, offset = 0x4, fixed_abs, tag = 'smem constant byte address 0x4 - core index']
  #allocation1 [shape = 'u32[144,128]{1,0:T(1,128)}', space=vmem, size = 0x12000, scoped, tag = 'internal scratch']
  #allocation2 [shape = 'f32[16,128]{1,0:T(8,128)}', space=vmem, size = 0x2000, scoped, tag = 'scratch operand']
  %s0 = inlined_call_operand.vmem [shape: f32[16,128], index: 0, kind: input, shape index: {}, may-alias: {0,5}]
  %s1 = inlined_call_operand.vmem [shape: f32[128,128], index: 1, kind: input, shape index: {}]
  %s2 = inlined_call_operand.vmem [shape: f32[1,128], index: 2, kind: input, shape index: {}]
  %s3 = inlined_call_operand.vmem [shape: f32[128,128], index: 3, kind: input, shape index: {}]
  %s4 = inlined_call_operand.vmem [shape: f32[1,128], index: 4, kind: input, shape index: {}]
  %s5 = inlined_call_operand.vmem [shape: f32[16,128], index: 5, kind: input, shape index: {}, may-alias: {0,5}]
  %s6 = inlined_call_operand.vmem [shape: f32[1,128], index: 6, kind: input, shape index: {}]
  %s7 = inlined_call_operand.vmem [shape: f32[1,128], index: 7, kind: input, shape index: {}]
  %s8 = inlined_call_operand.hbm [shape: f32[16,128], index: 8, kind: output, shape index: {}]
  %s9 = sld [smem:[#allocation0]]
  $region50: #{transformer_forward.35} parent=0
    _
  %s11 = ssub.s32 1, %s9
  %s12 = scalar_select 0, %s11, %s9
  $region1: #{transformer_forward.35} parent=0
    #allocation3 [shape = 'u8[8192]{0}', space=vmem, size = 0x2000, scoped, tag = 'output window, operand 0, single buffered']
    #allocation4 [shape = 's32[1]{0}', space=sflag, size = 0x4, scoped, tag = 'scoped memory for transformer_forward.35']
    %13 = vsyncpa [#allocation4], 0
    // Predicated region
    $region2: #{transformer_forward.35} parent=1 // pred_check
      _
    $region3: #{transformer_forward.35} parent=1 // pred_check_branch
      %15 = sbr.rel (0) target = $region5
    $region4: #{transformer_forward.35} parent=1 // pred_region
      _
    $region5: #{transformer_forward.35} parent=1 // pred_fallthru
      _
    // Predicated region
    $region6: #{transformer_forward.35} parent=1 // pred_check
      _
    $region7: #{transformer_forward.35} parent=1 // pred_check_branch
      %17 = sbr.rel (0) target = $region9
    $region8: #{transformer_forward.35} parent=1 // pred_region
      _
    $region9: #{transformer_forward.35} parent=1 // pred_fallthru
      _
    // Predicated region
    $region10: #{transformer_forward.35} parent=1 // pred_check
      _
    $region11: #{transformer_forward.35} parent=1 // pred_check_branch
      %19 = sbr.rel (0) target = $region13
    $region12: #{transformer_forward.35} parent=1 // pred_region
      _
    $region13: #{transformer_forward.35} parent=1 // pred_fallthru
      _
    // Predicated region
    $region14: #{transformer_forward.35} parent=1 // pred_check
      _
    $region15: #{transformer_forward.35} parent=1 // pred_check_branch
      %21 = sbr.rel (0) target = $region17
    $region16: #{transformer_forward.35} parent=1 // pred_region
      _
    $region17: #{transformer_forward.35} parent=1 // pred_fallthru
      _
    // Predicated region
    $region18: #{transformer_forward.35} parent=1 // pred_check
      _
    $region19: #{transformer_forward.35} parent=1 // pred_check_branch
      %23 = sbr.rel (0) target = $region21
    $region20: #{transformer_forward.35} parent=1 // pred_region
      _
    $region21: #{transformer_forward.35} parent=1 // pred_fallthru
      _
    // Predicated region
    $region22: #{transformer_forward.35} parent=1 // pred_check
      _
    $region23: #{transformer_forward.35} parent=1 // pred_check_branch
      %25 = sbr.rel (0) target = $region25
    $region24: #{transformer_forward.35} parent=1 // pred_region
      _
    $region25: #{transformer_forward.35} parent=1 // pred_fallthru
      _
    // Predicated region
    $region26: #{transformer_forward.35} parent=1 // pred_check
      _
    $region27: #{transformer_forward.35} parent=1 // pred_check_branch
      %27 = sbr.rel (0) target = $region29
    $region28: #{transformer_forward.35} parent=1 // pred_region
      _
    $region29: #{transformer_forward.35} parent=1 // pred_fallthru
      _
    // Predicated region
    $region30: #{transformer_forward.35} parent=1 // pred_check
      _
    $region31: #{transformer_forward.35} parent=1 // pred_check_branch
      %29 = sbr.rel (0) target = $region33
    $region32: #{transformer_forward.35} parent=1 // pred_region
      _
    $region33: #{transformer_forward.35} parent=1 // pred_fallthru
      _
    %p30 = scmp.eq.s32.totalorder 0, 0
    // Predicated region
    $region34: #{transformer_forward.35} parent=1 // pred_check
      %p31 = pneg %p30
    $region35: #{transformer_forward.35} parent=1 // pred_check_branch
      %33 = sbr.rel (%p31) target = $region37
    $region36: #{transformer_forward.35} parent=1 // pred_region
      %34 = vst [vmem:[#allocation2] sm:$0xff] 0.0
      %35 = vst [vmem:[#allocation2 + $0x8] sm:$0xff] 0.0
    $region37: #{transformer_forward.35} parent=1 // pred_fallthru
      _
    %v36 = vld [vmem:[%s0] sm:$0xff]
    %v37 = vld [vmem:[%s0 + $0x8] sm:$0xff]
    %v38 = vld [vmem:[%s1] sm:$0xff]
    %v39 = vld [vmem:[%s1 + $0x8] sm:$0xff]
    %v40 = vld [vmem:[%s1 + $0x10] sm:$0xff]
    %v41 = vld [vmem:[%s1 + $0x18] sm:$0xff]
    %v42 = vld [vmem:[%s1 + $0x20] sm:$0xff]
    %v43 = vld [vmem:[%s1 + $0x28] sm:$0xff]
    %v44 = vld [vmem:[%s1 + $0x30] sm:$0xff]
    %v45 = vld [vmem:[%s1 + $0x38] sm:$0xff]
    %v46 = vld [vmem:[%s1 + $0x40] sm:$0xff]
    %v47 = vld [vmem:[%s1 + $0x48] sm:$0xff]
    %v48 = vld [vmem:[%s1 + $0x50] sm:$0xff]
    %v49 = vld [vmem:[%s1 + $0x58] sm:$0xff]
    %v50 = vld [vmem:[%s1 + $0x60] sm:$0xff]
    %v51 = vld [vmem:[%s1 + $0x68] sm:$0xff]
    %v52 = vld [vmem:[%s1 + $0x70] sm:$0xff]
    %v53 = vld [vmem:[%s1 + $0x78] sm:$0xff]
    %v54 = vld [vmem:[%s2] sm:$0x1]
    %v56 = vlaneseq
    %v57 = vshrl.u32 %v56, 7
    %v58 = vsub.s32 0, %v57
    %v59 = vrot.slane %v54, %v58
    %61 = vmatprep.subr.mxu0 0.0
    %62 = vmatpush1.msra.mxu0 %v38
    %63 = vmatprep.subr.mxu0 0.0
    %64 = vmatpush1.msra.mxu0 %v39
    %65 = vmatprep.subr.mxu0 0.0
    %66 = vmatpush1.msra.mxu0 %v40
    %67 = vmatprep.subr.mxu0 0.0
    %68 = vmatpush1.msra.mxu0 %v41
    %69 = vmatprep.subr.mxu0 0.0
    %70 = vmatpush1.msra.mxu0 %v42
    %71 = vmatprep.subr.mxu0 0.0
    %72 = vmatpush1.msra.mxu0 %v43
    %73 = vmatprep.subr.mxu0 0.0
    %74 = vmatpush1.msra.mxu0 %v44
    %75 = vmatprep.subr.mxu0 0.0
    %76 = vmatpush1.msra.mxu0 %v45
    %77 = vmatprep.subr.mxu0 0.0
    %78 = vmatpush1.msra.mxu0 %v46
    %79 = vmatprep.subr.mxu0 0.0
    %80 = vmatpush1.msra.mxu0 %v47
    %81 = vmatprep.subr.mxu0 0.0
    %82 = vmatpush1.msra.mxu0 %v48
    %83 = vmatprep.subr.mxu0 0.0
    %84 = vmatpush1.msra.mxu0 %v49
    %85 = vmatprep.subr.mxu0 0.0
    %86 = vmatpush1.msra.mxu0 %v50
    %87 = vmatprep.subr.mxu0 0.0
    %88 = vmatpush1.msra.mxu0 %v51
    %89 = vmatprep.subr.mxu0 0.0
    %90 = vmatpush1.msra.mxu0 %v52
    %91 = vmatprep.subr.mxu0 0.0
    %92 = vmatpush1.msra.mxu0 %v53
    %93 = vmatprep.subr.mxu0 0.0
    %94 = vmatpush1.msra.mxu0 0.0
    %95 = vmatprep.subr.mxu0 0.0
    %96 = vmatpush1.msra.mxu0 0.0
    %97 = vmatprep.subr.mxu0 0.0
    %98 = vmatpush1.msra.mxu0 0.0
    %99 = vmatprep.subr.mxu0 0.0
    %100 = vmatpush1.msra.mxu0 0.0
    %101 = vmatprep.subr.mxu0 0.0
    %102 = vmatpush1.msra.mxu0 0.0
    %103 = vmatprep.subr.mxu0 0.0
    %104 = vmatpush1.msra.mxu0 0.0
    %105 = vmatprep.subr.mxu0 0.0
    %106 = vmatpush1.msra.mxu0 0.0
    %107 = vmatprep.subr.mxu0 0.0
    %108 = vmatpush1.msra.mxu0 0.0
    %109 = vmatprep.subr.mxu0 0.0
    %110 = vmatpush1.msra.mxu0 0.0
    %111 = vmatprep.subr.mxu0 0.0
    %112 = vmatpush1.msra.mxu0 0.0
    %113 = vmatprep.subr.mxu0 0.0
    %114 = vmatpush1.msra.mxu0 0.0
    %115 = vmatprep.subr.mxu0 0.0
    %116 = vmatpush1.msra.mxu0 0.0
    %117 = vmatprep.subr.mxu0 0.0
    %118 = vmatpush1.msra.mxu0 0.0
    %119 = vmatprep.subr.mxu0 0.0
    %120 = vmatpush1.msra.mxu0 0.0
    %121 = vmatprep.subr.mxu0 0.0
    %122 = vmatpush1.msra.mxu0 0.0
    %123 = vmatprep.subr.mxu0 0.0
    %124 = vmatpush1.msra.mxu0 0.0
    %125 = vmatprep.mubr.f32.mxu0 0.0
    %126 = vmatmul.mubr.f32.gmra.mrb[0].mxu0 %v36
    %v127 = vpop.f32.mrb[0].mxu0
    %v128 = vadd.f32 %v59, %v127
    %v129 = vpop.f32.mrb[0].mxu0
    %130 = vmatprep.mubr.f32.mxu0 0.0
    %131 = vmatmul.mubr.f32.gmra.mrb[0].mxu0 %v37
    %v132 = vpop.f32.mrb[0].mxu0
    %v133 = vadd.f32 %v59, %v132
    %v134 = vpop.f32.mrb[0].mxu0
    %135 = vdwg.mxu0
    %v136 = vmax.f32 %v128, 0.0
    %v137 = vmax.f32 %v133, 0.0
    %v138 = vld [vmem:[#allocation2] sm:$0xff]
    %v139 = vld [vmem:[#allocation2 + $0x8] sm:$0xff]
    %v140 = vld [vmem:[%s3] sm:$0xff]
    %v141 = vld [vmem:[%s3 + $0x8] sm:$0xff]
    %v142 = vld [vmem:[%s3 + $0x10] sm:$0xff]
    %v143 = vld [vmem:[%s3 + $0x18] sm:$0xff]
    %v144 = vld [vmem:[%s3 + $0x20] sm:$0xff]
    %v145 = vld [vmem:[%s3 + $0x28] sm:$0xff]
    %v146 = vld [vmem:[%s3 + $0x30] sm:$0xff]
    %v147 = vld [vmem:[%s3 + $0x38] sm:$0xff]
    %v148 = vld [vmem:[%s3 + $0x40] sm:$0xff]
    %v149 = vld [vmem:[%s3 + $0x48] sm:$0xff]
    %v150 = vld [vmem:[%s3 + $0x50] sm:$0xff]
    %v151 = vld [vmem:[%s3 + $0x58] sm:$0xff]
    %v152 = vld [vmem:[%s3 + $0x60] sm:$0xff]
    %v153 = vld [vmem:[%s3 + $0x68] sm:$0xff]
    %v154 = vld [vmem:[%s3 + $0x70] sm:$0xff]
    %v155 = vld [vmem:[%s3 + $0x78] sm:$0xff]
    %156 = vmatprep.subr.mxu0 0.0
    %157 = vmatpush1.msra.mxu0 %v140
    %158 = vmatprep.subr.mxu0 0.0
    %159 = vmatpush1.msra.mxu0 %v141
    %160 = vmatprep.subr.mxu0 0.0
    %161 = vmatpush1.msra.mxu0 %v142
    %162 = vmatprep.subr.mxu0 0.0
    %163 = vmatpush1.msra.mxu0 %v143
    %164 = vmatprep.subr.mxu0 0.0
    %165 = vmatpush1.msra.mxu0 %v144
    %166 = vmatprep.subr.mxu0 0.0
    %167 = vmatpush1.msra.mxu0 %v145
    %168 = vmatprep.subr.mxu0 0.0
    %169 = vmatpush1.msra.mxu0 %v146
    %170 = vmatprep.subr.mxu0 0.0
    %171 = vmatpush1.msra.mxu0 %v147
    %172 = vmatprep.subr.mxu0 0.0
    %173 = vmatpush1.msra.mxu0 %v148
    %174 = vmatprep.subr.mxu0 0.0
    %175 = vmatpush1.msra.mxu0 %v149
    %176 = vmatprep.subr.mxu0 0.0
    %177 = vmatpush1.msra.mxu0 %v150
    %178 = vmatprep.subr.mxu0 0.0
    %179 = vmatpush1.msra.mxu0 %v151
    %180 = vmatprep.subr.mxu0 0.0
    %181 = vmatpush1.msra.mxu0 %v152
    %182 = vmatprep.subr.mxu0 0.0
    %183 = vmatpush1.msra.mxu0 %v153
    %184 = vmatprep.subr.mxu0 0.0
    %185 = vmatpush1.msra.mxu0 %v154
    %186 = vmatprep.subr.mxu0 0.0
    %187 = vmatpush1.msra.mxu0 %v155
    %188 = vmatprep.subr.mxu0 0.0
    %189 = vmatpush1.msra.mxu0 0.0
    %190 = vmatprep.subr.mxu0 0.0
    %191 = vmatpush1.msra.mxu0 0.0
    %192 = vmatprep.subr.mxu0 0.0
    %193 = vmatpush1.msra.mxu0 0.0
    %194 = vmatprep.subr.mxu0 0.0
    %195 = vmatpush1.msra.mxu0 0.0
    %196 = vmatprep.subr.mxu0 0.0
    %197 = vmatpush1.msra.mxu0 0.0
    %198 = vmatprep.subr.mxu0 0.0
    %199 = vmatpush1.msra.mxu0 0.0
    %200 = vmatprep.subr.mxu0 0.0
    %201 = vmatpush1.msra.mxu0 0.0
    %202 = vmatprep.subr.mxu0 0.0
    %203 = vmatpush1.msra.mxu0 0.0
    %204 = vmatprep.subr.mxu0 0.0
    %205 = vmatpush1.msra.mxu0 0.0
    %206 = vmatprep.subr.mxu0 0.0
    %207 = vmatpush1.msra.mxu0 0.0
    %208 = vmatprep.subr.mxu0 0.0
    %209 = vmatpush1.msra.mxu0 0.0
    %210 = vmatprep.subr.mxu0 0.0
    %211 = vmatpush1.msra.mxu0 0.0
    %212 = vmatprep.subr.mxu0 0.0
    %213 = vmatpush1.msra.mxu0 0.0
    %214 = vmatprep.subr.mxu0 0.0
    %215 = vmatpush1.msra.mxu0 0.0
    %216 = vmatprep.subr.mxu0 0.0
    %217 = vmatpush1.msra.mxu0 0.0
    %218 = vmatprep.subr.mxu0 0.0
    %219 = vmatpush1.msra.mxu0 0.0
    %220 = vmatprep.mubr.f32.mxu0 0.0
    %221 = vmatmul.mubr.f32.gmra.mrb[0].mxu0 %v136
    %v222 = vpop.f32.mrb[0].mxu0
    %v223 = vadd.f32 0.0, %v222
    %v224 = vpop.f32.mrb[0].mxu0
    %225 = vmatprep.mubr.f32.mxu0 0.0
    %226 = vmatmul.mubr.f32.gmra.mrb[0].mxu0 %v137
    %v227 = vpop.f32.mrb[0].mxu0
    %v228 = vadd.f32 0.0, %v227
    %v229 = vpop.f32.mrb[0].mxu0
    %230 = vdwg.mxu0
    %v231 = vadd.f32 %v138, %v223
    %v232 = vadd.f32 %v139, %v228
    %233 = vst [vmem:[#allocation2] sm:$0xff] %v231
    %234 = vst [vmem:[#allocation2 + $0x8] sm:$0xff] %v232
    // Predicated region
    $region38: #{transformer_forward.35} parent=1 // pred_check
      %p235 = pneg %p30
    $region39: #{transformer_forward.35} parent=1 // pred_check_branch
      %237 = sbr.rel (%p235) target = $region41
    $region40: #{transformer_forward.35} parent=1 // pred_region
      %v238 = vld [vmem:[%s5] sm:$0xff]
      %v239 = vld [vmem:[%s5 + $0x8] sm:$0xff]
      %v240 = vld [vmem:[#allocation2] sm:$0xff]
      %v241 = vld [vmem:[#allocation2 + $0x8] sm:$0xff]
      %v242 = vadd.f32 %v238, %v240
      %v243 = vadd.f32 %v239, %v241
      %v244 = vld [vmem:[%s4] sm:$0x1]
      %v246 = vlaneseq
      %v247 = vshrl.u32 %v246, 7
      %v248 = vsub.s32 0, %v247
      %v249 = vrot.slane %v244, %v248
      %v251 = vadd.f32 %v242, %v249
      %v252 = vadd.f32 %v243, %v249
      %v253 = vld [vmem:[%s6] sm:$0x1]
      %v254 = vld [vmem:[%s7] sm:$0x1]
      %255 = vadd.xlane.f32.xlu0 %v251
      %v256 = vpop.xlane.xlu0 %255
      %257 = vadd.xlane.f32.xlu0 %v252
      %v258 = vpop.xlane.xlu0 %257
      %v259 = vrcp.pop 128.0
      %v260 = vmul.f32 %v256, %v259
      %v261 = vmul.f32 %v258, %v259
      %v262 = vsub.f32 %v251, %v260
      %v263 = vsub.f32 %v252, %v261
      %v264 = vmul.f32 %v262, %v262
      %v265 = vmul.f32 %v263, %v263
      %266 = vadd.xlane.f32.xlu0 %v264
      %v267 = vpop.xlane.xlu0 %266
      %268 = vadd.xlane.f32.xlu0 %v265
      %v269 = vpop.xlane.xlu0 %268
      %v270 = vmul.f32 %v267, %v259
      %v271 = vmul.f32 %v269, %v259
      %v272 = vadd.f32 %v270, 1e-05
      %v273 = vadd.f32 %v271, 1e-05
      %v274 = vrsqrt.pop %v272
      %v275 = vrsqrt.pop %v273
      %v276 = vmul.f32 %v262, %v274
      %v277 = vmul.f32 %v263, %v275
      %v279 = vlaneseq
      %v280 = vshrl.u32 %v279, 7
      %v281 = vsub.s32 0, %v280
      %v282 = vrot.slane %v253, %v281
      %v284 = vmul.f32 %v276, %v282
      %v285 = vmul.f32 %v277, %v282
      %v287 = vlaneseq
      %v288 = vshrl.u32 %v287, 7
      %v289 = vsub.s32 0, %v288
      %v290 = vrot.slane %v254, %v289
      %v292 = vadd.f32 %v284, %v290
      %v293 = vadd.f32 %v285, %v290
      %294 = vst [vmem:[#allocation3] sm:$0xff] %v292
      %295 = vst [vmem:[#allocation3 + $0x8] sm:$0xff] %v293
    $region41: #{transformer_forward.35} parent=1 // pred_fallthru
      _
    // Predicated region
    $region42: #{transformer_forward.35} parent=1 // pred_check
      _
    $region43: #{transformer_forward.35} parent=1 // pred_check_branch
      %297 = sbr.rel (0) target = $region45
    $region44: #{transformer_forward.35} parent=1 // pred_region
      %s299 = ssub.s32 256, 256
      %300 = vsyncadd [#allocation4], %s299
      %s301 = sshll.u32 [#allocation3], 4
      %s302 = int_to_ptr.vmem [resolvable:$true] %s301
      %307 = dma.vmem_to_hbm [thread:$0]  %s302, 256, %s8, [#allocation4], 128, 128, 8
    $region45: #{transformer_forward.35} parent=1 // pred_fallthru
      _
    // Predicated region
    $region46: #{transformer_forward.35} parent=1 // pred_check
      _
    $region47: #{transformer_forward.35} parent=1 // pred_check_branch
      %309 = sbr.rel (0) target = $region49
    $region48: #{transformer_forward.35} parent=1 // pred_region
      %310 = dma.done [#allocation4], 256
    $region49: #{transformer_forward.35} parent=1 // pred_fallthru
      _
    %311 = vsyncpa [#allocation4], 1

</llo_original>
